<compile_context>
chip_gen: v5e
topology: v5e:2x2
jax: 0.10.0
libtpu: 0.0.40
codegen_flags: <defaults>
</compile_context>

<pallas_src>
import functools

import numpy as np
import jax
import jax.numpy as jnp
from jax.experimental import pallas as pl
from jax.experimental.pallas import tpu as pltpu

EPS = 1e-5  # nn.BatchNorm2d default


# ----------------------------------------------------------------------------
# In-kernel helpers
# ----------------------------------------------------------------------------
def _patches3x3(img, row_w, masks):
    """im2col taps for a 3x3 / pad=1 conv on (C, L) lane-flattened images.

    img:   (C, L), L = N * H * W, row-major spatial flattening per sample.
    row_w: W (lane distance between consecutive image rows).
    masks: 4 x (1, L) float masks (not_first_col, not_last_col,
           not_first_row, not_last_row) zeroing values that wrapped across a
           row / sample border, so zero padding is exact.
    All shifts are pltpu.roll lane rotations (XLU slot).
    Returns (9*C, L): tap (ky, kx) occupies rows [(ky*3+kx)*C : (ky*3+kx+1)*C].
    """
    nf_col, nl_col, nf_row, nl_row = masks
    L = img.shape[1]
    left = pltpu.roll(img, 1, 1) * nf_col          # in[y, x-1]
    right = pltpu.roll(img, L - 1, 1) * nl_col     # in[y, x+1]
    cols = (left, img, right)

    taps = []
    for ky in range(3):
        for kx in range(3):
            c = cols[kx]
            if ky == 0:      # in[y-1, .]
                s = pltpu.roll(c, row_w, 1) * nf_row
            elif ky == 2:    # in[y+1, .]
                s = pltpu.roll(c, L - row_w, 1) * nl_row
            else:
                s = c
            taps.append(s)
    return jnp.concatenate(taps, axis=0)           # tile-aligned: C = 8 rows/tap


# ----------------------------------------------------------------------------
# The fused resblock kernel
# ----------------------------------------------------------------------------
def _fused_block_kernel(x_ref, g1_ref, b1_ref, g2_ref, b2_ref, ukT_ref,
                        w1_ref, c1b_ref, wf_ref, bf_ref, mask_ref, o_ref,
                        *, w_up):
    f32 = jnp.float32
    x = x_ref[...]                                           # (cpad, n*hw)

    # --- BN1: one-pass training-mode batch stats per channel ---------------
    mean1 = jnp.mean(x, axis=1, keepdims=True)
    var1 = jnp.mean(x * x, axis=1, keepdims=True) - mean1 * mean1
    a1 = jnp.maximum(
        (x - mean1) * jax.lax.rsqrt(var1 + EPS) * g1_ref[...] + b1_ref[...],
        0.0)                                                 # relu(bn1(x))

    # --- bilinear 2x upsample of both branches (block-diag kron matmul) ----
    ukT = ukT_ref[...]                                       # (n*hw, n*hw4)
    res_up = jnp.dot(a1, ukT, preferred_element_type=f32)    # (cpad, n*hw4)
    sc_up = jnp.dot(x, ukT, preferred_element_type=f32)      # raw-x shortcut

    m = mask_ref[...]
    masks = (m[0:1, :], m[1:2, :], m[2:3, :], m[3:4, :])

    # --- conv1: 3x3 pad=1 via im2col, one MXU matmul (K = 9*cpad) ----------
    patches1 = _patches3x3(res_up, w_up, masks)              # (9*cpad, n*hw4)
    h1 = jnp.dot(w1_ref[...], patches1,
                 preferred_element_type=f32) + c1b_ref[...]  # (ch, n*hw4)

    # --- BN2 (one-pass batch stats) + conditional affine + ReLU ------------
    mean2 = jnp.mean(h1, axis=1, keepdims=True)
    var2 = jnp.mean(h1 * h1, axis=1, keepdims=True) - mean2 * mean2
    a2 = jnp.maximum(
        (h1 - mean2) * jax.lax.rsqrt(var2 + EPS) * g2_ref[...] + b2_ref[...],
        0.0)                                                 # (ch, n*hw4)

    # --- conv2 + 1x1 shortcut + residual add: ONE fused matmul -------------
    patches2 = _patches3x3(a2, w_up, masks)                  # (9*ch, n*hw4)
    xf = jnp.concatenate([patches2, sc_up], axis=0)          # (9*ch+cpad, n*hw4)
    o_ref[...] = jnp.dot(wf_ref[...], xf,
                         preferred_element_type=f32) + bf_ref[...]


# ----------------------------------------------------------------------------
# Wrapper: one pallas_call for the whole resblock
# ----------------------------------------------------------------------------
def _full2d(shape):
    return pl.BlockSpec(shape, lambda i: (0, 0))


def block_generator_forward(x_nchw, y, params, ukT_bd, conv_masks, cpad=8):
    n, cin, h, w = x_nchw.shape
    ch = params["c1_w"].shape[0]
    cout = params["c2_w"].shape[0]
    h2, w2 = 2 * h, 2 * w
    hw, hw4 = h * w, h2 * w2
    f32 = jnp.float32

    # ---- layout prep (tiny, one-time XLA ops outside the kernel) ----------
    x2 = jnp.transpose(x_nchw.astype(f32), (1, 0, 2, 3)).reshape(cin, n * hw)
    x2 = jnp.pad(x2, ((0, cpad - cin), (0, 0)))      # zero channels -> 8 sublanes

    def bcast(v_nc, hw_, c_, pad_to=None, pad_val=0.0):
        # (n, c_) per-sample affine -> lane-dense (c_out, n*hw_)
        vt = v_nc.T.astype(f32)                       # (c_, n)
        if pad_to is not None and pad_to > c_:
            vt = jnp.concatenate(
                [vt, jnp.full((pad_to - c_, n), pad_val, f32)], axis=0)
        c_out = vt.shape[0]
        return jnp.broadcast_to(vt[:, :, None],
                                (c_out, n, hw_)).reshape(c_out, n * hw_)

    g1 = bcast(params["b1_gamma"][y], hw, cin, pad_to=cpad, pad_val=1.0)
    b1 = bcast(params["b1_beta"][y], hw, cin, pad_to=cpad, pad_val=0.0)
    g2 = bcast(params["b2_gamma"][y], hw4, ch)
    b2 = bcast(params["b2_beta"][y], hw4, ch)

    # im2col weight layout: W[o, t*C + i] = W_OIHW[o, i, ky, kx], t = ky*3+kx
    w1p = jnp.pad(params["c1_w"], ((0, 0), (0, cpad - cin), (0, 0), (0, 0)))
    w1m = w1p.transpose(0, 2, 3, 1).reshape(ch, 9 * cpad)
    w2m = params["c2_w"].transpose(0, 2, 3, 1).reshape(cout, 9 * ch)
    wsc = jnp.pad(params["csc_w"][:, :, 0, 0], ((0, 0), (0, cpad - cin)))
    wf = jnp.concatenate([w2m, wsc], axis=1)          # fused conv2 + shortcut
    bf = (params["c2_b"] + params["csc_b"]).reshape(cout, 1)

    kern = functools.partial(_fused_block_kernel, w_up=w2)

    out = pl.pallas_call(
        kern,
        out_shape=jax.ShapeDtypeStruct((cout, n * hw4), f32),
        grid=(1,),
        in_specs=[
            _full2d((cpad, n * hw)),
            _full2d((cpad, n * hw)), _full2d((cpad, n * hw)),
            _full2d((ch, n * hw4)), _full2d((ch, n * hw4)),
            _full2d((n * hw, n * hw4)),
            _full2d((ch, 9 * cpad)), _full2d((ch, 1)),
            _full2d((cout, 9 * ch + cpad)), _full2d((cout, 1)),
            _full2d((4, n * hw4)),
        ],
        out_specs=_full2d((cout, n * hw4)),
        # single grid step: training-mode BN statistics couple the whole batch;
        # splitting across cores needs a two-pass stats scheme (see TODO above).
        compiler_params=pltpu.CompilerParams(dimension_semantics=("arbitrary",)),
    )(x2, g1, b1, g2, b2, ukT_bd,
      w1m, params["c1_b"].reshape(ch, 1), wf, bf, conv_masks)

    # back to NCHW
    return out.reshape(cout, n, h2, w2).transpose(1, 0, 2, 3)


# ----------------------------------------------------------------------------
# Host-side constant construction
# ----------------------------------------------------------------------------
def make_upsample_matrix(size):
    # Bilinear 2x upsample, align_corners=False (F.interpolate default).
    out = np.zeros((2 * size, size), np.float32)
    for i in range(2 * size):
        src = (i + 0.5) / 2.0 - 0.5
        src = max(src, 0.0)
        i0 = int(np.floor(src))
        i1 = min(i0 + 1, size - 1)
        lam = src - i0
        out[i, i0] += 1.0 - lam
        out[i, i1] += lam
    return out


def make_blockdiag_upsample_T(n, h, w):
    """kron(Uh, Uw)^T replicated block-diagonally over the batch so one matmul
    maps (C, n*h*w) -> (C, n*4*h*w) directly in the lane-dense layout."""
    uh = make_upsample_matrix(h)
    uw = make_upsample_matrix(w)
    uk = np.kron(uh, uw)                               # (4*h*w, h*w)
    hw, hw4 = h * w, 4 * h * w
    bd = np.zeros((n * hw, n * hw4), np.float32)
    for s in range(n):
        bd[s * hw:(s + 1) * hw, s * hw4:(s + 1) * hw4] = uk.T
    return jnp.asarray(bd), jnp.asarray(uk)


def make_conv_masks(n, h2, w2):
    # (4, n*h2*w2) float border masks for the in-kernel rolled-tap build.
    L = n * h2 * w2
    p = np.arange(L)
    x = p % w2
    yy = (p // w2) % h2
    m = np.stack([x != 0, x != w2 - 1, yy != 0, yy != h2 - 1], axis=0)
    return jnp.asarray(m.astype(np.float32))


def init_params(key, in_ch, h_ch, out_ch, num_classes):
    ks = jax.random.split(key, 10)
    return {
        "c1_w": jax.random.normal(ks[0], (h_ch, in_ch, 3, 3), jnp.float32) * 0.2,
        "c1_b": jax.random.normal(ks[1], (h_ch,), jnp.float32) * 0.1,
        "c2_w": jax.random.normal(ks[2], (out_ch, h_ch, 3, 3), jnp.float32) * 0.2,
        "c2_b": jax.random.normal(ks[3], (out_ch,), jnp.float32) * 0.1,
        "csc_w": jax.random.normal(ks[4], (out_ch, in_ch, 1, 1), jnp.float32) * 0.2,
        "csc_b": jax.random.normal(ks[5], (out_ch,), jnp.float32) * 0.1,
        # CategoricalConditionalBatchNorm2d._initialize() uses ones/zeros;
        # perturb slightly so the conditional per-class path is actually tested.
        "b1_gamma": 1.0 + 0.1 * jax.random.normal(ks[6], (num_classes, in_ch), jnp.float32),
        "b1_beta": 0.1 * jax.random.normal(ks[7], (num_classes, in_ch), jnp.float32),
        "b2_gamma": 1.0 + 0.1 * jax.random.normal(ks[8], (num_classes, h_ch), jnp.float32),
        "b2_beta": 0.1 * jax.random.normal(ks[9], (num_classes, h_ch), jnp.float32),
    }


# ----------------------------------------------------------------------------
# Pure-JAX reference (NCHW, HIGHEST precision) for verification
# ----------------------------------------------------------------------------
def reference_forward(x_nchw, y, p, u_kron):
    hi = jax.lax.Precision.HIGHEST

    def bn(x, gamma, beta):
        mean = jnp.mean(x, axis=(0, 2, 3), keepdims=True)
        var = jnp.mean((x - mean) ** 2, axis=(0, 2, 3), keepdims=True)
        xn = (x - mean) * jax.lax.rsqrt(var + EPS)
        return gamma[:, :, None, None] * xn + beta[:, :, None, None]

    def up(x):
        n, c, h, w = x.shape
        xf = x.reshape(n, c, h * w)
        yf = jnp.einsum("ps,ncs->ncp", u_kron, xf, precision=hi)
        return yf.reshape(n, c, 2 * h, 2 * w)

    def conv(x, w, b, pad):
        o = jax.lax.conv_general_dilated(
            x, w, (1, 1), [(pad, pad), (pad, pad)],
            dimension_numbers=("NCHW", "OIHW", "NCHW"), precision=hi)
        return o + b[None, :, None, None]

    h = jax.nn.relu(bn(x_nchw, p["b1_gamma"][y], p["b1_beta"][y]))
    h = up(h)
    h = conv(h, p["c1_w"], p["c1_b"], 1)
    h = jax.nn.relu(bn(h, p["b2_gamma"][y], p["b2_beta"][y]))
    h = conv(h, p["c2_w"], p["c2_b"], 1)
    sc = conv(up(x_nchw), p["csc_w"], p["csc_b"], 0)
    return sc + h


# ----------------------------------------------------------------------------
if __name__ == "__main__":
    batch, in_ch, H, W = 2, 4, 16, 16
    h_ch = out_ch = 8
    num_classes = 5

    key = jax.random.PRNGKey(0)
    kx, ky_, kp = jax.random.split(key, 3)

    x = jax.random.normal(kx, (batch, in_ch, H, W), jnp.float32)   # NCHW input
    y = jax.random.randint(ky_, (batch,), 0, num_classes)
    params = init_params(kp, in_ch, h_ch, out_ch, num_classes)

    ukT_bd, u_kron = make_blockdiag_upsample_T(batch, H, W)
    conv_masks = make_conv_masks(batch, 2 * H, 2 * W)

    out = block_generator_forward(x, y, params, ukT_bd, conv_masks)
    out = jax.block_until_ready(out)
    assert out.shape == (batch, out_ch, 2 * H, 2 * W), out.shape

    ref = reference_forward(x, y, params, u_kron)
    ref = jax.block_until_ready(ref)
    if not bool(jnp.allclose(out, ref, atol=5e-3, rtol=5e-3)):
        raise AssertionError(
            f"mismatch: max abs err = {float(jnp.max(jnp.abs(out - ref)))}")

    print("KERNEL_OK")
</pallas_src>

<mosaic_0001>
module attributes {stable_mosaic.version = 11 : i64} {
  func.func @_fused_block_kernel(%arg0: i32, %arg1: memref<8x512xf32, #tpu.memory_space<vmem>>, %arg2: memref<8x512xf32, #tpu.memory_space<vmem>>, %arg3: memref<8x512xf32, #tpu.memory_space<vmem>>, %arg4: memref<8x2048xf32, #tpu.memory_space<vmem>>, %arg5: memref<8x2048xf32, #tpu.memory_space<vmem>>, %arg6: memref<512x2048xf32, #tpu.memory_space<vmem>>, %arg7: memref<8x72xf32, #tpu.memory_space<vmem>>, %arg8: memref<8x1xf32, #tpu.memory_space<vmem>>, %arg9: memref<8x80xf32, #tpu.memory_space<vmem>>, %arg10: memref<8x1xf32, #tpu.memory_space<vmem>>, %arg11: memref<4x2048xf32, #tpu.memory_space<vmem>>, %arg12: memref<8x2048xf32, #tpu.memory_space<vmem>>) attributes {dimension_semantics = [#tpu.dimension_semantics<arbitrary>], iteration_bounds = array<i64: 1>, scalar_prefetch = 0 : i64, scratch_operands = 0 : i64, tpu.core_type = #tpu.core_type<tc>, window_params = [{pipeline_mode = #tpu.pipeline_mode<synchronous>, transform_indices = @transform_0, window_bounds = array<i64: 8, 512>}, {pipeline_mode = #tpu.pipeline_mode<synchronous>, transform_indices = @transform_1, window_bounds = array<i64: 8, 512>}, {pipeline_mode = #tpu.pipeline_mode<synchronous>, transform_indices = @transform_2, window_bounds = array<i64: 8, 512>}, {pipeline_mode = #tpu.pipeline_mode<synchronous>, transform_indices = @transform_3, window_bounds = array<i64: 8, 2048>}, {pipeline_mode = #tpu.pipeline_mode<synchronous>, transform_indices = @transform_4, window_bounds = array<i64: 8, 2048>}, {pipeline_mode = #tpu.pipeline_mode<synchronous>, transform_indices = @transform_5, window_bounds = array<i64: 512, 2048>}, {pipeline_mode = #tpu.pipeline_mode<synchronous>, transform_indices = @transform_6, window_bounds = array<i64: 8, 72>}, {pipeline_mode = #tpu.pipeline_mode<synchronous>, transform_indices = @transform_7, window_bounds = array<i64: 8, 1>}, {pipeline_mode = #tpu.pipeline_mode<synchronous>, transform_indices = @transform_8, window_bounds = array<i64: 8, 80>}, {pipeline_mode = #tpu.pipeline_mode<synchronous>, transform_indices = @transform_9, window_bounds = array<i64: 8, 1>}, {pipeline_mode = #tpu.pipeline_mode<synchronous>, transform_indices = @transform_10, window_bounds = array<i64: 4, 2048>}, {pipeline_mode = #tpu.pipeline_mode<synchronous>, transform_indices = @transform_11, window_bounds = array<i64: 8, 2048>}]} {
    %c0 = arith.constant 0 : index
    %c0_0 = arith.constant 0 : index
    %0 = vector.load %arg1[%c0, %c0_0] : memref<8x512xf32, #tpu.memory_space<vmem>>, vector<8x512xf32>
    %cst = arith.constant dense<0.000000e+00> : vector<8xf32>
    %1 = vector.multi_reduction <add>, %0, %cst [1] : vector<8x512xf32> to vector<8xf32>
    %2 = vector.shape_cast %1 : vector<8xf32> to vector<8x1xf32>
    %cst_1 = arith.constant 5.120000e+02 : f32
    %3 = vector.broadcast %cst_1 : f32 to vector<8x1xf32>
    %4 = arith.divf %2, %3 : vector<8x1xf32>
    %5 = arith.mulf %0, %0 : vector<8x512xf32>
    %cst_2 = arith.constant dense<0.000000e+00> : vector<8xf32>
    %6 = vector.multi_reduction <add>, %5, %cst_2 [1] : vector<8x512xf32> to vector<8xf32>
    %7 = vector.shape_cast %6 : vector<8xf32> to vector<8x1xf32>
    %cst_3 = arith.constant 5.120000e+02 : f32
    %8 = vector.broadcast %cst_3 : f32 to vector<8x1xf32>
    %9 = arith.divf %7, %8 : vector<8x1xf32>
    %10 = arith.mulf %4, %4 : vector<8x1xf32>
    %11 = arith.subf %9, %10 : vector<8x1xf32>
    %12 = vector.broadcast %4 : vector<8x1xf32> to vector<8x512xf32>
    %13 = arith.subf %0, %12 : vector<8x512xf32>
    %cst_4 = arith.constant 9.99999974E-6 : f32
    %14 = vector.broadcast %cst_4 : f32 to vector<8x1xf32>
    %15 = arith.addf %11, %14 : vector<8x1xf32>
    %16 = math.rsqrt %15 : vector<8x1xf32>
    %17 = vector.broadcast %16 : vector<8x1xf32> to vector<8x512xf32>
    %18 = arith.mulf %13, %17 : vector<8x512xf32>
    %c0_5 = arith.constant 0 : index
    %c0_6 = arith.constant 0 : index
    %19 = vector.load %arg2[%c0_5, %c0_6] : memref<8x512xf32, #tpu.memory_space<vmem>>, vector<8x512xf32>
    %20 = arith.mulf %18, %19 : vector<8x512xf32>
    %c0_7 = arith.constant 0 : index
    %c0_8 = arith.constant 0 : index
    %21 = vector.load %arg3[%c0_7, %c0_8] : memref<8x512xf32, #tpu.memory_space<vmem>>, vector<8x512xf32>
    %22 = arith.addf %20, %21 : vector<8x512xf32>
    %cst_9 = arith.constant 0.000000e+00 : f32
    %23 = vector.broadcast %cst_9 : f32 to vector<8x512xf32>
    %24 = arith.maximumf %22, %23 : vector<8x512xf32>
    %c0_10 = arith.constant 0 : index
    %c0_11 = arith.constant 0 : index
    %25 = vector.load %arg6[%c0_10, %c0_11] : memref<512x2048xf32, #tpu.memory_space<vmem>>, vector<512x2048xf32>
    %cst_12 = arith.constant dense<0.000000e+00> : vector<8x2048xf32>
    %26 = tpu.matmul %24, %25, %cst_12 {dimension_numbers = #tpu.dot_dimension_numbers<[1], [0], [0], [1], [0, 0, 1, 1], [], []>} : vector<8x512xf32>, vector<512x2048xf32>, vector<8x2048xf32> -> vector<8x2048xf32>
    %cst_13 = arith.constant dense<0.000000e+00> : vector<8x2048xf32>
    %27 = tpu.matmul %0, %25, %cst_13 {dimension_numbers = #tpu.dot_dimension_numbers<[1], [0], [0], [1], [0, 0, 1, 1], [], []>} : vector<8x512xf32>, vector<512x2048xf32>, vector<8x2048xf32> -> vector<8x2048xf32>
    %c0_14 = arith.constant 0 : index
    %c0_15 = arith.constant 0 : index
    %28 = vector.load %arg11[%c0_14, %c0_15] : memref<4x2048xf32, #tpu.memory_space<vmem>>, vector<4x2048xf32>
    %29 = vector.extract_strided_slice %28 {offsets = [0, 0], sizes = [1, 2048], strides = [1, 1]} : vector<4x2048xf32> to vector<1x2048xf32>
    %30 = vector.extract_strided_slice %28 {offsets = [1, 0], sizes = [1, 2048], strides = [1, 1]} : vector<4x2048xf32> to vector<1x2048xf32>
    %31 = vector.extract_strided_slice %28 {offsets = [2, 0], sizes = [1, 2048], strides = [1, 1]} : vector<4x2048xf32> to vector<1x2048xf32>
    %32 = vector.extract_strided_slice %28 {offsets = [3, 0], sizes = [1, 2048], strides = [1, 1]} : vector<4x2048xf32> to vector<1x2048xf32>
    %c1_i32 = arith.constant 1 : i32
    %33 = tpu.dynamic_rotate %26 by %c1_i32 dim 1 : vector<8x2048xf32>, i32 -> vector<8x2048xf32>
    %34 = vector.broadcast %29 : vector<1x2048xf32> to vector<8x2048xf32>
    %35 = arith.mulf %33, %34 : vector<8x2048xf32>
    %c2047_i32 = arith.constant 2047 : i32
    %36 = tpu.dynamic_rotate %26 by %c2047_i32 dim 1 : vector<8x2048xf32>, i32 -> vector<8x2048xf32>
    %37 = vector.broadcast %30 : vector<1x2048xf32> to vector<8x2048xf32>
    %38 = arith.mulf %36, %37 : vector<8x2048xf32>
    %c32_i32 = arith.constant 32 : i32
    %39 = tpu.dynamic_rotate %35 by %c32_i32 dim 1 : vector<8x2048xf32>, i32 -> vector<8x2048xf32>
    %40 = vector.broadcast %31 : vector<1x2048xf32> to vector<8x2048xf32>
    %41 = arith.mulf %39, %40 : vector<8x2048xf32>
    %c32_i32_16 = arith.constant 32 : i32
    %42 = tpu.dynamic_rotate %26 by %c32_i32_16 dim 1 : vector<8x2048xf32>, i32 -> vector<8x2048xf32>
    %43 = vector.broadcast %31 : vector<1x2048xf32> to vector<8x2048xf32>
    %44 = arith.mulf %42, %43 : vector<8x2048xf32>
    %c32_i32_17 = arith.constant 32 : i32
    %45 = tpu.dynamic_rotate %38 by %c32_i32_17 dim 1 : vector<8x2048xf32>, i32 -> vector<8x2048xf32>
    %46 = vector.broadcast %31 : vector<1x2048xf32> to vector<8x2048xf32>
    %47 = arith.mulf %45, %46 : vector<8x2048xf32>
    %c2016_i32 = arith.constant 2016 : i32
    %48 = tpu.dynamic_rotate %35 by %c2016_i32 dim 1 : vector<8x2048xf32>, i32 -> vector<8x2048xf32>
    %49 = vector.broadcast %32 : vector<1x2048xf32> to vector<8x2048xf32>
    %50 = arith.mulf %48, %49 : vector<8x2048xf32>
    %c2016_i32_18 = arith.constant 2016 : i32
    %51 = tpu.dynamic_rotate %26 by %c2016_i32_18 dim 1 : vector<8x2048xf32>, i32 -> vector<8x2048xf32>
    %52 = vector.broadcast %32 : vector<1x2048xf32> to vector<8x2048xf32>
    %53 = arith.mulf %51, %52 : vector<8x2048xf32>
    %c2016_i32_19 = arith.constant 2016 : i32
    %54 = tpu.dynamic_rotate %38 by %c2016_i32_19 dim 1 : vector<8x2048xf32>, i32 -> vector<8x2048xf32>
    %55 = vector.broadcast %32 : vector<1x2048xf32> to vector<8x2048xf32>
    %56 = arith.mulf %54, %55 : vector<8x2048xf32>
    %57 = tpu.concatenate %41, %44, %47, %35, %26, %38, %50, %53, %56 in 0 : vector<8x2048xf32>, vector<8x2048xf32>, vector<8x2048xf32>, vector<8x2048xf32>, vector<8x2048xf32>, vector<8x2048xf32>, vector<8x2048xf32>, vector<8x2048xf32>, vector<8x2048xf32> -> vector<72x2048xf32>
    %c0_20 = arith.constant 0 : index
    %c0_21 = arith.constant 0 : index
    %58 = vector.load %arg7[%c0_20, %c0_21] : memref<8x72xf32, #tpu.memory_space<vmem>>, vector<8x72xf32>
    %cst_22 = arith.constant dense<0.000000e+00> : vector<8x2048xf32>
    %59 = tpu.matmul %58, %57, %cst_22 {dimension_numbers = #tpu.dot_dimension_numbers<[1], [0], [0], [1], [0, 0, 1, 1], [], []>} : vector<8x72xf32>, vector<72x2048xf32>, vector<8x2048xf32> -> vector<8x2048xf32>
    %c0_23 = arith.constant 0 : index
    %c0_24 = arith.constant 0 : index
    %60 = vector.load %arg8[%c0_23, %c0_24] : memref<8x1xf32, #tpu.memory_space<vmem>>, vector<8x1xf32>
    %61 = vector.broadcast %60 : vector<8x1xf32> to vector<8x2048xf32>
    %62 = arith.addf %59, %61 : vector<8x2048xf32>
    %cst_25 = arith.constant dense<0.000000e+00> : vector<8xf32>
    %63 = vector.multi_reduction <add>, %62, %cst_25 [1] : vector<8x2048xf32> to vector<8xf32>
    %64 = vector.shape_cast %63 : vector<8xf32> to vector<8x1xf32>
    %cst_26 = arith.constant 2.048000e+03 : f32
    %65 = vector.broadcast %cst_26 : f32 to vector<8x1xf32>
    %66 = arith.divf %64, %65 : vector<8x1xf32>
    %67 = arith.mulf %62, %62 : vector<8x2048xf32>
    %cst_27 = arith.constant dense<0.000000e+00> : vector<8xf32>
    %68 = vector.multi_reduction <add>, %67, %cst_27 [1] : vector<8x2048xf32> to vector<8xf32>
    %69 = vector.shape_cast %68 : vector<8xf32> to vector<8x1xf32>
    %cst_28 = arith.constant 2.048000e+03 : f32
    %70 = vector.broadcast %cst_28 : f32 to vector<8x1xf32>
    %71 = arith.divf %69, %70 : vector<8x1xf32>
    %72 = arith.mulf %66, %66 : vector<8x1xf32>
    %73 = arith.subf %71, %72 : vector<8x1xf32>
    %74 = vector.broadcast %66 : vector<8x1xf32> to vector<8x2048xf32>
    %75 = arith.subf %62, %74 : vector<8x2048xf32>
    %cst_29 = arith.constant 9.99999974E-6 : f32
    %76 = vector.broadcast %cst_29 : f32 to vector<8x1xf32>
    %77 = arith.addf %73, %76 : vector<8x1xf32>
    %78 = math.rsqrt %77 : vector<8x1xf32>
    %79 = vector.broadcast %78 : vector<8x1xf32> to vector<8x2048xf32>
    %80 = arith.mulf %75, %79 : vector<8x2048xf32>
    %c0_30 = arith.constant 0 : index
    %c0_31 = arith.constant 0 : index
    %81 = vector.load %arg4[%c0_30, %c0_31] : memref<8x2048xf32, #tpu.memory_space<vmem>>, vector<8x2048xf32>
    %82 = arith.mulf %80, %81 : vector<8x2048xf32>
    %c0_32 = arith.constant 0 : index
    %c0_33 = arith.constant 0 : index
    %83 = vector.load %arg5[%c0_32, %c0_33] : memref<8x2048xf32, #tpu.memory_space<vmem>>, vector<8x2048xf32>
    %84 = arith.addf %82, %83 : vector<8x2048xf32>
    %cst_34 = arith.constant 0.000000e+00 : f32
    %85 = vector.broadcast %cst_34 : f32 to vector<8x2048xf32>
    %86 = arith.maximumf %84, %85 : vector<8x2048xf32>
    %c1_i32_35 = arith.constant 1 : i32
    %87 = tpu.dynamic_rotate %86 by %c1_i32_35 dim 1 : vector<8x2048xf32>, i32 -> vector<8x2048xf32>
    %88 = vector.broadcast %29 : vector<1x2048xf32> to vector<8x2048xf32>
    %89 = arith.mulf %87, %88 : vector<8x2048xf32>
    %c2047_i32_36 = arith.constant 2047 : i32
    %90 = tpu.dynamic_rotate %86 by %c2047_i32_36 dim 1 : vector<8x2048xf32>, i32 -> vector<8x2048xf32>
    %91 = vector.broadcast %30 : vector<1x2048xf32> to vector<8x2048xf32>
    %92 = arith.mulf %90, %91 : vector<8x2048xf32>
    %c32_i32_37 = arith.constant 32 : i32
    %93 = tpu.dynamic_rotate %89 by %c32_i32_37 dim 1 : vector<8x2048xf32>, i32 -> vector<8x2048xf32>
    %94 = vector.broadcast %31 : vector<1x2048xf32> to vector<8x2048xf32>
    %95 = arith.mulf %93, %94 : vector<8x2048xf32>
    %c32_i32_38 = arith.constant 32 : i32
    %96 = tpu.dynamic_rotate %86 by %c32_i32_38 dim 1 : vector<8x2048xf32>, i32 -> vector<8x2048xf32>
    %97 = vector.broadcast %31 : vector<1x2048xf32> to vector<8x2048xf32>
    %98 = arith.mulf %96, %97 : vector<8x2048xf32>
    %c32_i32_39 = arith.constant 32 : i32
    %99 = tpu.dynamic_rotate %92 by %c32_i32_39 dim 1 : vector<8x2048xf32>, i32 -> vector<8x2048xf32>
    %100 = vector.broadcast %31 : vector<1x2048xf32> to vector<8x2048xf32>
    %101 = arith.mulf %99, %100 : vector<8x2048xf32>
    %c2016_i32_40 = arith.constant 2016 : i32
    %102 = tpu.dynamic_rotate %89 by %c2016_i32_40 dim 1 : vector<8x2048xf32>, i32 -> vector<8x2048xf32>
    %103 = vector.broadcast %32 : vector<1x2048xf32> to vector<8x2048xf32>
    %104 = arith.mulf %102, %103 : vector<8x2048xf32>
    %c2016_i32_41 = arith.constant 2016 : i32
    %105 = tpu.dynamic_rotate %86 by %c2016_i32_41 dim 1 : vector<8x2048xf32>, i32 -> vector<8x2048xf32>
    %106 = vector.broadcast %32 : vector<1x2048xf32> to vector<8x2048xf32>
    %107 = arith.mulf %105, %106 : vector<8x2048xf32>
    %c2016_i32_42 = arith.constant 2016 : i32
    %108 = tpu.dynamic_rotate %92 by %c2016_i32_42 dim 1 : vector<8x2048xf32>, i32 -> vector<8x2048xf32>
    %109 = vector.broadcast %32 : vector<1x2048xf32> to vector<8x2048xf32>
    %110 = arith.mulf %108, %109 : vector<8x2048xf32>
    %111 = tpu.concatenate %95, %98, %101, %89, %86, %92, %104, %107, %110 in 0 : vector<8x2048xf32>, vector<8x2048xf32>, vector<8x2048xf32>, vector<8x2048xf32>, vector<8x2048xf32>, vector<8x2048xf32>, vector<8x2048xf32>, vector<8x2048xf32>, vector<8x2048xf32> -> vector<72x2048xf32>
    %112 = tpu.concatenate %111, %27 in 0 : vector<72x2048xf32>, vector<8x2048xf32> -> vector<80x2048xf32>
    %c0_43 = arith.constant 0 : index
    %c0_44 = arith.constant 0 : index
    %113 = vector.load %arg9[%c0_43, %c0_44] : memref<8x80xf32, #tpu.memory_space<vmem>>, vector<8x80xf32>
    %cst_45 = arith.constant dense<0.000000e+00> : vector<8x2048xf32>
    %114 = tpu.matmul %113, %112, %cst_45 {dimension_numbers = #tpu.dot_dimension_numbers<[1], [0], [0], [1], [0, 0, 1, 1], [], []>} : vector<8x80xf32>, vector<80x2048xf32>, vector<8x2048xf32> -> vector<8x2048xf32>
    %c0_46 = arith.constant 0 : index
    %c0_47 = arith.constant 0 : index
    %115 = vector.load %arg10[%c0_46, %c0_47] : memref<8x1xf32, #tpu.memory_space<vmem>>, vector<8x1xf32>
    %116 = vector.broadcast %115 : vector<8x1xf32> to vector<8x2048xf32>
    %117 = arith.addf %114, %116 : vector<8x2048xf32>
    %c0_48 = arith.constant 0 : index
    %c0_49 = arith.constant 0 : index
    %118 = vector.load %arg12[%c0_48, %c0_49] : memref<8x2048xf32, #tpu.memory_space<vmem>>, vector<8x2048xf32>
    tpu.vector_store %arg12[%c0_48, %c0_49], %117 {strides = array<i32>} : memref<8x2048xf32, #tpu.memory_space<vmem>>, vector<8x2048xf32>,
    return
  }
  func.func @transform_0(%arg0: i32) -> (i32, i32) {
    %c0_i32 = arith.constant 0 : i32
    %c0_i32_0 = arith.constant 0 : i32
    %c0_i32_1 = arith.constant 0 : i32
    return %c0_i32, %c0_i32_0 : i32, i32
  }
  func.func @transform_1(%arg0: i32) -> (i32, i32) {
    %c0_i32 = arith.constant 0 : i32
    %c0_i32_0 = arith.constant 0 : i32
    %c0_i32_1 = arith.constant 0 : i32
    return %c0_i32, %c0_i32_0 : i32, i32
  }
  func.func @transform_2(%arg0: i32) -> (i32, i32) {
    %c0_i32 = arith.constant 0 : i32
    %c0_i32_0 = arith.constant 0 : i32
    %c0_i32_1 = arith.constant 0 : i32
    return %c0_i32, %c0_i32_0 : i32, i32
  }
  func.func @transform_3(%arg0: i32) -> (i32, i32) {
    %c0_i32 = arith.constant 0 : i32
    %c0_i32_0 = arith.constant 0 : i32
    %c0_i32_1 = arith.constant 0 : i32
    return %c0_i32, %c0_i32_0 : i32, i32
  }
  func.func @transform_4(%arg0: i32) -> (i32, i32) {
    %c0_i32 = arith.constant 0 : i32
    %c0_i32_0 = arith.constant 0 : i32
    %c0_i32_1 = arith.constant 0 : i32
    return %c0_i32, %c0_i32_0 : i32, i32
  }
  func.func @transform_5(%arg0: i32) -> (i32, i32) {
    %c0_i32 = arith.constant 0 : i32
    %c0_i32_0 = arith.constant 0 : i32
    %c0_i32_1 = arith.constant 0 : i32
    return %c0_i32, %c0_i32_0 : i32, i32
  }
  func.func @transform_6(%arg0: i32) -> (i32, i32) {
    %c0_i32 = arith.constant 0 : i32
    %c0_i32_0 = arith.constant 0 : i32
    %c0_i32_1 = arith.constant 0 : i32
    return %c0_i32, %c0_i32_0 : i32, i32
  }
  func.func @transform_7(%arg0: i32) -> (i32, i32) {
    %c0_i32 = arith.constant 0 : i32
    %c0_i32_0 = arith.constant 0 : i32
    %c0_i32_1 = arith.constant 0 : i32
    return %c0_i32, %c0_i32_0 : i32, i32
  }
  func.func @transform_8(%arg0: i32) -> (i32, i32) {
    %c0_i32 = arith.constant 0 : i32
    %c0_i32_0 = arith.constant 0 : i32
    %c0_i32_1 = arith.constant 0 : i32
    return %c0_i32, %c0_i32_0 : i32, i32
  }
  func.func @transform_9(%arg0: i32) -> (i32, i32) {
    %c0_i32 = arith.constant 0 : i32
    %c0_i32_0 = arith.constant 0 : i32
    %c0_i32_1 = arith.constant 0 : i32
    return %c0_i32, %c0_i32_0 : i32, i32
  }
  func.func @transform_10(%arg0: i32) -> (i32, i32) {
    %c0_i32 = arith.constant 0 : i32
    %c0_i32_0 = arith.constant 0 : i32
    %c0_i32_1 = arith.constant 0 : i32
    return %c0_i32, %c0_i32_0 : i32, i32
  }
  func.func @transform_11(%arg0: i32) -> (i32, i32) {
    %c0_i32 = arith.constant 0 : i32
    %c0_i32_0 = arith.constant 0 : i32
    %c0_i32_1 = arith.constant 0 : i32
    return %c0_i32, %c0_i32_0 : i32, i32
  }
}

</mosaic_0001>

<llo_original>
// kernel: tpu_custom_call.1
$region0: #{tpu_custom_call.1}
  #allocation0 [shape = 'u32[]', space=smem, size = 0x4, offset = 0x4, fixed_abs, tag = 'smem constant byte address 0x4 - core index']
  #allocation1 [shape = 'u32[72,128]{1,0:T(1,128)}', space=vmem, size = 0x9000, scoped, tag = 'internal scratch']
  %s0 = inlined_call_operand.hbm [shape: f32[8,512], index: 0, kind: input, shape index: {}]
  %s1 = inlined_call_operand.hbm [shape: f32[8,512], index: 1, kind: input, shape index: {}]
  %s2 = inlined_call_operand.hbm [shape: f32[8,512], index: 2, kind: input, shape index: {}]
  %s3 = inlined_call_operand.hbm [shape: f32[8,2048], index: 3, kind: input, shape index: {}]
  %s4 = inlined_call_operand.hbm [shape: f32[8,2048], index: 4, kind: input, shape index: {}]
  %s5 = inlined_call_operand.hbm [shape: f32[512,2048], index: 5, kind: input, shape index: {}]
  %s6 = inlined_call_operand.hbm [shape: f32[8,72], index: 6, kind: input, shape index: {}]
  %s7 = inlined_call_operand.vmem [shape: f32[8,1], index: 7, kind: input, shape index: {}]
  %s8 = inlined_call_operand.hbm [shape: f32[8,80], index: 8, kind: input, shape index: {}]
  %s9 = inlined_call_operand.vmem [shape: f32[8,1], index: 9, kind: input, shape index: {}]
  %s10 = inlined_call_operand.hbm [shape: f32[4,2048], index: 10, kind: input, shape index: {}]
  %s11 = inlined_call_operand.hbm [shape: f32[8,2048], index: 11, kind: output, shape index: {}]
  %s12 = sld [smem:[#allocation0]]
  $region90: #{tpu_custom_call.1} parent=0
    _
  %s14 = ssub.s32 1, %s12
  %s15 = scalar_select 0, %s14, %s12
  $region1: #{tpu_custom_call.1} parent=0
    #allocation2 [shape = 'u8[16384]{0}', space=vmem, size = 0x4000, scoped, tag = 'input window, operand 0, single buffered']
    #allocation3 [shape = 's32[1]{0}', space=sflag, size = 0x4, scoped, tag = 'scoped memory for tpu_custom_call.1']
    #allocation4 [shape = 's32[1]{0}', space=sflag, size = 0x4, scoped, tag = 'scoped memory for tpu_custom_call.1']
    #allocation5 [shape = 'u8[16384]{0}', space=vmem, size = 0x4000, scoped, tag = 'input window, operand 1, single buffered']
    #allocation6 [shape = 's32[1]{0}', space=sflag, size = 0x4, scoped, tag = 'scoped memory for tpu_custom_call.1']
    #allocation7 [shape = 'u8[16384]{0}', space=vmem, size = 0x4000, scoped, tag = 'input window, operand 2, single buffered']
    #allocation8 [shape = 'u8[65536]{0}', space=vmem, size = 0x10000, scoped, tag = 'input window, operand 3, single buffered']
    #allocation9 [shape = 's32[1]{0}', space=sflag, size = 0x4, scoped, tag = 'scoped memory for tpu_custom_call.1']
    #allocation10 [shape = 'u8[65536]{0}', space=vmem, size = 0x10000, scoped, tag = 'input window, operand 4, single buffered']
    #allocation11 [shape = 'u8[4194304]{0}', space=vmem, size = 0x400000, scoped, tag = 'input window, operand 5, single buffered']
    #allocation12 [shape = 's32[1]{0}', space=sflag, size = 0x4, scoped, tag = 'scoped memory for tpu_custom_call.1']
    #allocation13 [shape = 'u8[4096]{0}', space=vmem, size = 0x1000, scoped, tag = 'input window, operand 6, single buffered']
    #allocation14 [shape = 'u8[4096]{0}', space=vmem, size = 0x1000, scoped, tag = 'input window, operand 8, single buffered']
    #allocation15 [shape = 's32[1]{0}', space=sflag, size = 0x4, scoped, tag = 'scoped memory for tpu_custom_call.1']
    #allocation16 [shape = 'u8[32768]{0}', space=vmem, size = 0x8000, scoped, tag = 'input window, operand 10, single buffered']
    #allocation17 [shape = 'u8[65536]{0}', space=vmem, size = 0x10000, scoped, tag = 'output window, operand 0, single buffered']
    %16 = vsyncpa [#allocation3], 0
    %17 = vsyncpa [#allocation6], 0
    %18 = vsyncpa [#allocation9], 0
    %19 = vsyncpa [#allocation12], 0
    %20 = vsyncpa [#allocation15], 0
    %21 = vsyncpa [#allocation4], 0
    // Predicated region
    $region2: #{tpu_custom_call.1} parent=1 // pred_check
      _
    $region3: #{tpu_custom_call.1} parent=1 // pred_check_branch
      %23 = sbr.rel (0) target = $region5
    $region4: #{tpu_custom_call.1} parent=1 // pred_region
      %25 = vsyncadd [#allocation3], 0
      %s27 = sshll.u32 %s0, 4
      %s28 = int_to_ptr.hbm [resolvable:$true] %s27
      %s29 = sshll.u32 [#allocation2], 4
      %s30 = int_to_ptr.vmem [resolvable:$true] %s29
      %32 = dma.hbm_to_vmem [thread:$0]  %s28, 512, %s30, [#allocation3]
    $region5: #{tpu_custom_call.1} parent=1 // pred_fallthru
      _
    // Predicated region
    $region6: #{tpu_custom_call.1} parent=1 // pred_check
      _
    $region7: #{tpu_custom_call.1} parent=1 // pred_check_branch
      %34 = sbr.rel (0) target = $region9
    $region8: #{tpu_custom_call.1} parent=1 // pred_region
      %36 = vsyncadd [#allocation6], 0
      %s38 = sshll.u32 %s1, 4
      %s39 = int_to_ptr.hbm [resolvable:$true] %s38
      %s40 = sshll.u32 [#allocation5], 4
      %s41 = int_to_ptr.vmem [resolvable:$true] %s40
      %43 = dma.hbm_to_vmem [thread:$0]  %s39, 512, %s41, [#allocation6]
    $region9: #{tpu_custom_call.1} parent=1 // pred_fallthru
      _
    // Predicated region
    $region10: #{tpu_custom_call.1} parent=1 // pred_check
      _
    $region11: #{tpu_custom_call.1} parent=1 // pred_check_branch
      %45 = sbr.rel (0) target = $region13
    $region12: #{tpu_custom_call.1} parent=1 // pred_region
      %47 = vsyncadd [#allocation6], 0
      %s49 = sshll.u32 %s2, 4
      %s50 = int_to_ptr.hbm [resolvable:$true] %s49
      %s51 = sshll.u32 [#allocation7], 4
      %s52 = int_to_ptr.vmem [resolvable:$true] %s51
      %54 = dma.hbm_to_vmem [thread:$0]  %s50, 512, %s52, [#allocation6]
    $region13: #{tpu_custom_call.1} parent=1 // pred_fallthru
      _
    // Predicated region
    $region14: #{tpu_custom_call.1} parent=1 // pred_check
      _
    $region15: #{tpu_custom_call.1} parent=1 // pred_check_branch
      %56 = sbr.rel (0) target = $region17
    $region16: #{tpu_custom_call.1} parent=1 // pred_region
      %58 = vsyncadd [#allocation9], 0
      %s60 = sshll.u32 %s3, 4
      %s61 = int_to_ptr.hbm [resolvable:$true] %s60
      %s62 = sshll.u32 [#allocation8], 4
      %s63 = int_to_ptr.vmem [resolvable:$true] %s62
      %65 = dma.hbm_to_vmem [thread:$0]  %s61, 2048, %s63, [#allocation9]
    $region17: #{tpu_custom_call.1} parent=1 // pred_fallthru
      _
    // Predicated region
    $region18: #{tpu_custom_call.1} parent=1 // pred_check
      _
    $region19: #{tpu_custom_call.1} parent=1 // pred_check_branch
      %67 = sbr.rel (0) target = $region21
    $region20: #{tpu_custom_call.1} parent=1 // pred_region
      %69 = vsyncadd [#allocation9], 0
      %s71 = sshll.u32 %s4, 4
      %s72 = int_to_ptr.hbm [resolvable:$true] %s71
      %s73 = sshll.u32 [#allocation10], 4
      %s74 = int_to_ptr.vmem [resolvable:$true] %s73
      %76 = dma.hbm_to_vmem [thread:$0]  %s72, 2048, %s74, [#allocation9]
    $region21: #{tpu_custom_call.1} parent=1 // pred_fallthru
      _
    // Predicated region
    $region22: #{tpu_custom_call.1} parent=1 // pred_check
      _
    $region23: #{tpu_custom_call.1} parent=1 // pred_check_branch
      %78 = sbr.rel (0) target = $region25
    $region24: #{tpu_custom_call.1} parent=1 // pred_region
      %80 = vsyncadd [#allocation12], 0
      %s81 = sshll.u32 %s5, 4
      %s82 = int_to_ptr.hbm [resolvable:$true] %s81
      %s83 = sshll.u32 [#allocation11], 4
      %s84 = int_to_ptr.vmem [resolvable:$true] %s83
      %89 = dma.hbm_to_vmem [thread:$0]  %s82, 131072, %s84, [#allocation12], 2048, 2048, 128
    $region25: #{tpu_custom_call.1} parent=1 // pred_fallthru
      _
    // Predicated region
    $region26: #{tpu_custom_call.1} parent=1 // pred_check
      _
    $region27: #{tpu_custom_call.1} parent=1 // pred_check_branch
      %91 = sbr.rel (0) target = $region29
    $region28: #{tpu_custom_call.1} parent=1 // pred_region
      %93 = vsyncadd [#allocation12], 0
      %s95 = sshll.u32 %s6, 4
      %s96 = int_to_ptr.hbm [resolvable:$true] %s95
      %s97 = sshll.u32 [#allocation13], 4
      %s98 = int_to_ptr.vmem [resolvable:$true] %s97
      %100 = dma.hbm_to_vmem [thread:$0]  %s96, 128, %s98, [#allocation12]
    $region29: #{tpu_custom_call.1} parent=1 // pred_fallthru
      _
    // Predicated region
    $region30: #{tpu_custom_call.1} parent=1 // pred_check
      _
    $region31: #{tpu_custom_call.1} parent=1 // pred_check_branch
      %102 = sbr.rel (0) target = $region33
    $region32: #{tpu_custom_call.1} parent=1 // pred_region
      _
    $region33: #{tpu_custom_call.1} parent=1 // pred_fallthru
      _
    // Predicated region
    $region34: #{tpu_custom_call.1} parent=1 // pred_check
      _
    $region35: #{tpu_custom_call.1} parent=1 // pred_check_branch
      %104 = sbr.rel (0) target = $region37
    $region36: #{tpu_custom_call.1} parent=1 // pred_region
      %106 = vsyncadd [#allocation15], 0
      %s108 = sshll.u32 %s8, 4
      %s109 = int_to_ptr.hbm [resolvable:$true] %s108
      %s110 = sshll.u32 [#allocation14], 4
      %s111 = int_to_ptr.vmem [resolvable:$true] %s110
      %113 = dma.hbm_to_vmem [thread:$0]  %s109, 128, %s111, [#allocation15]
    $region37: #{tpu_custom_call.1} parent=1 // pred_fallthru
      _
    // Predicated region
    $region38: #{tpu_custom_call.1} parent=1 // pred_check
      _
    $region39: #{tpu_custom_call.1} parent=1 // pred_check_branch
      %115 = sbr.rel (0) target = $region41
    $region40: #{tpu_custom_call.1} parent=1 // pred_region
      _
    $region41: #{tpu_custom_call.1} parent=1 // pred_fallthru
      _
    // Predicated region
    $region42: #{tpu_custom_call.1} parent=1 // pred_check
      _
    $region43: #{tpu_custom_call.1} parent=1 // pred_check_branch
      %117 = sbr.rel (0) target = $region45
    $region44: #{tpu_custom_call.1} parent=1 // pred_region
      %119 = vsyncadd [#allocation15], 0
      %s121 = sshll.u32 %s10, 4
      %s122 = int_to_ptr.hbm [resolvable:$true] %s121
      %s123 = sshll.u32 [#allocation16], 4
      %s124 = int_to_ptr.vmem [resolvable:$true] %s123
      %126 = dma.hbm_to_vmem [thread:$0]  %s122, 1024, %s124, [#allocation15]
    $region45: #{tpu_custom_call.1} parent=1 // pred_fallthru
      _
    // Predicated region
    $region46: #{tpu_custom_call.1} parent=1 // pred_check
      _
    $region47: #{tpu_custom_call.1} parent=1 // pred_check_branch
      %128 = sbr.rel (0) target = $region49
    $region48: #{tpu_custom_call.1} parent=1 // pred_region
      %130 = dma.done [#allocation3], 512
    $region49: #{tpu_custom_call.1} parent=1 // pred_fallthru
      _
    // Predicated region
    $region50: #{tpu_custom_call.1} parent=1 // pred_check
      _
    $region51: #{tpu_custom_call.1} parent=1 // pred_check_branch
      %132 = sbr.rel (0) target = $region53
    $region52: #{tpu_custom_call.1} parent=1 // pred_region
      %134 = dma.done [#allocation6], 512
    $region53: #{tpu_custom_call.1} parent=1 // pred_fallthru
      _
    // Predicated region
    $region54: #{tpu_custom_call.1} parent=1 // pred_check
      _
    $region55: #{tpu_custom_call.1} parent=1 // pred_check_branch
      %136 = sbr.rel (0) target = $region57
    $region56: #{tpu_custom_call.1} parent=1 // pred_region
      %138 = dma.done [#allocation6], 512
    $region57: #{tpu_custom_call.1} parent=1 // pred_fallthru
      _
    // Predicated region
    $region58: #{tpu_custom_call.1} parent=1 // pred_check
      _
    $region59: #{tpu_custom_call.1} parent=1 // pred_check_branch
      %140 = sbr.rel (0) target = $region61
    $region60: #{tpu_custom_call.1} parent=1 // pred_region
      %142 = dma.done [#allocation9], 2048
    $region61: #{tpu_custom_call.1} parent=1 // pred_fallthru
      _
    // Predicated region
    $region62: #{tpu_custom_call.1} parent=1 // pred_check
      _
    $region63: #{tpu_custom_call.1} parent=1 // pred_check_branch
      %144 = sbr.rel (0) target = $region65
    $region64: #{tpu_custom_call.1} parent=1 // pred_region
      %146 = dma.done [#allocation9], 2048
    $region65: #{tpu_custom_call.1} parent=1 // pred_fallthru
      _
    // Predicated region
    $region66: #{tpu_custom_call.1} parent=1 // pred_check
      _
    $region67: #{tpu_custom_call.1} parent=1 // pred_check_branch
      %148 = sbr.rel (0) target = $region69
    $region68: #{tpu_custom_call.1} parent=1 // pred_region
      %150 = dma.done [#allocation12], 131072
    $region69: #{tpu_custom_call.1} parent=1 // pred_fallthru
      _
    // Predicated region
    $region70: #{tpu_custom_call.1} parent=1 // pred_check
      _
    $region71: #{tpu_custom_call.1} parent=1 // pred_check_branch
      %152 = sbr.rel (0) target = $region73
    $region72: #{tpu_custom_call.1} parent=1 // pred_region
      %154 = dma.done [#allocation12], 128
    $region73: #{tpu_custom_call.1} parent=1 // pred_fallthru
      _
    // Predicated region
    $region74: #{tpu_custom_call.1} parent=1 // pred_check
      _
    $region75: #{tpu_custom_call.1} parent=1 // pred_check_branch
      %156 = sbr.rel (0) target = $region77
    $region76: #{tpu_custom_call.1} parent=1 // pred_region
      %158 = dma.done [#allocation15], 128
    $region77: #{tpu_custom_call.1} parent=1 // pred_fallthru
      _
    // Predicated region
    $region78: #{tpu_custom_call.1} parent=1 // pred_check
      _
    $region79: #{tpu_custom_call.1} parent=1 // pred_check_branch
      %160 = sbr.rel (0) target = $region81
    $region80: #{tpu_custom_call.1} parent=1 // pred_region
      %162 = dma.done [#allocation15], 1024
    $region81: #{tpu_custom_call.1} parent=1 // pred_fallthru
      _
    %v163 = vld [vmem:[#allocation2] sm:$0xff]
    %v164 = vld [vmem:[#allocation2 + $0x8] sm:$0xff]
    %v165 = vld [vmem:[#allocation2 + $0x10] sm:$0xff]
    %v166 = vld [vmem:[#allocation2 + $0x18] sm:$0xff]
    %v167 = vadd.f32 %v163, %v164
    %v168 = vadd.f32 %v167, %v165
    %v169 = vadd.f32 %v168, %v166
    %170 = vadd.xlane.f32.xlu0 %v169
    %v171 = vpop.xlane.xlu0 %170
    %v172 = vrcp.pop 512.0
    %v173 = vmul.f32 512.0, %v172
    %v174 = vsub.f32 1.0, %v173
    %v175 = vmul.f32 %v172, %v174
    %v176 = vadd.f32 %v172, %v175
    %vm177 = vweird.f32 %v172
    %v178 = vsel %vm177, %v172, %v176
    %v179 = vmul.f32 %v171, %v178
    %v180 = vmul.f32 %v163, %v163
    %v181 = vmul.f32 %v164, %v164
    %v182 = vmul.f32 %v165, %v165
    %v183 = vmul.f32 %v166, %v166
    %v184 = vadd.f32 %v180, %v181
    %v185 = vadd.f32 %v184, %v182
    %v186 = vadd.f32 %v185, %v183
    %187 = vadd.xlane.f32.xlu0 %v186
    %v188 = vpop.xlane.xlu0 %187
    %v189 = vmul.f32 %v188, %v178
    %v190 = vmul.f32 %v179, %v179
    %v191 = vsub.f32 %v189, %v190
    %v192 = vsub.f32 %v163, %v179
    %v193 = vsub.f32 %v164, %v179
    %v194 = vsub.f32 %v165, %v179
    %v195 = vsub.f32 %v166, %v179
    %v196 = vadd.f32 %v191, 1e-05
    %v197 = vrsqrt.pop %v196
    %v198 = vmul.f32 %v197, %v196
    %v199 = vmul.f32 %v198, %v197
    %v200 = vmul.f32 0.5, %v199
    %v201 = vsub.f32 1.5, %v200
    %v202 = vmul.f32 %v197, %v201
    %vm203 = vweird.f32 %v196
    %vm204 = vweird.f32 %v197
    %vm205 = vmor %vm203, %vm204
    %v206 = vsel %vm205, %v197, %v202
    %v207 = vmul.f32 %v192, %v206
    %v208 = vmul.f32 %v193, %v206
    %v209 = vmul.f32 %v194, %v206
    %v210 = vmul.f32 %v195, %v206
    %v211 = vld [vmem:[#allocation5] sm:$0xff]
    %v212 = vld [vmem:[#allocation5 + $0x8] sm:$0xff]
    %v213 = vld [vmem:[#allocation5 + $0x10] sm:$0xff]
    %v214 = vld [vmem:[#allocation5 + $0x18] sm:$0xff]
    %v215 = vmul.f32 %v207, %v211
    %v216 = vmul.f32 %v208, %v212
    %v217 = vmul.f32 %v209, %v213
    %v218 = vmul.f32 %v210, %v214
    %v219 = vld [vmem:[#allocation7] sm:$0xff]
    %v220 = vld [vmem:[#allocation7 + $0x8] sm:$0xff]
    %v221 = vld [vmem:[#allocation7 + $0x10] sm:$0xff]
    %v222 = vld [vmem:[#allocation7 + $0x18] sm:$0xff]
    %v223 = vadd.f32 %v215, %v219
    %v224 = vadd.f32 %v216, %v220
    %v225 = vadd.f32 %v217, %v221
    %v226 = vadd.f32 %v218, %v222
    %v227 = vmax.f32 %v223, 0.0
    %v228 = vmax.f32 %v224, 0.0
    %v229 = vmax.f32 %v225, 0.0
    %v230 = vmax.f32 %v226, 0.0
    %v231 = vld [vmem:[#allocation11] sm:$0xff]
    %v232 = vld [vmem:[#allocation11 + $0x8] sm:$0xff]
    %v233 = vld [vmem:[#allocation11 + $0x10] sm:$0xff]
    %v234 = vld [vmem:[#allocation11 + $0x18] sm:$0xff]
    %v235 = vld [vmem:[#allocation11 + $0x20] sm:$0xff]
    %v236 = vld [vmem:[#allocation11 + $0x28] sm:$0xff]
    %v237 = vld [vmem:[#allocation11 + $0x30] sm:$0xff]
    %v238 = vld [vmem:[#allocation11 + $0x38] sm:$0xff]
    %v239 = vld [vmem:[#allocation11 + $0x40] sm:$0xff]
    %v240 = vld [vmem:[#allocation11 + $0x48] sm:$0xff]
    %v241 = vld [vmem:[#allocation11 + $0x50] sm:$0xff]
    %v242 = vld [vmem:[#allocation11 + $0x58] sm:$0xff]
    %v243 = vld [vmem:[#allocation11 + $0x60] sm:$0xff]
    %v244 = vld [vmem:[#allocation11 + $0x68] sm:$0xff]
    %v245 = vld [vmem:[#allocation11 + $0x70] sm:$0xff]
    %v246 = vld [vmem:[#allocation11 + $0x78] sm:$0xff]
    %v247 = vld [vmem:[#allocation11 + $0x80] sm:$0xff]
    %v248 = vld [vmem:[#allocation11 + $0x88] sm:$0xff]
    %v249 = vld [vmem:[#allocation11 + $0x90] sm:$0xff]
    %v250 = vld [vmem:[#allocation11 + $0x98] sm:$0xff]
    %v251 = vld [vmem:[#allocation11 + $0xa0] sm:$0xff]
    %v252 = vld [vmem:[#allocation11 + $0xa8] sm:$0xff]
    %v253 = vld [vmem:[#allocation11 + $0xb0] sm:$0xff]
    %v254 = vld [vmem:[#allocation11 + $0xb8] sm:$0xff]
    %v255 = vld [vmem:[#allocation11 + $0xc0] sm:$0xff]
    %v256 = vld [vmem:[#allocation11 + $0xc8] sm:$0xff]
    %v257 = vld [vmem:[#allocation11 + $0xd0] sm:$0xff]
    %v258 = vld [vmem:[#allocation11 + $0xd8] sm:$0xff]
    %v259 = vld [vmem:[#allocation11 + $0xe0] sm:$0xff]
    %v260 = vld [vmem:[#allocation11 + $0xe8] sm:$0xff]
    %v261 = vld [vmem:[#allocation11 + $0xf0] sm:$0xff]
    %v262 = vld [vmem:[#allocation11 + $0xf8] sm:$0xff]
    %v263 = vld [vmem:[#allocation11 + $0x100] sm:$0xff]
    %v264 = vld [vmem:[#allocation11 + $0x108] sm:$0xff]
    %v265 = vld [vmem:[#allocation11 + $0x110] sm:$0xff]
    %v266 = vld [vmem:[#allocation11 + $0x118] sm:$0xff]
    %v267 = vld [vmem:[#allocation11 + $0x120] sm:$0xff]
    %v268 = vld [vmem:[#allocation11 + $0x128] sm:$0xff]
    %v269 = vld [vmem:[#allocation11 + $0x130] sm:$0xff]
    %v270 = vld [vmem:[#allocation11 + $0x138] sm:$0xff]
    %v271 = vld [vmem:[#allocation11 + $0x140] sm:$0xff]
    %v272 = vld [vmem:[#allocation11 + $0x148] sm:$0xff]
    %v273 = vld [vmem:[#allocation11 + $0x150] sm:$0xff]
    %v274 = vld [vmem:[#allocation11 + $0x158] sm:$0xff]
    %v275 = vld [vmem:[#allocation11 + $0x160] sm:$0xff]
    %v276 = vld [vmem:[#allocation11 + $0x168] sm:$0xff]
    %v277 = vld [vmem:[#allocation11 + $0x170] sm:$0xff]
    %v278 = vld [vmem:[#allocation11 + $0x178] sm:$0xff]
    %v279 = vld [vmem:[#allocation11 + $0x180] sm:$0xff]
    %v280 = vld [vmem:[#allocation11 + $0x188] sm:$0xff]
    %v281 = vld [vmem:[#allocation11 + $0x190] sm:$0xff]
    %v282 = vld [vmem:[#allocation11 + $0x198] sm:$0xff]
    %v283 = vld [vmem:[#allocation11 + $0x1a0] sm:$0xff]
    %v284 = vld [vmem:[#allocation11 + $0x1a8] sm:$0xff]
    %v285 = vld [vmem:[#allocation11 + $0x1b0] sm:$0xff]
    %v286 = vld [vmem:[#allocation11 + $0x1b8] sm:$0xff]
    %v287 = vld [vmem:[#allocation11 + $0x1c0] sm:$0xff]
    %v288 = vld [vmem:[#allocation11 + $0x1c8] sm:$0xff]
    %v289 = vld [vmem:[#allocation11 + $0x1d0] sm:$0xff]
    %v290 = vld [vmem:[#allocation11 + $0x1d8] sm:$0xff]
    %v291 = vld [vmem:[#allocation11 + $0x1e0] sm:$0xff]
    %v292 = vld [vmem:[#allocation11 + $0x1e8] sm:$0xff]
    %v293 = vld [vmem:[#allocation11 + $0x1f0] sm:$0xff]
    %v294 = vld [vmem:[#allocation11 + $0x1f8] sm:$0xff]
    %v295 = vld [vmem:[#allocation11 + $0x200] sm:$0xff]
    %v296 = vld [vmem:[#allocation11 + $0x208] sm:$0xff]
    %v297 = vld [vmem:[#allocation11 + $0x210] sm:$0xff]
    %v298 = vld [vmem:[#allocation11 + $0x218] sm:$0xff]
    %v299 = vld [vmem:[#allocation11 + $0x220] sm:$0xff]
    %v300 = vld [vmem:[#allocation11 + $0x228] sm:$0xff]
    %v301 = vld [vmem:[#allocation11 + $0x230] sm:$0xff]
    %v302 = vld [vmem:[#allocation11 + $0x238] sm:$0xff]
    %v303 = vld [vmem:[#allocation11 + $0x240] sm:$0xff]
    %v304 = vld [vmem:[#allocation11 + $0x248] sm:$0xff]
    %v305 = vld [vmem:[#allocation11 + $0x250] sm:$0xff]
    %v306 = vld [vmem:[#allocation11 + $0x258] sm:$0xff]
    %v307 = vld [vmem:[#allocation11 + $0x260] sm:$0xff]
    %v308 = vld [vmem:[#allocation11 + $0x268] sm:$0xff]
    %v309 = vld [vmem:[#allocation11 + $0x270] sm:$0xff]
    %v310 = vld [vmem:[#allocation11 + $0x278] sm:$0xff]
    %v311 = vld [vmem:[#allocation11 + $0x280] sm:$0xff]
    %v312 = vld [vmem:[#allocation11 + $0x288] sm:$0xff]
    %v313 = vld [vmem:[#allocation11 + $0x290] sm:$0xff]
    %v314 = vld [vmem:[#allocation11 + $0x298] sm:$0xff]
    %v315 = vld [vmem:[#allocation11 + $0x2a0] sm:$0xff]
    %v316 = vld [vmem:[#allocation11 + $0x2a8] sm:$0xff]
    %v317 = vld [vmem:[#allocation11 + $0x2b0] sm:$0xff]
    %v318 = vld [vmem:[#allocation11 + $0x2b8] sm:$0xff]
    %v319 = vld [vmem:[#allocation11 + $0x2c0] sm:$0xff]
    %v320 = vld [vmem:[#allocation11 + $0x2c8] sm:$0xff]
    %v321 = vld [vmem:[#allocation11 + $0x2d0] sm:$0xff]
    %v322 = vld [vmem:[#allocation11 + $0x2d8] sm:$0xff]
    %v323 = vld [vmem:[#allocation11 + $0x2e0] sm:$0xff]
    %v324 = vld [vmem:[#allocation11 + $0x2e8] sm:$0xff]
    %v325 = vld [vmem:[#allocation11 + $0x2f0] sm:$0xff]
    %v326 = vld [vmem:[#allocation11 + $0x2f8] sm:$0xff]
    %v327 = vld [vmem:[#allocation11 + $0x300] sm:$0xff]
    %v328 = vld [vmem:[#allocation11 + $0x308] sm:$0xff]
    %v329 = vld [vmem:[#allocation11 + $0x310] sm:$0xff]
    %v330 = vld [vmem:[#allocation11 + $0x318] sm:$0xff]
    %v331 = vld [vmem:[#allocation11 + $0x320] sm:$0xff]
    %v332 = vld [vmem:[#allocation11 + $0x328] sm:$0xff]
    %v333 = vld [vmem:[#allocation11 + $0x330] sm:$0xff]
    %v334 = vld [vmem:[#allocation11 + $0x338] sm:$0xff]
    %v335 = vld [vmem:[#allocation11 + $0x340] sm:$0xff]
    %v336 = vld [vmem:[#allocation11 + $0x348] sm:$0xff]
    %v337 = vld [vmem:[#allocation11 + $0x350] sm:$0xff]
    %v338 = vld [vmem:[#allocation11 + $0x358] sm:$0xff]
    %v339 = vld [vmem:[#allocation11 + $0x360] sm:$0xff]
    %v340 = vld [vmem:[#allocation11 + $0x368] sm:$0xff]
    %v341 = vld [vmem:[#allocation11 + $0x370] sm:$0xff]
    %v342 = vld [vmem:[#allocation11 + $0x378] sm:$0xff]
    %v343 = vld [vmem:[#allocation11 + $0x380] sm:$0xff]
    %v344 = vld [vmem:[#allocation11 + $0x388] sm:$0xff]
    %v345 = vld [vmem:[#allocation11 + $0x390] sm:$0xff]
    %v346 = vld [vmem:[#allocation11 + $0x398] sm:$0xff]
    %v347 = vld [vmem:[#allocation11 + $0x3a0] sm:$0xff]
    %v348 = vld [vmem:[#allocation11 + $0x3a8] sm:$0xff]
    %v349 = vld [vmem:[#allocation11 + $0x3b0] sm:$0xff]
    %v350 = vld [vmem:[#allocation11 + $0x3b8] sm:$0xff]
    %v351 = vld [vmem:[#allocation11 + $0x3c0] sm:$0xff]
    %v352 = vld [vmem:[#allocation11 + $0x3c8] sm:$0xff]
    %v353 = vld [vmem:[#allocation11 + $0x3d0] sm:$0xff]
    %v354 = vld [vmem:[#allocation11 + $0x3d8] sm:$0xff]
    %v355 = vld [vmem:[#allocation11 + $0x3e0] sm:$0xff]
    %v356 = vld [vmem:[#allocation11 + $0x3e8] sm:$0xff]
    %v357 = vld [vmem:[#allocation11 + $0x3f0] sm:$0xff]
    %v358 = vld [vmem:[#allocation11 + $0x3f8] sm:$0xff]
    %v359 = vld [vmem:[#allocation11 + $0x400] sm:$0xff]
    %v360 = vld [vmem:[#allocation11 + $0x408] sm:$0xff]
    %v361 = vld [vmem:[#allocation11 + $0x410] sm:$0xff]
    %v362 = vld [vmem:[#allocation11 + $0x418] sm:$0xff]
    %v363 = vld [vmem:[#allocation11 + $0x420] sm:$0xff]
    %v364 = vld [vmem:[#allocation11 + $0x428] sm:$0xff]
    %v365 = vld [vmem:[#allocation11 + $0x430] sm:$0xff]
    %v366 = vld [vmem:[#allocation11 + $0x438] sm:$0xff]
    %v367 = vld [vmem:[#allocation11 + $0x440] sm:$0xff]
    %v368 = vld [vmem:[#allocation11 + $0x448] sm:$0xff]
    %v369 = vld [vmem:[#allocation11 + $0x450] sm:$0xff]
    %v370 = vld [vmem:[#allocation11 + $0x458] sm:$0xff]
    %v371 = vld [vmem:[#allocation11 + $0x460] sm:$0xff]
    %v372 = vld [vmem:[#allocation11 + $0x468] sm:$0xff]
    %v373 = vld [vmem:[#allocation11 + $0x470] sm:$0xff]
    %v374 = vld [vmem:[#allocation11 + $0x478] sm:$0xff]
    %v375 = vld [vmem:[#allocation11 + $0x480] sm:$0xff]
    %v376 = vld [vmem:[#allocation11 + $0x488] sm:$0xff]
    %v377 = vld [vmem:[#allocation11 + $0x490] sm:$0xff]
    %v378 = vld [vmem:[#allocation11 + $0x498] sm:$0xff]
    %v379 = vld [vmem:[#allocation11 + $0x4a0] sm:$0xff]
    %v380 = vld [vmem:[#allocation11 + $0x4a8] sm:$0xff]
    %v381 = vld [vmem:[#allocation11 + $0x4b0] sm:$0xff]
    %v382 = vld [vmem:[#allocation11 + $0x4b8] sm:$0xff]
    %v383 = vld [vmem:[#allocation11 + $0x4c0] sm:$0xff]
    %v384 = vld [vmem:[#allocation11 + $0x4c8] sm:$0xff]
    %v385 = vld [vmem:[#allocation11 + $0x4d0] sm:$0xff]
    %v386 = vld [vmem:[#allocation11 + $0x4d8] sm:$0xff]
    %v387 = vld [vmem:[#allocation11 + $0x4e0] sm:$0xff]
    %v388 = vld [vmem:[#allocation11 + $0x4e8] sm:$0xff]
    %v389 = vld [vmem:[#allocation11 + $0x4f0] sm:$0xff]
    %v390 = vld [vmem:[#allocation11 + $0x4f8] sm:$0xff]
    %v391 = vld [vmem:[#allocation11 + $0x500] sm:$0xff]
    %v392 = vld [vmem:[#allocation11 + $0x508] sm:$0xff]
    %v393 = vld [vmem:[#allocation11 + $0x510] sm:$0xff]
    %v394 = vld [vmem:[#allocation11 + $0x518] sm:$0xff]
    %v395 = vld [vmem:[#allocation11 + $0x520] sm:$0xff]
    %v396 = vld [vmem:[#allocation11 + $0x528] sm:$0xff]
    %v397 = vld [vmem:[#allocation11 + $0x530] sm:$0xff]
    %v398 = vld [vmem:[#allocation11 + $0x538] sm:$0xff]
    %v399 = vld [vmem:[#allocation11 + $0x540] sm:$0xff]
    %v400 = vld [vmem:[#allocation11 + $0x548] sm:$0xff]
    %v401 = vld [vmem:[#allocation11 + $0x550] sm:$0xff]
    %v402 = vld [vmem:[#allocation11 + $0x558] sm:$0xff]
    %v403 = vld [vmem:[#allocation11 + $0x560] sm:$0xff]
    %v404 = vld [vmem:[#allocation11 + $0x568] sm:$0xff]
    %v405 = vld [vmem:[#allocation11 + $0x570] sm:$0xff]
    %v406 = vld [vmem:[#allocation11 + $0x578] sm:$0xff]
    %v407 = vld [vmem:[#allocation11 + $0x580] sm:$0xff]
    %v408 = vld [vmem:[#allocation11 + $0x588] sm:$0xff]
    %v409 = vld [vmem:[#allocation11 + $0x590] sm:$0xff]
    %v410 = vld [vmem:[#allocation11 + $0x598] sm:$0xff]
    %v411 = vld [vmem:[#allocation11 + $0x5a0] sm:$0xff]
    %v412 = vld [vmem:[#allocation11 + $0x5a8] sm:$0xff]
    %v413 = vld [vmem:[#allocation11 + $0x5b0] sm:$0xff]
    %v414 = vld [vmem:[#allocation11 + $0x5b8] sm:$0xff]
    %v415 = vld [vmem:[#allocation11 + $0x5c0] sm:$0xff]
    %v416 = vld [vmem:[#allocation11 + $0x5c8] sm:$0xff]
    %v417 = vld [vmem:[#allocation11 + $0x5d0] sm:$0xff]
    %v418 = vld [vmem:[#allocation11 + $0x5d8] sm:$0xff]
    %v419 = vld [vmem:[#allocation11 + $0x5e0] sm:$0xff]
    %v420 = vld [vmem:[#allocation11 + $0x5e8] sm:$0xff]
    %v421 = vld [vmem:[#allocation11 + $0x5f0] sm:$0xff]
    %v422 = vld [vmem:[#allocation11 + $0x5f8] sm:$0xff]
    %v423 = vld [vmem:[#allocation11 + $0x600] sm:$0xff]
    %v424 = vld [vmem:[#allocation11 + $0x608] sm:$0xff]
    %v425 = vld [vmem:[#allocation11 + $0x610] sm:$0xff]
    %v426 = vld [vmem:[#allocation11 + $0x618] sm:$0xff]
    %v427 = vld [vmem:[#allocation11 + $0x620] sm:$0xff]
    %v428 = vld [vmem:[#allocation11 + $0x628] sm:$0xff]
    %v429 = vld [vmem:[#allocation11 + $0x630] sm:$0xff]
    %v430 = vld [vmem:[#allocation11 + $0x638] sm:$0xff]
    %v431 = vld [vmem:[#allocation11 + $0x640] sm:$0xff]
    %v432 = vld [vmem:[#allocation11 + $0x648] sm:$0xff]
    %v433 = vld [vmem:[#allocation11 + $0x650] sm:$0xff]
    %v434 = vld [vmem:[#allocation11 + $0x658] sm:$0xff]
    %v435 = vld [vmem:[#allocation11 + $0x660] sm:$0xff]
    %v436 = vld [vmem:[#allocation11 + $0x668] sm:$0xff]
    %v437 = vld [vmem:[#allocation11 + $0x670] sm:$0xff]
    %v438 = vld [vmem:[#allocation11 + $0x678] sm:$0xff]
    %v439 = vld [vmem:[#allocation11 + $0x680] sm:$0xff]
    %v440 = vld [vmem:[#allocation11 + $0x688] sm:$0xff]
    %v441 = vld [vmem:[#allocation11 + $0x690] sm:$0xff]
    %v442 = vld [vmem:[#allocation11 + $0x698] sm:$0xff]
    %v443 = vld [vmem:[#allocation11 + $0x6a0] sm:$0xff]
    %v444 = vld [vmem:[#allocation11 + $0x6a8] sm:$0xff]
    %v445 = vld [vmem:[#allocation11 + $0x6b0] sm:$0xff]
    %v446 = vld [vmem:[#allocation11 + $0x6b8] sm:$0xff]
    %v447 = vld [vmem:[#allocation11 + $0x6c0] sm:$0xff]
    %v448 = vld [vmem:[#allocation11 + $0x6c8] sm:$0xff]
    %v449 = vld [vmem:[#allocation11 + $0x6d0] sm:$0xff]
    %v450 = vld [vmem:[#allocation11 + $0x6d8] sm:$0xff]
    %v451 = vld [vmem:[#allocation11 + $0x6e0] sm:$0xff]
    %v452 = vld [vmem:[#allocation11 + $0x6e8] sm:$0xff]
    %v453 = vld [vmem:[#allocation11 + $0x6f0] sm:$0xff]
    %v454 = vld [vmem:[#allocation11 + $0x6f8] sm:$0xff]
    %v455 = vld [vmem:[#allocation11 + $0x700] sm:$0xff]
    %v456 = vld [vmem:[#allocation11 + $0x708] sm:$0xff]
    %v457 = vld [vmem:[#allocation11 + $0x710] sm:$0xff]
    %v458 = vld [vmem:[#allocation11 + $0x718] sm:$0xff]
    %v459 = vld [vmem:[#allocation11 + $0x720] sm:$0xff]
    %v460 = vld [vmem:[#allocation11 + $0x728] sm:$0xff]
    %v461 = vld [vmem:[#allocation11 + $0x730] sm:$0xff]
    %v462 = vld [vmem:[#allocation11 + $0x738] sm:$0xff]
    %v463 = vld [vmem:[#allocation11 + $0x740] sm:$0xff]
    %v464 = vld [vmem:[#allocation11 + $0x748] sm:$0xff]
    %v465 = vld [vmem:[#allocation11 + $0x750] sm:$0xff]
    %v466 = vld [vmem:[#allocation11 + $0x758] sm:$0xff]
    %v467 = vld [vmem:[#allocation11 + $0x760] sm:$0xff]
    %v468 = vld [vmem:[#allocation11 + $0x768] sm:$0xff]
    %v469 = vld [vmem:[#allocation11 + $0x770] sm:$0xff]
    %v470 = vld [vmem:[#allocation11 + $0x778] sm:$0xff]
    %v471 = vld [vmem:[#allocation11 + $0x780] sm:$0xff]
    %v472 = vld [vmem:[#allocation11 + $0x788] sm:$0xff]
    %v473 = vld [vmem:[#allocation11 + $0x790] sm:$0xff]
    %v474 = vld [vmem:[#allocation11 + $0x798] sm:$0xff]
    %v475 = vld [vmem:[#allocation11 + $0x7a0] sm:$0xff]
    %v476 = vld [vmem:[#allocation11 + $0x7a8] sm:$0xff]
    %v477 = vld [vmem:[#allocation11 + $0x7b0] sm:$0xff]
    %v478 = vld [vmem:[#allocation11 + $0x7b8] sm:$0xff]
    %v479 = vld [vmem:[#allocation11 + $0x7c0] sm:$0xff]
    %v480 = vld [vmem:[#allocation11 + $0x7c8] sm:$0xff]
    %v481 = vld [vmem:[#allocation11 + $0x7d0] sm:$0xff]
    %v482 = vld [vmem:[#allocation11 + $0x7d8] sm:$0xff]
    %v483 = vld [vmem:[#allocation11 + $0x7e0] sm:$0xff]
    %v484 = vld [vmem:[#allocation11 + $0x7e8] sm:$0xff]
    %v485 = vld [vmem:[#allocation11 + $0x7f0] sm:$0xff]
    %v486 = vld [vmem:[#allocation11 + $0x7f8] sm:$0xff]
    %v487 = vld [vmem:[#allocation11 + $0x800] sm:$0xff]
    %v488 = vld [vmem:[#allocation11 + $0x808] sm:$0xff]
    %v489 = vld [vmem:[#allocation11 + $0x810] sm:$0xff]
    %v490 = vld [vmem:[#allocation11 + $0x818] sm:$0xff]
    %v491 = vld [vmem:[#allocation11 + $0x820] sm:$0xff]
    %v492 = vld [vmem:[#allocation11 + $0x828] sm:$0xff]
    %v493 = vld [vmem:[#allocation11 + $0x830] sm:$0xff]
    %v494 = vld [vmem:[#allocation11 + $0x838] sm:$0xff]
    %v495 = vld [vmem:[#allocation11 + $0x840] sm:$0xff]
    %v496 = vld [vmem:[#allocation11 + $0x848] sm:$0xff]
    %v497 = vld [vmem:[#allocation11 + $0x850] sm:$0xff]
    %v498 = vld [vmem:[#allocation11 + $0x858] sm:$0xff]
    %v499 = vld [vmem:[#allocation11 + $0x860] sm:$0xff]
    %v500 = vld [vmem:[#allocation11 + $0x868] sm:$0xff]
    %v501 = vld [vmem:[#allocation11 + $0x870] sm:$0xff]
    %v502 = vld [vmem:[#allocation11 + $0x878] sm:$0xff]
    %v503 = vld [vmem:[#allocation11 + $0x880] sm:$0xff]
    %v504 = vld [vmem:[#allocation11 + $0x888] sm:$0xff]
    %v505 = vld [vmem:[#allocation11 + $0x890] sm:$0xff]
    %v506 = vld [vmem:[#allocation11 + $0x898] sm:$0xff]
    %v507 = vld [vmem:[#allocation11 + $0x8a0] sm:$0xff]
    %v508 = vld [vmem:[#allocation11 + $0x8a8] sm:$0xff]
    %v509 = vld [vmem:[#allocation11 + $0x8b0] sm:$0xff]
    %v510 = vld [vmem:[#allocation11 + $0x8b8] sm:$0xff]
    %v511 = vld [vmem:[#allocation11 + $0x8c0] sm:$0xff]
    %v512 = vld [vmem:[#allocation11 + $0x8c8] sm:$0xff]
    %v513 = vld [vmem:[#allocation11 + $0x8d0] sm:$0xff]
    %v514 = vld [vmem:[#allocation11 + $0x8d8] sm:$0xff]
    %v515 = vld [vmem:[#allocation11 + $0x8e0] sm:$0xff]
    %v516 = vld [vmem:[#allocation11 + $0x8e8] sm:$0xff]
    %v517 = vld [vmem:[#allocation11 + $0x8f0] sm:$0xff]
    %v518 = vld [vmem:[#allocation11 + $0x8f8] sm:$0xff]
    %v519 = vld [vmem:[#allocation11 + $0x900] sm:$0xff]
    %v520 = vld [vmem:[#allocation11 + $0x908] sm:$0xff]
    %v521 = vld [vmem:[#allocation11 + $0x910] sm:$0xff]
    %v522 = vld [vmem:[#allocation11 + $0x918] sm:$0xff]
    %v523 = vld [vmem:[#allocation11 + $0x920] sm:$0xff]
    %v524 = vld [vmem:[#allocation11 + $0x928] sm:$0xff]
    %v525 = vld [vmem:[#allocation11 + $0x930] sm:$0xff]
    %v526 = vld [vmem:[#allocation11 + $0x938] sm:$0xff]
    %v527 = vld [vmem:[#allocation11 + $0x940] sm:$0xff]
    %v528 = vld [vmem:[#allocation11 + $0x948] sm:$0xff]
    %v529 = vld [vmem:[#allocation11 + $0x950] sm:$0xff]
    %v530 = vld [vmem:[#allocation11 + $0x958] sm:$0xff]
    %v531 = vld [vmem:[#allocation11 + $0x960] sm:$0xff]
    %v532 = vld [vmem:[#allocation11 + $0x968] sm:$0xff]
    %v533 = vld [vmem:[#allocation11 + $0x970] sm:$0xff]
    %v534 = vld [vmem:[#allocation11 + $0x978] sm:$0xff]
    %v535 = vld [vmem:[#allocation11 + $0x980] sm:$0xff]
    %v536 = vld [vmem:[#allocation11 + $0x988] sm:$0xff]
    %v537 = vld [vmem:[#allocation11 + $0x990] sm:$0xff]
    %v538 = vld [vmem:[#allocation11 + $0x998] sm:$0xff]
    %v539 = vld [vmem:[#allocation11 + $0x9a0] sm:$0xff]
    %v540 = vld [vmem:[#allocation11 + $0x9a8] sm:$0xff]
    %v541 = vld [vmem:[#allocation11 + $0x9b0] sm:$0xff]
    %v542 = vld [vmem:[#allocation11 + $0x9b8] sm:$0xff]
    %v543 = vld [vmem:[#allocation11 + $0x9c0] sm:$0xff]
    %v544 = vld [vmem:[#allocation11 + $0x9c8] sm:$0xff]
    %v545 = vld [vmem:[#allocation11 + $0x9d0] sm:$0xff]
    %v546 = vld [vmem:[#allocation11 + $0x9d8] sm:$0xff]
    %v547 = vld [vmem:[#allocation11 + $0x9e0] sm:$0xff]
    %v548 = vld [vmem:[#allocation11 + $0x9e8] sm:$0xff]
    %v549 = vld [vmem:[#allocation11 + $0x9f0] sm:$0xff]
    %v550 = vld [vmem:[#allocation11 + $0x9f8] sm:$0xff]
    %v551 = vld [vmem:[#allocation11 + $0xa00] sm:$0xff]
    %v552 = vld [vmem:[#allocation11 + $0xa08] sm:$0xff]
    %v553 = vld [vmem:[#allocation11 + $0xa10] sm:$0xff]
    %v554 = vld [vmem:[#allocation11 + $0xa18] sm:$0xff]
    %v555 = vld [vmem:[#allocation11 + $0xa20] sm:$0xff]
    %v556 = vld [vmem:[#allocation11 + $0xa28] sm:$0xff]
    %v557 = vld [vmem:[#allocation11 + $0xa30] sm:$0xff]
    %v558 = vld [vmem:[#allocation11 + $0xa38] sm:$0xff]
    %v559 = vld [vmem:[#allocation11 + $0xa40] sm:$0xff]
    %v560 = vld [vmem:[#allocation11 + $0xa48] sm:$0xff]
    %v561 = vld [vmem:[#allocation11 + $0xa50] sm:$0xff]
    %v562 = vld [vmem:[#allocation11 + $0xa58] sm:$0xff]
    %v563 = vld [vmem:[#allocation11 + $0xa60] sm:$0xff]
    %v564 = vld [vmem:[#allocation11 + $0xa68] sm:$0xff]
    %v565 = vld [vmem:[#allocation11 + $0xa70] sm:$0xff]
    %v566 = vld [vmem:[#allocation11 + $0xa78] sm:$0xff]
    %v567 = vld [vmem:[#allocation11 + $0xa80] sm:$0xff]
    %v568 = vld [vmem:[#allocation11 + $0xa88] sm:$0xff]
    %v569 = vld [vmem:[#allocation11 + $0xa90] sm:$0xff]
    %v570 = vld [vmem:[#allocation11 + $0xa98] sm:$0xff]
    %v571 = vld [vmem:[#allocation11 + $0xaa0] sm:$0xff]
    %v572 = vld [vmem:[#allocation11 + $0xaa8] sm:$0xff]
    %v573 = vld [vmem:[#allocation11 + $0xab0] sm:$0xff]
    %v574 = vld [vmem:[#allocation11 + $0xab8] sm:$0xff]
    %v575 = vld [vmem:[#allocation11 + $0xac0] sm:$0xff]
    %v576 = vld [vmem:[#allocation11 + $0xac8] sm:$0xff]
    %v577 = vld [vmem:[#allocation11 + $0xad0] sm:$0xff]
    %v578 = vld [vmem:[#allocation11 + $0xad8] sm:$0xff]
    %v579 = vld [vmem:[#allocation11 + $0xae0] sm:$0xff]
    %v580 = vld [vmem:[#allocation11 + $0xae8] sm:$0xff]
    %v581 = vld [vmem:[#allocation11 + $0xaf0] sm:$0xff]
    %v582 = vld [vmem:[#allocation11 + $0xaf8] sm:$0xff]
    %v583 = vld [vmem:[#allocation11 + $0xb00] sm:$0xff]
    %v584 = vld [vmem:[#allocation11 + $0xb08] sm:$0xff]
    %v585 = vld [vmem:[#allocation11 + $0xb10] sm:$0xff]
    %v586 = vld [vmem:[#allocation11 + $0xb18] sm:$0xff]
    %v587 = vld [vmem:[#allocation11 + $0xb20] sm:$0xff]
    %v588 = vld [vmem:[#allocation11 + $0xb28] sm:$0xff]
    %v589 = vld [vmem:[#allocation11 + $0xb30] sm:$0xff]
    %v590 = vld [vmem:[#allocation11 + $0xb38] sm:$0xff]
    %v591 = vld [vmem:[#allocation11 + $0xb40] sm:$0xff]
    %v592 = vld [vmem:[#allocation11 + $0xb48] sm:$0xff]
    %v593 = vld [vmem:[#allocation11 + $0xb50] sm:$0xff]
    %v594 = vld [vmem:[#allocation11 + $0xb58] sm:$0xff]
    %v595 = vld [vmem:[#allocation11 + $0xb60] sm:$0xff]
    %v596 = vld [vmem:[#allocation11 + $0xb68] sm:$0xff]
    %v597 = vld [vmem:[#allocation11 + $0xb70] sm:$0xff]
    %v598 = vld [vmem:[#allocation11 + $0xb78] sm:$0xff]
    %v599 = vld [vmem:[#allocation11 + $0xb80] sm:$0xff]
    %v600 = vld [vmem:[#allocation11 + $0xb88] sm:$0xff]
    %v601 = vld [vmem:[#allocation11 + $0xb90] sm:$0xff]
    %v602 = vld [vmem:[#allocation11 + $0xb98] sm:$0xff]
    %v603 = vld [vmem:[#allocation11 + $0xba0] sm:$0xff]
    %v604 = vld [vmem:[#allocation11 + $0xba8] sm:$0xff]
    %v605 = vld [vmem:[#allocation11 + $0xbb0] sm:$0xff]
    %v606 = vld [vmem:[#allocation11 + $0xbb8] sm:$0xff]
    %v607 = vld [vmem:[#allocation11 + $0xbc0] sm:$0xff]
    %v608 = vld [vmem:[#allocation11 + $0xbc8] sm:$0xff]
    %v609 = vld [vmem:[#allocation11 + $0xbd0] sm:$0xff]
    %v610 = vld [vmem:[#allocation11 + $0xbd8] sm:$0xff]
    %v611 = vld [vmem:[#allocation11 + $0xbe0] sm:$0xff]
    %v612 = vld [vmem:[#allocation11 + $0xbe8] sm:$0xff]
    %v613 = vld [vmem:[#allocation11 + $0xbf0] sm:$0xff]
    %v614 = vld [vmem:[#allocation11 + $0xbf8] sm:$0xff]
    %v615 = vld [vmem:[#allocation11 + $0xc00] sm:$0xff]
    %v616 = vld [vmem:[#allocation11 + $0xc08] sm:$0xff]
    %v617 = vld [vmem:[#allocation11 + $0xc10] sm:$0xff]
    %v618 = vld [vmem:[#allocation11 + $0xc18] sm:$0xff]
    %v619 = vld [vmem:[#allocation11 + $0xc20] sm:$0xff]
    %v620 = vld [vmem:[#allocation11 + $0xc28] sm:$0xff]
    %v621 = vld [vmem:[#allocation11 + $0xc30] sm:$0xff]
    %v622 = vld [vmem:[#allocation11 + $0xc38] sm:$0xff]
    %v623 = vld [vmem:[#allocation11 + $0xc40] sm:$0xff]
    %v624 = vld [vmem:[#allocation11 + $0xc48] sm:$0xff]
    %v625 = vld [vmem:[#allocation11 + $0xc50] sm:$0xff]
    %v626 = vld [vmem:[#allocation11 + $0xc58] sm:$0xff]
    %v627 = vld [vmem:[#allocation11 + $0xc60] sm:$0xff]
    %v628 = vld [vmem:[#allocation11 + $0xc68] sm:$0xff]
    %v629 = vld [vmem:[#allocation11 + $0xc70] sm:$0xff]
    %v630 = vld [vmem:[#allocation11 + $0xc78] sm:$0xff]
    %v631 = vld [vmem:[#allocation11 + $0xc80] sm:$0xff]
    %v632 = vld [vmem:[#allocation11 + $0xc88] sm:$0xff]
    %v633 = vld [vmem:[#allocation11 + $0xc90] sm:$0xff]
    %v634 = vld [vmem:[#allocation11 + $0xc98] sm:$0xff]
    %v635 = vld [vmem:[#allocation11 + $0xca0] sm:$0xff]
    %v636 = vld [vmem:[#allocation11 + $0xca8] sm:$0xff]
    %v637 = vld [vmem:[#allocation11 + $0xcb0] sm:$0xff]
    %v638 = vld [vmem:[#allocation11 + $0xcb8] sm:$0xff]
    %v639 = vld [vmem:[#allocation11 + $0xcc0] sm:$0xff]
    %v640 = vld [vmem:[#allocation11 + $0xcc8] sm:$0xff]
    %v641 = vld [vmem:[#allocation11 + $0xcd0] sm:$0xff]
    %v642 = vld [vmem:[#allocation11 + $0xcd8] sm:$0xff]
    %v643 = vld [vmem:[#allocation11 + $0xce0] sm:$0xff]
    %v644 = vld [vmem:[#allocation11 + $0xce8] sm:$0xff]
    %v645 = vld [vmem:[#allocation11 + $0xcf0] sm:$0xff]
    %v646 = vld [vmem:[#allocation11 + $0xcf8] sm:$0xff]
    %v647 = vld [vmem:[#allocation11 + $0xd00] sm:$0xff]
    %v648 = vld [vmem:[#allocation11 + $0xd08] sm:$0xff]
    %v649 = vld [vmem:[#allocation11 + $0xd10] sm:$0xff]
    %v650 = vld [vmem:[#allocation11 + $0xd18] sm:$0xff]
    %v651 = vld [vmem:[#allocation11 + $0xd20] sm:$0xff]
    %v652 = vld [vmem:[#allocation11 + $0xd28] sm:$0xff]
    %v653 = vld [vmem:[#allocation11 + $0xd30] sm:$0xff]
    %v654 = vld [vmem:[#allocation11 + $0xd38] sm:$0xff]
    %v655 = vld [vmem:[#allocation11 + $0xd40] sm:$0xff]
    %v656 = vld [vmem:[#allocation11 + $0xd48] sm:$0xff]
    %v657 = vld [vmem:[#allocation11 + $0xd50] sm:$0xff]
    %v658 = vld [vmem:[#allocation11 + $0xd58] sm:$0xff]
    %v659 = vld [vmem:[#allocation11 + $0xd60] sm:$0xff]
    %v660 = vld [vmem:[#allocation11 + $0xd68] sm:$0xff]
    %v661 = vld [vmem:[#allocation11 + $0xd70] sm:$0xff]
    %v662 = vld [vmem:[#allocation11 + $0xd78] sm:$0xff]
    %v663 = vld [vmem:[#allocation11 + $0xd80] sm:$0xff]
    %v664 = vld [vmem:[#allocation11 + $0xd88] sm:$0xff]
    %v665 = vld [vmem:[#allocation11 + $0xd90] sm:$0xff]
    %v666 = vld [vmem:[#allocation11 + $0xd98] sm:$0xff]
    %v667 = vld [vmem:[#allocation11 + $0xda0] sm:$0xff]
    %v668 = vld [vmem:[#allocation11 + $0xda8] sm:$0xff]
    %v669 = vld [vmem:[#allocation11 + $0xdb0] sm:$0xff]
    %v670 = vld [vmem:[#allocation11 + $0xdb8] sm:$0xff]
    %v671 = vld [vmem:[#allocation11 + $0xdc0] sm:$0xff]
    %v672 = vld [vmem:[#allocation11 + $0xdc8] sm:$0xff]
    %v673 = vld [vmem:[#allocation11 + $0xdd0] sm:$0xff]
    %v674 = vld [vmem:[#allocation11 + $0xdd8] sm:$0xff]
    %v675 = vld [vmem:[#allocation11 + $0xde0] sm:$0xff]
    %v676 = vld [vmem:[#allocation11 + $0xde8] sm:$0xff]
    %v677 = vld [vmem:[#allocation11 + $0xdf0] sm:$0xff]
    %v678 = vld [vmem:[#allocation11 + $0xdf8] sm:$0xff]
    %v679 = vld [vmem:[#allocation11 + $0xe00] sm:$0xff]
    %v680 = vld [vmem:[#allocation11 + $0xe08] sm:$0xff]
    %v681 = vld [vmem:[#allocation11 + $0xe10] sm:$0xff]
    %v682 = vld [vmem:[#allocation11 + $0xe18] sm:$0xff]
    %v683 = vld [vmem:[#allocation11 + $0xe20] sm:$0xff]
    %v684 = vld [vmem:[#allocation11 + $0xe28] sm:$0xff]
    %v685 = vld [vmem:[#allocation11 + $0xe30] sm:$0xff]
    %v686 = vld [vmem:[#allocation11 + $0xe38] sm:$0xff]
    %v687 = vld [vmem:[#allocation11 + $0xe40] sm:$0xff]
    %v688 = vld [vmem:[#allocation11 + $0xe48] sm:$0xff]
    %v689 = vld [vmem:[#allocation11 + $0xe50] sm:$0xff]
    %v690 = vld [vmem:[#allocation11 + $0xe58] sm:$0xff]
    %v691 = vld [vmem:[#allocation11 + $0xe60] sm:$0xff]
    %v692 = vld [vmem:[#allocation11 + $0xe68] sm:$0xff]
    %v693 = vld [vmem:[#allocation11 + $0xe70] sm:$0xff]
    %v694 = vld [vmem:[#allocation11 + $0xe78] sm:$0xff]
    %v695 = vld [vmem:[#allocation11 + $0xe80] sm:$0xff]
    %v696 = vld [vmem:[#allocation11 + $0xe88] sm:$0xff]
    %v697 = vld [vmem:[#allocation11 + $0xe90] sm:$0xff]
    %v698 = vld [vmem:[#allocation11 + $0xe98] sm:$0xff]
    %v699 = vld [vmem:[#allocation11 + $0xea0] sm:$0xff]
    %v700 = vld [vmem:[#allocation11 + $0xea8] sm:$0xff]
    %v701 = vld [vmem:[#allocation11 + $0xeb0] sm:$0xff]
    %v702 = vld [vmem:[#allocation11 + $0xeb8] sm:$0xff]
    %v703 = vld [vmem:[#allocation11 + $0xec0] sm:$0xff]
    %v704 = vld [vmem:[#allocation11 + $0xec8] sm:$0xff]
    %v705 = vld [vmem:[#allocation11 + $0xed0] sm:$0xff]
    %v706 = vld [vmem:[#allocation11 + $0xed8] sm:$0xff]
    %v707 = vld [vmem:[#allocation11 + $0xee0] sm:$0xff]
    %v708 = vld [vmem:[#allocation11 + $0xee8] sm:$0xff]
    %v709 = vld [vmem:[#allocation11 + $0xef0] sm:$0xff]
    %v710 = vld [vmem:[#allocation11 + $0xef8] sm:$0xff]
    %v711 = vld [vmem:[#allocation11 + $0xf00] sm:$0xff]
    %v712 = vld [vmem:[#allocation11 + $0xf08] sm:$0xff]
    %v713 = vld [vmem:[#allocation11 + $0xf10] sm:$0xff]
    %v714 = vld [vmem:[#allocation11 + $0xf18] sm:$0xff]
    %v715 = vld [vmem:[#allocation11 + $0xf20] sm:$0xff]
    %v716 = vld [vmem:[#allocation11 + $0xf28] sm:$0xff]
    %v717 = vld [vmem:[#allocation11 + $0xf30] sm:$0xff]
    %v718 = vld [vmem:[#allocation11 + $0xf38] sm:$0xff]
    %v719 = vld [vmem:[#allocation11 + $0xf40] sm:$0xff]
    %v720 = vld [vmem:[#allocation11 + $0xf48] sm:$0xff]
    %v721 = vld [vmem:[#allocation11 + $0xf50] sm:$0xff]
    %v722 = vld [vmem:[#allocation11 + $0xf58] sm:$0xff]
    %v723 = vld [vmem:[#allocation11 + $0xf60] sm:$0xff]
    %v724 = vld [vmem:[#allocation11 + $0xf68] sm:$0xff]
    %v725 = vld [vmem:[#allocation11 + $0xf70] sm:$0xff]
    %v726 = vld [vmem:[#allocation11 + $0xf78] sm:$0xff]
    %v727 = vld [vmem:[#allocation11 + $0xf80] sm:$0xff]
    %v728 = vld [vmem:[#allocation11 + $0xf88] sm:$0xff]
    %v729 = vld [vmem:[#allocation11 + $0xf90] sm:$0xff]
    %v730 = vld [vmem:[#allocation11 + $0xf98] sm:$0xff]
    %v731 = vld [vmem:[#allocation11 + $0xfa0] sm:$0xff]
    %v732 = vld [vmem:[#allocation11 + $0xfa8] sm:$0xff]
    %v733 = vld [vmem:[#allocation11 + $0xfb0] sm:$0xff]
    %v734 = vld [vmem:[#allocation11 + $0xfb8] sm:$0xff]
    %v735 = vld [vmem:[#allocation11 + $0xfc0] sm:$0xff]
    %v736 = vld [vmem:[#allocation11 + $0xfc8] sm:$0xff]
    %v737 = vld [vmem:[#allocation11 + $0xfd0] sm:$0xff]
    %v738 = vld [vmem:[#allocation11 + $0xfd8] sm:$0xff]
    %v739 = vld [vmem:[#allocation11 + $0xfe0] sm:$0xff]
    %v740 = vld [vmem:[#allocation11 + $0xfe8] sm:$0xff]
    %v741 = vld [vmem:[#allocation11 + $0xff0] sm:$0xff]
    %v742 = vld [vmem:[#allocation11 + $0xff8] sm:$0xff]
    %v743 = vld [vmem:[#allocation11 + $0x1000] sm:$0xff]
    %v744 = vld [vmem:[#allocation11 + $0x1008] sm:$0xff]
    %v745 = vld [vmem:[#allocation11 + $0x1010] sm:$0xff]
    %v746 = vld [vmem:[#allocation11 + $0x1018] sm:$0xff]
    %v747 = vld [vmem:[#allocation11 + $0x1020] sm:$0xff]
    %v748 = vld [vmem:[#allocation11 + $0x1028] sm:$0xff]
    %v749 = vld [vmem:[#allocation11 + $0x1030] sm:$0xff]
    %v750 = vld [vmem:[#allocation11 + $0x1038] sm:$0xff]
    %v751 = vld [vmem:[#allocation11 + $0x1040] sm:$0xff]
    %v752 = vld [vmem:[#allocation11 + $0x1048] sm:$0xff]
    %v753 = vld [vmem:[#allocation11 + $0x1050] sm:$0xff]
    %v754 = vld [vmem:[#allocation11 + $0x1058] sm:$0xff]
    %v755 = vld [vmem:[#allocation11 + $0x1060] sm:$0xff]
    %v756 = vld [vmem:[#allocation11 + $0x1068] sm:$0xff]
    %v757 = vld [vmem:[#allocation11 + $0x1070] sm:$0xff]
    %v758 = vld [vmem:[#allocation11 + $0x1078] sm:$0xff]
    %v759 = vld [vmem:[#allocation11 + $0x1080] sm:$0xff]
    %v760 = vld [vmem:[#allocation11 + $0x1088] sm:$0xff]
    %v761 = vld [vmem:[#allocation11 + $0x1090] sm:$0xff]
    %v762 = vld [vmem:[#allocation11 + $0x1098] sm:$0xff]
    %v763 = vld [vmem:[#allocation11 + $0x10a0] sm:$0xff]
    %v764 = vld [vmem:[#allocation11 + $0x10a8] sm:$0xff]
    %v765 = vld [vmem:[#allocation11 + $0x10b0] sm:$0xff]
    %v766 = vld [vmem:[#allocation11 + $0x10b8] sm:$0xff]
    %v767 = vld [vmem:[#allocation11 + $0x10c0] sm:$0xff]
    %v768 = vld [vmem:[#allocation11 + $0x10c8] sm:$0xff]
    %v769 = vld [vmem:[#allocation11 + $0x10d0] sm:$0xff]
    %v770 = vld [vmem:[#allocation11 + $0x10d8] sm:$0xff]
    %v771 = vld [vmem:[#allocation11 + $0x10e0] sm:$0xff]
    %v772 = vld [vmem:[#allocation11 + $0x10e8] sm:$0xff]
    %v773 = vld [vmem:[#allocation11 + $0x10f0] sm:$0xff]
    %v774 = vld [vmem:[#allocation11 + $0x10f8] sm:$0xff]
    %v775 = vld [vmem:[#allocation11 + $0x1100] sm:$0xff]
    %v776 = vld [vmem:[#allocation11 + $0x1108] sm:$0xff]
    %v777 = vld [vmem:[#allocation11 + $0x1110] sm:$0xff]
    %v778 = vld [vmem:[#allocation11 + $0x1118] sm:$0xff]
    %v779 = vld [vmem:[#allocation11 + $0x1120] sm:$0xff]
    %v780 = vld [vmem:[#allocation11 + $0x1128] sm:$0xff]
    %v781 = vld [vmem:[#allocation11 + $0x1130] sm:$0xff]
    %v782 = vld [vmem:[#allocation11 + $0x1138] sm:$0xff]
    %v783 = vld [vmem:[#allocation11 + $0x1140] sm:$0xff]
    %v784 = vld [vmem:[#allocation11 + $0x1148] sm:$0xff]
    %v785 = vld [vmem:[#allocation11 + $0x1150] sm:$0xff]
    %v786 = vld [vmem:[#allocation11 + $0x1158] sm:$0xff]
    %v787 = vld [vmem:[#allocation11 + $0x1160] sm:$0xff]
    %v788 = vld [vmem:[#allocation11 + $0x1168] sm:$0xff]
    %v789 = vld [vmem:[#allocation11 + $0x1170] sm:$0xff]
    %v790 = vld [vmem:[#allocation11 + $0x1178] sm:$0xff]
    %v791 = vld [vmem:[#allocation11 + $0x1180] sm:$0xff]
    %v792 = vld [vmem:[#allocation11 + $0x1188] sm:$0xff]
    %v793 = vld [vmem:[#allocation11 + $0x1190] sm:$0xff]
    %v794 = vld [vmem:[#allocation11 + $0x1198] sm:$0xff]
    %v795 = vld [vmem:[#allocation11 + $0x11a0] sm:$0xff]
    %v796 = vld [vmem:[#allocation11 + $0x11a8] sm:$0xff]
    %v797 = vld [vmem:[#allocation11 + $0x11b0] sm:$0xff]
    %v798 = vld [vmem:[#allocation11 + $0x11b8] sm:$0xff]
    %v799 = vld [vmem:[#allocation11 + $0x11c0] sm:$0xff]
    %v800 = vld [vmem:[#allocation11 + $0x11c8] sm:$0xff]
    %v801 = vld [vmem:[#allocation11 + $0x11d0] sm:$0xff]
    %v802 = vld [vmem:[#allocation11 + $0x11d8] sm:$0xff]
    %v803 = vld [vmem:[#allocation11 + $0x11e0] sm:$0xff]
    %v804 = vld [vmem:[#allocation11 + $0x11e8] sm:$0xff]
    %v805 = vld [vmem:[#allocation11 + $0x11f0] sm:$0xff]
    %v806 = vld [vmem:[#allocation11 + $0x11f8] sm:$0xff]
    %v807 = vld [vmem:[#allocation11 + $0x1200] sm:$0xff]
    %v808 = vld [vmem:[#allocation11 + $0x1208] sm:$0xff]
    %v809 = vld [vmem:[#allocation11 + $0x1210] sm:$0xff]
    %v810 = vld [vmem:[#allocation11 + $0x1218] sm:$0xff]
    %v811 = vld [vmem:[#allocation11 + $0x1220] sm:$0xff]
    %v812 = vld [vmem:[#allocation11 + $0x1228] sm:$0xff]
    %v813 = vld [vmem:[#allocation11 + $0x1230] sm:$0xff]
    %v814 = vld [vmem:[#allocation11 + $0x1238] sm:$0xff]
    %v815 = vld [vmem:[#allocation11 + $0x1240] sm:$0xff]
    %v816 = vld [vmem:[#allocation11 + $0x1248] sm:$0xff]
    %v817 = vld [vmem:[#allocation11 + $0x1250] sm:$0xff]
    %v818 = vld [vmem:[#allocation11 + $0x1258] sm:$0xff]
    %v819 = vld [vmem:[#allocation11 + $0x1260] sm:$0xff]
    %v820 = vld [vmem:[#allocation11 + $0x1268] sm:$0xff]
    %v821 = vld [vmem:[#allocation11 + $0x1270] sm:$0xff]
    %v822 = vld [vmem:[#allocation11 + $0x1278] sm:$0xff]
    %v823 = vld [vmem:[#allocation11 + $0x1280] sm:$0xff]
    %v824 = vld [vmem:[#allocation11 + $0x1288] sm:$0xff]
    %v825 = vld [vmem:[#allocation11 + $0x1290] sm:$0xff]
    %v826 = vld [vmem:[#allocation11 + $0x1298] sm:$0xff]
    %v827 = vld [vmem:[#allocation11 + $0x12a0] sm:$0xff]
    %v828 = vld [vmem:[#allocation11 + $0x12a8] sm:$0xff]
    %v829 = vld [vmem:[#allocation11 + $0x12b0] sm:$0xff]
    %v830 = vld [vmem:[#allocation11 + $0x12b8] sm:$0xff]
    %v831 = vld [vmem:[#allocation11 + $0x12c0] sm:$0xff]
    %v832 = vld [vmem:[#allocation11 + $0x12c8] sm:$0xff]
    %v833 = vld [vmem:[#allocation11 + $0x12d0] sm:$0xff]
    %v834 = vld [vmem:[#allocation11 + $0x12d8] sm:$0xff]
    %v835 = vld [vmem:[#allocation11 + $0x12e0] sm:$0xff]
    %v836 = vld [vmem:[#allocation11 + $0x12e8] sm:$0xff]
    %v837 = vld [vmem:[#allocation11 + $0x12f0] sm:$0xff]
    %v838 = vld [vmem:[#allocation11 + $0x12f8] sm:$0xff]
    %v839 = vld [vmem:[#allocation11 + $0x1300] sm:$0xff]
    %v840 = vld [vmem:[#allocation11 + $0x1308] sm:$0xff]
    %v841 = vld [vmem:[#allocation11 + $0x1310] sm:$0xff]
    %v842 = vld [vmem:[#allocation11 + $0x1318] sm:$0xff]
    %v843 = vld [vmem:[#allocation11 + $0x1320] sm:$0xff]
    %v844 = vld [vmem:[#allocation11 + $0x1328] sm:$0xff]
    %v845 = vld [vmem:[#allocation11 + $0x1330] sm:$0xff]
    %v846 = vld [vmem:[#allocation11 + $0x1338] sm:$0xff]
    %v847 = vld [vmem:[#allocation11 + $0x1340] sm:$0xff]
    %v848 = vld [vmem:[#allocation11 + $0x1348] sm:$0xff]
    %v849 = vld [vmem:[#allocation11 + $0x1350] sm:$0xff]
    %v850 = vld [vmem:[#allocation11 + $0x1358] sm:$0xff]
    %v851 = vld [vmem:[#allocation11 + $0x1360] sm:$0xff]
    %v852 = vld [vmem:[#allocation11 + $0x1368] sm:$0xff]
    %v853 = vld [vmem:[#allocation11 + $0x1370] sm:$0xff]
    %v854 = vld [vmem:[#allocation11 + $0x1378] sm:$0xff]
    %v855 = vld [vmem:[#allocation11 + $0x1380] sm:$0xff]
    %v856 = vld [vmem:[#allocation11 + $0x1388] sm:$0xff]
    %v857 = vld [vmem:[#allocation11 + $0x1390] sm:$0xff]
    %v858 = vld [vmem:[#allocation11 + $0x1398] sm:$0xff]
    %v859 = vld [vmem:[#allocation11 + $0x13a0] sm:$0xff]
    %v860 = vld [vmem:[#allocation11 + $0x13a8] sm:$0xff]
    %v861 = vld [vmem:[#allocation11 + $0x13b0] sm:$0xff]
    %v862 = vld [vmem:[#allocation11 + $0x13b8] sm:$0xff]
    %v863 = vld [vmem:[#allocation11 + $0x13c0] sm:$0xff]
    %v864 = vld [vmem:[#allocation11 + $0x13c8] sm:$0xff]
    %v865 = vld [vmem:[#allocation11 + $0x13d0] sm:$0xff]
    %v866 = vld [vmem:[#allocation11 + $0x13d8] sm:$0xff]
    %v867 = vld [vmem:[#allocation11 + $0x13e0] sm:$0xff]
    %v868 = vld [vmem:[#allocation11 + $0x13e8] sm:$0xff]
    %v869 = vld [vmem:[#allocation11 + $0x13f0] sm:$0xff]
    %v870 = vld [vmem:[#allocation11 + $0x13f8] sm:$0xff]
    %v871 = vld [vmem:[#allocation11 + $0x1400] sm:$0xff]
    %v872 = vld [vmem:[#allocation11 + $0x1408] sm:$0xff]
    %v873 = vld [vmem:[#allocation11 + $0x1410] sm:$0xff]
    %v874 = vld [vmem:[#allocation11 + $0x1418] sm:$0xff]
    %v875 = vld [vmem:[#allocation11 + $0x1420] sm:$0xff]
    %v876 = vld [vmem:[#allocation11 + $0x1428] sm:$0xff]
    %v877 = vld [vmem:[#allocation11 + $0x1430] sm:$0xff]
    %v878 = vld [vmem:[#allocation11 + $0x1438] sm:$0xff]
    %v879 = vld [vmem:[#allocation11 + $0x1440] sm:$0xff]
    %v880 = vld [vmem:[#allocation11 + $0x1448] sm:$0xff]
    %v881 = vld [vmem:[#allocation11 + $0x1450] sm:$0xff]
    %v882 = vld [vmem:[#allocation11 + $0x1458] sm:$0xff]
    %v883 = vld [vmem:[#allocation11 + $0x1460] sm:$0xff]
    %v884 = vld [vmem:[#allocation11 + $0x1468] sm:$0xff]
    %v885 = vld [vmem:[#allocation11 + $0x1470] sm:$0xff]
    %v886 = vld [vmem:[#allocation11 + $0x1478] sm:$0xff]
    %v887 = vld [vmem:[#allocation11 + $0x1480] sm:$0xff]
    %v888 = vld [vmem:[#allocation11 + $0x1488] sm:$0xff]
    %v889 = vld [vmem:[#allocation11 + $0x1490] sm:$0xff]
    %v890 = vld [vmem:[#allocation11 + $0x1498] sm:$0xff]
    %v891 = vld [vmem:[#allocation11 + $0x14a0] sm:$0xff]
    %v892 = vld [vmem:[#allocation11 + $0x14a8] sm:$0xff]
    %v893 = vld [vmem:[#allocation11 + $0x14b0] sm:$0xff]
    %v894 = vld [vmem:[#allocation11 + $0x14b8] sm:$0xff]
    %v895 = vld [vmem:[#allocation11 + $0x14c0] sm:$0xff]
    %v896 = vld [vmem:[#allocation11 + $0x14c8] sm:$0xff]
    %v897 = vld [vmem:[#allocation11 + $0x14d0] sm:$0xff]
    %v898 = vld [vmem:[#allocation11 + $0x14d8] sm:$0xff]
    %v899 = vld [vmem:[#allocation11 + $0x14e0] sm:$0xff]
    %v900 = vld [vmem:[#allocation11 + $0x14e8] sm:$0xff]
    %v901 = vld [vmem:[#allocation11 + $0x14f0] sm:$0xff]
    %v902 = vld [vmem:[#allocation11 + $0x14f8] sm:$0xff]
    %v903 = vld [vmem:[#allocation11 + $0x1500] sm:$0xff]
    %v904 = vld [vmem:[#allocation11 + $0x1508] sm:$0xff]
    %v905 = vld [vmem:[#allocation11 + $0x1510] sm:$0xff]
    %v906 = vld [vmem:[#allocation11 + $0x1518] sm:$0xff]
    %v907 = vld [vmem:[#allocation11 + $0x1520] sm:$0xff]
    %v908 = vld [vmem:[#allocation11 + $0x1528] sm:$0xff]
    %v909 = vld [vmem:[#allocation11 + $0x1530] sm:$0xff]
    %v910 = vld [vmem:[#allocation11 + $0x1538] sm:$0xff]
    %v911 = vld [vmem:[#allocation11 + $0x1540] sm:$0xff]
    %v912 = vld [vmem:[#allocation11 + $0x1548] sm:$0xff]
    %v913 = vld [vmem:[#allocation11 + $0x1550] sm:$0xff]
    %v914 = vld [vmem:[#allocation11 + $0x1558] sm:$0xff]
    %v915 = vld [vmem:[#allocation11 + $0x1560] sm:$0xff]
    %v916 = vld [vmem:[#allocation11 + $0x1568] sm:$0xff]
    %v917 = vld [vmem:[#allocation11 + $0x1570] sm:$0xff]
    %v918 = vld [vmem:[#allocation11 + $0x1578] sm:$0xff]
    %v919 = vld [vmem:[#allocation11 + $0x1580] sm:$0xff]
    %v920 = vld [vmem:[#allocation11 + $0x1588] sm:$0xff]
    %v921 = vld [vmem:[#allocation11 + $0x1590] sm:$0xff]
    %v922 = vld [vmem:[#allocation11 + $0x1598] sm:$0xff]
    %v923 = vld [vmem:[#allocation11 + $0x15a0] sm:$0xff]
    %v924 = vld [vmem:[#allocation11 + $0x15a8] sm:$0xff]
    %v925 = vld [vmem:[#allocation11 + $0x15b0] sm:$0xff]
    %v926 = vld [vmem:[#allocation11 + $0x15b8] sm:$0xff]
    %v927 = vld [vmem:[#allocation11 + $0x15c0] sm:$0xff]
    %v928 = vld [vmem:[#allocation11 + $0x15c8] sm:$0xff]
    %v929 = vld [vmem:[#allocation11 + $0x15d0] sm:$0xff]
    %v930 = vld [vmem:[#allocation11 + $0x15d8] sm:$0xff]
    %v931 = vld [vmem:[#allocation11 + $0x15e0] sm:$0xff]
    %v932 = vld [vmem:[#allocation11 + $0x15e8] sm:$0xff]
    %v933 = vld [vmem:[#allocation11 + $0x15f0] sm:$0xff]
    %v934 = vld [vmem:[#allocation11 + $0x15f8] sm:$0xff]
    %v935 = vld [vmem:[#allocation11 + $0x1600] sm:$0xff]
    %v936 = vld [vmem:[#allocation11 + $0x1608] sm:$0xff]
    %v937 = vld [vmem:[#allocation11 + $0x1610] sm:$0xff]
    %v938 = vld [vmem:[#allocation11 + $0x1618] sm:$0xff]
    %v939 = vld [vmem:[#allocation11 + $0x1620] sm:$0xff]
    %v940 = vld [vmem:[#allocation11 + $0x1628] sm:$0xff]
    %v941 = vld [vmem:[#allocation11 + $0x1630] sm:$0xff]
    %v942 = vld [vmem:[#allocation11 + $0x1638] sm:$0xff]
    %v943 = vld [vmem:[#allocation11 + $0x1640] sm:$0xff]
    %v944 = vld [vmem:[#allocation11 + $0x1648] sm:$0xff]
    %v945 = vld [vmem:[#allocation11 + $0x1650] sm:$0xff]
    %v946 = vld [vmem:[#allocation11 + $0x1658] sm:$0xff]
    %v947 = vld [vmem:[#allocation11 + $0x1660] sm:$0xff]
    %v948 = vld [vmem:[#allocation11 + $0x1668] sm:$0xff]
    %v949 = vld [vmem:[#allocation11 + $0x1670] sm:$0xff]
    %v950 = vld [vmem:[#allocation11 + $0x1678] sm:$0xff]
    %v951 = vld [vmem:[#allocation11 + $0x1680] sm:$0xff]
    %v952 = vld [vmem:[#allocation11 + $0x1688] sm:$0xff]
    %v953 = vld [vmem:[#allocation11 + $0x1690] sm:$0xff]
    %v954 = vld [vmem:[#allocation11 + $0x1698] sm:$0xff]
    %v955 = vld [vmem:[#allocation11 + $0x16a0] sm:$0xff]
    %v956 = vld [vmem:[#allocation11 + $0x16a8] sm:$0xff]
    %v957 = vld [vmem:[#allocation11 + $0x16b0] sm:$0xff]
    %v958 = vld [vmem:[#allocation11 + $0x16b8] sm:$0xff]
    %v959 = vld [vmem:[#allocation11 + $0x16c0] sm:$0xff]
    %v960 = vld [vmem:[#allocation11 + $0x16c8] sm:$0xff]
    %v961 = vld [vmem:[#allocation11 + $0x16d0] sm:$0xff]
    %v962 = vld [vmem:[#allocation11 + $0x16d8] sm:$0xff]
    %v963 = vld [vmem:[#allocation11 + $0x16e0] sm:$0xff]
    %v964 = vld [vmem:[#allocation11 + $0x16e8] sm:$0xff]
    %v965 = vld [vmem:[#allocation11 + $0x16f0] sm:$0xff]
    %v966 = vld [vmem:[#allocation11 + $0x16f8] sm:$0xff]
    %v967 = vld [vmem:[#allocation11 + $0x1700] sm:$0xff]
    %v968 = vld [vmem:[#allocation11 + $0x1708] sm:$0xff]
    %v969 = vld [vmem:[#allocation11 + $0x1710] sm:$0xff]
    %v970 = vld [vmem:[#allocation11 + $0x1718] sm:$0xff]
    %v971 = vld [vmem:[#allocation11 + $0x1720] sm:$0xff]
    %v972 = vld [vmem:[#allocation11 + $0x1728] sm:$0xff]
    %v973 = vld [vmem:[#allocation11 + $0x1730] sm:$0xff]
    %v974 = vld [vmem:[#allocation11 + $0x1738] sm:$0xff]
    %v975 = vld [vmem:[#allocation11 + $0x1740] sm:$0xff]
    %v976 = vld [vmem:[#allocation11 + $0x1748] sm:$0xff]
    %v977 = vld [vmem:[#allocation11 + $0x1750] sm:$0xff]
    %v978 = vld [vmem:[#allocation11 + $0x1758] sm:$0xff]
    %v979 = vld [vmem:[#allocation11 + $0x1760] sm:$0xff]
    %v980 = vld [vmem:[#allocation11 + $0x1768] sm:$0xff]
    %v981 = vld [vmem:[#allocation11 + $0x1770] sm:$0xff]
    %v982 = vld [vmem:[#allocation11 + $0x1778] sm:$0xff]
    %v983 = vld [vmem:[#allocation11 + $0x1780] sm:$0xff]
    %v984 = vld [vmem:[#allocation11 + $0x1788] sm:$0xff]
    %v985 = vld [vmem:[#allocation11 + $0x1790] sm:$0xff]
    %v986 = vld [vmem:[#allocation11 + $0x1798] sm:$0xff]
    %v987 = vld [vmem:[#allocation11 + $0x17a0] sm:$0xff]
    %v988 = vld [vmem:[#allocation11 + $0x17a8] sm:$0xff]
    %v989 = vld [vmem:[#allocation11 + $0x17b0] sm:$0xff]
    %v990 = vld [vmem:[#allocation11 + $0x17b8] sm:$0xff]
    %v991 = vld [vmem:[#allocation11 + $0x17c0] sm:$0xff]
    %v992 = vld [vmem:[#allocation11 + $0x17c8] sm:$0xff]
    %v993 = vld [vmem:[#allocation11 + $0x17d0] sm:$0xff]
    %v994 = vld [vmem:[#allocation11 + $0x17d8] sm:$0xff]
    %v995 = vld [vmem:[#allocation11 + $0x17e0] sm:$0xff]
    %v996 = vld [vmem:[#allocation11 + $0x17e8] sm:$0xff]
    %v997 = vld [vmem:[#allocation11 + $0x17f0] sm:$0xff]
    %v998 = vld [vmem:[#allocation11 + $0x17f8] sm:$0xff]
    %v999 = vld [vmem:[#allocation11 + $0x1800] sm:$0xff]
    %v1000 = vld [vmem:[#allocation11 + $0x1808] sm:$0xff]
    %v1001 = vld [vmem:[#allocation11 + $0x1810] sm:$0xff]
    %v1002 = vld [vmem:[#allocation11 + $0x1818] sm:$0xff]
    %v1003 = vld [vmem:[#allocation11 + $0x1820] sm:$0xff]
    %v1004 = vld [vmem:[#allocation11 + $0x1828] sm:$0xff]
    %v1005 = vld [vmem:[#allocation11 + $0x1830] sm:$0xff]
    %v1006 = vld [vmem:[#allocation11 + $0x1838] sm:$0xff]
    %v1007 = vld [vmem:[#allocation11 + $0x1840] sm:$0xff]
    %v1008 = vld [vmem:[#allocation11 + $0x1848] sm:$0xff]
    %v1009 = vld [vmem:[#allocation11 + $0x1850] sm:$0xff]
    %v1010 = vld [vmem:[#allocation11 + $0x1858] sm:$0xff]
    %v1011 = vld [vmem:[#allocation11 + $0x1860] sm:$0xff]
    %v1012 = vld [vmem:[#allocation11 + $0x1868] sm:$0xff]
    %v1013 = vld [vmem:[#allocation11 + $0x1870] sm:$0xff]
    %v1014 = vld [vmem:[#allocation11 + $0x1878] sm:$0xff]
    %v1015 = vld [vmem:[#allocation11 + $0x1880] sm:$0xff]
    %v1016 = vld [vmem:[#allocation11 + $0x1888] sm:$0xff]
    %v1017 = vld [vmem:[#allocation11 + $0x1890] sm:$0xff]
    %v1018 = vld [vmem:[#allocation11 + $0x1898] sm:$0xff]
    %v1019 = vld [vmem:[#allocation11 + $0x18a0] sm:$0xff]
    %v1020 = vld [vmem:[#allocation11 + $0x18a8] sm:$0xff]
    %v1021 = vld [vmem:[#allocation11 + $0x18b0] sm:$0xff]
    %v1022 = vld [vmem:[#allocation11 + $0x18b8] sm:$0xff]
    %v1023 = vld [vmem:[#allocation11 + $0x18c0] sm:$0xff]
    %v1024 = vld [vmem:[#allocation11 + $0x18c8] sm:$0xff]
    %v1025 = vld [vmem:[#allocation11 + $0x18d0] sm:$0xff]
    %v1026 = vld [vmem:[#allocation11 + $0x18d8] sm:$0xff]
    %v1027 = vld [vmem:[#allocation11 + $0x18e0] sm:$0xff]
    %v1028 = vld [vmem:[#allocation11 + $0x18e8] sm:$0xff]
    %v1029 = vld [vmem:[#allocation11 + $0x18f0] sm:$0xff]
    %v1030 = vld [vmem:[#allocation11 + $0x18f8] sm:$0xff]
    %v1031 = vld [vmem:[#allocation11 + $0x1900] sm:$0xff]
    %v1032 = vld [vmem:[#allocation11 + $0x1908] sm:$0xff]
    %v1033 = vld [vmem:[#allocation11 + $0x1910] sm:$0xff]
    %v1034 = vld [vmem:[#allocation11 + $0x1918] sm:$0xff]
    %v1035 = vld [vmem:[#allocation11 + $0x1920] sm:$0xff]
    %v1036 = vld [vmem:[#allocation11 + $0x1928] sm:$0xff]
    %v1037 = vld [vmem:[#allocation11 + $0x1930] sm:$0xff]
    %v1038 = vld [vmem:[#allocation11 + $0x1938] sm:$0xff]
    %v1039 = vld [vmem:[#allocation11 + $0x1940] sm:$0xff]
    %v1040 = vld [vmem:[#allocation11 + $0x1948] sm:$0xff]
    %v1041 = vld [vmem:[#allocation11 + $0x1950] sm:$0xff]
    %v1042 = vld [vmem:[#allocation11 + $0x1958] sm:$0xff]
    %v1043 = vld [vmem:[#allocation11 + $0x1960] sm:$0xff]
    %v1044 = vld [vmem:[#allocation11 + $0x1968] sm:$0xff]
    %v1045 = vld [vmem:[#allocation11 + $0x1970] sm:$0xff]
    %v1046 = vld [vmem:[#allocation11 + $0x1978] sm:$0xff]
    %v1047 = vld [vmem:[#allocation11 + $0x1980] sm:$0xff]
    %v1048 = vld [vmem:[#allocation11 + $0x1988] sm:$0xff]
    %v1049 = vld [vmem:[#allocation11 + $0x1990] sm:$0xff]
    %v1050 = vld [vmem:[#allocation11 + $0x1998] sm:$0xff]
    %v1051 = vld [vmem:[#allocation11 + $0x19a0] sm:$0xff]
    %v1052 = vld [vmem:[#allocation11 + $0x19a8] sm:$0xff]
    %v1053 = vld [vmem:[#allocation11 + $0x19b0] sm:$0xff]
    %v1054 = vld [vmem:[#allocation11 + $0x19b8] sm:$0xff]
    %v1055 = vld [vmem:[#allocation11 + $0x19c0] sm:$0xff]
    %v1056 = vld [vmem:[#allocation11 + $0x19c8] sm:$0xff]
    %v1057 = vld [vmem:[#allocation11 + $0x19d0] sm:$0xff]
    %v1058 = vld [vmem:[#allocation11 + $0x19d8] sm:$0xff]
    %v1059 = vld [vmem:[#allocation11 + $0x19e0] sm:$0xff]
    %v1060 = vld [vmem:[#allocation11 + $0x19e8] sm:$0xff]
    %v1061 = vld [vmem:[#allocation11 + $0x19f0] sm:$0xff]
    %v1062 = vld [vmem:[#allocation11 + $0x19f8] sm:$0xff]
    %v1063 = vld [vmem:[#allocation11 + $0x1a00] sm:$0xff]
    %v1064 = vld [vmem:[#allocation11 + $0x1a08] sm:$0xff]
    %v1065 = vld [vmem:[#allocation11 + $0x1a10] sm:$0xff]
    %v1066 = vld [vmem:[#allocation11 + $0x1a18] sm:$0xff]
    %v1067 = vld [vmem:[#allocation11 + $0x1a20] sm:$0xff]
    %v1068 = vld [vmem:[#allocation11 + $0x1a28] sm:$0xff]
    %v1069 = vld [vmem:[#allocation11 + $0x1a30] sm:$0xff]
    %v1070 = vld [vmem:[#allocation11 + $0x1a38] sm:$0xff]
    %v1071 = vld [vmem:[#allocation11 + $0x1a40] sm:$0xff]
    %v1072 = vld [vmem:[#allocation11 + $0x1a48] sm:$0xff]
    %v1073 = vld [vmem:[#allocation11 + $0x1a50] sm:$0xff]
    %v1074 = vld [vmem:[#allocation11 + $0x1a58] sm:$0xff]
    %v1075 = vld [vmem:[#allocation11 + $0x1a60] sm:$0xff]
    %v1076 = vld [vmem:[#allocation11 + $0x1a68] sm:$0xff]
    %v1077 = vld [vmem:[#allocation11 + $0x1a70] sm:$0xff]
    %v1078 = vld [vmem:[#allocation11 + $0x1a78] sm:$0xff]
    %v1079 = vld [vmem:[#allocation11 + $0x1a80] sm:$0xff]
    %v1080 = vld [vmem:[#allocation11 + $0x1a88] sm:$0xff]
    %v1081 = vld [vmem:[#allocation11 + $0x1a90] sm:$0xff]
    %v1082 = vld [vmem:[#allocation11 + $0x1a98] sm:$0xff]
    %v1083 = vld [vmem:[#allocation11 + $0x1aa0] sm:$0xff]
    %v1084 = vld [vmem:[#allocation11 + $0x1aa8] sm:$0xff]
    %v1085 = vld [vmem:[#allocation11 + $0x1ab0] sm:$0xff]
    %v1086 = vld [vmem:[#allocation11 + $0x1ab8] sm:$0xff]
    %v1087 = vld [vmem:[#allocation11 + $0x1ac0] sm:$0xff]
    %v1088 = vld [vmem:[#allocation11 + $0x1ac8] sm:$0xff]
    %v1089 = vld [vmem:[#allocation11 + $0x1ad0] sm:$0xff]
    %v1090 = vld [vmem:[#allocation11 + $0x1ad8] sm:$0xff]
    %v1091 = vld [vmem:[#allocation11 + $0x1ae0] sm:$0xff]
    %v1092 = vld [vmem:[#allocation11 + $0x1ae8] sm:$0xff]
    %v1093 = vld [vmem:[#allocation11 + $0x1af0] sm:$0xff]
    %v1094 = vld [vmem:[#allocation11 + $0x1af8] sm:$0xff]
    %v1095 = vld [vmem:[#allocation11 + $0x1b00] sm:$0xff]
    %v1096 = vld [vmem:[#allocation11 + $0x1b08] sm:$0xff]
    %v1097 = vld [vmem:[#allocation11 + $0x1b10] sm:$0xff]
    %v1098 = vld [vmem:[#allocation11 + $0x1b18] sm:$0xff]
    %v1099 = vld [vmem:[#allocation11 + $0x1b20] sm:$0xff]
    %v1100 = vld [vmem:[#allocation11 + $0x1b28] sm:$0xff]
    %v1101 = vld [vmem:[#allocation11 + $0x1b30] sm:$0xff]
    %v1102 = vld [vmem:[#allocation11 + $0x1b38] sm:$0xff]
    %v1103 = vld [vmem:[#allocation11 + $0x1b40] sm:$0xff]
    %v1104 = vld [vmem:[#allocation11 + $0x1b48] sm:$0xff]
    %v1105 = vld [vmem:[#allocation11 + $0x1b50] sm:$0xff]
    %v1106 = vld [vmem:[#allocation11 + $0x1b58] sm:$0xff]
    %v1107 = vld [vmem:[#allocation11 + $0x1b60] sm:$0xff]
    %v1108 = vld [vmem:[#allocation11 + $0x1b68] sm:$0xff]
    %v1109 = vld [vmem:[#allocation11 + $0x1b70] sm:$0xff]
    %v1110 = vld [vmem:[#allocation11 + $0x1b78] sm:$0xff]
    %v1111 = vld [vmem:[#allocation11 + $0x1b80] sm:$0xff]
    %v1112 = vld [vmem:[#allocation11 + $0x1b88] sm:$0xff]
    %v1113 = vld [vmem:[#allocation11 + $0x1b90] sm:$0xff]
    %v1114 = vld [vmem:[#allocation11 + $0x1b98] sm:$0xff]
    %v1115 = vld [vmem:[#allocation11 + $0x1ba0] sm:$0xff]
    %v1116 = vld [vmem:[#allocation11 + $0x1ba8] sm:$0xff]
    %v1117 = vld [vmem:[#allocation11 + $0x1bb0] sm:$0xff]
    %v1118 = vld [vmem:[#allocation11 + $0x1bb8] sm:$0xff]
    %v1119 = vld [vmem:[#allocation11 + $0x1bc0] sm:$0xff]
    %v1120 = vld [vmem:[#allocation11 + $0x1bc8] sm:$0xff]
    %v1121 = vld [vmem:[#allocation11 + $0x1bd0] sm:$0xff]
    %v1122 = vld [vmem:[#allocation11 + $0x1bd8] sm:$0xff]
    %v1123 = vld [vmem:[#allocation11 + $0x1be0] sm:$0xff]
    %v1124 = vld [vmem:[#allocation11 + $0x1be8] sm:$0xff]
    %v1125 = vld [vmem:[#allocation11 + $0x1bf0] sm:$0xff]
    %v1126 = vld [vmem:[#allocation11 + $0x1bf8] sm:$0xff]
    %v1127 = vld [vmem:[#allocation11 + $0x1c00] sm:$0xff]
    %v1128 = vld [vmem:[#allocation11 + $0x1c08] sm:$0xff]
    %v1129 = vld [vmem:[#allocation11 + $0x1c10] sm:$0xff]
    %v1130 = vld [vmem:[#allocation11 + $0x1c18] sm:$0xff]
    %v1131 = vld [vmem:[#allocation11 + $0x1c20] sm:$0xff]
    %v1132 = vld [vmem:[#allocation11 + $0x1c28] sm:$0xff]
    %v1133 = vld [vmem:[#allocation11 + $0x1c30] sm:$0xff]
    %v1134 = vld [vmem:[#allocation11 + $0x1c38] sm:$0xff]
    %v1135 = vld [vmem:[#allocation11 + $0x1c40] sm:$0xff]
    %v1136 = vld [vmem:[#allocation11 + $0x1c48] sm:$0xff]
    %v1137 = vld [vmem:[#allocation11 + $0x1c50] sm:$0xff]
    %v1138 = vld [vmem:[#allocation11 + $0x1c58] sm:$0xff]
    %v1139 = vld [vmem:[#allocation11 + $0x1c60] sm:$0xff]
    %v1140 = vld [vmem:[#allocation11 + $0x1c68] sm:$0xff]
    %v1141 = vld [vmem:[#allocation11 + $0x1c70] sm:$0xff]
    %v1142 = vld [vmem:[#allocation11 + $0x1c78] sm:$0xff]
    %v1143 = vld [vmem:[#allocation11 + $0x1c80] sm:$0xff]
    %v1144 = vld [vmem:[#allocation11 + $0x1c88] sm:$0xff]
    %v1145 = vld [vmem:[#allocation11 + $0x1c90] sm:$0xff]
    %v1146 = vld [vmem:[#allocation11 + $0x1c98] sm:$0xff]
    %v1147 = vld [vmem:[#allocation11 + $0x1ca0] sm:$0xff]
    %v1148 = vld [vmem:[#allocation11 + $0x1ca8] sm:$0xff]
    %v1149 = vld [vmem:[#allocation11 + $0x1cb0] sm:$0xff]
    %v1150 = vld [vmem:[#allocation11 + $0x1cb8] sm:$0xff]
    %v1151 = vld [vmem:[#allocation11 + $0x1cc0] sm:$0xff]
    %v1152 = vld [vmem:[#allocation11 + $0x1cc8] sm:$0xff]
    %v1153 = vld [vmem:[#allocation11 + $0x1cd0] sm:$0xff]
    %v1154 = vld [vmem:[#allocation11 + $0x1cd8] sm:$0xff]
    %v1155 = vld [vmem:[#allocation11 + $0x1ce0] sm:$0xff]
    %v1156 = vld [vmem:[#allocation11 + $0x1ce8] sm:$0xff]
    %v1157 = vld [vmem:[#allocation11 + $0x1cf0] sm:$0xff]
    %v1158 = vld [vmem:[#allocation11 + $0x1cf8] sm:$0xff]
    %v1159 = vld [vmem:[#allocation11 + $0x1d00] sm:$0xff]
    %v1160 = vld [vmem:[#allocation11 + $0x1d08] sm:$0xff]
    %v1161 = vld [vmem:[#allocation11 + $0x1d10] sm:$0xff]
    %v1162 = vld [vmem:[#allocation11 + $0x1d18] sm:$0xff]
    %v1163 = vld [vmem:[#allocation11 + $0x1d20] sm:$0xff]
    %v1164 = vld [vmem:[#allocation11 + $0x1d28] sm:$0xff]
    %v1165 = vld [vmem:[#allocation11 + $0x1d30] sm:$0xff]
    %v1166 = vld [vmem:[#allocation11 + $0x1d38] sm:$0xff]
    %v1167 = vld [vmem:[#allocation11 + $0x1d40] sm:$0xff]
    %v1168 = vld [vmem:[#allocation11 + $0x1d48] sm:$0xff]
    %v1169 = vld [vmem:[#allocation11 + $0x1d50] sm:$0xff]
    %v1170 = vld [vmem:[#allocation11 + $0x1d58] sm:$0xff]
    %v1171 = vld [vmem:[#allocation11 + $0x1d60] sm:$0xff]
    %v1172 = vld [vmem:[#allocation11 + $0x1d68] sm:$0xff]
    %v1173 = vld [vmem:[#allocation11 + $0x1d70] sm:$0xff]
    %v1174 = vld [vmem:[#allocation11 + $0x1d78] sm:$0xff]
    %v1175 = vld [vmem:[#allocation11 + $0x1d80] sm:$0xff]
    %v1176 = vld [vmem:[#allocation11 + $0x1d88] sm:$0xff]
    %v1177 = vld [vmem:[#allocation11 + $0x1d90] sm:$0xff]
    %v1178 = vld [vmem:[#allocation11 + $0x1d98] sm:$0xff]
    %v1179 = vld [vmem:[#allocation11 + $0x1da0] sm:$0xff]
    %v1180 = vld [vmem:[#allocation11 + $0x1da8] sm:$0xff]
    %v1181 = vld [vmem:[#allocation11 + $0x1db0] sm:$0xff]
    %v1182 = vld [vmem:[#allocation11 + $0x1db8] sm:$0xff]
    %v1183 = vld [vmem:[#allocation11 + $0x1dc0] sm:$0xff]
    %v1184 = vld [vmem:[#allocation11 + $0x1dc8] sm:$0xff]
    %v1185 = vld [vmem:[#allocation11 + $0x1dd0] sm:$0xff]
    %v1186 = vld [vmem:[#allocation11 + $0x1dd8] sm:$0xff]
    %v1187 = vld [vmem:[#allocation11 + $0x1de0] sm:$0xff]
    %v1188 = vld [vmem:[#allocation11 + $0x1de8] sm:$0xff]
    %v1189 = vld [vmem:[#allocation11 + $0x1df0] sm:$0xff]
    %v1190 = vld [vmem:[#allocation11 + $0x1df8] sm:$0xff]
    %v1191 = vld [vmem:[#allocation11 + $0x1e00] sm:$0xff]
    %v1192 = vld [vmem:[#allocation11 + $0x1e08] sm:$0xff]
    %v1193 = vld [vmem:[#allocation11 + $0x1e10] sm:$0xff]
    %v1194 = vld [vmem:[#allocation11 + $0x1e18] sm:$0xff]
    %v1195 = vld [vmem:[#allocation11 + $0x1e20] sm:$0xff]
    %v1196 = vld [vmem:[#allocation11 + $0x1e28] sm:$0xff]
    %v1197 = vld [vmem:[#allocation11 + $0x1e30] sm:$0xff]
    %v1198 = vld [vmem:[#allocation11 + $0x1e38] sm:$0xff]
    %v1199 = vld [vmem:[#allocation11 + $0x1e40] sm:$0xff]
    %v1200 = vld [vmem:[#allocation11 + $0x1e48] sm:$0xff]
    %v1201 = vld [vmem:[#allocation11 + $0x1e50] sm:$0xff]
    %v1202 = vld [vmem:[#allocation11 + $0x1e58] sm:$0xff]
    %v1203 = vld [vmem:[#allocation11 + $0x1e60] sm:$0xff]
    %v1204 = vld [vmem:[#allocation11 + $0x1e68] sm:$0xff]
    %v1205 = vld [vmem:[#allocation11 + $0x1e70] sm:$0xff]
    %v1206 = vld [vmem:[#allocation11 + $0x1e78] sm:$0xff]
    %v1207 = vld [vmem:[#allocation11 + $0x1e80] sm:$0xff]
    %v1208 = vld [vmem:[#allocation11 + $0x1e88] sm:$0xff]
    %v1209 = vld [vmem:[#allocation11 + $0x1e90] sm:$0xff]
    %v1210 = vld [vmem:[#allocation11 + $0x1e98] sm:$0xff]
    %v1211 = vld [vmem:[#allocation11 + $0x1ea0] sm:$0xff]
    %v1212 = vld [vmem:[#allocation11 + $0x1ea8] sm:$0xff]
    %v1213 = vld [vmem:[#allocation11 + $0x1eb0] sm:$0xff]
    %v1214 = vld [vmem:[#allocation11 + $0x1eb8] sm:$0xff]
    %v1215 = vld [vmem:[#allocation11 + $0x1ec0] sm:$0xff]
    %v1216 = vld [vmem:[#allocation11 + $0x1ec8] sm:$0xff]
    %v1217 = vld [vmem:[#allocation11 + $0x1ed0] sm:$0xff]
    %v1218 = vld [vmem:[#allocation11 + $0x1ed8] sm:$0xff]
    %v1219 = vld [vmem:[#allocation11 + $0x1ee0] sm:$0xff]
    %v1220 = vld [vmem:[#allocation11 + $0x1ee8] sm:$0xff]
    %v1221 = vld [vmem:[#allocation11 + $0x1ef0] sm:$0xff]
    %v1222 = vld [vmem:[#allocation11 + $0x1ef8] sm:$0xff]
    %v1223 = vld [vmem:[#allocation11 + $0x1f00] sm:$0xff]
    %v1224 = vld [vmem:[#allocation11 + $0x1f08] sm:$0xff]
    %v1225 = vld [vmem:[#allocation11 + $0x1f10] sm:$0xff]
    %v1226 = vld [vmem:[#allocation11 + $0x1f18] sm:$0xff]
    %v1227 = vld [vmem:[#allocation11 + $0x1f20] sm:$0xff]
    %v1228 = vld [vmem:[#allocation11 + $0x1f28] sm:$0xff]
    %v1229 = vld [vmem:[#allocation11 + $0x1f30] sm:$0xff]
    %v1230 = vld [vmem:[#allocation11 + $0x1f38] sm:$0xff]
    %v1231 = vld [vmem:[#allocation11 + $0x1f40] sm:$0xff]
    %v1232 = vld [vmem:[#allocation11 + $0x1f48] sm:$0xff]
    %v1233 = vld [vmem:[#allocation11 + $0x1f50] sm:$0xff]
    %v1234 = vld [vmem:[#allocation11 + $0x1f58] sm:$0xff]
    %v1235 = vld [vmem:[#allocation11 + $0x1f60] sm:$0xff]
    %v1236 = vld [vmem:[#allocation11 + $0x1f68] sm:$0xff]
    %v1237 = vld [vmem:[#allocation11 + $0x1f70] sm:$0xff]
    %v1238 = vld [vmem:[#allocation11 + $0x1f78] sm:$0xff]
    %v1239 = vld [vmem:[#allocation11 + $0x1f80] sm:$0xff]
    %v1240 = vld [vmem:[#allocation11 + $0x1f88] sm:$0xff]
    %v1241 = vld [vmem:[#allocation11 + $0x1f90] sm:$0xff]
    %v1242 = vld [vmem:[#allocation11 + $0x1f98] sm:$0xff]
    %v1243 = vld [vmem:[#allocation11 + $0x1fa0] sm:$0xff]
    %v1244 = vld [vmem:[#allocation11 + $0x1fa8] sm:$0xff]
    %v1245 = vld [vmem:[#allocation11 + $0x1fb0] sm:$0xff]
    %v1246 = vld [vmem:[#allocation11 + $0x1fb8] sm:$0xff]
    %v1247 = vld [vmem:[#allocation11 + $0x1fc0] sm:$0xff]
    %v1248 = vld [vmem:[#allocation11 + $0x1fc8] sm:$0xff]
    %v1249 = vld [vmem:[#allocation11 + $0x1fd0] sm:$0xff]
    %v1250 = vld [vmem:[#allocation11 + $0x1fd8] sm:$0xff]
    %v1251 = vld [vmem:[#allocation11 + $0x1fe0] sm:$0xff]
    %v1252 = vld [vmem:[#allocation11 + $0x1fe8] sm:$0xff]
    %v1253 = vld [vmem:[#allocation11 + $0x1ff0] sm:$0xff]
    %v1254 = vld [vmem:[#allocation11 + $0x1ff8] sm:$0xff]
    %1255 = vmatpush.msra.mxu0 %v471
    %1256 = vmatpush.msra.mxu0 %v455
    %1257 = vmatpush.msra.mxu0 %v439
    %1258 = vmatpush.msra.mxu0 %v423
    %1259 = vmatpush.msra.mxu0 %v407
    %1260 = vmatpush.msra.mxu0 %v391
    %1261 = vmatpush.msra.mxu0 %v375
    %1262 = vmatpush.msra.mxu0 %v359
    %1263 = vmatpush.msra.mxu0 %v343
    %1264 = vmatpush.msra.mxu0 %v327
    %1265 = vmatpush.msra.mxu0 %v311
    %1266 = vmatpush.msra.mxu0 %v295
    %1267 = vmatpush.msra.mxu0 %v279
    %1268 = vmatpush.msra.mxu0 %v263
    %1269 = vmatpush.msra.mxu0 %v247
    %1270 = vmatpush.msra.mxu0 %v231
    %1271 = vmatmul.f32.gmra.mxu0 %v227
    %v1272 = vpop.f32.mrf.mxu0
    %v1273 = vadd.f32 0.0, %v1272
    %1274 = vdwg.mxu0
    %1275 = vmatpush.msra.mxu0 %v727
    %1276 = vmatpush.msra.mxu0 %v711
    %1277 = vmatpush.msra.mxu0 %v695
    %1278 = vmatpush.msra.mxu0 %v679
    %1279 = vmatpush.msra.mxu0 %v663
    %1280 = vmatpush.msra.mxu0 %v647
    %1281 = vmatpush.msra.mxu0 %v631
    %1282 = vmatpush.msra.mxu0 %v615
    %1283 = vmatpush.msra.mxu0 %v599
    %1284 = vmatpush.msra.mxu0 %v583
    %1285 = vmatpush.msra.mxu0 %v567
    %1286 = vmatpush.msra.mxu0 %v551
    %1287 = vmatpush.msra.mxu0 %v535
    %1288 = vmatpush.msra.mxu0 %v519
    %1289 = vmatpush.msra.mxu0 %v503
    %1290 = vmatpush.msra.mxu0 %v487
    %1291 = vmatmul.f32.gmra.mxu0 %v228
    %v1292 = vpop.f32.mrf.mxu0
    %v1293 = vadd.f32 %v1273, %v1292
    %1294 = vdwg.mxu0
    %1295 = vmatpush.msra.mxu0 %v983
    %1296 = vmatpush.msra.mxu0 %v967
    %1297 = vmatpush.msra.mxu0 %v951
    %1298 = vmatpush.msra.mxu0 %v935
    %1299 = vmatpush.msra.mxu0 %v919
    %1300 = vmatpush.msra.mxu0 %v903
    %1301 = vmatpush.msra.mxu0 %v887
    %1302 = vmatpush.msra.mxu0 %v871
    %1303 = vmatpush.msra.mxu0 %v855
    %1304 = vmatpush.msra.mxu0 %v839
    %1305 = vmatpush.msra.mxu0 %v823
    %1306 = vmatpush.msra.mxu0 %v807
    %1307 = vmatpush.msra.mxu0 %v791
    %1308 = vmatpush.msra.mxu0 %v775
    %1309 = vmatpush.msra.mxu0 %v759
    %1310 = vmatpush.msra.mxu0 %v743
    %1311 = vmatmul.f32.gmra.mxu0 %v229
    %v1312 = vpop.f32.mrf.mxu0
    %v1313 = vadd.f32 %v1293, %v1312
    %1314 = vdwg.mxu0
    %1315 = vmatpush.msra.mxu0 %v1239
    %1316 = vmatpush.msra.mxu0 %v1223
    %1317 = vmatpush.msra.mxu0 %v1207
    %1318 = vmatpush.msra.mxu0 %v1191
    %1319 = vmatpush.msra.mxu0 %v1175
    %1320 = vmatpush.msra.mxu0 %v1159
    %1321 = vmatpush.msra.mxu0 %v1143
    %1322 = vmatpush.msra.mxu0 %v1127
    %1323 = vmatpush.msra.mxu0 %v1111
    %1324 = vmatpush.msra.mxu0 %v1095
    %1325 = vmatpush.msra.mxu0 %v1079
    %1326 = vmatpush.msra.mxu0 %v1063
    %1327 = vmatpush.msra.mxu0 %v1047
    %1328 = vmatpush.msra.mxu0 %v1031
    %1329 = vmatpush.msra.mxu0 %v1015
    %1330 = vmatpush.msra.mxu0 %v999
    %1331 = vmatmul.f32.gmra.mxu0 %v230
    %v1332 = vpop.f32.mrf.mxu0
    %v1333 = vadd.f32 %v1313, %v1332
    %1334 = vdwg.mxu0
    %1335 = vmatpush.msra.mxu0 %v472
    %1336 = vmatpush.msra.mxu0 %v456
    %1337 = vmatpush.msra.mxu0 %v440
    %1338 = vmatpush.msra.mxu0 %v424
    %1339 = vmatpush.msra.mxu0 %v408
    %1340 = vmatpush.msra.mxu0 %v392
    %1341 = vmatpush.msra.mxu0 %v376
    %1342 = vmatpush.msra.mxu0 %v360
    %1343 = vmatpush.msra.mxu0 %v344
    %1344 = vmatpush.msra.mxu0 %v328
    %1345 = vmatpush.msra.mxu0 %v312
    %1346 = vmatpush.msra.mxu0 %v296
    %1347 = vmatpush.msra.mxu0 %v280
    %1348 = vmatpush.msra.mxu0 %v264
    %1349 = vmatpush.msra.mxu0 %v248
    %1350 = vmatpush.msra.mxu0 %v232
    %1351 = vmatmul.f32.gmra.mxu0 %v227
    %v1352 = vpop.f32.mrf.mxu0
    %v1353 = vadd.f32 0.0, %v1352
    %1354 = vdwg.mxu0
    %1355 = vmatpush.msra.mxu0 %v728
    %1356 = vmatpush.msra.mxu0 %v712
    %1357 = vmatpush.msra.mxu0 %v696
    %1358 = vmatpush.msra.mxu0 %v680
    %1359 = vmatpush.msra.mxu0 %v664
    %1360 = vmatpush.msra.mxu0 %v648
    %1361 = vmatpush.msra.mxu0 %v632
    %1362 = vmatpush.msra.mxu0 %v616
    %1363 = vmatpush.msra.mxu0 %v600
    %1364 = vmatpush.msra.mxu0 %v584
    %1365 = vmatpush.msra.mxu0 %v568
    %1366 = vmatpush.msra.mxu0 %v552
    %1367 = vmatpush.msra.mxu0 %v536
    %1368 = vmatpush.msra.mxu0 %v520
    %1369 = vmatpush.msra.mxu0 %v504
    %1370 = vmatpush.msra.mxu0 %v488
    %1371 = vmatmul.f32.gmra.mxu0 %v228
    %v1372 = vpop.f32.mrf.mxu0
    %v1373 = vadd.f32 %v1353, %v1372
    %1374 = vdwg.mxu0
    %1375 = vmatpush.msra.mxu0 %v984
    %1376 = vmatpush.msra.mxu0 %v968
    %1377 = vmatpush.msra.mxu0 %v952
    %1378 = vmatpush.msra.mxu0 %v936
    %1379 = vmatpush.msra.mxu0 %v920
    %1380 = vmatpush.msra.mxu0 %v904
    %1381 = vmatpush.msra.mxu0 %v888
    %1382 = vmatpush.msra.mxu0 %v872
    %1383 = vmatpush.msra.mxu0 %v856
    %1384 = vmatpush.msra.mxu0 %v840
    %1385 = vmatpush.msra.mxu0 %v824
    %1386 = vmatpush.msra.mxu0 %v808
    %1387 = vmatpush.msra.mxu0 %v792
    %1388 = vmatpush.msra.mxu0 %v776
    %1389 = vmatpush.msra.mxu0 %v760
    %1390 = vmatpush.msra.mxu0 %v744
    %1391 = vmatmul.f32.gmra.mxu0 %v229
    %v1392 = vpop.f32.mrf.mxu0
    %v1393 = vadd.f32 %v1373, %v1392
    %1394 = vdwg.mxu0
    %1395 = vmatpush.msra.mxu0 %v1240
    %1396 = vmatpush.msra.mxu0 %v1224
    %1397 = vmatpush.msra.mxu0 %v1208
    %1398 = vmatpush.msra.mxu0 %v1192
    %1399 = vmatpush.msra.mxu0 %v1176
    %1400 = vmatpush.msra.mxu0 %v1160
    %1401 = vmatpush.msra.mxu0 %v1144
    %1402 = vmatpush.msra.mxu0 %v1128
    %1403 = vmatpush.msra.mxu0 %v1112
    %1404 = vmatpush.msra.mxu0 %v1096
    %1405 = vmatpush.msra.mxu0 %v1080
    %1406 = vmatpush.msra.mxu0 %v1064
    %1407 = vmatpush.msra.mxu0 %v1048
    %1408 = vmatpush.msra.mxu0 %v1032
    %1409 = vmatpush.msra.mxu0 %v1016
    %1410 = vmatpush.msra.mxu0 %v1000
    %1411 = vmatmul.f32.gmra.mxu0 %v230
    %v1412 = vpop.f32.mrf.mxu0
    %v1413 = vadd.f32 %v1393, %v1412
    %1414 = vdwg.mxu0
    %1415 = vmatpush.msra.mxu0 %v473
    %1416 = vmatpush.msra.mxu0 %v457
    %1417 = vmatpush.msra.mxu0 %v441
    %1418 = vmatpush.msra.mxu0 %v425
    %1419 = vmatpush.msra.mxu0 %v409
    %1420 = vmatpush.msra.mxu0 %v393
    %1421 = vmatpush.msra.mxu0 %v377
    %1422 = vmatpush.msra.mxu0 %v361
    %1423 = vmatpush.msra.mxu0 %v345
    %1424 = vmatpush.msra.mxu0 %v329
    %1425 = vmatpush.msra.mxu0 %v313
    %1426 = vmatpush.msra.mxu0 %v297
    %1427 = vmatpush.msra.mxu0 %v281
    %1428 = vmatpush.msra.mxu0 %v265
    %1429 = vmatpush.msra.mxu0 %v249
    %1430 = vmatpush.msra.mxu0 %v233
    %1431 = vmatmul.f32.gmra.mxu0 %v227
    %v1432 = vpop.f32.mrf.mxu0
    %v1433 = vadd.f32 0.0, %v1432
    %1434 = vdwg.mxu0
    %1435 = vmatpush.msra.mxu0 %v729
    %1436 = vmatpush.msra.mxu0 %v713
    %1437 = vmatpush.msra.mxu0 %v697
    %1438 = vmatpush.msra.mxu0 %v681
    %1439 = vmatpush.msra.mxu0 %v665
    %1440 = vmatpush.msra.mxu0 %v649
    %1441 = vmatpush.msra.mxu0 %v633
    %1442 = vmatpush.msra.mxu0 %v617
    %1443 = vmatpush.msra.mxu0 %v601
    %1444 = vmatpush.msra.mxu0 %v585
    %1445 = vmatpush.msra.mxu0 %v569
    %1446 = vmatpush.msra.mxu0 %v553
    %1447 = vmatpush.msra.mxu0 %v537
    %1448 = vmatpush.msra.mxu0 %v521
    %1449 = vmatpush.msra.mxu0 %v505
    %1450 = vmatpush.msra.mxu0 %v489
    %1451 = vmatmul.f32.gmra.mxu0 %v228
    %v1452 = vpop.f32.mrf.mxu0
    %v1453 = vadd.f32 %v1433, %v1452
    %1454 = vdwg.mxu0
    %1455 = vmatpush.msra.mxu0 %v985
    %1456 = vmatpush.msra.mxu0 %v969
    %1457 = vmatpush.msra.mxu0 %v953
    %1458 = vmatpush.msra.mxu0 %v937
    %1459 = vmatpush.msra.mxu0 %v921
    %1460 = vmatpush.msra.mxu0 %v905
    %1461 = vmatpush.msra.mxu0 %v889
    %1462 = vmatpush.msra.mxu0 %v873
    %1463 = vmatpush.msra.mxu0 %v857
    %1464 = vmatpush.msra.mxu0 %v841
    %1465 = vmatpush.msra.mxu0 %v825
    %1466 = vmatpush.msra.mxu0 %v809
    %1467 = vmatpush.msra.mxu0 %v793
    %1468 = vmatpush.msra.mxu0 %v777
    %1469 = vmatpush.msra.mxu0 %v761
    %1470 = vmatpush.msra.mxu0 %v745
    %1471 = vmatmul.f32.gmra.mxu0 %v229
    %v1472 = vpop.f32.mrf.mxu0
    %v1473 = vadd.f32 %v1453, %v1472
    %1474 = vdwg.mxu0
    %1475 = vmatpush.msra.mxu0 %v1241
    %1476 = vmatpush.msra.mxu0 %v1225
    %1477 = vmatpush.msra.mxu0 %v1209
    %1478 = vmatpush.msra.mxu0 %v1193
    %1479 = vmatpush.msra.mxu0 %v1177
    %1480 = vmatpush.msra.mxu0 %v1161
    %1481 = vmatpush.msra.mxu0 %v1145
    %1482 = vmatpush.msra.mxu0 %v1129
    %1483 = vmatpush.msra.mxu0 %v1113
    %1484 = vmatpush.msra.mxu0 %v1097
    %1485 = vmatpush.msra.mxu0 %v1081
    %1486 = vmatpush.msra.mxu0 %v1065
    %1487 = vmatpush.msra.mxu0 %v1049
    %1488 = vmatpush.msra.mxu0 %v1033
    %1489 = vmatpush.msra.mxu0 %v1017
    %1490 = vmatpush.msra.mxu0 %v1001
    %1491 = vmatmul.f32.gmra.mxu0 %v230
    %v1492 = vpop.f32.mrf.mxu0
    %v1493 = vadd.f32 %v1473, %v1492
    %1494 = vdwg.mxu0
    %1495 = vmatpush.msra.mxu0 %v474
    %1496 = vmatpush.msra.mxu0 %v458
    %1497 = vmatpush.msra.mxu0 %v442
    %1498 = vmatpush.msra.mxu0 %v426
    %1499 = vmatpush.msra.mxu0 %v410
    %1500 = vmatpush.msra.mxu0 %v394
    %1501 = vmatpush.msra.mxu0 %v378
    %1502 = vmatpush.msra.mxu0 %v362
    %1503 = vmatpush.msra.mxu0 %v346
    %1504 = vmatpush.msra.mxu0 %v330
    %1505 = vmatpush.msra.mxu0 %v314
    %1506 = vmatpush.msra.mxu0 %v298
    %1507 = vmatpush.msra.mxu0 %v282
    %1508 = vmatpush.msra.mxu0 %v266
    %1509 = vmatpush.msra.mxu0 %v250
    %1510 = vmatpush.msra.mxu0 %v234
    %1511 = vmatmul.f32.gmra.mxu0 %v227
    %v1512 = vpop.f32.mrf.mxu0
    %v1513 = vadd.f32 0.0, %v1512
    %1514 = vdwg.mxu0
    %1515 = vmatpush.msra.mxu0 %v730
    %1516 = vmatpush.msra.mxu0 %v714
    %1517 = vmatpush.msra.mxu0 %v698
    %1518 = vmatpush.msra.mxu0 %v682
    %1519 = vmatpush.msra.mxu0 %v666
    %1520 = vmatpush.msra.mxu0 %v650
    %1521 = vmatpush.msra.mxu0 %v634
    %1522 = vmatpush.msra.mxu0 %v618
    %1523 = vmatpush.msra.mxu0 %v602
    %1524 = vmatpush.msra.mxu0 %v586
    %1525 = vmatpush.msra.mxu0 %v570
    %1526 = vmatpush.msra.mxu0 %v554
    %1527 = vmatpush.msra.mxu0 %v538
    %1528 = vmatpush.msra.mxu0 %v522
    %1529 = vmatpush.msra.mxu0 %v506
    %1530 = vmatpush.msra.mxu0 %v490
    %1531 = vmatmul.f32.gmra.mxu0 %v228
    %v1532 = vpop.f32.mrf.mxu0
    %v1533 = vadd.f32 %v1513, %v1532
    %1534 = vdwg.mxu0
    %1535 = vmatpush.msra.mxu0 %v986
    %1536 = vmatpush.msra.mxu0 %v970
    %1537 = vmatpush.msra.mxu0 %v954
    %1538 = vmatpush.msra.mxu0 %v938
    %1539 = vmatpush.msra.mxu0 %v922
    %1540 = vmatpush.msra.mxu0 %v906
    %1541 = vmatpush.msra.mxu0 %v890
    %1542 = vmatpush.msra.mxu0 %v874
    %1543 = vmatpush.msra.mxu0 %v858
    %1544 = vmatpush.msra.mxu0 %v842
    %1545 = vmatpush.msra.mxu0 %v826
    %1546 = vmatpush.msra.mxu0 %v810
    %1547 = vmatpush.msra.mxu0 %v794
    %1548 = vmatpush.msra.mxu0 %v778
    %1549 = vmatpush.msra.mxu0 %v762
    %1550 = vmatpush.msra.mxu0 %v746
    %1551 = vmatmul.f32.gmra.mxu0 %v229
    %v1552 = vpop.f32.mrf.mxu0
    %v1553 = vadd.f32 %v1533, %v1552
    %1554 = vdwg.mxu0
    %1555 = vmatpush.msra.mxu0 %v1242
    %1556 = vmatpush.msra.mxu0 %v1226
    %1557 = vmatpush.msra.mxu0 %v1210
    %1558 = vmatpush.msra.mxu0 %v1194
    %1559 = vmatpush.msra.mxu0 %v1178
    %1560 = vmatpush.msra.mxu0 %v1162
    %1561 = vmatpush.msra.mxu0 %v1146
    %1562 = vmatpush.msra.mxu0 %v1130
    %1563 = vmatpush.msra.mxu0 %v1114
    %1564 = vmatpush.msra.mxu0 %v1098
    %1565 = vmatpush.msra.mxu0 %v1082
    %1566 = vmatpush.msra.mxu0 %v1066
    %1567 = vmatpush.msra.mxu0 %v1050
    %1568 = vmatpush.msra.mxu0 %v1034
    %1569 = vmatpush.msra.mxu0 %v1018
    %1570 = vmatpush.msra.mxu0 %v1002
    %1571 = vmatmul.f32.gmra.mxu0 %v230
    %v1572 = vpop.f32.mrf.mxu0
    %v1573 = vadd.f32 %v1553, %v1572
    %1574 = vdwg.mxu0
    %1575 = vmatpush.msra.mxu0 %v475
    %1576 = vmatpush.msra.mxu0 %v459
    %1577 = vmatpush.msra.mxu0 %v443
    %1578 = vmatpush.msra.mxu0 %v427
    %1579 = vmatpush.msra.mxu0 %v411
    %1580 = vmatpush.msra.mxu0 %v395
    %1581 = vmatpush.msra.mxu0 %v379
    %1582 = vmatpush.msra.mxu0 %v363
    %1583 = vmatpush.msra.mxu0 %v347
    %1584 = vmatpush.msra.mxu0 %v331
    %1585 = vmatpush.msra.mxu0 %v315
    %1586 = vmatpush.msra.mxu0 %v299
    %1587 = vmatpush.msra.mxu0 %v283
    %1588 = vmatpush.msra.mxu0 %v267
    %1589 = vmatpush.msra.mxu0 %v251
    %1590 = vmatpush.msra.mxu0 %v235
    %1591 = vmatmul.f32.gmra.mxu0 %v227
    %v1592 = vpop.f32.mrf.mxu0
    %v1593 = vadd.f32 0.0, %v1592
    %1594 = vdwg.mxu0
    %1595 = vmatpush.msra.mxu0 %v731
    %1596 = vmatpush.msra.mxu0 %v715
    %1597 = vmatpush.msra.mxu0 %v699
    %1598 = vmatpush.msra.mxu0 %v683
    %1599 = vmatpush.msra.mxu0 %v667
    %1600 = vmatpush.msra.mxu0 %v651
    %1601 = vmatpush.msra.mxu0 %v635
    %1602 = vmatpush.msra.mxu0 %v619
    %1603 = vmatpush.msra.mxu0 %v603
    %1604 = vmatpush.msra.mxu0 %v587
    %1605 = vmatpush.msra.mxu0 %v571
    %1606 = vmatpush.msra.mxu0 %v555
    %1607 = vmatpush.msra.mxu0 %v539
    %1608 = vmatpush.msra.mxu0 %v523
    %1609 = vmatpush.msra.mxu0 %v507
    %1610 = vmatpush.msra.mxu0 %v491
    %1611 = vmatmul.f32.gmra.mxu0 %v228
    %v1612 = vpop.f32.mrf.mxu0
    %v1613 = vadd.f32 %v1593, %v1612
    %1614 = vdwg.mxu0
    %1615 = vmatpush.msra.mxu0 %v987
    %1616 = vmatpush.msra.mxu0 %v971
    %1617 = vmatpush.msra.mxu0 %v955
    %1618 = vmatpush.msra.mxu0 %v939
    %1619 = vmatpush.msra.mxu0 %v923
    %1620 = vmatpush.msra.mxu0 %v907
    %1621 = vmatpush.msra.mxu0 %v891
    %1622 = vmatpush.msra.mxu0 %v875
    %1623 = vmatpush.msra.mxu0 %v859
    %1624 = vmatpush.msra.mxu0 %v843
    %1625 = vmatpush.msra.mxu0 %v827
    %1626 = vmatpush.msra.mxu0 %v811
    %1627 = vmatpush.msra.mxu0 %v795
    %1628 = vmatpush.msra.mxu0 %v779
    %1629 = vmatpush.msra.mxu0 %v763
    %1630 = vmatpush.msra.mxu0 %v747
    %1631 = vmatmul.f32.gmra.mxu0 %v229
    %v1632 = vpop.f32.mrf.mxu0
    %v1633 = vadd.f32 %v1613, %v1632
    %1634 = vdwg.mxu0
    %1635 = vmatpush.msra.mxu0 %v1243
    %1636 = vmatpush.msra.mxu0 %v1227
    %1637 = vmatpush.msra.mxu0 %v1211
    %1638 = vmatpush.msra.mxu0 %v1195
    %1639 = vmatpush.msra.mxu0 %v1179
    %1640 = vmatpush.msra.mxu0 %v1163
    %1641 = vmatpush.msra.mxu0 %v1147
    %1642 = vmatpush.msra.mxu0 %v1131
    %1643 = vmatpush.msra.mxu0 %v1115
    %1644 = vmatpush.msra.mxu0 %v1099
    %1645 = vmatpush.msra.mxu0 %v1083
    %1646 = vmatpush.msra.mxu0 %v1067
    %1647 = vmatpush.msra.mxu0 %v1051
    %1648 = vmatpush.msra.mxu0 %v1035
    %1649 = vmatpush.msra.mxu0 %v1019
    %1650 = vmatpush.msra.mxu0 %v1003
    %1651 = vmatmul.f32.gmra.mxu0 %v230
    %v1652 = vpop.f32.mrf.mxu0
    %v1653 = vadd.f32 %v1633, %v1652
    %1654 = vdwg.mxu0
    %1655 = vmatpush.msra.mxu0 %v476
    %1656 = vmatpush.msra.mxu0 %v460
    %1657 = vmatpush.msra.mxu0 %v444
    %1658 = vmatpush.msra.mxu0 %v428
    %1659 = vmatpush.msra.mxu0 %v412
    %1660 = vmatpush.msra.mxu0 %v396
    %1661 = vmatpush.msra.mxu0 %v380
    %1662 = vmatpush.msra.mxu0 %v364
    %1663 = vmatpush.msra.mxu0 %v348
    %1664 = vmatpush.msra.mxu0 %v332
    %1665 = vmatpush.msra.mxu0 %v316
    %1666 = vmatpush.msra.mxu0 %v300
    %1667 = vmatpush.msra.mxu0 %v284
    %1668 = vmatpush.msra.mxu0 %v268
    %1669 = vmatpush.msra.mxu0 %v252
    %1670 = vmatpush.msra.mxu0 %v236
    %1671 = vmatmul.f32.gmra.mxu0 %v227
    %v1672 = vpop.f32.mrf.mxu0
    %v1673 = vadd.f32 0.0, %v1672
    %1674 = vdwg.mxu0
    %1675 = vmatpush.msra.mxu0 %v732
    %1676 = vmatpush.msra.mxu0 %v716
    %1677 = vmatpush.msra.mxu0 %v700
    %1678 = vmatpush.msra.mxu0 %v684
    %1679 = vmatpush.msra.mxu0 %v668
    %1680 = vmatpush.msra.mxu0 %v652
    %1681 = vmatpush.msra.mxu0 %v636
    %1682 = vmatpush.msra.mxu0 %v620
    %1683 = vmatpush.msra.mxu0 %v604
    %1684 = vmatpush.msra.mxu0 %v588
    %1685 = vmatpush.msra.mxu0 %v572
    %1686 = vmatpush.msra.mxu0 %v556
    %1687 = vmatpush.msra.mxu0 %v540
    %1688 = vmatpush.msra.mxu0 %v524
    %1689 = vmatpush.msra.mxu0 %v508
    %1690 = vmatpush.msra.mxu0 %v492
    %1691 = vmatmul.f32.gmra.mxu0 %v228
    %v1692 = vpop.f32.mrf.mxu0
    %v1693 = vadd.f32 %v1673, %v1692
    %1694 = vdwg.mxu0
    %1695 = vmatpush.msra.mxu0 %v988
    %1696 = vmatpush.msra.mxu0 %v972
    %1697 = vmatpush.msra.mxu0 %v956
    %1698 = vmatpush.msra.mxu0 %v940
    %1699 = vmatpush.msra.mxu0 %v924
    %1700 = vmatpush.msra.mxu0 %v908
    %1701 = vmatpush.msra.mxu0 %v892
    %1702 = vmatpush.msra.mxu0 %v876
    %1703 = vmatpush.msra.mxu0 %v860
    %1704 = vmatpush.msra.mxu0 %v844
    %1705 = vmatpush.msra.mxu0 %v828
    %1706 = vmatpush.msra.mxu0 %v812
    %1707 = vmatpush.msra.mxu0 %v796
    %1708 = vmatpush.msra.mxu0 %v780
    %1709 = vmatpush.msra.mxu0 %v764
    %1710 = vmatpush.msra.mxu0 %v748
    %1711 = vmatmul.f32.gmra.mxu0 %v229
    %v1712 = vpop.f32.mrf.mxu0
    %v1713 = vadd.f32 %v1693, %v1712
    %1714 = vdwg.mxu0
    %1715 = vmatpush.msra.mxu0 %v1244
    %1716 = vmatpush.msra.mxu0 %v1228
    %1717 = vmatpush.msra.mxu0 %v1212
    %1718 = vmatpush.msra.mxu0 %v1196
    %1719 = vmatpush.msra.mxu0 %v1180
    %1720 = vmatpush.msra.mxu0 %v1164
    %1721 = vmatpush.msra.mxu0 %v1148
    %1722 = vmatpush.msra.mxu0 %v1132
    %1723 = vmatpush.msra.mxu0 %v1116
    %1724 = vmatpush.msra.mxu0 %v1100
    %1725 = vmatpush.msra.mxu0 %v1084
    %1726 = vmatpush.msra.mxu0 %v1068
    %1727 = vmatpush.msra.mxu0 %v1052
    %1728 = vmatpush.msra.mxu0 %v1036
    %1729 = vmatpush.msra.mxu0 %v1020
    %1730 = vmatpush.msra.mxu0 %v1004
    %1731 = vmatmul.f32.gmra.mxu0 %v230
    %v1732 = vpop.f32.mrf.mxu0
    %v1733 = vadd.f32 %v1713, %v1732
    %1734 = vdwg.mxu0
    %1735 = vmatpush.msra.mxu0 %v477
    %1736 = vmatpush.msra.mxu0 %v461
    %1737 = vmatpush.msra.mxu0 %v445
    %1738 = vmatpush.msra.mxu0 %v429
    %1739 = vmatpush.msra.mxu0 %v413
    %1740 = vmatpush.msra.mxu0 %v397
    %1741 = vmatpush.msra.mxu0 %v381
    %1742 = vmatpush.msra.mxu0 %v365
    %1743 = vmatpush.msra.mxu0 %v349
    %1744 = vmatpush.msra.mxu0 %v333
    %1745 = vmatpush.msra.mxu0 %v317
    %1746 = vmatpush.msra.mxu0 %v301
    %1747 = vmatpush.msra.mxu0 %v285
    %1748 = vmatpush.msra.mxu0 %v269
    %1749 = vmatpush.msra.mxu0 %v253
    %1750 = vmatpush.msra.mxu0 %v237
    %1751 = vmatmul.f32.gmra.mxu0 %v227
    %v1752 = vpop.f32.mrf.mxu0
    %v1753 = vadd.f32 0.0, %v1752
    %1754 = vdwg.mxu0
    %1755 = vmatpush.msra.mxu0 %v733
    %1756 = vmatpush.msra.mxu0 %v717
    %1757 = vmatpush.msra.mxu0 %v701
    %1758 = vmatpush.msra.mxu0 %v685
    %1759 = vmatpush.msra.mxu0 %v669
    %1760 = vmatpush.msra.mxu0 %v653
    %1761 = vmatpush.msra.mxu0 %v637
    %1762 = vmatpush.msra.mxu0 %v621
    %1763 = vmatpush.msra.mxu0 %v605
    %1764 = vmatpush.msra.mxu0 %v589
    %1765 = vmatpush.msra.mxu0 %v573
    %1766 = vmatpush.msra.mxu0 %v557
    %1767 = vmatpush.msra.mxu0 %v541
    %1768 = vmatpush.msra.mxu0 %v525
    %1769 = vmatpush.msra.mxu0 %v509
    %1770 = vmatpush.msra.mxu0 %v493
    %1771 = vmatmul.f32.gmra.mxu0 %v228
    %v1772 = vpop.f32.mrf.mxu0
    %v1773 = vadd.f32 %v1753, %v1772
    %1774 = vdwg.mxu0
    %1775 = vmatpush.msra.mxu0 %v989
    %1776 = vmatpush.msra.mxu0 %v973
    %1777 = vmatpush.msra.mxu0 %v957
    %1778 = vmatpush.msra.mxu0 %v941
    %1779 = vmatpush.msra.mxu0 %v925
    %1780 = vmatpush.msra.mxu0 %v909
    %1781 = vmatpush.msra.mxu0 %v893
    %1782 = vmatpush.msra.mxu0 %v877
    %1783 = vmatpush.msra.mxu0 %v861
    %1784 = vmatpush.msra.mxu0 %v845
    %1785 = vmatpush.msra.mxu0 %v829
    %1786 = vmatpush.msra.mxu0 %v813
    %1787 = vmatpush.msra.mxu0 %v797
    %1788 = vmatpush.msra.mxu0 %v781
    %1789 = vmatpush.msra.mxu0 %v765
    %1790 = vmatpush.msra.mxu0 %v749
    %1791 = vmatmul.f32.gmra.mxu0 %v229
    %v1792 = vpop.f32.mrf.mxu0
    %v1793 = vadd.f32 %v1773, %v1792
    %1794 = vdwg.mxu0
    %1795 = vmatpush.msra.mxu0 %v1245
    %1796 = vmatpush.msra.mxu0 %v1229
    %1797 = vmatpush.msra.mxu0 %v1213
    %1798 = vmatpush.msra.mxu0 %v1197
    %1799 = vmatpush.msra.mxu0 %v1181
    %1800 = vmatpush.msra.mxu0 %v1165
    %1801 = vmatpush.msra.mxu0 %v1149
    %1802 = vmatpush.msra.mxu0 %v1133
    %1803 = vmatpush.msra.mxu0 %v1117
    %1804 = vmatpush.msra.mxu0 %v1101
    %1805 = vmatpush.msra.mxu0 %v1085
    %1806 = vmatpush.msra.mxu0 %v1069
    %1807 = vmatpush.msra.mxu0 %v1053
    %1808 = vmatpush.msra.mxu0 %v1037
    %1809 = vmatpush.msra.mxu0 %v1021
    %1810 = vmatpush.msra.mxu0 %v1005
    %1811 = vmatmul.f32.gmra.mxu0 %v230
    %v1812 = vpop.f32.mrf.mxu0
    %v1813 = vadd.f32 %v1793, %v1812
    %1814 = vdwg.mxu0
    %1815 = vmatpush.msra.mxu0 %v478
    %1816 = vmatpush.msra.mxu0 %v462
    %1817 = vmatpush.msra.mxu0 %v446
    %1818 = vmatpush.msra.mxu0 %v430
    %1819 = vmatpush.msra.mxu0 %v414
    %1820 = vmatpush.msra.mxu0 %v398
    %1821 = vmatpush.msra.mxu0 %v382
    %1822 = vmatpush.msra.mxu0 %v366
    %1823 = vmatpush.msra.mxu0 %v350
    %1824 = vmatpush.msra.mxu0 %v334
    %1825 = vmatpush.msra.mxu0 %v318
    %1826 = vmatpush.msra.mxu0 %v302
    %1827 = vmatpush.msra.mxu0 %v286
    %1828 = vmatpush.msra.mxu0 %v270
    %1829 = vmatpush.msra.mxu0 %v254
    %1830 = vmatpush.msra.mxu0 %v238
    %1831 = vmatmul.f32.gmra.mxu0 %v227
    %v1832 = vpop.f32.mrf.mxu0
    %v1833 = vadd.f32 0.0, %v1832
    %1834 = vdwg.mxu0
    %1835 = vmatpush.msra.mxu0 %v734
    %1836 = vmatpush.msra.mxu0 %v718
    %1837 = vmatpush.msra.mxu0 %v702
    %1838 = vmatpush.msra.mxu0 %v686
    %1839 = vmatpush.msra.mxu0 %v670
    %1840 = vmatpush.msra.mxu0 %v654
    %1841 = vmatpush.msra.mxu0 %v638
    %1842 = vmatpush.msra.mxu0 %v622
    %1843 = vmatpush.msra.mxu0 %v606
    %1844 = vmatpush.msra.mxu0 %v590
    %1845 = vmatpush.msra.mxu0 %v574
    %1846 = vmatpush.msra.mxu0 %v558
    %1847 = vmatpush.msra.mxu0 %v542
    %1848 = vmatpush.msra.mxu0 %v526
    %1849 = vmatpush.msra.mxu0 %v510
    %1850 = vmatpush.msra.mxu0 %v494
    %1851 = vmatmul.f32.gmra.mxu0 %v228
    %v1852 = vpop.f32.mrf.mxu0
    %v1853 = vadd.f32 %v1833, %v1852
    %1854 = vdwg.mxu0
    %1855 = vmatpush.msra.mxu0 %v990
    %1856 = vmatpush.msra.mxu0 %v974
    %1857 = vmatpush.msra.mxu0 %v958
    %1858 = vmatpush.msra.mxu0 %v942
    %1859 = vmatpush.msra.mxu0 %v926
    %1860 = vmatpush.msra.mxu0 %v910
    %1861 = vmatpush.msra.mxu0 %v894
    %1862 = vmatpush.msra.mxu0 %v878
    %1863 = vmatpush.msra.mxu0 %v862
    %1864 = vmatpush.msra.mxu0 %v846
    %1865 = vmatpush.msra.mxu0 %v830
    %1866 = vmatpush.msra.mxu0 %v814
    %1867 = vmatpush.msra.mxu0 %v798
    %1868 = vmatpush.msra.mxu0 %v782
    %1869 = vmatpush.msra.mxu0 %v766
    %1870 = vmatpush.msra.mxu0 %v750
    %1871 = vmatmul.f32.gmra.mxu0 %v229
    %v1872 = vpop.f32.mrf.mxu0
    %v1873 = vadd.f32 %v1853, %v1872
    %1874 = vdwg.mxu0
    %1875 = vmatpush.msra.mxu0 %v1246
    %1876 = vmatpush.msra.mxu0 %v1230
    %1877 = vmatpush.msra.mxu0 %v1214
    %1878 = vmatpush.msra.mxu0 %v1198
    %1879 = vmatpush.msra.mxu0 %v1182
    %1880 = vmatpush.msra.mxu0 %v1166
    %1881 = vmatpush.msra.mxu0 %v1150
    %1882 = vmatpush.msra.mxu0 %v1134
    %1883 = vmatpush.msra.mxu0 %v1118
    %1884 = vmatpush.msra.mxu0 %v1102
    %1885 = vmatpush.msra.mxu0 %v1086
    %1886 = vmatpush.msra.mxu0 %v1070
    %1887 = vmatpush.msra.mxu0 %v1054
    %1888 = vmatpush.msra.mxu0 %v1038
    %1889 = vmatpush.msra.mxu0 %v1022
    %1890 = vmatpush.msra.mxu0 %v1006
    %1891 = vmatmul.f32.gmra.mxu0 %v230
    %v1892 = vpop.f32.mrf.mxu0
    %v1893 = vadd.f32 %v1873, %v1892
    %1894 = vdwg.mxu0
    %1895 = vmatpush.msra.mxu0 %v479
    %1896 = vmatpush.msra.mxu0 %v463
    %1897 = vmatpush.msra.mxu0 %v447
    %1898 = vmatpush.msra.mxu0 %v431
    %1899 = vmatpush.msra.mxu0 %v415
    %1900 = vmatpush.msra.mxu0 %v399
    %1901 = vmatpush.msra.mxu0 %v383
    %1902 = vmatpush.msra.mxu0 %v367
    %1903 = vmatpush.msra.mxu0 %v351
    %1904 = vmatpush.msra.mxu0 %v335
    %1905 = vmatpush.msra.mxu0 %v319
    %1906 = vmatpush.msra.mxu0 %v303
    %1907 = vmatpush.msra.mxu0 %v287
    %1908 = vmatpush.msra.mxu0 %v271
    %1909 = vmatpush.msra.mxu0 %v255
    %1910 = vmatpush.msra.mxu0 %v239
    %1911 = vmatmul.f32.gmra.mxu0 %v227
    %v1912 = vpop.f32.mrf.mxu0
    %v1913 = vadd.f32 0.0, %v1912
    %1914 = vdwg.mxu0
    %1915 = vmatpush.msra.mxu0 %v735
    %1916 = vmatpush.msra.mxu0 %v719
    %1917 = vmatpush.msra.mxu0 %v703
    %1918 = vmatpush.msra.mxu0 %v687
    %1919 = vmatpush.msra.mxu0 %v671
    %1920 = vmatpush.msra.mxu0 %v655
    %1921 = vmatpush.msra.mxu0 %v639
    %1922 = vmatpush.msra.mxu0 %v623
    %1923 = vmatpush.msra.mxu0 %v607
    %1924 = vmatpush.msra.mxu0 %v591
    %1925 = vmatpush.msra.mxu0 %v575
    %1926 = vmatpush.msra.mxu0 %v559
    %1927 = vmatpush.msra.mxu0 %v543
    %1928 = vmatpush.msra.mxu0 %v527
    %1929 = vmatpush.msra.mxu0 %v511
    %1930 = vmatpush.msra.mxu0 %v495
    %1931 = vmatmul.f32.gmra.mxu0 %v228
    %v1932 = vpop.f32.mrf.mxu0
    %v1933 = vadd.f32 %v1913, %v1932
    %1934 = vdwg.mxu0
    %1935 = vmatpush.msra.mxu0 %v991
    %1936 = vmatpush.msra.mxu0 %v975
    %1937 = vmatpush.msra.mxu0 %v959
    %1938 = vmatpush.msra.mxu0 %v943
    %1939 = vmatpush.msra.mxu0 %v927
    %1940 = vmatpush.msra.mxu0 %v911
    %1941 = vmatpush.msra.mxu0 %v895
    %1942 = vmatpush.msra.mxu0 %v879
    %1943 = vmatpush.msra.mxu0 %v863
    %1944 = vmatpush.msra.mxu0 %v847
    %1945 = vmatpush.msra.mxu0 %v831
    %1946 = vmatpush.msra.mxu0 %v815
    %1947 = vmatpush.msra.mxu0 %v799
    %1948 = vmatpush.msra.mxu0 %v783
    %1949 = vmatpush.msra.mxu0 %v767
    %1950 = vmatpush.msra.mxu0 %v751
    %1951 = vmatmul.f32.gmra.mxu0 %v229
    %v1952 = vpop.f32.mrf.mxu0
    %v1953 = vadd.f32 %v1933, %v1952
    %1954 = vdwg.mxu0
    %1955 = vmatpush.msra.mxu0 %v1247
    %1956 = vmatpush.msra.mxu0 %v1231
    %1957 = vmatpush.msra.mxu0 %v1215
    %1958 = vmatpush.msra.mxu0 %v1199
    %1959 = vmatpush.msra.mxu0 %v1183
    %1960 = vmatpush.msra.mxu0 %v1167
    %1961 = vmatpush.msra.mxu0 %v1151
    %1962 = vmatpush.msra.mxu0 %v1135
    %1963 = vmatpush.msra.mxu0 %v1119
    %1964 = vmatpush.msra.mxu0 %v1103
    %1965 = vmatpush.msra.mxu0 %v1087
    %1966 = vmatpush.msra.mxu0 %v1071
    %1967 = vmatpush.msra.mxu0 %v1055
    %1968 = vmatpush.msra.mxu0 %v1039
    %1969 = vmatpush.msra.mxu0 %v1023
    %1970 = vmatpush.msra.mxu0 %v1007
    %1971 = vmatmul.f32.gmra.mxu0 %v230
    %v1972 = vpop.f32.mrf.mxu0
    %v1973 = vadd.f32 %v1953, %v1972
    %1974 = vdwg.mxu0
    %1975 = vmatpush.msra.mxu0 %v480
    %1976 = vmatpush.msra.mxu0 %v464
    %1977 = vmatpush.msra.mxu0 %v448
    %1978 = vmatpush.msra.mxu0 %v432
    %1979 = vmatpush.msra.mxu0 %v416
    %1980 = vmatpush.msra.mxu0 %v400
    %1981 = vmatpush.msra.mxu0 %v384
    %1982 = vmatpush.msra.mxu0 %v368
    %1983 = vmatpush.msra.mxu0 %v352
    %1984 = vmatpush.msra.mxu0 %v336
    %1985 = vmatpush.msra.mxu0 %v320
    %1986 = vmatpush.msra.mxu0 %v304
    %1987 = vmatpush.msra.mxu0 %v288
    %1988 = vmatpush.msra.mxu0 %v272
    %1989 = vmatpush.msra.mxu0 %v256
    %1990 = vmatpush.msra.mxu0 %v240
    %1991 = vmatmul.f32.gmra.mxu0 %v227
    %v1992 = vpop.f32.mrf.mxu0
    %v1993 = vadd.f32 0.0, %v1992
    %1994 = vdwg.mxu0
    %1995 = vmatpush.msra.mxu0 %v736
    %1996 = vmatpush.msra.mxu0 %v720
    %1997 = vmatpush.msra.mxu0 %v704
    %1998 = vmatpush.msra.mxu0 %v688
    %1999 = vmatpush.msra.mxu0 %v672
    %2000 = vmatpush.msra.mxu0 %v656
    %2001 = vmatpush.msra.mxu0 %v640
    %2002 = vmatpush.msra.mxu0 %v624
    %2003 = vmatpush.msra.mxu0 %v608
    %2004 = vmatpush.msra.mxu0 %v592
    %2005 = vmatpush.msra.mxu0 %v576
    %2006 = vmatpush.msra.mxu0 %v560
    %2007 = vmatpush.msra.mxu0 %v544
    %2008 = vmatpush.msra.mxu0 %v528
    %2009 = vmatpush.msra.mxu0 %v512
    %2010 = vmatpush.msra.mxu0 %v496
    %2011 = vmatmul.f32.gmra.mxu0 %v228
    %v2012 = vpop.f32.mrf.mxu0
    %v2013 = vadd.f32 %v1993, %v2012
    %2014 = vdwg.mxu0
    %2015 = vmatpush.msra.mxu0 %v992
    %2016 = vmatpush.msra.mxu0 %v976
    %2017 = vmatpush.msra.mxu0 %v960
    %2018 = vmatpush.msra.mxu0 %v944
    %2019 = vmatpush.msra.mxu0 %v928
    %2020 = vmatpush.msra.mxu0 %v912
    %2021 = vmatpush.msra.mxu0 %v896
    %2022 = vmatpush.msra.mxu0 %v880
    %2023 = vmatpush.msra.mxu0 %v864
    %2024 = vmatpush.msra.mxu0 %v848
    %2025 = vmatpush.msra.mxu0 %v832
    %2026 = vmatpush.msra.mxu0 %v816
    %2027 = vmatpush.msra.mxu0 %v800
    %2028 = vmatpush.msra.mxu0 %v784
    %2029 = vmatpush.msra.mxu0 %v768
    %2030 = vmatpush.msra.mxu0 %v752
    %2031 = vmatmul.f32.gmra.mxu0 %v229
    %v2032 = vpop.f32.mrf.mxu0
    %v2033 = vadd.f32 %v2013, %v2032
    %2034 = vdwg.mxu0
    %2035 = vmatpush.msra.mxu0 %v1248
    %2036 = vmatpush.msra.mxu0 %v1232
    %2037 = vmatpush.msra.mxu0 %v1216
    %2038 = vmatpush.msra.mxu0 %v1200
    %2039 = vmatpush.msra.mxu0 %v1184
    %2040 = vmatpush.msra.mxu0 %v1168
    %2041 = vmatpush.msra.mxu0 %v1152
    %2042 = vmatpush.msra.mxu0 %v1136
    %2043 = vmatpush.msra.mxu0 %v1120
    %2044 = vmatpush.msra.mxu0 %v1104
    %2045 = vmatpush.msra.mxu0 %v1088
    %2046 = vmatpush.msra.mxu0 %v1072
    %2047 = vmatpush.msra.mxu0 %v1056
    %2048 = vmatpush.msra.mxu0 %v1040
    %2049 = vmatpush.msra.mxu0 %v1024
    %2050 = vmatpush.msra.mxu0 %v1008
    %2051 = vmatmul.f32.gmra.mxu0 %v230
    %v2052 = vpop.f32.mrf.mxu0
    %v2053 = vadd.f32 %v2033, %v2052
    %2054 = vdwg.mxu0
    %2055 = vmatpush.msra.mxu0 %v481
    %2056 = vmatpush.msra.mxu0 %v465
    %2057 = vmatpush.msra.mxu0 %v449
    %2058 = vmatpush.msra.mxu0 %v433
    %2059 = vmatpush.msra.mxu0 %v417
    %2060 = vmatpush.msra.mxu0 %v401
    %2061 = vmatpush.msra.mxu0 %v385
    %2062 = vmatpush.msra.mxu0 %v369
    %2063 = vmatpush.msra.mxu0 %v353
    %2064 = vmatpush.msra.mxu0 %v337
    %2065 = vmatpush.msra.mxu0 %v321
    %2066 = vmatpush.msra.mxu0 %v305
    %2067 = vmatpush.msra.mxu0 %v289
    %2068 = vmatpush.msra.mxu0 %v273
    %2069 = vmatpush.msra.mxu0 %v257
    %2070 = vmatpush.msra.mxu0 %v241
    %2071 = vmatmul.f32.gmra.mxu0 %v227
    %v2072 = vpop.f32.mrf.mxu0
    %v2073 = vadd.f32 0.0, %v2072
    %2074 = vdwg.mxu0
    %2075 = vmatpush.msra.mxu0 %v737
    %2076 = vmatpush.msra.mxu0 %v721
    %2077 = vmatpush.msra.mxu0 %v705
    %2078 = vmatpush.msra.mxu0 %v689
    %2079 = vmatpush.msra.mxu0 %v673
    %2080 = vmatpush.msra.mxu0 %v657
    %2081 = vmatpush.msra.mxu0 %v641
    %2082 = vmatpush.msra.mxu0 %v625
    %2083 = vmatpush.msra.mxu0 %v609
    %2084 = vmatpush.msra.mxu0 %v593
    %2085 = vmatpush.msra.mxu0 %v577
    %2086 = vmatpush.msra.mxu0 %v561
    %2087 = vmatpush.msra.mxu0 %v545
    %2088 = vmatpush.msra.mxu0 %v529
    %2089 = vmatpush.msra.mxu0 %v513
    %2090 = vmatpush.msra.mxu0 %v497
    %2091 = vmatmul.f32.gmra.mxu0 %v228
    %v2092 = vpop.f32.mrf.mxu0
    %v2093 = vadd.f32 %v2073, %v2092
    %2094 = vdwg.mxu0
    %2095 = vmatpush.msra.mxu0 %v993
    %2096 = vmatpush.msra.mxu0 %v977
    %2097 = vmatpush.msra.mxu0 %v961
    %2098 = vmatpush.msra.mxu0 %v945
    %2099 = vmatpush.msra.mxu0 %v929
    %2100 = vmatpush.msra.mxu0 %v913
    %2101 = vmatpush.msra.mxu0 %v897
    %2102 = vmatpush.msra.mxu0 %v881
    %2103 = vmatpush.msra.mxu0 %v865
    %2104 = vmatpush.msra.mxu0 %v849
    %2105 = vmatpush.msra.mxu0 %v833
    %2106 = vmatpush.msra.mxu0 %v817
    %2107 = vmatpush.msra.mxu0 %v801
    %2108 = vmatpush.msra.mxu0 %v785
    %2109 = vmatpush.msra.mxu0 %v769
    %2110 = vmatpush.msra.mxu0 %v753
    %2111 = vmatmul.f32.gmra.mxu0 %v229
    %v2112 = vpop.f32.mrf.mxu0
    %v2113 = vadd.f32 %v2093, %v2112
    %2114 = vdwg.mxu0
    %2115 = vmatpush.msra.mxu0 %v1249
    %2116 = vmatpush.msra.mxu0 %v1233
    %2117 = vmatpush.msra.mxu0 %v1217
    %2118 = vmatpush.msra.mxu0 %v1201
    %2119 = vmatpush.msra.mxu0 %v1185
    %2120 = vmatpush.msra.mxu0 %v1169
    %2121 = vmatpush.msra.mxu0 %v1153
    %2122 = vmatpush.msra.mxu0 %v1137
    %2123 = vmatpush.msra.mxu0 %v1121
    %2124 = vmatpush.msra.mxu0 %v1105
    %2125 = vmatpush.msra.mxu0 %v1089
    %2126 = vmatpush.msra.mxu0 %v1073
    %2127 = vmatpush.msra.mxu0 %v1057
    %2128 = vmatpush.msra.mxu0 %v1041
    %2129 = vmatpush.msra.mxu0 %v1025
    %2130 = vmatpush.msra.mxu0 %v1009
    %2131 = vmatmul.f32.gmra.mxu0 %v230
    %v2132 = vpop.f32.mrf.mxu0
    %v2133 = vadd.f32 %v2113, %v2132
    %2134 = vdwg.mxu0
    %2135 = vmatpush.msra.mxu0 %v482
    %2136 = vmatpush.msra.mxu0 %v466
    %2137 = vmatpush.msra.mxu0 %v450
    %2138 = vmatpush.msra.mxu0 %v434
    %2139 = vmatpush.msra.mxu0 %v418
    %2140 = vmatpush.msra.mxu0 %v402
    %2141 = vmatpush.msra.mxu0 %v386
    %2142 = vmatpush.msra.mxu0 %v370
    %2143 = vmatpush.msra.mxu0 %v354
    %2144 = vmatpush.msra.mxu0 %v338
    %2145 = vmatpush.msra.mxu0 %v322
    %2146 = vmatpush.msra.mxu0 %v306
    %2147 = vmatpush.msra.mxu0 %v290
    %2148 = vmatpush.msra.mxu0 %v274
    %2149 = vmatpush.msra.mxu0 %v258
    %2150 = vmatpush.msra.mxu0 %v242
    %2151 = vmatmul.f32.gmra.mxu0 %v227
    %v2152 = vpop.f32.mrf.mxu0
    %v2153 = vadd.f32 0.0, %v2152
    %2154 = vdwg.mxu0
    %2155 = vmatpush.msra.mxu0 %v738
    %2156 = vmatpush.msra.mxu0 %v722
    %2157 = vmatpush.msra.mxu0 %v706
    %2158 = vmatpush.msra.mxu0 %v690
    %2159 = vmatpush.msra.mxu0 %v674
    %2160 = vmatpush.msra.mxu0 %v658
    %2161 = vmatpush.msra.mxu0 %v642
    %2162 = vmatpush.msra.mxu0 %v626
    %2163 = vmatpush.msra.mxu0 %v610
    %2164 = vmatpush.msra.mxu0 %v594
    %2165 = vmatpush.msra.mxu0 %v578
    %2166 = vmatpush.msra.mxu0 %v562
    %2167 = vmatpush.msra.mxu0 %v546
    %2168 = vmatpush.msra.mxu0 %v530
    %2169 = vmatpush.msra.mxu0 %v514
    %2170 = vmatpush.msra.mxu0 %v498
    %2171 = vmatmul.f32.gmra.mxu0 %v228
    %v2172 = vpop.f32.mrf.mxu0
    %v2173 = vadd.f32 %v2153, %v2172
    %2174 = vdwg.mxu0
    %2175 = vmatpush.msra.mxu0 %v994
    %2176 = vmatpush.msra.mxu0 %v978
    %2177 = vmatpush.msra.mxu0 %v962
    %2178 = vmatpush.msra.mxu0 %v946
    %2179 = vmatpush.msra.mxu0 %v930
    %2180 = vmatpush.msra.mxu0 %v914
    %2181 = vmatpush.msra.mxu0 %v898
    %2182 = vmatpush.msra.mxu0 %v882
    %2183 = vmatpush.msra.mxu0 %v866
    %2184 = vmatpush.msra.mxu0 %v850
    %2185 = vmatpush.msra.mxu0 %v834
    %2186 = vmatpush.msra.mxu0 %v818
    %2187 = vmatpush.msra.mxu0 %v802
    %2188 = vmatpush.msra.mxu0 %v786
    %2189 = vmatpush.msra.mxu0 %v770
    %2190 = vmatpush.msra.mxu0 %v754
    %2191 = vmatmul.f32.gmra.mxu0 %v229
    %v2192 = vpop.f32.mrf.mxu0
    %v2193 = vadd.f32 %v2173, %v2192
    %2194 = vdwg.mxu0
    %2195 = vmatpush.msra.mxu0 %v1250
    %2196 = vmatpush.msra.mxu0 %v1234
    %2197 = vmatpush.msra.mxu0 %v1218
    %2198 = vmatpush.msra.mxu0 %v1202
    %2199 = vmatpush.msra.mxu0 %v1186
    %2200 = vmatpush.msra.mxu0 %v1170
    %2201 = vmatpush.msra.mxu0 %v1154
    %2202 = vmatpush.msra.mxu0 %v1138
    %2203 = vmatpush.msra.mxu0 %v1122
    %2204 = vmatpush.msra.mxu0 %v1106
    %2205 = vmatpush.msra.mxu0 %v1090
    %2206 = vmatpush.msra.mxu0 %v1074
    %2207 = vmatpush.msra.mxu0 %v1058
    %2208 = vmatpush.msra.mxu0 %v1042
    %2209 = vmatpush.msra.mxu0 %v1026
    %2210 = vmatpush.msra.mxu0 %v1010
    %2211 = vmatmul.f32.gmra.mxu0 %v230
    %v2212 = vpop.f32.mrf.mxu0
    %v2213 = vadd.f32 %v2193, %v2212
    %2214 = vdwg.mxu0
    %2215 = vmatpush.msra.mxu0 %v483
    %2216 = vmatpush.msra.mxu0 %v467
    %2217 = vmatpush.msra.mxu0 %v451
    %2218 = vmatpush.msra.mxu0 %v435
    %2219 = vmatpush.msra.mxu0 %v419
    %2220 = vmatpush.msra.mxu0 %v403
    %2221 = vmatpush.msra.mxu0 %v387
    %2222 = vmatpush.msra.mxu0 %v371
    %2223 = vmatpush.msra.mxu0 %v355
    %2224 = vmatpush.msra.mxu0 %v339
    %2225 = vmatpush.msra.mxu0 %v323
    %2226 = vmatpush.msra.mxu0 %v307
    %2227 = vmatpush.msra.mxu0 %v291
    %2228 = vmatpush.msra.mxu0 %v275
    %2229 = vmatpush.msra.mxu0 %v259
    %2230 = vmatpush.msra.mxu0 %v243
    %2231 = vmatmul.f32.gmra.mxu0 %v227
    %v2232 = vpop.f32.mrf.mxu0
    %v2233 = vadd.f32 0.0, %v2232
    %2234 = vdwg.mxu0
    %2235 = vmatpush.msra.mxu0 %v739
    %2236 = vmatpush.msra.mxu0 %v723
    %2237 = vmatpush.msra.mxu0 %v707
    %2238 = vmatpush.msra.mxu0 %v691
    %2239 = vmatpush.msra.mxu0 %v675
    %2240 = vmatpush.msra.mxu0 %v659
    %2241 = vmatpush.msra.mxu0 %v643
    %2242 = vmatpush.msra.mxu0 %v627
    %2243 = vmatpush.msra.mxu0 %v611
    %2244 = vmatpush.msra.mxu0 %v595
    %2245 = vmatpush.msra.mxu0 %v579
    %2246 = vmatpush.msra.mxu0 %v563
    %2247 = vmatpush.msra.mxu0 %v547
    %2248 = vmatpush.msra.mxu0 %v531
    %2249 = vmatpush.msra.mxu0 %v515
    %2250 = vmatpush.msra.mxu0 %v499
    %2251 = vmatmul.f32.gmra.mxu0 %v228
    %v2252 = vpop.f32.mrf.mxu0
    %v2253 = vadd.f32 %v2233, %v2252
    %2254 = vdwg.mxu0
    %2255 = vmatpush.msra.mxu0 %v995
    %2256 = vmatpush.msra.mxu0 %v979
    %2257 = vmatpush.msra.mxu0 %v963
    %2258 = vmatpush.msra.mxu0 %v947
    %2259 = vmatpush.msra.mxu0 %v931
    %2260 = vmatpush.msra.mxu0 %v915
    %2261 = vmatpush.msra.mxu0 %v899
    %2262 = vmatpush.msra.mxu0 %v883
    %2263 = vmatpush.msra.mxu0 %v867
    %2264 = vmatpush.msra.mxu0 %v851
    %2265 = vmatpush.msra.mxu0 %v835
    %2266 = vmatpush.msra.mxu0 %v819
    %2267 = vmatpush.msra.mxu0 %v803
    %2268 = vmatpush.msra.mxu0 %v787
    %2269 = vmatpush.msra.mxu0 %v771
    %2270 = vmatpush.msra.mxu0 %v755
    %2271 = vmatmul.f32.gmra.mxu0 %v229
    %v2272 = vpop.f32.mrf.mxu0
    %v2273 = vadd.f32 %v2253, %v2272
    %2274 = vdwg.mxu0
    %2275 = vmatpush.msra.mxu0 %v1251
    %2276 = vmatpush.msra.mxu0 %v1235
    %2277 = vmatpush.msra.mxu0 %v1219
    %2278 = vmatpush.msra.mxu0 %v1203
    %2279 = vmatpush.msra.mxu0 %v1187
    %2280 = vmatpush.msra.mxu0 %v1171
    %2281 = vmatpush.msra.mxu0 %v1155
    %2282 = vmatpush.msra.mxu0 %v1139
    %2283 = vmatpush.msra.mxu0 %v1123
    %2284 = vmatpush.msra.mxu0 %v1107
    %2285 = vmatpush.msra.mxu0 %v1091
    %2286 = vmatpush.msra.mxu0 %v1075
    %2287 = vmatpush.msra.mxu0 %v1059
    %2288 = vmatpush.msra.mxu0 %v1043
    %2289 = vmatpush.msra.mxu0 %v1027
    %2290 = vmatpush.msra.mxu0 %v1011
    %2291 = vmatmul.f32.gmra.mxu0 %v230
    %v2292 = vpop.f32.mrf.mxu0
    %v2293 = vadd.f32 %v2273, %v2292
    %2294 = vdwg.mxu0
    %2295 = vmatpush.msra.mxu0 %v484
    %2296 = vmatpush.msra.mxu0 %v468
    %2297 = vmatpush.msra.mxu0 %v452
    %2298 = vmatpush.msra.mxu0 %v436
    %2299 = vmatpush.msra.mxu0 %v420
    %2300 = vmatpush.msra.mxu0 %v404
    %2301 = vmatpush.msra.mxu0 %v388
    %2302 = vmatpush.msra.mxu0 %v372
    %2303 = vmatpush.msra.mxu0 %v356
    %2304 = vmatpush.msra.mxu0 %v340
    %2305 = vmatpush.msra.mxu0 %v324
    %2306 = vmatpush.msra.mxu0 %v308
    %2307 = vmatpush.msra.mxu0 %v292
    %2308 = vmatpush.msra.mxu0 %v276
    %2309 = vmatpush.msra.mxu0 %v260
    %2310 = vmatpush.msra.mxu0 %v244
    %2311 = vmatmul.f32.gmra.mxu0 %v227
    %v2312 = vpop.f32.mrf.mxu0
    %v2313 = vadd.f32 0.0, %v2312
    %2314 = vdwg.mxu0
    %2315 = vmatpush.msra.mxu0 %v740
    %2316 = vmatpush.msra.mxu0 %v724
    %2317 = vmatpush.msra.mxu0 %v708
    %2318 = vmatpush.msra.mxu0 %v692
    %2319 = vmatpush.msra.mxu0 %v676
    %2320 = vmatpush.msra.mxu0 %v660
    %2321 = vmatpush.msra.mxu0 %v644
    %2322 = vmatpush.msra.mxu0 %v628
    %2323 = vmatpush.msra.mxu0 %v612
    %2324 = vmatpush.msra.mxu0 %v596
    %2325 = vmatpush.msra.mxu0 %v580
    %2326 = vmatpush.msra.mxu0 %v564
    %2327 = vmatpush.msra.mxu0 %v548
    %2328 = vmatpush.msra.mxu0 %v532
    %2329 = vmatpush.msra.mxu0 %v516
    %2330 = vmatpush.msra.mxu0 %v500
    %2331 = vmatmul.f32.gmra.mxu0 %v228
    %v2332 = vpop.f32.mrf.mxu0
    %v2333 = vadd.f32 %v2313, %v2332
    %2334 = vdwg.mxu0
    %2335 = vmatpush.msra.mxu0 %v996
    %2336 = vmatpush.msra.mxu0 %v980
    %2337 = vmatpush.msra.mxu0 %v964
    %2338 = vmatpush.msra.mxu0 %v948
    %2339 = vmatpush.msra.mxu0 %v932
    %2340 = vmatpush.msra.mxu0 %v916
    %2341 = vmatpush.msra.mxu0 %v900
    %2342 = vmatpush.msra.mxu0 %v884
    %2343 = vmatpush.msra.mxu0 %v868
    %2344 = vmatpush.msra.mxu0 %v852
    %2345 = vmatpush.msra.mxu0 %v836
    %2346 = vmatpush.msra.mxu0 %v820
    %2347 = vmatpush.msra.mxu0 %v804
    %2348 = vmatpush.msra.mxu0 %v788
    %2349 = vmatpush.msra.mxu0 %v772
    %2350 = vmatpush.msra.mxu0 %v756
    %2351 = vmatmul.f32.gmra.mxu0 %v229
    %v2352 = vpop.f32.mrf.mxu0
    %v2353 = vadd.f32 %v2333, %v2352
    %2354 = vdwg.mxu0
    %2355 = vmatpush.msra.mxu0 %v1252
    %2356 = vmatpush.msra.mxu0 %v1236
    %2357 = vmatpush.msra.mxu0 %v1220
    %2358 = vmatpush.msra.mxu0 %v1204
    %2359 = vmatpush.msra.mxu0 %v1188
    %2360 = vmatpush.msra.mxu0 %v1172
    %2361 = vmatpush.msra.mxu0 %v1156
    %2362 = vmatpush.msra.mxu0 %v1140
    %2363 = vmatpush.msra.mxu0 %v1124
    %2364 = vmatpush.msra.mxu0 %v1108
    %2365 = vmatpush.msra.mxu0 %v1092
    %2366 = vmatpush.msra.mxu0 %v1076
    %2367 = vmatpush.msra.mxu0 %v1060
    %2368 = vmatpush.msra.mxu0 %v1044
    %2369 = vmatpush.msra.mxu0 %v1028
    %2370 = vmatpush.msra.mxu0 %v1012
    %2371 = vmatmul.f32.gmra.mxu0 %v230
    %v2372 = vpop.f32.mrf.mxu0
    %v2373 = vadd.f32 %v2353, %v2372
    %2374 = vdwg.mxu0
    %2375 = vmatpush.msra.mxu0 %v485
    %2376 = vmatpush.msra.mxu0 %v469
    %2377 = vmatpush.msra.mxu0 %v453
    %2378 = vmatpush.msra.mxu0 %v437
    %2379 = vmatpush.msra.mxu0 %v421
    %2380 = vmatpush.msra.mxu0 %v405
    %2381 = vmatpush.msra.mxu0 %v389
    %2382 = vmatpush.msra.mxu0 %v373
    %2383 = vmatpush.msra.mxu0 %v357
    %2384 = vmatpush.msra.mxu0 %v341
    %2385 = vmatpush.msra.mxu0 %v325
    %2386 = vmatpush.msra.mxu0 %v309
    %2387 = vmatpush.msra.mxu0 %v293
    %2388 = vmatpush.msra.mxu0 %v277
    %2389 = vmatpush.msra.mxu0 %v261
    %2390 = vmatpush.msra.mxu0 %v245
    %2391 = vmatmul.f32.gmra.mxu0 %v227
    %v2392 = vpop.f32.mrf.mxu0
    %v2393 = vadd.f32 0.0, %v2392
    %2394 = vdwg.mxu0
    %2395 = vmatpush.msra.mxu0 %v741
    %2396 = vmatpush.msra.mxu0 %v725
    %2397 = vmatpush.msra.mxu0 %v709
    %2398 = vmatpush.msra.mxu0 %v693
    %2399 = vmatpush.msra.mxu0 %v677
    %2400 = vmatpush.msra.mxu0 %v661
    %2401 = vmatpush.msra.mxu0 %v645
    %2402 = vmatpush.msra.mxu0 %v629
    %2403 = vmatpush.msra.mxu0 %v613
    %2404 = vmatpush.msra.mxu0 %v597
    %2405 = vmatpush.msra.mxu0 %v581
    %2406 = vmatpush.msra.mxu0 %v565
    %2407 = vmatpush.msra.mxu0 %v549
    %2408 = vmatpush.msra.mxu0 %v533
    %2409 = vmatpush.msra.mxu0 %v517
    %2410 = vmatpush.msra.mxu0 %v501
    %2411 = vmatmul.f32.gmra.mxu0 %v228
    %v2412 = vpop.f32.mrf.mxu0
    %v2413 = vadd.f32 %v2393, %v2412
    %2414 = vdwg.mxu0
    %2415 = vmatpush.msra.mxu0 %v997
    %2416 = vmatpush.msra.mxu0 %v981
    %2417 = vmatpush.msra.mxu0 %v965
    %2418 = vmatpush.msra.mxu0 %v949
    %2419 = vmatpush.msra.mxu0 %v933
    %2420 = vmatpush.msra.mxu0 %v917
    %2421 = vmatpush.msra.mxu0 %v901
    %2422 = vmatpush.msra.mxu0 %v885
    %2423 = vmatpush.msra.mxu0 %v869
    %2424 = vmatpush.msra.mxu0 %v853
    %2425 = vmatpush.msra.mxu0 %v837
    %2426 = vmatpush.msra.mxu0 %v821
    %2427 = vmatpush.msra.mxu0 %v805
    %2428 = vmatpush.msra.mxu0 %v789
    %2429 = vmatpush.msra.mxu0 %v773
    %2430 = vmatpush.msra.mxu0 %v757
    %2431 = vmatmul.f32.gmra.mxu0 %v229
    %v2432 = vpop.f32.mrf.mxu0
    %v2433 = vadd.f32 %v2413, %v2432
    %2434 = vdwg.mxu0
    %2435 = vmatpush.msra.mxu0 %v1253
    %2436 = vmatpush.msra.mxu0 %v1237
    %2437 = vmatpush.msra.mxu0 %v1221
    %2438 = vmatpush.msra.mxu0 %v1205
    %2439 = vmatpush.msra.mxu0 %v1189
    %2440 = vmatpush.msra.mxu0 %v1173
    %2441 = vmatpush.msra.mxu0 %v1157
    %2442 = vmatpush.msra.mxu0 %v1141
    %2443 = vmatpush.msra.mxu0 %v1125
    %2444 = vmatpush.msra.mxu0 %v1109
    %2445 = vmatpush.msra.mxu0 %v1093
    %2446 = vmatpush.msra.mxu0 %v1077
    %2447 = vmatpush.msra.mxu0 %v1061
    %2448 = vmatpush.msra.mxu0 %v1045
    %2449 = vmatpush.msra.mxu0 %v1029
    %2450 = vmatpush.msra.mxu0 %v1013
    %2451 = vmatmul.f32.gmra.mxu0 %v230
    %v2452 = vpop.f32.mrf.mxu0
    %v2453 = vadd.f32 %v2433, %v2452
    %2454 = vdwg.mxu0
    %2455 = vmatpush.msra.mxu0 %v486
    %2456 = vmatpush.msra.mxu0 %v470
    %2457 = vmatpush.msra.mxu0 %v454
    %2458 = vmatpush.msra.mxu0 %v438
    %2459 = vmatpush.msra.mxu0 %v422
    %2460 = vmatpush.msra.mxu0 %v406
    %2461 = vmatpush.msra.mxu0 %v390
    %2462 = vmatpush.msra.mxu0 %v374
    %2463 = vmatpush.msra.mxu0 %v358
    %2464 = vmatpush.msra.mxu0 %v342
    %2465 = vmatpush.msra.mxu0 %v326
    %2466 = vmatpush.msra.mxu0 %v310
    %2467 = vmatpush.msra.mxu0 %v294
    %2468 = vmatpush.msra.mxu0 %v278
    %2469 = vmatpush.msra.mxu0 %v262
    %2470 = vmatpush.msra.mxu0 %v246
    %2471 = vmatmul.f32.gmra.mxu0 %v227
    %v2472 = vpop.f32.mrf.mxu0
    %v2473 = vadd.f32 0.0, %v2472
    %2474 = vdwg.mxu0
    %2475 = vmatpush.msra.mxu0 %v742
    %2476 = vmatpush.msra.mxu0 %v726
    %2477 = vmatpush.msra.mxu0 %v710
    %2478 = vmatpush.msra.mxu0 %v694
    %2479 = vmatpush.msra.mxu0 %v678
    %2480 = vmatpush.msra.mxu0 %v662
    %2481 = vmatpush.msra.mxu0 %v646
    %2482 = vmatpush.msra.mxu0 %v630
    %2483 = vmatpush.msra.mxu0 %v614
    %2484 = vmatpush.msra.mxu0 %v598
    %2485 = vmatpush.msra.mxu0 %v582
    %2486 = vmatpush.msra.mxu0 %v566
    %2487 = vmatpush.msra.mxu0 %v550
    %2488 = vmatpush.msra.mxu0 %v534
    %2489 = vmatpush.msra.mxu0 %v518
    %2490 = vmatpush.msra.mxu0 %v502
    %2491 = vmatmul.f32.gmra.mxu0 %v228
    %v2492 = vpop.f32.mrf.mxu0
    %v2493 = vadd.f32 %v2473, %v2492
    %2494 = vdwg.mxu0
    %2495 = vmatpush.msra.mxu0 %v998
    %2496 = vmatpush.msra.mxu0 %v982
    %2497 = vmatpush.msra.mxu0 %v966
    %2498 = vmatpush.msra.mxu0 %v950
    %2499 = vmatpush.msra.mxu0 %v934
    %2500 = vmatpush.msra.mxu0 %v918
    %2501 = vmatpush.msra.mxu0 %v902
    %2502 = vmatpush.msra.mxu0 %v886
    %2503 = vmatpush.msra.mxu0 %v870
    %2504 = vmatpush.msra.mxu0 %v854
    %2505 = vmatpush.msra.mxu0 %v838
    %2506 = vmatpush.msra.mxu0 %v822
    %2507 = vmatpush.msra.mxu0 %v806
    %2508 = vmatpush.msra.mxu0 %v790
    %2509 = vmatpush.msra.mxu0 %v774
    %2510 = vmatpush.msra.mxu0 %v758
    %2511 = vmatmul.f32.gmra.mxu0 %v229
    %v2512 = vpop.f32.mrf.mxu0
    %v2513 = vadd.f32 %v2493, %v2512
    %2514 = vdwg.mxu0
    %2515 = vmatpush.msra.mxu0 %v1254
    %2516 = vmatpush.msra.mxu0 %v1238
    %2517 = vmatpush.msra.mxu0 %v1222
    %2518 = vmatpush.msra.mxu0 %v1206
    %2519 = vmatpush.msra.mxu0 %v1190
    %2520 = vmatpush.msra.mxu0 %v1174
    %2521 = vmatpush.msra.mxu0 %v1158
    %2522 = vmatpush.msra.mxu0 %v1142
    %2523 = vmatpush.msra.mxu0 %v1126
    %2524 = vmatpush.msra.mxu0 %v1110
    %2525 = vmatpush.msra.mxu0 %v1094
    %2526 = vmatpush.msra.mxu0 %v1078
    %2527 = vmatpush.msra.mxu0 %v1062
    %2528 = vmatpush.msra.mxu0 %v1046
    %2529 = vmatpush.msra.mxu0 %v1030
    %2530 = vmatpush.msra.mxu0 %v1014
    %2531 = vmatmul.f32.gmra.mxu0 %v230
    %v2532 = vpop.f32.mrf.mxu0
    %v2533 = vadd.f32 %v2513, %v2532
    %2534 = vdwg.mxu0
    %2535 = vmatpush.msra.mxu0 %v471
    %2536 = vmatpush.msra.mxu0 %v455
    %2537 = vmatpush.msra.mxu0 %v439
    %2538 = vmatpush.msra.mxu0 %v423
    %2539 = vmatpush.msra.mxu0 %v407
    %2540 = vmatpush.msra.mxu0 %v391
    %2541 = vmatpush.msra.mxu0 %v375
    %2542 = vmatpush.msra.mxu0 %v359
    %2543 = vmatpush.msra.mxu0 %v343
    %2544 = vmatpush.msra.mxu0 %v327
    %2545 = vmatpush.msra.mxu0 %v311
    %2546 = vmatpush.msra.mxu0 %v295
    %2547 = vmatpush.msra.mxu0 %v279
    %2548 = vmatpush.msra.mxu0 %v263
    %2549 = vmatpush.msra.mxu0 %v247
    %2550 = vmatpush.msra.mxu0 %v231
    %2551 = vmatmul.f32.gmra.mxu0 %v163
    %v2552 = vpop.f32.mrf.mxu0
    %v2553 = vadd.f32 0.0, %v2552
    %2554 = vdwg.mxu0
    %2555 = vmatpush.msra.mxu0 %v727
    %2556 = vmatpush.msra.mxu0 %v711
    %2557 = vmatpush.msra.mxu0 %v695
    %2558 = vmatpush.msra.mxu0 %v679
    %2559 = vmatpush.msra.mxu0 %v663
    %2560 = vmatpush.msra.mxu0 %v647
    %2561 = vmatpush.msra.mxu0 %v631
    %2562 = vmatpush.msra.mxu0 %v615
    %2563 = vmatpush.msra.mxu0 %v599
    %2564 = vmatpush.msra.mxu0 %v583
    %2565 = vmatpush.msra.mxu0 %v567
    %2566 = vmatpush.msra.mxu0 %v551
    %2567 = vmatpush.msra.mxu0 %v535
    %2568 = vmatpush.msra.mxu0 %v519
    %2569 = vmatpush.msra.mxu0 %v503
    %2570 = vmatpush.msra.mxu0 %v487
    %2571 = vmatmul.f32.gmra.mxu0 %v164
    %v2572 = vpop.f32.mrf.mxu0
    %v2573 = vadd.f32 %v2553, %v2572
    %2574 = vdwg.mxu0
    %2575 = vmatpush.msra.mxu0 %v983
    %2576 = vmatpush.msra.mxu0 %v967
    %2577 = vmatpush.msra.mxu0 %v951
    %2578 = vmatpush.msra.mxu0 %v935
    %2579 = vmatpush.msra.mxu0 %v919
    %2580 = vmatpush.msra.mxu0 %v903
    %2581 = vmatpush.msra.mxu0 %v887
    %2582 = vmatpush.msra.mxu0 %v871
    %2583 = vmatpush.msra.mxu0 %v855
    %2584 = vmatpush.msra.mxu0 %v839
    %2585 = vmatpush.msra.mxu0 %v823
    %2586 = vmatpush.msra.mxu0 %v807
    %2587 = vmatpush.msra.mxu0 %v791
    %2588 = vmatpush.msra.mxu0 %v775
    %2589 = vmatpush.msra.mxu0 %v759
    %2590 = vmatpush.msra.mxu0 %v743
    %2591 = vmatmul.f32.gmra.mxu0 %v165
    %v2592 = vpop.f32.mrf.mxu0
    %v2593 = vadd.f32 %v2573, %v2592
    %2594 = vdwg.mxu0
    %2595 = vmatpush.msra.mxu0 %v1239
    %2596 = vmatpush.msra.mxu0 %v1223
    %2597 = vmatpush.msra.mxu0 %v1207
    %2598 = vmatpush.msra.mxu0 %v1191
    %2599 = vmatpush.msra.mxu0 %v1175
    %2600 = vmatpush.msra.mxu0 %v1159
    %2601 = vmatpush.msra.mxu0 %v1143
    %2602 = vmatpush.msra.mxu0 %v1127
    %2603 = vmatpush.msra.mxu0 %v1111
    %2604 = vmatpush.msra.mxu0 %v1095
    %2605 = vmatpush.msra.mxu0 %v1079
    %2606 = vmatpush.msra.mxu0 %v1063
    %2607 = vmatpush.msra.mxu0 %v1047
    %2608 = vmatpush.msra.mxu0 %v1031
    %2609 = vmatpush.msra.mxu0 %v1015
    %2610 = vmatpush.msra.mxu0 %v999
    %2611 = vmatmul.f32.gmra.mxu0 %v166
    %v2612 = vpop.f32.mrf.mxu0
    %v2613 = vadd.f32 %v2593, %v2612
    %2614 = vdwg.mxu0
    %2615 = vmatpush.msra.mxu0 %v472
    %2616 = vmatpush.msra.mxu0 %v456
    %2617 = vmatpush.msra.mxu0 %v440
    %2618 = vmatpush.msra.mxu0 %v424
    %2619 = vmatpush.msra.mxu0 %v408
    %2620 = vmatpush.msra.mxu0 %v392
    %2621 = vmatpush.msra.mxu0 %v376
    %2622 = vmatpush.msra.mxu0 %v360
    %2623 = vmatpush.msra.mxu0 %v344
    %2624 = vmatpush.msra.mxu0 %v328
    %2625 = vmatpush.msra.mxu0 %v312
    %2626 = vmatpush.msra.mxu0 %v296
    %2627 = vmatpush.msra.mxu0 %v280
    %2628 = vmatpush.msra.mxu0 %v264
    %2629 = vmatpush.msra.mxu0 %v248
    %2630 = vmatpush.msra.mxu0 %v232
    %2631 = vmatmul.f32.gmra.mxu0 %v163
    %v2632 = vpop.f32.mrf.mxu0
    %v2633 = vadd.f32 0.0, %v2632
    %2634 = vdwg.mxu0
    %2635 = vmatpush.msra.mxu0 %v728
    %2636 = vmatpush.msra.mxu0 %v712
    %2637 = vmatpush.msra.mxu0 %v696
    %2638 = vmatpush.msra.mxu0 %v680
    %2639 = vmatpush.msra.mxu0 %v664
    %2640 = vmatpush.msra.mxu0 %v648
    %2641 = vmatpush.msra.mxu0 %v632
    %2642 = vmatpush.msra.mxu0 %v616
    %2643 = vmatpush.msra.mxu0 %v600
    %2644 = vmatpush.msra.mxu0 %v584
    %2645 = vmatpush.msra.mxu0 %v568
    %2646 = vmatpush.msra.mxu0 %v552
    %2647 = vmatpush.msra.mxu0 %v536
    %2648 = vmatpush.msra.mxu0 %v520
    %2649 = vmatpush.msra.mxu0 %v504
    %2650 = vmatpush.msra.mxu0 %v488
    %2651 = vmatmul.f32.gmra.mxu0 %v164
    %v2652 = vpop.f32.mrf.mxu0
    %v2653 = vadd.f32 %v2633, %v2652
    %2654 = vdwg.mxu0
    %2655 = vmatpush.msra.mxu0 %v984
    %2656 = vmatpush.msra.mxu0 %v968
    %2657 = vmatpush.msra.mxu0 %v952
    %2658 = vmatpush.msra.mxu0 %v936
    %2659 = vmatpush.msra.mxu0 %v920
    %2660 = vmatpush.msra.mxu0 %v904
    %2661 = vmatpush.msra.mxu0 %v888
    %2662 = vmatpush.msra.mxu0 %v872
    %2663 = vmatpush.msra.mxu0 %v856
    %2664 = vmatpush.msra.mxu0 %v840
    %2665 = vmatpush.msra.mxu0 %v824
    %2666 = vmatpush.msra.mxu0 %v808
    %2667 = vmatpush.msra.mxu0 %v792
    %2668 = vmatpush.msra.mxu0 %v776
    %2669 = vmatpush.msra.mxu0 %v760
    %2670 = vmatpush.msra.mxu0 %v744
    %2671 = vmatmul.f32.gmra.mxu0 %v165
    %v2672 = vpop.f32.mrf.mxu0
    %v2673 = vadd.f32 %v2653, %v2672
    %2674 = vdwg.mxu0
    %2675 = vmatpush.msra.mxu0 %v1240
    %2676 = vmatpush.msra.mxu0 %v1224
    %2677 = vmatpush.msra.mxu0 %v1208
    %2678 = vmatpush.msra.mxu0 %v1192
    %2679 = vmatpush.msra.mxu0 %v1176
    %2680 = vmatpush.msra.mxu0 %v1160
    %2681 = vmatpush.msra.mxu0 %v1144
    %2682 = vmatpush.msra.mxu0 %v1128
    %2683 = vmatpush.msra.mxu0 %v1112
    %2684 = vmatpush.msra.mxu0 %v1096
    %2685 = vmatpush.msra.mxu0 %v1080
    %2686 = vmatpush.msra.mxu0 %v1064
    %2687 = vmatpush.msra.mxu0 %v1048
    %2688 = vmatpush.msra.mxu0 %v1032
    %2689 = vmatpush.msra.mxu0 %v1016
    %2690 = vmatpush.msra.mxu0 %v1000
    %2691 = vmatmul.f32.gmra.mxu0 %v166
    %v2692 = vpop.f32.mrf.mxu0
    %v2693 = vadd.f32 %v2673, %v2692
    %2694 = vdwg.mxu0
    %2695 = vmatpush.msra.mxu0 %v473
    %2696 = vmatpush.msra.mxu0 %v457
    %2697 = vmatpush.msra.mxu0 %v441
    %2698 = vmatpush.msra.mxu0 %v425
    %2699 = vmatpush.msra.mxu0 %v409
    %2700 = vmatpush.msra.mxu0 %v393
    %2701 = vmatpush.msra.mxu0 %v377
    %2702 = vmatpush.msra.mxu0 %v361
    %2703 = vmatpush.msra.mxu0 %v345
    %2704 = vmatpush.msra.mxu0 %v329
    %2705 = vmatpush.msra.mxu0 %v313
    %2706 = vmatpush.msra.mxu0 %v297
    %2707 = vmatpush.msra.mxu0 %v281
    %2708 = vmatpush.msra.mxu0 %v265
    %2709 = vmatpush.msra.mxu0 %v249
    %2710 = vmatpush.msra.mxu0 %v233
    %2711 = vmatmul.f32.gmra.mxu0 %v163
    %v2712 = vpop.f32.mrf.mxu0
    %v2713 = vadd.f32 0.0, %v2712
    %2714 = vdwg.mxu0
    %2715 = vmatpush.msra.mxu0 %v729
    %2716 = vmatpush.msra.mxu0 %v713
    %2717 = vmatpush.msra.mxu0 %v697
    %2718 = vmatpush.msra.mxu0 %v681
    %2719 = vmatpush.msra.mxu0 %v665
    %2720 = vmatpush.msra.mxu0 %v649
    %2721 = vmatpush.msra.mxu0 %v633
    %2722 = vmatpush.msra.mxu0 %v617
    %2723 = vmatpush.msra.mxu0 %v601
    %2724 = vmatpush.msra.mxu0 %v585
    %2725 = vmatpush.msra.mxu0 %v569
    %2726 = vmatpush.msra.mxu0 %v553
    %2727 = vmatpush.msra.mxu0 %v537
    %2728 = vmatpush.msra.mxu0 %v521
    %2729 = vmatpush.msra.mxu0 %v505
    %2730 = vmatpush.msra.mxu0 %v489
    %2731 = vmatmul.f32.gmra.mxu0 %v164
    %v2732 = vpop.f32.mrf.mxu0
    %v2733 = vadd.f32 %v2713, %v2732
    %2734 = vdwg.mxu0
    %2735 = vmatpush.msra.mxu0 %v985
    %2736 = vmatpush.msra.mxu0 %v969
    %2737 = vmatpush.msra.mxu0 %v953
    %2738 = vmatpush.msra.mxu0 %v937
    %2739 = vmatpush.msra.mxu0 %v921
    %2740 = vmatpush.msra.mxu0 %v905
    %2741 = vmatpush.msra.mxu0 %v889
    %2742 = vmatpush.msra.mxu0 %v873
    %2743 = vmatpush.msra.mxu0 %v857
    %2744 = vmatpush.msra.mxu0 %v841
    %2745 = vmatpush.msra.mxu0 %v825
    %2746 = vmatpush.msra.mxu0 %v809
    %2747 = vmatpush.msra.mxu0 %v793
    %2748 = vmatpush.msra.mxu0 %v777
    %2749 = vmatpush.msra.mxu0 %v761
    %2750 = vmatpush.msra.mxu0 %v745
    %2751 = vmatmul.f32.gmra.mxu0 %v165
    %v2752 = vpop.f32.mrf.mxu0
    %v2753 = vadd.f32 %v2733, %v2752
    %2754 = vdwg.mxu0
    %2755 = vmatpush.msra.mxu0 %v1241
    %2756 = vmatpush.msra.mxu0 %v1225
    %2757 = vmatpush.msra.mxu0 %v1209
    %2758 = vmatpush.msra.mxu0 %v1193
    %2759 = vmatpush.msra.mxu0 %v1177
    %2760 = vmatpush.msra.mxu0 %v1161
    %2761 = vmatpush.msra.mxu0 %v1145
    %2762 = vmatpush.msra.mxu0 %v1129
    %2763 = vmatpush.msra.mxu0 %v1113
    %2764 = vmatpush.msra.mxu0 %v1097
    %2765 = vmatpush.msra.mxu0 %v1081
    %2766 = vmatpush.msra.mxu0 %v1065
    %2767 = vmatpush.msra.mxu0 %v1049
    %2768 = vmatpush.msra.mxu0 %v1033
    %2769 = vmatpush.msra.mxu0 %v1017
    %2770 = vmatpush.msra.mxu0 %v1001
    %2771 = vmatmul.f32.gmra.mxu0 %v166
    %v2772 = vpop.f32.mrf.mxu0
    %v2773 = vadd.f32 %v2753, %v2772
    %2774 = vdwg.mxu0
    %2775 = vmatpush.msra.mxu0 %v474
    %2776 = vmatpush.msra.mxu0 %v458
    %2777 = vmatpush.msra.mxu0 %v442
    %2778 = vmatpush.msra.mxu0 %v426
    %2779 = vmatpush.msra.mxu0 %v410
    %2780 = vmatpush.msra.mxu0 %v394
    %2781 = vmatpush.msra.mxu0 %v378
    %2782 = vmatpush.msra.mxu0 %v362
    %2783 = vmatpush.msra.mxu0 %v346
    %2784 = vmatpush.msra.mxu0 %v330
    %2785 = vmatpush.msra.mxu0 %v314
    %2786 = vmatpush.msra.mxu0 %v298
    %2787 = vmatpush.msra.mxu0 %v282
    %2788 = vmatpush.msra.mxu0 %v266
    %2789 = vmatpush.msra.mxu0 %v250
    %2790 = vmatpush.msra.mxu0 %v234
    %2791 = vmatmul.f32.gmra.mxu0 %v163
    %v2792 = vpop.f32.mrf.mxu0
    %v2793 = vadd.f32 0.0, %v2792
    %2794 = vdwg.mxu0
    %2795 = vmatpush.msra.mxu0 %v730
    %2796 = vmatpush.msra.mxu0 %v714
    %2797 = vmatpush.msra.mxu0 %v698
    %2798 = vmatpush.msra.mxu0 %v682
    %2799 = vmatpush.msra.mxu0 %v666
    %2800 = vmatpush.msra.mxu0 %v650
    %2801 = vmatpush.msra.mxu0 %v634
    %2802 = vmatpush.msra.mxu0 %v618
    %2803 = vmatpush.msra.mxu0 %v602
    %2804 = vmatpush.msra.mxu0 %v586
    %2805 = vmatpush.msra.mxu0 %v570
    %2806 = vmatpush.msra.mxu0 %v554
    %2807 = vmatpush.msra.mxu0 %v538
    %2808 = vmatpush.msra.mxu0 %v522
    %2809 = vmatpush.msra.mxu0 %v506
    %2810 = vmatpush.msra.mxu0 %v490
    %2811 = vmatmul.f32.gmra.mxu0 %v164
    %v2812 = vpop.f32.mrf.mxu0
    %v2813 = vadd.f32 %v2793, %v2812
    %2814 = vdwg.mxu0
    %2815 = vmatpush.msra.mxu0 %v986
    %2816 = vmatpush.msra.mxu0 %v970
    %2817 = vmatpush.msra.mxu0 %v954
    %2818 = vmatpush.msra.mxu0 %v938
    %2819 = vmatpush.msra.mxu0 %v922
    %2820 = vmatpush.msra.mxu0 %v906
    %2821 = vmatpush.msra.mxu0 %v890
    %2822 = vmatpush.msra.mxu0 %v874
    %2823 = vmatpush.msra.mxu0 %v858
    %2824 = vmatpush.msra.mxu0 %v842
    %2825 = vmatpush.msra.mxu0 %v826
    %2826 = vmatpush.msra.mxu0 %v810
    %2827 = vmatpush.msra.mxu0 %v794
    %2828 = vmatpush.msra.mxu0 %v778
    %2829 = vmatpush.msra.mxu0 %v762
    %2830 = vmatpush.msra.mxu0 %v746
    %2831 = vmatmul.f32.gmra.mxu0 %v165
    %v2832 = vpop.f32.mrf.mxu0
    %v2833 = vadd.f32 %v2813, %v2832
    %2834 = vdwg.mxu0
    %2835 = vmatpush.msra.mxu0 %v1242
    %2836 = vmatpush.msra.mxu0 %v1226
    %2837 = vmatpush.msra.mxu0 %v1210
    %2838 = vmatpush.msra.mxu0 %v1194
    %2839 = vmatpush.msra.mxu0 %v1178
    %2840 = vmatpush.msra.mxu0 %v1162
    %2841 = vmatpush.msra.mxu0 %v1146
    %2842 = vmatpush.msra.mxu0 %v1130
    %2843 = vmatpush.msra.mxu0 %v1114
    %2844 = vmatpush.msra.mxu0 %v1098
    %2845 = vmatpush.msra.mxu0 %v1082
    %2846 = vmatpush.msra.mxu0 %v1066
    %2847 = vmatpush.msra.mxu0 %v1050
    %2848 = vmatpush.msra.mxu0 %v1034
    %2849 = vmatpush.msra.mxu0 %v1018
    %2850 = vmatpush.msra.mxu0 %v1002
    %2851 = vmatmul.f32.gmra.mxu0 %v166
    %v2852 = vpop.f32.mrf.mxu0
    %v2853 = vadd.f32 %v2833, %v2852
    %2854 = vdwg.mxu0
    %2855 = vmatpush.msra.mxu0 %v475
    %2856 = vmatpush.msra.mxu0 %v459
    %2857 = vmatpush.msra.mxu0 %v443
    %2858 = vmatpush.msra.mxu0 %v427
    %2859 = vmatpush.msra.mxu0 %v411
    %2860 = vmatpush.msra.mxu0 %v395
    %2861 = vmatpush.msra.mxu0 %v379
    %2862 = vmatpush.msra.mxu0 %v363
    %2863 = vmatpush.msra.mxu0 %v347
    %2864 = vmatpush.msra.mxu0 %v331
    %2865 = vmatpush.msra.mxu0 %v315
    %2866 = vmatpush.msra.mxu0 %v299
    %2867 = vmatpush.msra.mxu0 %v283
    %2868 = vmatpush.msra.mxu0 %v267
    %2869 = vmatpush.msra.mxu0 %v251
    %2870 = vmatpush.msra.mxu0 %v235
    %2871 = vmatmul.f32.gmra.mxu0 %v163
    %v2872 = vpop.f32.mrf.mxu0
    %v2873 = vadd.f32 0.0, %v2872
    %2874 = vdwg.mxu0
    %2875 = vmatpush.msra.mxu0 %v731
    %2876 = vmatpush.msra.mxu0 %v715
    %2877 = vmatpush.msra.mxu0 %v699
    %2878 = vmatpush.msra.mxu0 %v683
    %2879 = vmatpush.msra.mxu0 %v667
    %2880 = vmatpush.msra.mxu0 %v651
    %2881 = vmatpush.msra.mxu0 %v635
    %2882 = vmatpush.msra.mxu0 %v619
    %2883 = vmatpush.msra.mxu0 %v603
    %2884 = vmatpush.msra.mxu0 %v587
    %2885 = vmatpush.msra.mxu0 %v571
    %2886 = vmatpush.msra.mxu0 %v555
    %2887 = vmatpush.msra.mxu0 %v539
    %2888 = vmatpush.msra.mxu0 %v523
    %2889 = vmatpush.msra.mxu0 %v507
    %2890 = vmatpush.msra.mxu0 %v491
    %2891 = vmatmul.f32.gmra.mxu0 %v164
    %v2892 = vpop.f32.mrf.mxu0
    %v2893 = vadd.f32 %v2873, %v2892
    %2894 = vdwg.mxu0
    %2895 = vmatpush.msra.mxu0 %v987
    %2896 = vmatpush.msra.mxu0 %v971
    %2897 = vmatpush.msra.mxu0 %v955
    %2898 = vmatpush.msra.mxu0 %v939
    %2899 = vmatpush.msra.mxu0 %v923
    %2900 = vmatpush.msra.mxu0 %v907
    %2901 = vmatpush.msra.mxu0 %v891
    %2902 = vmatpush.msra.mxu0 %v875
    %2903 = vmatpush.msra.mxu0 %v859
    %2904 = vmatpush.msra.mxu0 %v843
    %2905 = vmatpush.msra.mxu0 %v827
    %2906 = vmatpush.msra.mxu0 %v811
    %2907 = vmatpush.msra.mxu0 %v795
    %2908 = vmatpush.msra.mxu0 %v779
    %2909 = vmatpush.msra.mxu0 %v763
    %2910 = vmatpush.msra.mxu0 %v747
    %2911 = vmatmul.f32.gmra.mxu0 %v165
    %v2912 = vpop.f32.mrf.mxu0
    %v2913 = vadd.f32 %v2893, %v2912
    %2914 = vdwg.mxu0
    %2915 = vmatpush.msra.mxu0 %v1243
    %2916 = vmatpush.msra.mxu0 %v1227
    %2917 = vmatpush.msra.mxu0 %v1211
    %2918 = vmatpush.msra.mxu0 %v1195
    %2919 = vmatpush.msra.mxu0 %v1179
    %2920 = vmatpush.msra.mxu0 %v1163
    %2921 = vmatpush.msra.mxu0 %v1147
    %2922 = vmatpush.msra.mxu0 %v1131
    %2923 = vmatpush.msra.mxu0 %v1115
    %2924 = vmatpush.msra.mxu0 %v1099
    %2925 = vmatpush.msra.mxu0 %v1083
    %2926 = vmatpush.msra.mxu0 %v1067
    %2927 = vmatpush.msra.mxu0 %v1051
    %2928 = vmatpush.msra.mxu0 %v1035
    %2929 = vmatpush.msra.mxu0 %v1019
    %2930 = vmatpush.msra.mxu0 %v1003
    %2931 = vmatmul.f32.gmra.mxu0 %v166
    %v2932 = vpop.f32.mrf.mxu0
    %v2933 = vadd.f32 %v2913, %v2932
    %2934 = vdwg.mxu0
    %2935 = vmatpush.msra.mxu0 %v476
    %2936 = vmatpush.msra.mxu0 %v460
    %2937 = vmatpush.msra.mxu0 %v444
    %2938 = vmatpush.msra.mxu0 %v428
    %2939 = vmatpush.msra.mxu0 %v412
    %2940 = vmatpush.msra.mxu0 %v396
    %2941 = vmatpush.msra.mxu0 %v380
    %2942 = vmatpush.msra.mxu0 %v364
    %2943 = vmatpush.msra.mxu0 %v348
    %2944 = vmatpush.msra.mxu0 %v332
    %2945 = vmatpush.msra.mxu0 %v316
    %2946 = vmatpush.msra.mxu0 %v300
    %2947 = vmatpush.msra.mxu0 %v284
    %2948 = vmatpush.msra.mxu0 %v268
    %2949 = vmatpush.msra.mxu0 %v252
    %2950 = vmatpush.msra.mxu0 %v236
    %2951 = vmatmul.f32.gmra.mxu0 %v163
    %v2952 = vpop.f32.mrf.mxu0
    %v2953 = vadd.f32 0.0, %v2952
    %2954 = vdwg.mxu0
    %2955 = vmatpush.msra.mxu0 %v732
    %2956 = vmatpush.msra.mxu0 %v716
    %2957 = vmatpush.msra.mxu0 %v700
    %2958 = vmatpush.msra.mxu0 %v684
    %2959 = vmatpush.msra.mxu0 %v668
    %2960 = vmatpush.msra.mxu0 %v652
    %2961 = vmatpush.msra.mxu0 %v636
    %2962 = vmatpush.msra.mxu0 %v620
    %2963 = vmatpush.msra.mxu0 %v604
    %2964 = vmatpush.msra.mxu0 %v588
    %2965 = vmatpush.msra.mxu0 %v572
    %2966 = vmatpush.msra.mxu0 %v556
    %2967 = vmatpush.msra.mxu0 %v540
    %2968 = vmatpush.msra.mxu0 %v524
    %2969 = vmatpush.msra.mxu0 %v508
    %2970 = vmatpush.msra.mxu0 %v492
    %2971 = vmatmul.f32.gmra.mxu0 %v164
    %v2972 = vpop.f32.mrf.mxu0
    %v2973 = vadd.f32 %v2953, %v2972
    %2974 = vdwg.mxu0
    %2975 = vmatpush.msra.mxu0 %v988
    %2976 = vmatpush.msra.mxu0 %v972
    %2977 = vmatpush.msra.mxu0 %v956
    %2978 = vmatpush.msra.mxu0 %v940
    %2979 = vmatpush.msra.mxu0 %v924
    %2980 = vmatpush.msra.mxu0 %v908
    %2981 = vmatpush.msra.mxu0 %v892
    %2982 = vmatpush.msra.mxu0 %v876
    %2983 = vmatpush.msra.mxu0 %v860
    %2984 = vmatpush.msra.mxu0 %v844
    %2985 = vmatpush.msra.mxu0 %v828
    %2986 = vmatpush.msra.mxu0 %v812
    %2987 = vmatpush.msra.mxu0 %v796
    %2988 = vmatpush.msra.mxu0 %v780
    %2989 = vmatpush.msra.mxu0 %v764
    %2990 = vmatpush.msra.mxu0 %v748
    %2991 = vmatmul.f32.gmra.mxu0 %v165
    %v2992 = vpop.f32.mrf.mxu0
    %v2993 = vadd.f32 %v2973, %v2992
    %2994 = vdwg.mxu0
    %2995 = vmatpush.msra.mxu0 %v1244
    %2996 = vmatpush.msra.mxu0 %v1228
    %2997 = vmatpush.msra.mxu0 %v1212
    %2998 = vmatpush.msra.mxu0 %v1196
    %2999 = vmatpush.msra.mxu0 %v1180
    %3000 = vmatpush.msra.mxu0 %v1164
    %3001 = vmatpush.msra.mxu0 %v1148
    %3002 = vmatpush.msra.mxu0 %v1132
    %3003 = vmatpush.msra.mxu0 %v1116
    %3004 = vmatpush.msra.mxu0 %v1100
    %3005 = vmatpush.msra.mxu0 %v1084
    %3006 = vmatpush.msra.mxu0 %v1068
    %3007 = vmatpush.msra.mxu0 %v1052
    %3008 = vmatpush.msra.mxu0 %v1036
    %3009 = vmatpush.msra.mxu0 %v1020
    %3010 = vmatpush.msra.mxu0 %v1004
    %3011 = vmatmul.f32.gmra.mxu0 %v166
    %v3012 = vpop.f32.mrf.mxu0
    %v3013 = vadd.f32 %v2993, %v3012
    %3014 = vdwg.mxu0
    %3015 = vmatpush.msra.mxu0 %v477
    %3016 = vmatpush.msra.mxu0 %v461
    %3017 = vmatpush.msra.mxu0 %v445
    %3018 = vmatpush.msra.mxu0 %v429
    %3019 = vmatpush.msra.mxu0 %v413
    %3020 = vmatpush.msra.mxu0 %v397
    %3021 = vmatpush.msra.mxu0 %v381
    %3022 = vmatpush.msra.mxu0 %v365
    %3023 = vmatpush.msra.mxu0 %v349
    %3024 = vmatpush.msra.mxu0 %v333
    %3025 = vmatpush.msra.mxu0 %v317
    %3026 = vmatpush.msra.mxu0 %v301
    %3027 = vmatpush.msra.mxu0 %v285
    %3028 = vmatpush.msra.mxu0 %v269
    %3029 = vmatpush.msra.mxu0 %v253
    %3030 = vmatpush.msra.mxu0 %v237
    %3031 = vmatmul.f32.gmra.mxu0 %v163
    %v3032 = vpop.f32.mrf.mxu0
    %v3033 = vadd.f32 0.0, %v3032
    %3034 = vdwg.mxu0
    %3035 = vmatpush.msra.mxu0 %v733
    %3036 = vmatpush.msra.mxu0 %v717
    %3037 = vmatpush.msra.mxu0 %v701
    %3038 = vmatpush.msra.mxu0 %v685
    %3039 = vmatpush.msra.mxu0 %v669
    %3040 = vmatpush.msra.mxu0 %v653
    %3041 = vmatpush.msra.mxu0 %v637
    %3042 = vmatpush.msra.mxu0 %v621
    %3043 = vmatpush.msra.mxu0 %v605
    %3044 = vmatpush.msra.mxu0 %v589
    %3045 = vmatpush.msra.mxu0 %v573
    %3046 = vmatpush.msra.mxu0 %v557
    %3047 = vmatpush.msra.mxu0 %v541
    %3048 = vmatpush.msra.mxu0 %v525
    %3049 = vmatpush.msra.mxu0 %v509
    %3050 = vmatpush.msra.mxu0 %v493
    %3051 = vmatmul.f32.gmra.mxu0 %v164
    %v3052 = vpop.f32.mrf.mxu0
    %v3053 = vadd.f32 %v3033, %v3052
    %3054 = vdwg.mxu0
    %3055 = vmatpush.msra.mxu0 %v989
    %3056 = vmatpush.msra.mxu0 %v973
    %3057 = vmatpush.msra.mxu0 %v957
    %3058 = vmatpush.msra.mxu0 %v941
    %3059 = vmatpush.msra.mxu0 %v925
    %3060 = vmatpush.msra.mxu0 %v909
    %3061 = vmatpush.msra.mxu0 %v893
    %3062 = vmatpush.msra.mxu0 %v877
    %3063 = vmatpush.msra.mxu0 %v861
    %3064 = vmatpush.msra.mxu0 %v845
    %3065 = vmatpush.msra.mxu0 %v829
    %3066 = vmatpush.msra.mxu0 %v813
    %3067 = vmatpush.msra.mxu0 %v797
    %3068 = vmatpush.msra.mxu0 %v781
    %3069 = vmatpush.msra.mxu0 %v765
    %3070 = vmatpush.msra.mxu0 %v749
    %3071 = vmatmul.f32.gmra.mxu0 %v165
    %v3072 = vpop.f32.mrf.mxu0
    %v3073 = vadd.f32 %v3053, %v3072
    %3074 = vdwg.mxu0
    %3075 = vmatpush.msra.mxu0 %v1245
    %3076 = vmatpush.msra.mxu0 %v1229
    %3077 = vmatpush.msra.mxu0 %v1213
    %3078 = vmatpush.msra.mxu0 %v1197
    %3079 = vmatpush.msra.mxu0 %v1181
    %3080 = vmatpush.msra.mxu0 %v1165
    %3081 = vmatpush.msra.mxu0 %v1149
    %3082 = vmatpush.msra.mxu0 %v1133
    %3083 = vmatpush.msra.mxu0 %v1117
    %3084 = vmatpush.msra.mxu0 %v1101
    %3085 = vmatpush.msra.mxu0 %v1085
    %3086 = vmatpush.msra.mxu0 %v1069
    %3087 = vmatpush.msra.mxu0 %v1053
    %3088 = vmatpush.msra.mxu0 %v1037
    %3089 = vmatpush.msra.mxu0 %v1021
    %3090 = vmatpush.msra.mxu0 %v1005
    %3091 = vmatmul.f32.gmra.mxu0 %v166
    %v3092 = vpop.f32.mrf.mxu0
    %v3093 = vadd.f32 %v3073, %v3092
    %3094 = vdwg.mxu0
    %3095 = vmatpush.msra.mxu0 %v478
    %3096 = vmatpush.msra.mxu0 %v462
    %3097 = vmatpush.msra.mxu0 %v446
    %3098 = vmatpush.msra.mxu0 %v430
    %3099 = vmatpush.msra.mxu0 %v414
    %3100 = vmatpush.msra.mxu0 %v398
    %3101 = vmatpush.msra.mxu0 %v382
    %3102 = vmatpush.msra.mxu0 %v366
    %3103 = vmatpush.msra.mxu0 %v350
    %3104 = vmatpush.msra.mxu0 %v334
    %3105 = vmatpush.msra.mxu0 %v318
    %3106 = vmatpush.msra.mxu0 %v302
    %3107 = vmatpush.msra.mxu0 %v286
    %3108 = vmatpush.msra.mxu0 %v270
    %3109 = vmatpush.msra.mxu0 %v254
    %3110 = vmatpush.msra.mxu0 %v238
    %3111 = vmatmul.f32.gmra.mxu0 %v163
    %v3112 = vpop.f32.mrf.mxu0
    %v3113 = vadd.f32 0.0, %v3112
    %3114 = vdwg.mxu0
    %3115 = vmatpush.msra.mxu0 %v734
    %3116 = vmatpush.msra.mxu0 %v718
    %3117 = vmatpush.msra.mxu0 %v702
    %3118 = vmatpush.msra.mxu0 %v686
    %3119 = vmatpush.msra.mxu0 %v670
    %3120 = vmatpush.msra.mxu0 %v654
    %3121 = vmatpush.msra.mxu0 %v638
    %3122 = vmatpush.msra.mxu0 %v622
    %3123 = vmatpush.msra.mxu0 %v606
    %3124 = vmatpush.msra.mxu0 %v590
    %3125 = vmatpush.msra.mxu0 %v574
    %3126 = vmatpush.msra.mxu0 %v558
    %3127 = vmatpush.msra.mxu0 %v542
    %3128 = vmatpush.msra.mxu0 %v526
    %3129 = vmatpush.msra.mxu0 %v510
    %3130 = vmatpush.msra.mxu0 %v494
    %3131 = vmatmul.f32.gmra.mxu0 %v164
    %v3132 = vpop.f32.mrf.mxu0
    %v3133 = vadd.f32 %v3113, %v3132
    %3134 = vdwg.mxu0
    %3135 = vmatpush.msra.mxu0 %v990
    %3136 = vmatpush.msra.mxu0 %v974
    %3137 = vmatpush.msra.mxu0 %v958
    %3138 = vmatpush.msra.mxu0 %v942
    %3139 = vmatpush.msra.mxu0 %v926
    %3140 = vmatpush.msra.mxu0 %v910
    %3141 = vmatpush.msra.mxu0 %v894
    %3142 = vmatpush.msra.mxu0 %v878
    %3143 = vmatpush.msra.mxu0 %v862
    %3144 = vmatpush.msra.mxu0 %v846
    %3145 = vmatpush.msra.mxu0 %v830
    %3146 = vmatpush.msra.mxu0 %v814
    %3147 = vmatpush.msra.mxu0 %v798
    %3148 = vmatpush.msra.mxu0 %v782
    %3149 = vmatpush.msra.mxu0 %v766
    %3150 = vmatpush.msra.mxu0 %v750
    %3151 = vmatmul.f32.gmra.mxu0 %v165
    %v3152 = vpop.f32.mrf.mxu0
    %v3153 = vadd.f32 %v3133, %v3152
    %3154 = vdwg.mxu0
    %3155 = vmatpush.msra.mxu0 %v1246
    %3156 = vmatpush.msra.mxu0 %v1230
    %3157 = vmatpush.msra.mxu0 %v1214
    %3158 = vmatpush.msra.mxu0 %v1198
    %3159 = vmatpush.msra.mxu0 %v1182
    %3160 = vmatpush.msra.mxu0 %v1166
    %3161 = vmatpush.msra.mxu0 %v1150
    %3162 = vmatpush.msra.mxu0 %v1134
    %3163 = vmatpush.msra.mxu0 %v1118
    %3164 = vmatpush.msra.mxu0 %v1102
    %3165 = vmatpush.msra.mxu0 %v1086
    %3166 = vmatpush.msra.mxu0 %v1070
    %3167 = vmatpush.msra.mxu0 %v1054
    %3168 = vmatpush.msra.mxu0 %v1038
    %3169 = vmatpush.msra.mxu0 %v1022
    %3170 = vmatpush.msra.mxu0 %v1006
    %3171 = vmatmul.f32.gmra.mxu0 %v166
    %v3172 = vpop.f32.mrf.mxu0
    %v3173 = vadd.f32 %v3153, %v3172
    %3174 = vdwg.mxu0
    %3175 = vmatpush.msra.mxu0 %v479
    %3176 = vmatpush.msra.mxu0 %v463
    %3177 = vmatpush.msra.mxu0 %v447
    %3178 = vmatpush.msra.mxu0 %v431
    %3179 = vmatpush.msra.mxu0 %v415
    %3180 = vmatpush.msra.mxu0 %v399
    %3181 = vmatpush.msra.mxu0 %v383
    %3182 = vmatpush.msra.mxu0 %v367
    %3183 = vmatpush.msra.mxu0 %v351
    %3184 = vmatpush.msra.mxu0 %v335
    %3185 = vmatpush.msra.mxu0 %v319
    %3186 = vmatpush.msra.mxu0 %v303
    %3187 = vmatpush.msra.mxu0 %v287
    %3188 = vmatpush.msra.mxu0 %v271
    %3189 = vmatpush.msra.mxu0 %v255
    %3190 = vmatpush.msra.mxu0 %v239
    %3191 = vmatmul.f32.gmra.mxu0 %v163
    %v3192 = vpop.f32.mrf.mxu0
    %v3193 = vadd.f32 0.0, %v3192
    %3194 = vdwg.mxu0
    %3195 = vmatpush.msra.mxu0 %v735
    %3196 = vmatpush.msra.mxu0 %v719
    %3197 = vmatpush.msra.mxu0 %v703
    %3198 = vmatpush.msra.mxu0 %v687
    %3199 = vmatpush.msra.mxu0 %v671
    %3200 = vmatpush.msra.mxu0 %v655
    %3201 = vmatpush.msra.mxu0 %v639
    %3202 = vmatpush.msra.mxu0 %v623
    %3203 = vmatpush.msra.mxu0 %v607
    %3204 = vmatpush.msra.mxu0 %v591
    %3205 = vmatpush.msra.mxu0 %v575
    %3206 = vmatpush.msra.mxu0 %v559
    %3207 = vmatpush.msra.mxu0 %v543
    %3208 = vmatpush.msra.mxu0 %v527
    %3209 = vmatpush.msra.mxu0 %v511
    %3210 = vmatpush.msra.mxu0 %v495
    %3211 = vmatmul.f32.gmra.mxu0 %v164
    %v3212 = vpop.f32.mrf.mxu0
    %v3213 = vadd.f32 %v3193, %v3212
    %3214 = vdwg.mxu0
    %3215 = vmatpush.msra.mxu0 %v991
    %3216 = vmatpush.msra.mxu0 %v975
    %3217 = vmatpush.msra.mxu0 %v959
    %3218 = vmatpush.msra.mxu0 %v943
    %3219 = vmatpush.msra.mxu0 %v927
    %3220 = vmatpush.msra.mxu0 %v911
    %3221 = vmatpush.msra.mxu0 %v895
    %3222 = vmatpush.msra.mxu0 %v879
    %3223 = vmatpush.msra.mxu0 %v863
    %3224 = vmatpush.msra.mxu0 %v847
    %3225 = vmatpush.msra.mxu0 %v831
    %3226 = vmatpush.msra.mxu0 %v815
    %3227 = vmatpush.msra.mxu0 %v799
    %3228 = vmatpush.msra.mxu0 %v783
    %3229 = vmatpush.msra.mxu0 %v767
    %3230 = vmatpush.msra.mxu0 %v751
    %3231 = vmatmul.f32.gmra.mxu0 %v165
    %v3232 = vpop.f32.mrf.mxu0
    %v3233 = vadd.f32 %v3213, %v3232
    %3234 = vdwg.mxu0
    %3235 = vmatpush.msra.mxu0 %v1247
    %3236 = vmatpush.msra.mxu0 %v1231
    %3237 = vmatpush.msra.mxu0 %v1215
    %3238 = vmatpush.msra.mxu0 %v1199
    %3239 = vmatpush.msra.mxu0 %v1183
    %3240 = vmatpush.msra.mxu0 %v1167
    %3241 = vmatpush.msra.mxu0 %v1151
    %3242 = vmatpush.msra.mxu0 %v1135
    %3243 = vmatpush.msra.mxu0 %v1119
    %3244 = vmatpush.msra.mxu0 %v1103
    %3245 = vmatpush.msra.mxu0 %v1087
    %3246 = vmatpush.msra.mxu0 %v1071
    %3247 = vmatpush.msra.mxu0 %v1055
    %3248 = vmatpush.msra.mxu0 %v1039
    %3249 = vmatpush.msra.mxu0 %v1023
    %3250 = vmatpush.msra.mxu0 %v1007
    %3251 = vmatmul.f32.gmra.mxu0 %v166
    %v3252 = vpop.f32.mrf.mxu0
    %v3253 = vadd.f32 %v3233, %v3252
    %3254 = vdwg.mxu0
    %3255 = vmatpush.msra.mxu0 %v480
    %3256 = vmatpush.msra.mxu0 %v464
    %3257 = vmatpush.msra.mxu0 %v448
    %3258 = vmatpush.msra.mxu0 %v432
    %3259 = vmatpush.msra.mxu0 %v416
    %3260 = vmatpush.msra.mxu0 %v400
    %3261 = vmatpush.msra.mxu0 %v384
    %3262 = vmatpush.msra.mxu0 %v368
    %3263 = vmatpush.msra.mxu0 %v352
    %3264 = vmatpush.msra.mxu0 %v336
    %3265 = vmatpush.msra.mxu0 %v320
    %3266 = vmatpush.msra.mxu0 %v304
    %3267 = vmatpush.msra.mxu0 %v288
    %3268 = vmatpush.msra.mxu0 %v272
    %3269 = vmatpush.msra.mxu0 %v256
    %3270 = vmatpush.msra.mxu0 %v240
    %3271 = vmatmul.f32.gmra.mxu0 %v163
    %v3272 = vpop.f32.mrf.mxu0
    %v3273 = vadd.f32 0.0, %v3272
    %3274 = vdwg.mxu0
    %3275 = vmatpush.msra.mxu0 %v736
    %3276 = vmatpush.msra.mxu0 %v720
    %3277 = vmatpush.msra.mxu0 %v704
    %3278 = vmatpush.msra.mxu0 %v688
    %3279 = vmatpush.msra.mxu0 %v672
    %3280 = vmatpush.msra.mxu0 %v656
    %3281 = vmatpush.msra.mxu0 %v640
    %3282 = vmatpush.msra.mxu0 %v624
    %3283 = vmatpush.msra.mxu0 %v608
    %3284 = vmatpush.msra.mxu0 %v592
    %3285 = vmatpush.msra.mxu0 %v576
    %3286 = vmatpush.msra.mxu0 %v560
    %3287 = vmatpush.msra.mxu0 %v544
    %3288 = vmatpush.msra.mxu0 %v528
    %3289 = vmatpush.msra.mxu0 %v512
    %3290 = vmatpush.msra.mxu0 %v496
    %3291 = vmatmul.f32.gmra.mxu0 %v164
    %v3292 = vpop.f32.mrf.mxu0
    %v3293 = vadd.f32 %v3273, %v3292
    %3294 = vdwg.mxu0
    %3295 = vmatpush.msra.mxu0 %v992
    %3296 = vmatpush.msra.mxu0 %v976
    %3297 = vmatpush.msra.mxu0 %v960
    %3298 = vmatpush.msra.mxu0 %v944
    %3299 = vmatpush.msra.mxu0 %v928
    %3300 = vmatpush.msra.mxu0 %v912
    %3301 = vmatpush.msra.mxu0 %v896
    %3302 = vmatpush.msra.mxu0 %v880
    %3303 = vmatpush.msra.mxu0 %v864
    %3304 = vmatpush.msra.mxu0 %v848
    %3305 = vmatpush.msra.mxu0 %v832
    %3306 = vmatpush.msra.mxu0 %v816
    %3307 = vmatpush.msra.mxu0 %v800
    %3308 = vmatpush.msra.mxu0 %v784
    %3309 = vmatpush.msra.mxu0 %v768
    %3310 = vmatpush.msra.mxu0 %v752
    %3311 = vmatmul.f32.gmra.mxu0 %v165
    %v3312 = vpop.f32.mrf.mxu0
    %v3313 = vadd.f32 %v3293, %v3312
    %3314 = vdwg.mxu0
    %3315 = vmatpush.msra.mxu0 %v1248
    %3316 = vmatpush.msra.mxu0 %v1232
    %3317 = vmatpush.msra.mxu0 %v1216
    %3318 = vmatpush.msra.mxu0 %v1200
    %3319 = vmatpush.msra.mxu0 %v1184
    %3320 = vmatpush.msra.mxu0 %v1168
    %3321 = vmatpush.msra.mxu0 %v1152
    %3322 = vmatpush.msra.mxu0 %v1136
    %3323 = vmatpush.msra.mxu0 %v1120
    %3324 = vmatpush.msra.mxu0 %v1104
    %3325 = vmatpush.msra.mxu0 %v1088
    %3326 = vmatpush.msra.mxu0 %v1072
    %3327 = vmatpush.msra.mxu0 %v1056
    %3328 = vmatpush.msra.mxu0 %v1040
    %3329 = vmatpush.msra.mxu0 %v1024
    %3330 = vmatpush.msra.mxu0 %v1008
    %3331 = vmatmul.f32.gmra.mxu0 %v166
    %v3332 = vpop.f32.mrf.mxu0
    %v3333 = vadd.f32 %v3313, %v3332
    %3334 = vdwg.mxu0
    %3335 = vmatpush.msra.mxu0 %v481
    %3336 = vmatpush.msra.mxu0 %v465
    %3337 = vmatpush.msra.mxu0 %v449
    %3338 = vmatpush.msra.mxu0 %v433
    %3339 = vmatpush.msra.mxu0 %v417
    %3340 = vmatpush.msra.mxu0 %v401
    %3341 = vmatpush.msra.mxu0 %v385
    %3342 = vmatpush.msra.mxu0 %v369
    %3343 = vmatpush.msra.mxu0 %v353
    %3344 = vmatpush.msra.mxu0 %v337
    %3345 = vmatpush.msra.mxu0 %v321
    %3346 = vmatpush.msra.mxu0 %v305
    %3347 = vmatpush.msra.mxu0 %v289
    %3348 = vmatpush.msra.mxu0 %v273
    %3349 = vmatpush.msra.mxu0 %v257
    %3350 = vmatpush.msra.mxu0 %v241
    %3351 = vmatmul.f32.gmra.mxu0 %v163
    %v3352 = vpop.f32.mrf.mxu0
    %v3353 = vadd.f32 0.0, %v3352
    %3354 = vdwg.mxu0
    %3355 = vmatpush.msra.mxu0 %v737
    %3356 = vmatpush.msra.mxu0 %v721
    %3357 = vmatpush.msra.mxu0 %v705
    %3358 = vmatpush.msra.mxu0 %v689
    %3359 = vmatpush.msra.mxu0 %v673
    %3360 = vmatpush.msra.mxu0 %v657
    %3361 = vmatpush.msra.mxu0 %v641
    %3362 = vmatpush.msra.mxu0 %v625
    %3363 = vmatpush.msra.mxu0 %v609
    %3364 = vmatpush.msra.mxu0 %v593
    %3365 = vmatpush.msra.mxu0 %v577
    %3366 = vmatpush.msra.mxu0 %v561
    %3367 = vmatpush.msra.mxu0 %v545
    %3368 = vmatpush.msra.mxu0 %v529
    %3369 = vmatpush.msra.mxu0 %v513
    %3370 = vmatpush.msra.mxu0 %v497
    %3371 = vmatmul.f32.gmra.mxu0 %v164
    %v3372 = vpop.f32.mrf.mxu0
    %v3373 = vadd.f32 %v3353, %v3372
    %3374 = vdwg.mxu0
    %3375 = vmatpush.msra.mxu0 %v993
    %3376 = vmatpush.msra.mxu0 %v977
    %3377 = vmatpush.msra.mxu0 %v961
    %3378 = vmatpush.msra.mxu0 %v945
    %3379 = vmatpush.msra.mxu0 %v929
    %3380 = vmatpush.msra.mxu0 %v913
    %3381 = vmatpush.msra.mxu0 %v897
    %3382 = vmatpush.msra.mxu0 %v881
    %3383 = vmatpush.msra.mxu0 %v865
    %3384 = vmatpush.msra.mxu0 %v849
    %3385 = vmatpush.msra.mxu0 %v833
    %3386 = vmatpush.msra.mxu0 %v817
    %3387 = vmatpush.msra.mxu0 %v801
    %3388 = vmatpush.msra.mxu0 %v785
    %3389 = vmatpush.msra.mxu0 %v769
    %3390 = vmatpush.msra.mxu0 %v753
    %3391 = vmatmul.f32.gmra.mxu0 %v165
    %v3392 = vpop.f32.mrf.mxu0
    %v3393 = vadd.f32 %v3373, %v3392
    %3394 = vdwg.mxu0
    %3395 = vmatpush.msra.mxu0 %v1249
    %3396 = vmatpush.msra.mxu0 %v1233
    %3397 = vmatpush.msra.mxu0 %v1217
    %3398 = vmatpush.msra.mxu0 %v1201
    %3399 = vmatpush.msra.mxu0 %v1185
    %3400 = vmatpush.msra.mxu0 %v1169
    %3401 = vmatpush.msra.mxu0 %v1153
    %3402 = vmatpush.msra.mxu0 %v1137
    %3403 = vmatpush.msra.mxu0 %v1121
    %3404 = vmatpush.msra.mxu0 %v1105
    %3405 = vmatpush.msra.mxu0 %v1089
    %3406 = vmatpush.msra.mxu0 %v1073
    %3407 = vmatpush.msra.mxu0 %v1057
    %3408 = vmatpush.msra.mxu0 %v1041
    %3409 = vmatpush.msra.mxu0 %v1025
    %3410 = vmatpush.msra.mxu0 %v1009
    %3411 = vmatmul.f32.gmra.mxu0 %v166
    %v3412 = vpop.f32.mrf.mxu0
    %v3413 = vadd.f32 %v3393, %v3412
    %3414 = vdwg.mxu0
    %3415 = vmatpush.msra.mxu0 %v482
    %3416 = vmatpush.msra.mxu0 %v466
    %3417 = vmatpush.msra.mxu0 %v450
    %3418 = vmatpush.msra.mxu0 %v434
    %3419 = vmatpush.msra.mxu0 %v418
    %3420 = vmatpush.msra.mxu0 %v402
    %3421 = vmatpush.msra.mxu0 %v386
    %3422 = vmatpush.msra.mxu0 %v370
    %3423 = vmatpush.msra.mxu0 %v354
    %3424 = vmatpush.msra.mxu0 %v338
    %3425 = vmatpush.msra.mxu0 %v322
    %3426 = vmatpush.msra.mxu0 %v306
    %3427 = vmatpush.msra.mxu0 %v290
    %3428 = vmatpush.msra.mxu0 %v274
    %3429 = vmatpush.msra.mxu0 %v258
    %3430 = vmatpush.msra.mxu0 %v242
    %3431 = vmatmul.f32.gmra.mxu0 %v163
    %v3432 = vpop.f32.mrf.mxu0
    %v3433 = vadd.f32 0.0, %v3432
    %3434 = vdwg.mxu0
    %3435 = vmatpush.msra.mxu0 %v738
    %3436 = vmatpush.msra.mxu0 %v722
    %3437 = vmatpush.msra.mxu0 %v706
    %3438 = vmatpush.msra.mxu0 %v690
    %3439 = vmatpush.msra.mxu0 %v674
    %3440 = vmatpush.msra.mxu0 %v658
    %3441 = vmatpush.msra.mxu0 %v642
    %3442 = vmatpush.msra.mxu0 %v626
    %3443 = vmatpush.msra.mxu0 %v610
    %3444 = vmatpush.msra.mxu0 %v594
    %3445 = vmatpush.msra.mxu0 %v578
    %3446 = vmatpush.msra.mxu0 %v562
    %3447 = vmatpush.msra.mxu0 %v546
    %3448 = vmatpush.msra.mxu0 %v530
    %3449 = vmatpush.msra.mxu0 %v514
    %3450 = vmatpush.msra.mxu0 %v498
    %3451 = vmatmul.f32.gmra.mxu0 %v164
    %v3452 = vpop.f32.mrf.mxu0
    %v3453 = vadd.f32 %v3433, %v3452
    %3454 = vdwg.mxu0
    %3455 = vmatpush.msra.mxu0 %v994
    %3456 = vmatpush.msra.mxu0 %v978
    %3457 = vmatpush.msra.mxu0 %v962
    %3458 = vmatpush.msra.mxu0 %v946
    %3459 = vmatpush.msra.mxu0 %v930
    %3460 = vmatpush.msra.mxu0 %v914
    %3461 = vmatpush.msra.mxu0 %v898
    %3462 = vmatpush.msra.mxu0 %v882
    %3463 = vmatpush.msra.mxu0 %v866
    %3464 = vmatpush.msra.mxu0 %v850
    %3465 = vmatpush.msra.mxu0 %v834
    %3466 = vmatpush.msra.mxu0 %v818
    %3467 = vmatpush.msra.mxu0 %v802
    %3468 = vmatpush.msra.mxu0 %v786
    %3469 = vmatpush.msra.mxu0 %v770
    %3470 = vmatpush.msra.mxu0 %v754
    %3471 = vmatmul.f32.gmra.mxu0 %v165
    %v3472 = vpop.f32.mrf.mxu0
    %v3473 = vadd.f32 %v3453, %v3472
    %3474 = vdwg.mxu0
    %3475 = vmatpush.msra.mxu0 %v1250
    %3476 = vmatpush.msra.mxu0 %v1234
    %3477 = vmatpush.msra.mxu0 %v1218
    %3478 = vmatpush.msra.mxu0 %v1202
    %3479 = vmatpush.msra.mxu0 %v1186
    %3480 = vmatpush.msra.mxu0 %v1170
    %3481 = vmatpush.msra.mxu0 %v1154
    %3482 = vmatpush.msra.mxu0 %v1138
    %3483 = vmatpush.msra.mxu0 %v1122
    %3484 = vmatpush.msra.mxu0 %v1106
    %3485 = vmatpush.msra.mxu0 %v1090
    %3486 = vmatpush.msra.mxu0 %v1074
    %3487 = vmatpush.msra.mxu0 %v1058
    %3488 = vmatpush.msra.mxu0 %v1042
    %3489 = vmatpush.msra.mxu0 %v1026
    %3490 = vmatpush.msra.mxu0 %v1010
    %3491 = vmatmul.f32.gmra.mxu0 %v166
    %v3492 = vpop.f32.mrf.mxu0
    %v3493 = vadd.f32 %v3473, %v3492
    %3494 = vdwg.mxu0
    %3495 = vmatpush.msra.mxu0 %v483
    %3496 = vmatpush.msra.mxu0 %v467
    %3497 = vmatpush.msra.mxu0 %v451
    %3498 = vmatpush.msra.mxu0 %v435
    %3499 = vmatpush.msra.mxu0 %v419
    %3500 = vmatpush.msra.mxu0 %v403
    %3501 = vmatpush.msra.mxu0 %v387
    %3502 = vmatpush.msra.mxu0 %v371
    %3503 = vmatpush.msra.mxu0 %v355
    %3504 = vmatpush.msra.mxu0 %v339
    %3505 = vmatpush.msra.mxu0 %v323
    %3506 = vmatpush.msra.mxu0 %v307
    %3507 = vmatpush.msra.mxu0 %v291
    %3508 = vmatpush.msra.mxu0 %v275
    %3509 = vmatpush.msra.mxu0 %v259
    %3510 = vmatpush.msra.mxu0 %v243
    %3511 = vmatmul.f32.gmra.mxu0 %v163
    %v3512 = vpop.f32.mrf.mxu0
    %v3513 = vadd.f32 0.0, %v3512
    %3514 = vdwg.mxu0
    %3515 = vmatpush.msra.mxu0 %v739
    %3516 = vmatpush.msra.mxu0 %v723
    %3517 = vmatpush.msra.mxu0 %v707
    %3518 = vmatpush.msra.mxu0 %v691
    %3519 = vmatpush.msra.mxu0 %v675
    %3520 = vmatpush.msra.mxu0 %v659
    %3521 = vmatpush.msra.mxu0 %v643
    %3522 = vmatpush.msra.mxu0 %v627
    %3523 = vmatpush.msra.mxu0 %v611
    %3524 = vmatpush.msra.mxu0 %v595
    %3525 = vmatpush.msra.mxu0 %v579
    %3526 = vmatpush.msra.mxu0 %v563
    %3527 = vmatpush.msra.mxu0 %v547
    %3528 = vmatpush.msra.mxu0 %v531
    %3529 = vmatpush.msra.mxu0 %v515
    %3530 = vmatpush.msra.mxu0 %v499
    %3531 = vmatmul.f32.gmra.mxu0 %v164
    %v3532 = vpop.f32.mrf.mxu0
    %v3533 = vadd.f32 %v3513, %v3532
    %3534 = vdwg.mxu0
    %3535 = vmatpush.msra.mxu0 %v995
    %3536 = vmatpush.msra.mxu0 %v979
    %3537 = vmatpush.msra.mxu0 %v963
    %3538 = vmatpush.msra.mxu0 %v947
    %3539 = vmatpush.msra.mxu0 %v931
    %3540 = vmatpush.msra.mxu0 %v915
    %3541 = vmatpush.msra.mxu0 %v899
    %3542 = vmatpush.msra.mxu0 %v883
    %3543 = vmatpush.msra.mxu0 %v867
    %3544 = vmatpush.msra.mxu0 %v851
    %3545 = vmatpush.msra.mxu0 %v835
    %3546 = vmatpush.msra.mxu0 %v819
    %3547 = vmatpush.msra.mxu0 %v803
    %3548 = vmatpush.msra.mxu0 %v787
    %3549 = vmatpush.msra.mxu0 %v771
    %3550 = vmatpush.msra.mxu0 %v755
    %3551 = vmatmul.f32.gmra.mxu0 %v165
    %v3552 = vpop.f32.mrf.mxu0
    %v3553 = vadd.f32 %v3533, %v3552
    %3554 = vdwg.mxu0
    %3555 = vmatpush.msra.mxu0 %v1251
    %3556 = vmatpush.msra.mxu0 %v1235
    %3557 = vmatpush.msra.mxu0 %v1219
    %3558 = vmatpush.msra.mxu0 %v1203
    %3559 = vmatpush.msra.mxu0 %v1187
    %3560 = vmatpush.msra.mxu0 %v1171
    %3561 = vmatpush.msra.mxu0 %v1155
    %3562 = vmatpush.msra.mxu0 %v1139
    %3563 = vmatpush.msra.mxu0 %v1123
    %3564 = vmatpush.msra.mxu0 %v1107
    %3565 = vmatpush.msra.mxu0 %v1091
    %3566 = vmatpush.msra.mxu0 %v1075
    %3567 = vmatpush.msra.mxu0 %v1059
    %3568 = vmatpush.msra.mxu0 %v1043
    %3569 = vmatpush.msra.mxu0 %v1027
    %3570 = vmatpush.msra.mxu0 %v1011
    %3571 = vmatmul.f32.gmra.mxu0 %v166
    %v3572 = vpop.f32.mrf.mxu0
    %v3573 = vadd.f32 %v3553, %v3572
    %3574 = vdwg.mxu0
    %3575 = vmatpush.msra.mxu0 %v484
    %3576 = vmatpush.msra.mxu0 %v468
    %3577 = vmatpush.msra.mxu0 %v452
    %3578 = vmatpush.msra.mxu0 %v436
    %3579 = vmatpush.msra.mxu0 %v420
    %3580 = vmatpush.msra.mxu0 %v404
    %3581 = vmatpush.msra.mxu0 %v388
    %3582 = vmatpush.msra.mxu0 %v372
    %3583 = vmatpush.msra.mxu0 %v356
    %3584 = vmatpush.msra.mxu0 %v340
    %3585 = vmatpush.msra.mxu0 %v324
    %3586 = vmatpush.msra.mxu0 %v308
    %3587 = vmatpush.msra.mxu0 %v292
    %3588 = vmatpush.msra.mxu0 %v276
    %3589 = vmatpush.msra.mxu0 %v260
    %3590 = vmatpush.msra.mxu0 %v244
    %3591 = vmatmul.f32.gmra.mxu0 %v163
    %v3592 = vpop.f32.mrf.mxu0
    %v3593 = vadd.f32 0.0, %v3592
    %3594 = vdwg.mxu0
    %3595 = vmatpush.msra.mxu0 %v740
    %3596 = vmatpush.msra.mxu0 %v724
    %3597 = vmatpush.msra.mxu0 %v708
    %3598 = vmatpush.msra.mxu0 %v692
    %3599 = vmatpush.msra.mxu0 %v676
    %3600 = vmatpush.msra.mxu0 %v660
    %3601 = vmatpush.msra.mxu0 %v644
    %3602 = vmatpush.msra.mxu0 %v628
    %3603 = vmatpush.msra.mxu0 %v612
    %3604 = vmatpush.msra.mxu0 %v596
    %3605 = vmatpush.msra.mxu0 %v580
    %3606 = vmatpush.msra.mxu0 %v564
    %3607 = vmatpush.msra.mxu0 %v548
    %3608 = vmatpush.msra.mxu0 %v532
    %3609 = vmatpush.msra.mxu0 %v516
    %3610 = vmatpush.msra.mxu0 %v500
    %3611 = vmatmul.f32.gmra.mxu0 %v164
    %v3612 = vpop.f32.mrf.mxu0
    %v3613 = vadd.f32 %v3593, %v3612
    %3614 = vdwg.mxu0
    %3615 = vmatpush.msra.mxu0 %v996
    %3616 = vmatpush.msra.mxu0 %v980
    %3617 = vmatpush.msra.mxu0 %v964
    %3618 = vmatpush.msra.mxu0 %v948
    %3619 = vmatpush.msra.mxu0 %v932
    %3620 = vmatpush.msra.mxu0 %v916
    %3621 = vmatpush.msra.mxu0 %v900
    %3622 = vmatpush.msra.mxu0 %v884
    %3623 = vmatpush.msra.mxu0 %v868
    %3624 = vmatpush.msra.mxu0 %v852
    %3625 = vmatpush.msra.mxu0 %v836
    %3626 = vmatpush.msra.mxu0 %v820
    %3627 = vmatpush.msra.mxu0 %v804
    %3628 = vmatpush.msra.mxu0 %v788
    %3629 = vmatpush.msra.mxu0 %v772
    %3630 = vmatpush.msra.mxu0 %v756
    %3631 = vmatmul.f32.gmra.mxu0 %v165
    %v3632 = vpop.f32.mrf.mxu0
    %v3633 = vadd.f32 %v3613, %v3632
    %3634 = vdwg.mxu0
    %3635 = vmatpush.msra.mxu0 %v1252
    %3636 = vmatpush.msra.mxu0 %v1236
    %3637 = vmatpush.msra.mxu0 %v1220
    %3638 = vmatpush.msra.mxu0 %v1204
    %3639 = vmatpush.msra.mxu0 %v1188
    %3640 = vmatpush.msra.mxu0 %v1172
    %3641 = vmatpush.msra.mxu0 %v1156
    %3642 = vmatpush.msra.mxu0 %v1140
    %3643 = vmatpush.msra.mxu0 %v1124
    %3644 = vmatpush.msra.mxu0 %v1108
    %3645 = vmatpush.msra.mxu0 %v1092
    %3646 = vmatpush.msra.mxu0 %v1076
    %3647 = vmatpush.msra.mxu0 %v1060
    %3648 = vmatpush.msra.mxu0 %v1044
    %3649 = vmatpush.msra.mxu0 %v1028
    %3650 = vmatpush.msra.mxu0 %v1012
    %3651 = vmatmul.f32.gmra.mxu0 %v166
    %v3652 = vpop.f32.mrf.mxu0
    %v3653 = vadd.f32 %v3633, %v3652
    %3654 = vdwg.mxu0
    %3655 = vmatpush.msra.mxu0 %v485
    %3656 = vmatpush.msra.mxu0 %v469
    %3657 = vmatpush.msra.mxu0 %v453
    %3658 = vmatpush.msra.mxu0 %v437
    %3659 = vmatpush.msra.mxu0 %v421
    %3660 = vmatpush.msra.mxu0 %v405
    %3661 = vmatpush.msra.mxu0 %v389
    %3662 = vmatpush.msra.mxu0 %v373
    %3663 = vmatpush.msra.mxu0 %v357
    %3664 = vmatpush.msra.mxu0 %v341
    %3665 = vmatpush.msra.mxu0 %v325
    %3666 = vmatpush.msra.mxu0 %v309
    %3667 = vmatpush.msra.mxu0 %v293
    %3668 = vmatpush.msra.mxu0 %v277
    %3669 = vmatpush.msra.mxu0 %v261
    %3670 = vmatpush.msra.mxu0 %v245
    %3671 = vmatmul.f32.gmra.mxu0 %v163
    %v3672 = vpop.f32.mrf.mxu0
    %v3673 = vadd.f32 0.0, %v3672
    %3674 = vdwg.mxu0
    %3675 = vmatpush.msra.mxu0 %v741
    %3676 = vmatpush.msra.mxu0 %v725
    %3677 = vmatpush.msra.mxu0 %v709
    %3678 = vmatpush.msra.mxu0 %v693
    %3679 = vmatpush.msra.mxu0 %v677
    %3680 = vmatpush.msra.mxu0 %v661
    %3681 = vmatpush.msra.mxu0 %v645
    %3682 = vmatpush.msra.mxu0 %v629
    %3683 = vmatpush.msra.mxu0 %v613
    %3684 = vmatpush.msra.mxu0 %v597
    %3685 = vmatpush.msra.mxu0 %v581
    %3686 = vmatpush.msra.mxu0 %v565
    %3687 = vmatpush.msra.mxu0 %v549
    %3688 = vmatpush.msra.mxu0 %v533
    %3689 = vmatpush.msra.mxu0 %v517
    %3690 = vmatpush.msra.mxu0 %v501
    %3691 = vmatmul.f32.gmra.mxu0 %v164
    %v3692 = vpop.f32.mrf.mxu0
    %v3693 = vadd.f32 %v3673, %v3692
    %3694 = vdwg.mxu0
    %3695 = vmatpush.msra.mxu0 %v997
    %3696 = vmatpush.msra.mxu0 %v981
    %3697 = vmatpush.msra.mxu0 %v965
    %3698 = vmatpush.msra.mxu0 %v949
    %3699 = vmatpush.msra.mxu0 %v933
    %3700 = vmatpush.msra.mxu0 %v917
    %3701 = vmatpush.msra.mxu0 %v901
    %3702 = vmatpush.msra.mxu0 %v885
    %3703 = vmatpush.msra.mxu0 %v869
    %3704 = vmatpush.msra.mxu0 %v853
    %3705 = vmatpush.msra.mxu0 %v837
    %3706 = vmatpush.msra.mxu0 %v821
    %3707 = vmatpush.msra.mxu0 %v805
    %3708 = vmatpush.msra.mxu0 %v789
    %3709 = vmatpush.msra.mxu0 %v773
    %3710 = vmatpush.msra.mxu0 %v757
    %3711 = vmatmul.f32.gmra.mxu0 %v165
    %v3712 = vpop.f32.mrf.mxu0
    %v3713 = vadd.f32 %v3693, %v3712
    %3714 = vdwg.mxu0
    %3715 = vmatpush.msra.mxu0 %v1253
    %3716 = vmatpush.msra.mxu0 %v1237
    %3717 = vmatpush.msra.mxu0 %v1221
    %3718 = vmatpush.msra.mxu0 %v1205
    %3719 = vmatpush.msra.mxu0 %v1189
    %3720 = vmatpush.msra.mxu0 %v1173
    %3721 = vmatpush.msra.mxu0 %v1157
    %3722 = vmatpush.msra.mxu0 %v1141
    %3723 = vmatpush.msra.mxu0 %v1125
    %3724 = vmatpush.msra.mxu0 %v1109
    %3725 = vmatpush.msra.mxu0 %v1093
    %3726 = vmatpush.msra.mxu0 %v1077
    %3727 = vmatpush.msra.mxu0 %v1061
    %3728 = vmatpush.msra.mxu0 %v1045
    %3729 = vmatpush.msra.mxu0 %v1029
    %3730 = vmatpush.msra.mxu0 %v1013
    %3731 = vmatmul.f32.gmra.mxu0 %v166
    %v3732 = vpop.f32.mrf.mxu0
    %v3733 = vadd.f32 %v3713, %v3732
    %3734 = vdwg.mxu0
    %3735 = vmatpush.msra.mxu0 %v486
    %3736 = vmatpush.msra.mxu0 %v470
    %3737 = vmatpush.msra.mxu0 %v454
    %3738 = vmatpush.msra.mxu0 %v438
    %3739 = vmatpush.msra.mxu0 %v422
    %3740 = vmatpush.msra.mxu0 %v406
    %3741 = vmatpush.msra.mxu0 %v390
    %3742 = vmatpush.msra.mxu0 %v374
    %3743 = vmatpush.msra.mxu0 %v358
    %3744 = vmatpush.msra.mxu0 %v342
    %3745 = vmatpush.msra.mxu0 %v326
    %3746 = vmatpush.msra.mxu0 %v310
    %3747 = vmatpush.msra.mxu0 %v294
    %3748 = vmatpush.msra.mxu0 %v278
    %3749 = vmatpush.msra.mxu0 %v262
    %3750 = vmatpush.msra.mxu0 %v246
    %3751 = vmatmul.f32.gmra.mxu0 %v163
    %v3752 = vpop.f32.mrf.mxu0
    %v3753 = vadd.f32 0.0, %v3752
    %3754 = vdwg.mxu0
    %3755 = vmatpush.msra.mxu0 %v742
    %3756 = vmatpush.msra.mxu0 %v726
    %3757 = vmatpush.msra.mxu0 %v710
    %3758 = vmatpush.msra.mxu0 %v694
    %3759 = vmatpush.msra.mxu0 %v678
    %3760 = vmatpush.msra.mxu0 %v662
    %3761 = vmatpush.msra.mxu0 %v646
    %3762 = vmatpush.msra.mxu0 %v630
    %3763 = vmatpush.msra.mxu0 %v614
    %3764 = vmatpush.msra.mxu0 %v598
    %3765 = vmatpush.msra.mxu0 %v582
    %3766 = vmatpush.msra.mxu0 %v566
    %3767 = vmatpush.msra.mxu0 %v550
    %3768 = vmatpush.msra.mxu0 %v534
    %3769 = vmatpush.msra.mxu0 %v518
    %3770 = vmatpush.msra.mxu0 %v502
    %3771 = vmatmul.f32.gmra.mxu0 %v164
    %v3772 = vpop.f32.mrf.mxu0
    %v3773 = vadd.f32 %v3753, %v3772
    %3774 = vdwg.mxu0
    %3775 = vmatpush.msra.mxu0 %v998
    %3776 = vmatpush.msra.mxu0 %v982
    %3777 = vmatpush.msra.mxu0 %v966
    %3778 = vmatpush.msra.mxu0 %v950
    %3779 = vmatpush.msra.mxu0 %v934
    %3780 = vmatpush.msra.mxu0 %v918
    %3781 = vmatpush.msra.mxu0 %v902
    %3782 = vmatpush.msra.mxu0 %v886
    %3783 = vmatpush.msra.mxu0 %v870
    %3784 = vmatpush.msra.mxu0 %v854
    %3785 = vmatpush.msra.mxu0 %v838
    %3786 = vmatpush.msra.mxu0 %v822
    %3787 = vmatpush.msra.mxu0 %v806
    %3788 = vmatpush.msra.mxu0 %v790
    %3789 = vmatpush.msra.mxu0 %v774
    %3790 = vmatpush.msra.mxu0 %v758
    %3791 = vmatmul.f32.gmra.mxu0 %v165
    %v3792 = vpop.f32.mrf.mxu0
    %v3793 = vadd.f32 %v3773, %v3792
    %3794 = vdwg.mxu0
    %3795 = vmatpush.msra.mxu0 %v1254
    %3796 = vmatpush.msra.mxu0 %v1238
    %3797 = vmatpush.msra.mxu0 %v1222
    %3798 = vmatpush.msra.mxu0 %v1206
    %3799 = vmatpush.msra.mxu0 %v1190
    %3800 = vmatpush.msra.mxu0 %v1174
    %3801 = vmatpush.msra.mxu0 %v1158
    %3802 = vmatpush.msra.mxu0 %v1142
    %3803 = vmatpush.msra.mxu0 %v1126
    %3804 = vmatpush.msra.mxu0 %v1110
    %3805 = vmatpush.msra.mxu0 %v1094
    %3806 = vmatpush.msra.mxu0 %v1078
    %3807 = vmatpush.msra.mxu0 %v1062
    %3808 = vmatpush.msra.mxu0 %v1046
    %3809 = vmatpush.msra.mxu0 %v1030
    %3810 = vmatpush.msra.mxu0 %v1014
    %3811 = vmatmul.f32.gmra.mxu0 %v166
    %v3812 = vpop.f32.mrf.mxu0
    %v3813 = vadd.f32 %v3793, %v3812
    %3814 = vdwg.mxu0
    %v3815 = vld [vmem:[#allocation16] sm:$0xff]
    %v3816 = vld [vmem:[#allocation16 + $0x8] sm:$0xff]
    %v3817 = vld [vmem:[#allocation16 + $0x10] sm:$0xff]
    %v3818 = vld [vmem:[#allocation16 + $0x18] sm:$0xff]
    %v3819 = vld [vmem:[#allocation16 + $0x20] sm:$0xff]
    %v3820 = vld [vmem:[#allocation16 + $0x28] sm:$0xff]
    %v3821 = vld [vmem:[#allocation16 + $0x30] sm:$0xff]
    %v3822 = vld [vmem:[#allocation16 + $0x38] sm:$0xff]
    %3823 = vrot.lane.b32.xlu0 %v1333, 1
    %v3824 = vpop.permute.xlu0 %3823
    %3825 = vrot.lane.b32.xlu0 %v1413, 1
    %v3826 = vpop.permute.xlu0 %3825
    %3827 = vrot.lane.b32.xlu0 %v1493, 1
    %v3828 = vpop.permute.xlu0 %3827
    %3829 = vrot.lane.b32.xlu0 %v1573, 1
    %v3830 = vpop.permute.xlu0 %3829
    %3831 = vrot.lane.b32.xlu0 %v1653, 1
    %v3832 = vpop.permute.xlu0 %3831
    %3833 = vrot.lane.b32.xlu0 %v1733, 1
    %v3834 = vpop.permute.xlu0 %3833
    %3835 = vrot.lane.b32.xlu0 %v1813, 1
    %v3836 = vpop.permute.xlu0 %3835
    %3837 = vrot.lane.b32.xlu0 %v1893, 1
    %v3838 = vpop.permute.xlu0 %3837
    %3839 = vrot.lane.b32.xlu0 %v1973, 1
    %v3840 = vpop.permute.xlu0 %3839
    %3841 = vrot.lane.b32.xlu0 %v2053, 1
    %v3842 = vpop.permute.xlu0 %3841
    %3843 = vrot.lane.b32.xlu0 %v2133, 1
    %v3844 = vpop.permute.xlu0 %3843
    %3845 = vrot.lane.b32.xlu0 %v2213, 1
    %v3846 = vpop.permute.xlu0 %3845
    %3847 = vrot.lane.b32.xlu0 %v2293, 1
    %v3848 = vpop.permute.xlu0 %3847
    %3849 = vrot.lane.b32.xlu0 %v2373, 1
    %v3850 = vpop.permute.xlu0 %3849
    %3851 = vrot.lane.b32.xlu0 %v2453, 1
    %v3852 = vpop.permute.xlu0 %3851
    %3853 = vrot.lane.b32.xlu0 %v2533, 1
    %v3854 = vpop.permute.xlu0 %3853
    %v3855 = vlaneseq
    %v3856 = vand.u32 %v3855, 127
    %vm3857 = vcmp.lt.s32.totalorder %v3856, 1
    %v3858 = vsel %vm3857, %v3852, %v3854
    %v3859 = vsel %vm3857, %v3850, %v3852
    %v3860 = vsel %vm3857, %v3848, %v3850
    %v3861 = vsel %vm3857, %v3846, %v3848
    %v3862 = vsel %vm3857, %v3844, %v3846
    %v3863 = vsel %vm3857, %v3842, %v3844
    %v3864 = vsel %vm3857, %v3840, %v3842
    %v3865 = vsel %vm3857, %v3838, %v3840
    %v3866 = vsel %vm3857, %v3836, %v3838
    %v3867 = vsel %vm3857, %v3834, %v3836
    %v3868 = vsel %vm3857, %v3832, %v3834
    %v3869 = vsel %vm3857, %v3830, %v3832
    %v3870 = vsel %vm3857, %v3828, %v3830
    %v3871 = vsel %vm3857, %v3826, %v3828
    %v3872 = vsel %vm3857, %v3824, %v3826
    %v3873 = vsel %vm3857, %v3854, %v3824
    %v3882 = vperm.slane %v3815, 0
    %v3883 = vperm.slane %v3815, 4
    %v3884 = vperm.slane %v3816, 0
    %v3885 = vperm.slane %v3816, 4
    %v3886 = vperm.slane %v3817, 0
    %v3887 = vperm.slane %v3817, 4
    %v3888 = vperm.slane %v3818, 0
    %v3889 = vperm.slane %v3818, 4
    %v3890 = vperm.slane %v3819, 0
    %v3891 = vperm.slane %v3819, 4
    %v3892 = vperm.slane %v3820, 0
    %v3893 = vperm.slane %v3820, 4
    %v3894 = vperm.slane %v3821, 0
    %v3895 = vperm.slane %v3821, 4
    %v3896 = vperm.slane %v3822, 0
    %v3897 = vperm.slane %v3822, 4
    %v3914 = vperm.slane %v3882, 0
    %v3915 = vperm.slane %v3883, 0
    %v3916 = vperm.slane %v3884, 0
    %v3917 = vperm.slane %v3885, 0
    %v3918 = vperm.slane %v3886, 0
    %v3919 = vperm.slane %v3887, 0
    %v3920 = vperm.slane %v3888, 0
    %v3921 = vperm.slane %v3889, 0
    %v3922 = vperm.slane %v3890, 0
    %v3923 = vperm.slane %v3891, 0
    %v3924 = vperm.slane %v3892, 0
    %v3925 = vperm.slane %v3893, 0
    %v3926 = vperm.slane %v3894, 0
    %v3927 = vperm.slane %v3895, 0
    %v3928 = vperm.slane %v3896, 0
    %v3929 = vperm.slane %v3897, 0
    %v3930 = vmul.f32 %v3873, %v3914
    %v3931 = vmul.f32 %v3872, %v3915
    %v3932 = vmul.f32 %v3871, %v3916
    %v3933 = vmul.f32 %v3870, %v3917
    %v3934 = vmul.f32 %v3869, %v3918
    %v3935 = vmul.f32 %v3868, %v3919
    %v3936 = vmul.f32 %v3867, %v3920
    %v3937 = vmul.f32 %v3866, %v3921
    %v3938 = vmul.f32 %v3865, %v3922
    %v3939 = vmul.f32 %v3864, %v3923
    %v3940 = vmul.f32 %v3863, %v3924
    %v3941 = vmul.f32 %v3862, %v3925
    %v3942 = vmul.f32 %v3861, %v3926
    %v3943 = vmul.f32 %v3860, %v3927
    %v3944 = vmul.f32 %v3859, %v3928
    %v3945 = vmul.f32 %v3858, %v3929
    %3946 = vrot.lane.b32.xlu0 %v1333, 127
    %v3947 = vpop.permute.xlu0 %3946
    %3948 = vrot.lane.b32.xlu0 %v1413, 127
    %v3949 = vpop.permute.xlu0 %3948
    %3950 = vrot.lane.b32.xlu0 %v1493, 127
    %v3951 = vpop.permute.xlu0 %3950
    %3952 = vrot.lane.b32.xlu0 %v1573, 127
    %v3953 = vpop.permute.xlu0 %3952
    %3954 = vrot.lane.b32.xlu0 %v1653, 127
    %v3955 = vpop.permute.xlu0 %3954
    %3956 = vrot.lane.b32.xlu0 %v1733, 127
    %v3957 = vpop.permute.xlu0 %3956
    %3958 = vrot.lane.b32.xlu0 %v1813, 127
    %v3959 = vpop.permute.xlu0 %3958
    %3960 = vrot.lane.b32.xlu0 %v1893, 127
    %v3961 = vpop.permute.xlu0 %3960
    %3962 = vrot.lane.b32.xlu0 %v1973, 127
    %v3963 = vpop.permute.xlu0 %3962
    %3964 = vrot.lane.b32.xlu0 %v2053, 127
    %v3965 = vpop.permute.xlu0 %3964
    %3966 = vrot.lane.b32.xlu0 %v2133, 127
    %v3967 = vpop.permute.xlu0 %3966
    %3968 = vrot.lane.b32.xlu0 %v2213, 127
    %v3969 = vpop.permute.xlu0 %3968
    %3970 = vrot.lane.b32.xlu0 %v2293, 127
    %v3971 = vpop.permute.xlu0 %3970
    %3972 = vrot.lane.b32.xlu0 %v2373, 127
    %v3973 = vpop.permute.xlu0 %3972
    %3974 = vrot.lane.b32.xlu0 %v2453, 127
    %v3975 = vpop.permute.xlu0 %3974
    %3976 = vrot.lane.b32.xlu0 %v2533, 127
    %v3977 = vpop.permute.xlu0 %3976
    %vm3978 = vcmp.lt.s32.totalorder %v3856, 127
    %v3979 = vsel %vm3978, %v3975, %v3977
    %v3980 = vsel %vm3978, %v3973, %v3975
    %v3981 = vsel %vm3978, %v3971, %v3973
    %v3982 = vsel %vm3978, %v3969, %v3971
    %v3983 = vsel %vm3978, %v3967, %v3969
    %v3984 = vsel %vm3978, %v3965, %v3967
    %v3985 = vsel %vm3978, %v3963, %v3965
    %v3986 = vsel %vm3978, %v3961, %v3963
    %v3987 = vsel %vm3978, %v3959, %v3961
    %v3988 = vsel %vm3978, %v3957, %v3959
    %v3989 = vsel %vm3978, %v3955, %v3957
    %v3990 = vsel %vm3978, %v3953, %v3955
    %v3991 = vsel %vm3978, %v3951, %v3953
    %v3992 = vsel %vm3978, %v3949, %v3951
    %v3993 = vsel %vm3978, %v3947, %v3949
    %v3994 = vsel %vm3978, %v3977, %v3947
    %v3995 = vperm.slane %v3815, 1
    %v3996 = vperm.slane %v3815, 5
    %v3997 = vperm.slane %v3816, 1
    %v3998 = vperm.slane %v3816, 5
    %v3999 = vperm.slane %v3817, 1
    %v4000 = vperm.slane %v3817, 5
    %v4001 = vperm.slane %v3818, 1
    %v4002 = vperm.slane %v3818, 5
    %v4003 = vperm.slane %v3819, 1
    %v4004 = vperm.slane %v3819, 5
    %v4005 = vperm.slane %v3820, 1
    %v4006 = vperm.slane %v3820, 5
    %v4007 = vperm.slane %v3821, 1
    %v4008 = vperm.slane %v3821, 5
    %v4009 = vperm.slane %v3822, 1
    %v4010 = vperm.slane %v3822, 5
    %v4027 = vperm.slane %v3995, 1
    %v4028 = vperm.slane %v3996, 1
    %v4029 = vperm.slane %v3997, 1
    %v4030 = vperm.slane %v3998, 1
    %v4031 = vperm.slane %v3999, 1
    %v4032 = vperm.slane %v4000, 1
    %v4033 = vperm.slane %v4001, 1
    %v4034 = vperm.slane %v4002, 1
    %v4035 = vperm.slane %v4003, 1
    %v4036 = vperm.slane %v4004, 1
    %v4037 = vperm.slane %v4005, 1
    %v4038 = vperm.slane %v4006, 1
    %v4039 = vperm.slane %v4007, 1
    %v4040 = vperm.slane %v4008, 1
    %v4041 = vperm.slane %v4009, 1
    %v4042 = vperm.slane %v4010, 1
    %v4043 = vmul.f32 %v3993, %v4027
    %v4044 = vmul.f32 %v3992, %v4028
    %v4045 = vmul.f32 %v3991, %v4029
    %v4046 = vmul.f32 %v3990, %v4030
    %v4047 = vmul.f32 %v3989, %v4031
    %v4048 = vmul.f32 %v3988, %v4032
    %v4049 = vmul.f32 %v3987, %v4033
    %v4050 = vmul.f32 %v3986, %v4034
    %v4051 = vmul.f32 %v3985, %v4035
    %v4052 = vmul.f32 %v3984, %v4036
    %v4053 = vmul.f32 %v3983, %v4037
    %v4054 = vmul.f32 %v3982, %v4038
    %v4055 = vmul.f32 %v3981, %v4039
    %v4056 = vmul.f32 %v3980, %v4040
    %v4057 = vmul.f32 %v3979, %v4041
    %v4058 = vmul.f32 %v3994, %v4042
    %4059 = vrot.lane.b32.xlu0 %v3930, 32
    %v4060 = vpop.permute.xlu0 %4059
    %4061 = vrot.lane.b32.xlu0 %v3931, 32
    %v4062 = vpop.permute.xlu0 %4061
    %4063 = vrot.lane.b32.xlu0 %v3932, 32
    %v4064 = vpop.permute.xlu0 %4063
    %4065 = vrot.lane.b32.xlu0 %v3933, 32
    %v4066 = vpop.permute.xlu0 %4065
    %4067 = vrot.lane.b32.xlu0 %v3934, 32
    %v4068 = vpop.permute.xlu0 %4067
    %4069 = vrot.lane.b32.xlu0 %v3935, 32
    %v4070 = vpop.permute.xlu0 %4069
    %4071 = vrot.lane.b32.xlu0 %v3936, 32
    %v4072 = vpop.permute.xlu0 %4071
    %4073 = vrot.lane.b32.xlu0 %v3937, 32
    %v4074 = vpop.permute.xlu0 %4073
    %4075 = vrot.lane.b32.xlu0 %v3938, 32
    %v4076 = vpop.permute.xlu0 %4075
    %4077 = vrot.lane.b32.xlu0 %v3939, 32
    %v4078 = vpop.permute.xlu0 %4077
    %4079 = vrot.lane.b32.xlu0 %v3940, 32
    %v4080 = vpop.permute.xlu0 %4079
    %4081 = vrot.lane.b32.xlu0 %v3941, 32
    %v4082 = vpop.permute.xlu0 %4081
    %4083 = vrot.lane.b32.xlu0 %v3942, 32
    %v4084 = vpop.permute.xlu0 %4083
    %4085 = vrot.lane.b32.xlu0 %v3943, 32
    %v4086 = vpop.permute.xlu0 %4085
    %4087 = vrot.lane.b32.xlu0 %v3944, 32
    %v4088 = vpop.permute.xlu0 %4087
    %4089 = vrot.lane.b32.xlu0 %v3945, 32
    %v4090 = vpop.permute.xlu0 %4089
    %vm4091 = vcmp.lt.s32.totalorder %v3856, 32
    %v4092 = vsel %vm4091, %v4088, %v4090
    %v4093 = vsel %vm4091, %v4086, %v4088
    %v4094 = vsel %vm4091, %v4084, %v4086
    %v4095 = vsel %vm4091, %v4082, %v4084
    %v4096 = vsel %vm4091, %v4080, %v4082
    %v4097 = vsel %vm4091, %v4078, %v4080
    %v4098 = vsel %vm4091, %v4076, %v4078
    %v4099 = vsel %vm4091, %v4074, %v4076
    %v4100 = vsel %vm4091, %v4072, %v4074
    %v4101 = vsel %vm4091, %v4070, %v4072
    %v4102 = vsel %vm4091, %v4068, %v4070
    %v4103 = vsel %vm4091, %v4066, %v4068
    %v4104 = vsel %vm4091, %v4064, %v4066
    %v4105 = vsel %vm4091, %v4062, %v4064
    %v4106 = vsel %vm4091, %v4060, %v4062
    %v4107 = vsel %vm4091, %v4090, %v4060
    %v4108 = vperm.slane %v3815, 2
    %v4109 = vperm.slane %v3815, 6
    %v4110 = vperm.slane %v3816, 2
    %v4111 = vperm.slane %v3816, 6
    %v4112 = vperm.slane %v3817, 2
    %v4113 = vperm.slane %v3817, 6
    %v4114 = vperm.slane %v3818, 2
    %v4115 = vperm.slane %v3818, 6
    %v4116 = vperm.slane %v3819, 2
    %v4117 = vperm.slane %v3819, 6
    %v4118 = vperm.slane %v3820, 2
    %v4119 = vperm.slane %v3820, 6
    %v4120 = vperm.slane %v3821, 2
    %v4121 = vperm.slane %v3821, 6
    %v4122 = vperm.slane %v3822, 2
    %v4123 = vperm.slane %v3822, 6
    %v4140 = vperm.slane %v4108, 2
    %v4141 = vperm.slane %v4109, 2
    %v4142 = vperm.slane %v4110, 2
    %v4143 = vperm.slane %v4111, 2
    %v4144 = vperm.slane %v4112, 2
    %v4145 = vperm.slane %v4113, 2
    %v4146 = vperm.slane %v4114, 2
    %v4147 = vperm.slane %v4115, 2
    %v4148 = vperm.slane %v4116, 2
    %v4149 = vperm.slane %v4117, 2
    %v4150 = vperm.slane %v4118, 2
    %v4151 = vperm.slane %v4119, 2
    %v4152 = vperm.slane %v4120, 2
    %v4153 = vperm.slane %v4121, 2
    %v4154 = vperm.slane %v4122, 2
    %v4155 = vperm.slane %v4123, 2
    %v4156 = vmul.f32 %v4107, %v4140
    %v4157 = vmul.f32 %v4106, %v4141
    %v4158 = vmul.f32 %v4105, %v4142
    %v4159 = vmul.f32 %v4104, %v4143
    %v4160 = vmul.f32 %v4103, %v4144
    %v4161 = vmul.f32 %v4102, %v4145
    %v4162 = vmul.f32 %v4101, %v4146
    %v4163 = vmul.f32 %v4100, %v4147
    %v4164 = vmul.f32 %v4099, %v4148
    %v4165 = vmul.f32 %v4098, %v4149
    %v4166 = vmul.f32 %v4097, %v4150
    %v4167 = vmul.f32 %v4096, %v4151
    %v4168 = vmul.f32 %v4095, %v4152
    %v4169 = vmul.f32 %v4094, %v4153
    %v4170 = vmul.f32 %v4093, %v4154
    %v4171 = vmul.f32 %v4092, %v4155
    %4172 = vrot.lane.b32.xlu0 %v1333, 32
    %v4173 = vpop.permute.xlu0 %4172
    %4174 = vrot.lane.b32.xlu0 %v1413, 32
    %v4175 = vpop.permute.xlu0 %4174
    %4176 = vrot.lane.b32.xlu0 %v1493, 32
    %v4177 = vpop.permute.xlu0 %4176
    %4178 = vrot.lane.b32.xlu0 %v1573, 32
    %v4179 = vpop.permute.xlu0 %4178
    %4180 = vrot.lane.b32.xlu0 %v1653, 32
    %v4181 = vpop.permute.xlu0 %4180
    %4182 = vrot.lane.b32.xlu0 %v1733, 32
    %v4183 = vpop.permute.xlu0 %4182
    %4184 = vrot.lane.b32.xlu0 %v1813, 32
    %v4185 = vpop.permute.xlu0 %4184
    %4186 = vrot.lane.b32.xlu0 %v1893, 32
    %v4187 = vpop.permute.xlu0 %4186
    %4188 = vrot.lane.b32.xlu0 %v1973, 32
    %v4189 = vpop.permute.xlu0 %4188
    %4190 = vrot.lane.b32.xlu0 %v2053, 32
    %v4191 = vpop.permute.xlu0 %4190
    %4192 = vrot.lane.b32.xlu0 %v2133, 32
    %v4193 = vpop.permute.xlu0 %4192
    %4194 = vrot.lane.b32.xlu0 %v2213, 32
    %v4195 = vpop.permute.xlu0 %4194
    %4196 = vrot.lane.b32.xlu0 %v2293, 32
    %v4197 = vpop.permute.xlu0 %4196
    %4198 = vrot.lane.b32.xlu0 %v2373, 32
    %v4199 = vpop.permute.xlu0 %4198
    %4200 = vrot.lane.b32.xlu0 %v2453, 32
    %v4201 = vpop.permute.xlu0 %4200
    %4202 = vrot.lane.b32.xlu0 %v2533, 32
    %v4203 = vpop.permute.xlu0 %4202
    %v4204 = vsel %vm4091, %v4201, %v4203
    %v4205 = vsel %vm4091, %v4199, %v4201
    %v4206 = vsel %vm4091, %v4197, %v4199
    %v4207 = vsel %vm4091, %v4195, %v4197
    %v4208 = vsel %vm4091, %v4193, %v4195
    %v4209 = vsel %vm4091, %v4191, %v4193
    %v4210 = vsel %vm4091, %v4189, %v4191
    %v4211 = vsel %vm4091, %v4187, %v4189
    %v4212 = vsel %vm4091, %v4185, %v4187
    %v4213 = vsel %vm4091, %v4183, %v4185
    %v4214 = vsel %vm4091, %v4181, %v4183
    %v4215 = vsel %vm4091, %v4179, %v4181
    %v4216 = vsel %vm4091, %v4177, %v4179
    %v4217 = vsel %vm4091, %v4175, %v4177
    %v4218 = vsel %vm4091, %v4173, %v4175
    %v4219 = vsel %vm4091, %v4203, %v4173
    %v4220 = vmul.f32 %v4219, %v4140
    %v4221 = vmul.f32 %v4218, %v4141
    %v4222 = vmul.f32 %v4217, %v4142
    %v4223 = vmul.f32 %v4216, %v4143
    %v4224 = vmul.f32 %v4215, %v4144
    %v4225 = vmul.f32 %v4214, %v4145
    %v4226 = vmul.f32 %v4213, %v4146
    %v4227 = vmul.f32 %v4212, %v4147
    %v4228 = vmul.f32 %v4211, %v4148
    %v4229 = vmul.f32 %v4210, %v4149
    %v4230 = vmul.f32 %v4209, %v4150
    %v4231 = vmul.f32 %v4208, %v4151
    %v4232 = vmul.f32 %v4207, %v4152
    %v4233 = vmul.f32 %v4206, %v4153
    %v4234 = vmul.f32 %v4205, %v4154
    %v4235 = vmul.f32 %v4204, %v4155
    %4236 = vrot.lane.b32.xlu0 %v4043, 32
    %v4237 = vpop.permute.xlu0 %4236
    %4238 = vrot.lane.b32.xlu0 %v4044, 32
    %v4239 = vpop.permute.xlu0 %4238
    %4240 = vrot.lane.b32.xlu0 %v4045, 32
    %v4241 = vpop.permute.xlu0 %4240
    %4242 = vrot.lane.b32.xlu0 %v4046, 32
    %v4243 = vpop.permute.xlu0 %4242
    %4244 = vrot.lane.b32.xlu0 %v4047, 32
    %v4245 = vpop.permute.xlu0 %4244
    %4246 = vrot.lane.b32.xlu0 %v4048, 32
    %v4247 = vpop.permute.xlu0 %4246
    %4248 = vrot.lane.b32.xlu0 %v4049, 32
    %v4249 = vpop.permute.xlu0 %4248
    %4250 = vrot.lane.b32.xlu0 %v4050, 32
    %v4251 = vpop.permute.xlu0 %4250
    %4252 = vrot.lane.b32.xlu0 %v4051, 32
    %v4253 = vpop.permute.xlu0 %4252
    %4254 = vrot.lane.b32.xlu0 %v4052, 32
    %v4255 = vpop.permute.xlu0 %4254
    %4256 = vrot.lane.b32.xlu0 %v4053, 32
    %v4257 = vpop.permute.xlu0 %4256
    %4258 = vrot.lane.b32.xlu0 %v4054, 32
    %v4259 = vpop.permute.xlu0 %4258
    %4260 = vrot.lane.b32.xlu0 %v4055, 32
    %v4261 = vpop.permute.xlu0 %4260
    %4262 = vrot.lane.b32.xlu0 %v4056, 32
    %v4263 = vpop.permute.xlu0 %4262
    %4264 = vrot.lane.b32.xlu0 %v4057, 32
    %v4265 = vpop.permute.xlu0 %4264
    %4266 = vrot.lane.b32.xlu0 %v4058, 32
    %v4267 = vpop.permute.xlu0 %4266
    %v4268 = vsel %vm4091, %v4265, %v4267
    %v4269 = vsel %vm4091, %v4263, %v4265
    %v4270 = vsel %vm4091, %v4261, %v4263
    %v4271 = vsel %vm4091, %v4259, %v4261
    %v4272 = vsel %vm4091, %v4257, %v4259
    %v4273 = vsel %vm4091, %v4255, %v4257
    %v4274 = vsel %vm4091, %v4253, %v4255
    %v4275 = vsel %vm4091, %v4251, %v4253
    %v4276 = vsel %vm4091, %v4249, %v4251
    %v4277 = vsel %vm4091, %v4247, %v4249
    %v4278 = vsel %vm4091, %v4245, %v4247
    %v4279 = vsel %vm4091, %v4243, %v4245
    %v4280 = vsel %vm4091, %v4241, %v4243
    %v4281 = vsel %vm4091, %v4239, %v4241
    %v4282 = vsel %vm4091, %v4237, %v4239
    %v4283 = vsel %vm4091, %v4267, %v4237
    %v4284 = vmul.f32 %v4283, %v4140
    %v4285 = vmul.f32 %v4282, %v4141
    %v4286 = vmul.f32 %v4281, %v4142
    %v4287 = vmul.f32 %v4280, %v4143
    %v4288 = vmul.f32 %v4279, %v4144
    %v4289 = vmul.f32 %v4278, %v4145
    %v4290 = vmul.f32 %v4277, %v4146
    %v4291 = vmul.f32 %v4276, %v4147
    %v4292 = vmul.f32 %v4275, %v4148
    %v4293 = vmul.f32 %v4274, %v4149
    %v4294 = vmul.f32 %v4273, %v4150
    %v4295 = vmul.f32 %v4272, %v4151
    %v4296 = vmul.f32 %v4271, %v4152
    %v4297 = vmul.f32 %v4270, %v4153
    %v4298 = vmul.f32 %v4269, %v4154
    %v4299 = vmul.f32 %v4268, %v4155
    %4300 = vrot.lane.b32.xlu0 %v3930, 96
    %v4301 = vpop.permute.xlu0 %4300
    %4302 = vrot.lane.b32.xlu0 %v3931, 96
    %v4303 = vpop.permute.xlu0 %4302
    %4304 = vrot.lane.b32.xlu0 %v3932, 96
    %v4305 = vpop.permute.xlu0 %4304
    %4306 = vrot.lane.b32.xlu0 %v3933, 96
    %v4307 = vpop.permute.xlu0 %4306
    %4308 = vrot.lane.b32.xlu0 %v3934, 96
    %v4309 = vpop.permute.xlu0 %4308
    %4310 = vrot.lane.b32.xlu0 %v3935, 96
    %v4311 = vpop.permute.xlu0 %4310
    %4312 = vrot.lane.b32.xlu0 %v3936, 96
    %v4313 = vpop.permute.xlu0 %4312
    %4314 = vrot.lane.b32.xlu0 %v3937, 96
    %v4315 = vpop.permute.xlu0 %4314
    %4316 = vrot.lane.b32.xlu0 %v3938, 96
    %v4317 = vpop.permute.xlu0 %4316
    %4318 = vrot.lane.b32.xlu0 %v3939, 96
    %v4319 = vpop.permute.xlu0 %4318
    %4320 = vrot.lane.b32.xlu0 %v3940, 96
    %v4321 = vpop.permute.xlu0 %4320
    %4322 = vrot.lane.b32.xlu0 %v3941, 96
    %v4323 = vpop.permute.xlu0 %4322
    %4324 = vrot.lane.b32.xlu0 %v3942, 96
    %v4325 = vpop.permute.xlu0 %4324
    %4326 = vrot.lane.b32.xlu0 %v3943, 96
    %v4327 = vpop.permute.xlu0 %4326
    %4328 = vrot.lane.b32.xlu0 %v3944, 96
    %v4329 = vpop.permute.xlu0 %4328
    %4330 = vrot.lane.b32.xlu0 %v3945, 96
    %v4331 = vpop.permute.xlu0 %4330
    %vm4332 = vcmp.lt.s32.totalorder %v3856, 96
    %v4333 = vsel %vm4332, %v4329, %v4331
    %v4334 = vsel %vm4332, %v4327, %v4329
    %v4335 = vsel %vm4332, %v4325, %v4327
    %v4336 = vsel %vm4332, %v4323, %v4325
    %v4337 = vsel %vm4332, %v4321, %v4323
    %v4338 = vsel %vm4332, %v4319, %v4321
    %v4339 = vsel %vm4332, %v4317, %v4319
    %v4340 = vsel %vm4332, %v4315, %v4317
    %v4341 = vsel %vm4332, %v4313, %v4315
    %v4342 = vsel %vm4332, %v4311, %v4313
    %v4343 = vsel %vm4332, %v4309, %v4311
    %v4344 = vsel %vm4332, %v4307, %v4309
    %v4345 = vsel %vm4332, %v4305, %v4307
    %v4346 = vsel %vm4332, %v4303, %v4305
    %v4347 = vsel %vm4332, %v4301, %v4303
    %v4348 = vsel %vm4332, %v4331, %v4301
    %v4349 = vperm.slane %v3815, 3
    %v4350 = vperm.slane %v3815, 7
    %v4351 = vperm.slane %v3816, 3
    %v4352 = vperm.slane %v3816, 7
    %v4353 = vperm.slane %v3817, 3
    %v4354 = vperm.slane %v3817, 7
    %v4355 = vperm.slane %v3818, 3
    %v4356 = vperm.slane %v3818, 7
    %v4357 = vperm.slane %v3819, 3
    %v4358 = vperm.slane %v3819, 7
    %v4359 = vperm.slane %v3820, 3
    %v4360 = vperm.slane %v3820, 7
    %v4361 = vperm.slane %v3821, 3
    %v4362 = vperm.slane %v3821, 7
    %v4363 = vperm.slane %v3822, 3
    %v4364 = vperm.slane %v3822, 7
    %v4381 = vperm.slane %v4349, 3
    %v4382 = vperm.slane %v4350, 3
    %v4383 = vperm.slane %v4351, 3
    %v4384 = vperm.slane %v4352, 3
    %v4385 = vperm.slane %v4353, 3
    %v4386 = vperm.slane %v4354, 3
    %v4387 = vperm.slane %v4355, 3
    %v4388 = vperm.slane %v4356, 3
    %v4389 = vperm.slane %v4357, 3
    %v4390 = vperm.slane %v4358, 3
    %v4391 = vperm.slane %v4359, 3
    %v4392 = vperm.slane %v4360, 3
    %v4393 = vperm.slane %v4361, 3
    %v4394 = vperm.slane %v4362, 3
    %v4395 = vperm.slane %v4363, 3
    %v4396 = vperm.slane %v4364, 3
    %v4397 = vmul.f32 %v4347, %v4381
    %v4398 = vmul.f32 %v4346, %v4382
    %v4399 = vmul.f32 %v4345, %v4383
    %v4400 = vmul.f32 %v4344, %v4384
    %v4401 = vmul.f32 %v4343, %v4385
    %v4402 = vmul.f32 %v4342, %v4386
    %v4403 = vmul.f32 %v4341, %v4387
    %v4404 = vmul.f32 %v4340, %v4388
    %v4405 = vmul.f32 %v4339, %v4389
    %v4406 = vmul.f32 %v4338, %v4390
    %v4407 = vmul.f32 %v4337, %v4391
    %v4408 = vmul.f32 %v4336, %v4392
    %v4409 = vmul.f32 %v4335, %v4393
    %v4410 = vmul.f32 %v4334, %v4394
    %v4411 = vmul.f32 %v4333, %v4395
    %v4412 = vmul.f32 %v4348, %v4396
    %4413 = vrot.lane.b32.xlu0 %v1333, 96
    %v4414 = vpop.permute.xlu0 %4413
    %4415 = vrot.lane.b32.xlu0 %v1413, 96
    %v4416 = vpop.permute.xlu0 %4415
    %4417 = vrot.lane.b32.xlu0 %v1493, 96
    %v4418 = vpop.permute.xlu0 %4417
    %4419 = vrot.lane.b32.xlu0 %v1573, 96
    %v4420 = vpop.permute.xlu0 %4419
    %4421 = vrot.lane.b32.xlu0 %v1653, 96
    %v4422 = vpop.permute.xlu0 %4421
    %4423 = vrot.lane.b32.xlu0 %v1733, 96
    %v4424 = vpop.permute.xlu0 %4423
    %4425 = vrot.lane.b32.xlu0 %v1813, 96
    %v4426 = vpop.permute.xlu0 %4425
    %4427 = vrot.lane.b32.xlu0 %v1893, 96
    %v4428 = vpop.permute.xlu0 %4427
    %4429 = vrot.lane.b32.xlu0 %v1973, 96
    %v4430 = vpop.permute.xlu0 %4429
    %4431 = vrot.lane.b32.xlu0 %v2053, 96
    %v4432 = vpop.permute.xlu0 %4431
    %4433 = vrot.lane.b32.xlu0 %v2133, 96
    %v4434 = vpop.permute.xlu0 %4433
    %4435 = vrot.lane.b32.xlu0 %v2213, 96
    %v4436 = vpop.permute.xlu0 %4435
    %4437 = vrot.lane.b32.xlu0 %v2293, 96
    %v4438 = vpop.permute.xlu0 %4437
    %4439 = vrot.lane.b32.xlu0 %v2373, 96
    %v4440 = vpop.permute.xlu0 %4439
    %4441 = vrot.lane.b32.xlu0 %v2453, 96
    %v4442 = vpop.permute.xlu0 %4441
    %4443 = vrot.lane.b32.xlu0 %v2533, 96
    %v4444 = vpop.permute.xlu0 %4443
    %v4445 = vsel %vm4332, %v4442, %v4444
    %v4446 = vsel %vm4332, %v4440, %v4442
    %v4447 = vsel %vm4332, %v4438, %v4440
    %v4448 = vsel %vm4332, %v4436, %v4438
    %v4449 = vsel %vm4332, %v4434, %v4436
    %v4450 = vsel %vm4332, %v4432, %v4434
    %v4451 = vsel %vm4332, %v4430, %v4432
    %v4452 = vsel %vm4332, %v4428, %v4430
    %v4453 = vsel %vm4332, %v4426, %v4428
    %v4454 = vsel %vm4332, %v4424, %v4426
    %v4455 = vsel %vm4332, %v4422, %v4424
    %v4456 = vsel %vm4332, %v4420, %v4422
    %v4457 = vsel %vm4332, %v4418, %v4420
    %v4458 = vsel %vm4332, %v4416, %v4418
    %v4459 = vsel %vm4332, %v4414, %v4416
    %v4460 = vsel %vm4332, %v4444, %v4414
    %v4461 = vmul.f32 %v4459, %v4381
    %v4462 = vmul.f32 %v4458, %v4382
    %v4463 = vmul.f32 %v4457, %v4383
    %v4464 = vmul.f32 %v4456, %v4384
    %v4465 = vmul.f32 %v4455, %v4385
    %v4466 = vmul.f32 %v4454, %v4386
    %v4467 = vmul.f32 %v4453, %v4387
    %v4468 = vmul.f32 %v4452, %v4388
    %v4469 = vmul.f32 %v4451, %v4389
    %v4470 = vmul.f32 %v4450, %v4390
    %v4471 = vmul.f32 %v4449, %v4391
    %v4472 = vmul.f32 %v4448, %v4392
    %v4473 = vmul.f32 %v4447, %v4393
    %v4474 = vmul.f32 %v4446, %v4394
    %v4475 = vmul.f32 %v4445, %v4395
    %v4476 = vmul.f32 %v4460, %v4396
    %4477 = vrot.lane.b32.xlu0 %v4043, 96
    %v4478 = vpop.permute.xlu0 %4477
    %4479 = vrot.lane.b32.xlu0 %v4044, 96
    %v4480 = vpop.permute.xlu0 %4479
    %4481 = vrot.lane.b32.xlu0 %v4045, 96
    %v4482 = vpop.permute.xlu0 %4481
    %4483 = vrot.lane.b32.xlu0 %v4046, 96
    %v4484 = vpop.permute.xlu0 %4483
    %4485 = vrot.lane.b32.xlu0 %v4047, 96
    %v4486 = vpop.permute.xlu0 %4485
    %4487 = vrot.lane.b32.xlu0 %v4048, 96
    %v4488 = vpop.permute.xlu0 %4487
    %4489 = vrot.lane.b32.xlu0 %v4049, 96
    %v4490 = vpop.permute.xlu0 %4489
    %4491 = vrot.lane.b32.xlu0 %v4050, 96
    %v4492 = vpop.permute.xlu0 %4491
    %4493 = vrot.lane.b32.xlu0 %v4051, 96
    %v4494 = vpop.permute.xlu0 %4493
    %4495 = vrot.lane.b32.xlu0 %v4052, 96
    %v4496 = vpop.permute.xlu0 %4495
    %4497 = vrot.lane.b32.xlu0 %v4053, 96
    %v4498 = vpop.permute.xlu0 %4497
    %4499 = vrot.lane.b32.xlu0 %v4054, 96
    %v4500 = vpop.permute.xlu0 %4499
    %4501 = vrot.lane.b32.xlu0 %v4055, 96
    %v4502 = vpop.permute.xlu0 %4501
    %4503 = vrot.lane.b32.xlu0 %v4056, 96
    %v4504 = vpop.permute.xlu0 %4503
    %4505 = vrot.lane.b32.xlu0 %v4057, 96
    %v4506 = vpop.permute.xlu0 %4505
    %4507 = vrot.lane.b32.xlu0 %v4058, 96
    %v4508 = vpop.permute.xlu0 %4507
    %v4509 = vsel %vm4332, %v4506, %v4508
    %v4510 = vsel %vm4332, %v4504, %v4506
    %v4511 = vsel %vm4332, %v4502, %v4504
    %v4512 = vsel %vm4332, %v4500, %v4502
    %v4513 = vsel %vm4332, %v4498, %v4500
    %v4514 = vsel %vm4332, %v4496, %v4498
    %v4515 = vsel %vm4332, %v4494, %v4496
    %v4516 = vsel %vm4332, %v4492, %v4494
    %v4517 = vsel %vm4332, %v4490, %v4492
    %v4518 = vsel %vm4332, %v4488, %v4490
    %v4519 = vsel %vm4332, %v4486, %v4488
    %v4520 = vsel %vm4332, %v4484, %v4486
    %v4521 = vsel %vm4332, %v4482, %v4484
    %v4522 = vsel %vm4332, %v4480, %v4482
    %v4523 = vsel %vm4332, %v4478, %v4480
    %v4524 = vsel %vm4332, %v4508, %v4478
    %v4525 = vmul.f32 %v4523, %v4381
    %v4526 = vmul.f32 %v4522, %v4382
    %v4527 = vmul.f32 %v4521, %v4383
    %v4528 = vmul.f32 %v4520, %v4384
    %v4529 = vmul.f32 %v4519, %v4385
    %v4530 = vmul.f32 %v4518, %v4386
    %v4531 = vmul.f32 %v4517, %v4387
    %v4532 = vmul.f32 %v4516, %v4388
    %v4533 = vmul.f32 %v4515, %v4389
    %v4534 = vmul.f32 %v4514, %v4390
    %v4535 = vmul.f32 %v4513, %v4391
    %v4536 = vmul.f32 %v4512, %v4392
    %v4537 = vmul.f32 %v4511, %v4393
    %v4538 = vmul.f32 %v4510, %v4394
    %v4539 = vmul.f32 %v4509, %v4395
    %v4540 = vmul.f32 %v4524, %v4396
    %v4541 = vld [vmem:[#allocation13] sm:$0xff]
    %v4542 = vld [vmem:[%s7] sm:$0xff]
    %4544 = vset.pattern.permute.xlu0 0
    %4545 = vperm.xlu0 %4544, %v4542
    %v4546 = vpop.permute.xlu0 %4545
    %vm4548 = vcmask 588800
    %v4550 = vsel %vm4548, %v4541, 0
    %4552 = vmatpush.msra.mxu0 0.0
    %4553 = vmatpush.msra.mxu0 0.0
    %4554 = vmatpush.msra.mxu0 0.0
    %4555 = vmatpush.msra.mxu0 0.0
    %4556 = vmatpush.msra.mxu0 0.0
    %4557 = vmatpush.msra.mxu0 0.0
    %4558 = vmatpush.msra.mxu0 0.0
    %4559 = vmatpush.msra.mxu0 %v4525
    %4560 = vmatpush.msra.mxu0 %v4461
    %4561 = vmatpush.msra.mxu0 %v4397
    %4562 = vmatpush.msra.mxu0 %v4043
    %4563 = vmatpush.msra.mxu0 %v1333
    %4564 = vmatpush.msra.mxu0 %v3930
    %4565 = vmatpush.msra.mxu0 %v4284
    %4566 = vmatpush.msra.mxu0 %v4220
    %4567 = vmatpush.msra.mxu0 %v4156
    %4568 = vmatmul.f32.gmra.mxu0 %v4550
    %v4569 = vpop.f32.mrf.mxu0
    %v4570 = vadd.f32 %v4546, %v4569
    %4571 = vdwg.mxu0
    %4572 = vmatpush.msra.mxu0 0.0
    %4573 = vmatpush.msra.mxu0 0.0
    %4574 = vmatpush.msra.mxu0 0.0
    %4575 = vmatpush.msra.mxu0 0.0
    %4576 = vmatpush.msra.mxu0 0.0
    %4577 = vmatpush.msra.mxu0 0.0
    %4578 = vmatpush.msra.mxu0 0.0
    %4579 = vmatpush.msra.mxu0 %v4526
    %4580 = vmatpush.msra.mxu0 %v4462
    %4581 = vmatpush.msra.mxu0 %v4398
    %4582 = vmatpush.msra.mxu0 %v4044
    %4583 = vmatpush.msra.mxu0 %v1413
    %4584 = vmatpush.msra.mxu0 %v3931
    %4585 = vmatpush.msra.mxu0 %v4285
    %4586 = vmatpush.msra.mxu0 %v4221
    %4587 = vmatpush.msra.mxu0 %v4157
    %4588 = vmatmul.f32.gmra.mxu0 %v4550
    %v4589 = vpop.f32.mrf.mxu0
    %v4590 = vadd.f32 %v4546, %v4589
    %4591 = vdwg.mxu0
    %4592 = vmatpush.msra.mxu0 0.0
    %4593 = vmatpush.msra.mxu0 0.0
    %4594 = vmatpush.msra.mxu0 0.0
    %4595 = vmatpush.msra.mxu0 0.0
    %4596 = vmatpush.msra.mxu0 0.0
    %4597 = vmatpush.msra.mxu0 0.0
    %4598 = vmatpush.msra.mxu0 0.0
    %4599 = vmatpush.msra.mxu0 %v4527
    %4600 = vmatpush.msra.mxu0 %v4463
    %4601 = vmatpush.msra.mxu0 %v4399
    %4602 = vmatpush.msra.mxu0 %v4045
    %4603 = vmatpush.msra.mxu0 %v1493
    %4604 = vmatpush.msra.mxu0 %v3932
    %4605 = vmatpush.msra.mxu0 %v4286
    %4606 = vmatpush.msra.mxu0 %v4222
    %4607 = vmatpush.msra.mxu0 %v4158
    %4608 = vmatmul.f32.gmra.mxu0 %v4550
    %v4609 = vpop.f32.mrf.mxu0
    %v4610 = vadd.f32 %v4546, %v4609
    %4611 = vdwg.mxu0
    %4612 = vmatpush.msra.mxu0 0.0
    %4613 = vmatpush.msra.mxu0 0.0
    %4614 = vmatpush.msra.mxu0 0.0
    %4615 = vmatpush.msra.mxu0 0.0
    %4616 = vmatpush.msra.mxu0 0.0
    %4617 = vmatpush.msra.mxu0 0.0
    %4618 = vmatpush.msra.mxu0 0.0
    %4619 = vmatpush.msra.mxu0 %v4528
    %4620 = vmatpush.msra.mxu0 %v4464
    %4621 = vmatpush.msra.mxu0 %v4400
    %4622 = vmatpush.msra.mxu0 %v4046
    %4623 = vmatpush.msra.mxu0 %v1573
    %4624 = vmatpush.msra.mxu0 %v3933
    %4625 = vmatpush.msra.mxu0 %v4287
    %4626 = vmatpush.msra.mxu0 %v4223
    %4627 = vmatpush.msra.mxu0 %v4159
    %4628 = vmatmul.f32.gmra.mxu0 %v4550
    %v4629 = vpop.f32.mrf.mxu0
    %v4630 = vadd.f32 %v4546, %v4629
    %4631 = vdwg.mxu0
    %4632 = vmatpush.msra.mxu0 0.0
    %4633 = vmatpush.msra.mxu0 0.0
    %4634 = vmatpush.msra.mxu0 0.0
    %4635 = vmatpush.msra.mxu0 0.0
    %4636 = vmatpush.msra.mxu0 0.0
    %4637 = vmatpush.msra.mxu0 0.0
    %4638 = vmatpush.msra.mxu0 0.0
    %4639 = vmatpush.msra.mxu0 %v4529
    %4640 = vmatpush.msra.mxu0 %v4465
    %4641 = vmatpush.msra.mxu0 %v4401
    %4642 = vmatpush.msra.mxu0 %v4047
    %4643 = vmatpush.msra.mxu0 %v1653
    %4644 = vmatpush.msra.mxu0 %v3934
    %4645 = vmatpush.msra.mxu0 %v4288
    %4646 = vmatpush.msra.mxu0 %v4224
    %4647 = vmatpush.msra.mxu0 %v4160
    %4648 = vmatmul.f32.gmra.mxu0 %v4550
    %v4649 = vpop.f32.mrf.mxu0
    %v4650 = vadd.f32 %v4546, %v4649
    %4651 = vdwg.mxu0
    %4652 = vmatpush.msra.mxu0 0.0
    %4653 = vmatpush.msra.mxu0 0.0
    %4654 = vmatpush.msra.mxu0 0.0
    %4655 = vmatpush.msra.mxu0 0.0
    %4656 = vmatpush.msra.mxu0 0.0
    %4657 = vmatpush.msra.mxu0 0.0
    %4658 = vmatpush.msra.mxu0 0.0
    %4659 = vmatpush.msra.mxu0 %v4530
    %4660 = vmatpush.msra.mxu0 %v4466
    %4661 = vmatpush.msra.mxu0 %v4402
    %4662 = vmatpush.msra.mxu0 %v4048
    %4663 = vmatpush.msra.mxu0 %v1733
    %4664 = vmatpush.msra.mxu0 %v3935
    %4665 = vmatpush.msra.mxu0 %v4289
    %4666 = vmatpush.msra.mxu0 %v4225
    %4667 = vmatpush.msra.mxu0 %v4161
    %4668 = vmatmul.f32.gmra.mxu0 %v4550
    %v4669 = vpop.f32.mrf.mxu0
    %v4670 = vadd.f32 %v4546, %v4669
    %4671 = vdwg.mxu0
    %4672 = vmatpush.msra.mxu0 0.0
    %4673 = vmatpush.msra.mxu0 0.0
    %4674 = vmatpush.msra.mxu0 0.0
    %4675 = vmatpush.msra.mxu0 0.0
    %4676 = vmatpush.msra.mxu0 0.0
    %4677 = vmatpush.msra.mxu0 0.0
    %4678 = vmatpush.msra.mxu0 0.0
    %4679 = vmatpush.msra.mxu0 %v4531
    %4680 = vmatpush.msra.mxu0 %v4467
    %4681 = vmatpush.msra.mxu0 %v4403
    %4682 = vmatpush.msra.mxu0 %v4049
    %4683 = vmatpush.msra.mxu0 %v1813
    %4684 = vmatpush.msra.mxu0 %v3936
    %4685 = vmatpush.msra.mxu0 %v4290
    %4686 = vmatpush.msra.mxu0 %v4226
    %4687 = vmatpush.msra.mxu0 %v4162
    %4688 = vmatmul.f32.gmra.mxu0 %v4550
    %v4689 = vpop.f32.mrf.mxu0
    %v4690 = vadd.f32 %v4546, %v4689
    %4691 = vdwg.mxu0
    %4692 = vmatpush.msra.mxu0 0.0
    %4693 = vmatpush.msra.mxu0 0.0
    %4694 = vmatpush.msra.mxu0 0.0
    %4695 = vmatpush.msra.mxu0 0.0
    %4696 = vmatpush.msra.mxu0 0.0
    %4697 = vmatpush.msra.mxu0 0.0
    %4698 = vmatpush.msra.mxu0 0.0
    %4699 = vmatpush.msra.mxu0 %v4532
    %4700 = vmatpush.msra.mxu0 %v4468
    %4701 = vmatpush.msra.mxu0 %v4404
    %4702 = vmatpush.msra.mxu0 %v4050
    %4703 = vmatpush.msra.mxu0 %v1893
    %4704 = vmatpush.msra.mxu0 %v3937
    %4705 = vmatpush.msra.mxu0 %v4291
    %4706 = vmatpush.msra.mxu0 %v4227
    %4707 = vmatpush.msra.mxu0 %v4163
    %4708 = vmatmul.f32.gmra.mxu0 %v4550
    %v4709 = vpop.f32.mrf.mxu0
    %v4710 = vadd.f32 %v4546, %v4709
    %4711 = vdwg.mxu0
    %4712 = vmatpush.msra.mxu0 0.0
    %4713 = vmatpush.msra.mxu0 0.0
    %4714 = vmatpush.msra.mxu0 0.0
    %4715 = vmatpush.msra.mxu0 0.0
    %4716 = vmatpush.msra.mxu0 0.0
    %4717 = vmatpush.msra.mxu0 0.0
    %4718 = vmatpush.msra.mxu0 0.0
    %4719 = vmatpush.msra.mxu0 %v4533
    %4720 = vmatpush.msra.mxu0 %v4469
    %4721 = vmatpush.msra.mxu0 %v4405
    %4722 = vmatpush.msra.mxu0 %v4051
    %4723 = vmatpush.msra.mxu0 %v1973
    %4724 = vmatpush.msra.mxu0 %v3938
    %4725 = vmatpush.msra.mxu0 %v4292
    %4726 = vmatpush.msra.mxu0 %v4228
    %4727 = vmatpush.msra.mxu0 %v4164
    %4728 = vmatmul.f32.gmra.mxu0 %v4550
    %v4729 = vpop.f32.mrf.mxu0
    %v4730 = vadd.f32 %v4546, %v4729
    %4731 = vdwg.mxu0
    %4732 = vmatpush.msra.mxu0 0.0
    %4733 = vmatpush.msra.mxu0 0.0
    %4734 = vmatpush.msra.mxu0 0.0
    %4735 = vmatpush.msra.mxu0 0.0
    %4736 = vmatpush.msra.mxu0 0.0
    %4737 = vmatpush.msra.mxu0 0.0
    %4738 = vmatpush.msra.mxu0 0.0
    %4739 = vmatpush.msra.mxu0 %v4534
    %4740 = vmatpush.msra.mxu0 %v4470
    %4741 = vmatpush.msra.mxu0 %v4406
    %4742 = vmatpush.msra.mxu0 %v4052
    %4743 = vmatpush.msra.mxu0 %v2053
    %4744 = vmatpush.msra.mxu0 %v3939
    %4745 = vmatpush.msra.mxu0 %v4293
    %4746 = vmatpush.msra.mxu0 %v4229
    %4747 = vmatpush.msra.mxu0 %v4165
    %4748 = vmatmul.f32.gmra.mxu0 %v4550
    %v4749 = vpop.f32.mrf.mxu0
    %v4750 = vadd.f32 %v4546, %v4749
    %4751 = vdwg.mxu0
    %4752 = vmatpush.msra.mxu0 0.0
    %4753 = vmatpush.msra.mxu0 0.0
    %4754 = vmatpush.msra.mxu0 0.0
    %4755 = vmatpush.msra.mxu0 0.0
    %4756 = vmatpush.msra.mxu0 0.0
    %4757 = vmatpush.msra.mxu0 0.0
    %4758 = vmatpush.msra.mxu0 0.0
    %4759 = vmatpush.msra.mxu0 %v4535
    %4760 = vmatpush.msra.mxu0 %v4471
    %4761 = vmatpush.msra.mxu0 %v4407
    %4762 = vmatpush.msra.mxu0 %v4053
    %4763 = vmatpush.msra.mxu0 %v2133
    %4764 = vmatpush.msra.mxu0 %v3940
    %4765 = vmatpush.msra.mxu0 %v4294
    %4766 = vmatpush.msra.mxu0 %v4230
    %4767 = vmatpush.msra.mxu0 %v4166
    %4768 = vmatmul.f32.gmra.mxu0 %v4550
    %v4769 = vpop.f32.mrf.mxu0
    %v4770 = vadd.f32 %v4546, %v4769
    %4771 = vdwg.mxu0
    %4772 = vmatpush.msra.mxu0 0.0
    %4773 = vmatpush.msra.mxu0 0.0
    %4774 = vmatpush.msra.mxu0 0.0
    %4775 = vmatpush.msra.mxu0 0.0
    %4776 = vmatpush.msra.mxu0 0.0
    %4777 = vmatpush.msra.mxu0 0.0
    %4778 = vmatpush.msra.mxu0 0.0
    %4779 = vmatpush.msra.mxu0 %v4536
    %4780 = vmatpush.msra.mxu0 %v4472
    %4781 = vmatpush.msra.mxu0 %v4408
    %4782 = vmatpush.msra.mxu0 %v4054
    %4783 = vmatpush.msra.mxu0 %v2213
    %4784 = vmatpush.msra.mxu0 %v3941
    %4785 = vmatpush.msra.mxu0 %v4295
    %4786 = vmatpush.msra.mxu0 %v4231
    %4787 = vmatpush.msra.mxu0 %v4167
    %4788 = vmatmul.f32.gmra.mxu0 %v4550
    %v4789 = vpop.f32.mrf.mxu0
    %v4790 = vadd.f32 %v4546, %v4789
    %4791 = vdwg.mxu0
    %4792 = vmatpush.msra.mxu0 0.0
    %4793 = vmatpush.msra.mxu0 0.0
    %4794 = vmatpush.msra.mxu0 0.0
    %4795 = vmatpush.msra.mxu0 0.0
    %4796 = vmatpush.msra.mxu0 0.0
    %4797 = vmatpush.msra.mxu0 0.0
    %4798 = vmatpush.msra.mxu0 0.0
    %4799 = vmatpush.msra.mxu0 %v4537
    %4800 = vmatpush.msra.mxu0 %v4473
    %4801 = vmatpush.msra.mxu0 %v4409
    %4802 = vmatpush.msra.mxu0 %v4055
    %4803 = vmatpush.msra.mxu0 %v2293
    %4804 = vmatpush.msra.mxu0 %v3942
    %4805 = vmatpush.msra.mxu0 %v4296
    %4806 = vmatpush.msra.mxu0 %v4232
    %4807 = vmatpush.msra.mxu0 %v4168
    %4808 = vmatmul.f32.gmra.mxu0 %v4550
    %v4809 = vpop.f32.mrf.mxu0
    %v4810 = vadd.f32 %v4546, %v4809
    %4811 = vdwg.mxu0
    %4812 = vmatpush.msra.mxu0 0.0
    %4813 = vmatpush.msra.mxu0 0.0
    %4814 = vmatpush.msra.mxu0 0.0
    %4815 = vmatpush.msra.mxu0 0.0
    %4816 = vmatpush.msra.mxu0 0.0
    %4817 = vmatpush.msra.mxu0 0.0
    %4818 = vmatpush.msra.mxu0 0.0
    %4819 = vmatpush.msra.mxu0 %v4538
    %4820 = vmatpush.msra.mxu0 %v4474
    %4821 = vmatpush.msra.mxu0 %v4410
    %4822 = vmatpush.msra.mxu0 %v4056
    %4823 = vmatpush.msra.mxu0 %v2373
    %4824 = vmatpush.msra.mxu0 %v3943
    %4825 = vmatpush.msra.mxu0 %v4297
    %4826 = vmatpush.msra.mxu0 %v4233
    %4827 = vmatpush.msra.mxu0 %v4169
    %4828 = vmatmul.f32.gmra.mxu0 %v4550
    %v4829 = vpop.f32.mrf.mxu0
    %v4830 = vadd.f32 %v4546, %v4829
    %4831 = vdwg.mxu0
    %4832 = vmatpush.msra.mxu0 0.0
    %4833 = vmatpush.msra.mxu0 0.0
    %4834 = vmatpush.msra.mxu0 0.0
    %4835 = vmatpush.msra.mxu0 0.0
    %4836 = vmatpush.msra.mxu0 0.0
    %4837 = vmatpush.msra.mxu0 0.0
    %4838 = vmatpush.msra.mxu0 0.0
    %4839 = vmatpush.msra.mxu0 %v4539
    %4840 = vmatpush.msra.mxu0 %v4475
    %4841 = vmatpush.msra.mxu0 %v4411
    %4842 = vmatpush.msra.mxu0 %v4057
    %4843 = vmatpush.msra.mxu0 %v2453
    %4844 = vmatpush.msra.mxu0 %v3944
    %4845 = vmatpush.msra.mxu0 %v4298
    %4846 = vmatpush.msra.mxu0 %v4234
    %4847 = vmatpush.msra.mxu0 %v4170
    %4848 = vmatmul.f32.gmra.mxu0 %v4550
    %v4849 = vpop.f32.mrf.mxu0
    %v4850 = vadd.f32 %v4546, %v4849
    %4851 = vdwg.mxu0
    %4852 = vmatpush.msra.mxu0 0.0
    %4853 = vmatpush.msra.mxu0 0.0
    %4854 = vmatpush.msra.mxu0 0.0
    %4855 = vmatpush.msra.mxu0 0.0
    %4856 = vmatpush.msra.mxu0 0.0
    %4857 = vmatpush.msra.mxu0 0.0
    %4858 = vmatpush.msra.mxu0 0.0
    %4859 = vmatpush.msra.mxu0 %v4540
    %4860 = vmatpush.msra.mxu0 %v4476
    %4861 = vmatpush.msra.mxu0 %v4412
    %4862 = vmatpush.msra.mxu0 %v4058
    %4863 = vmatpush.msra.mxu0 %v2533
    %4864 = vmatpush.msra.mxu0 %v3945
    %4865 = vmatpush.msra.mxu0 %v4299
    %4866 = vmatpush.msra.mxu0 %v4235
    %4867 = vmatpush.msra.mxu0 %v4171
    %4868 = vmatmul.f32.gmra.mxu0 %v4550
    %v4869 = vpop.f32.mrf.mxu0
    %v4870 = vadd.f32 %v4546, %v4869
    %4871 = vdwg.mxu0
    %v4872 = vadd.f32 %v4570, %v4590
    %v4873 = vadd.f32 %v4872, %v4610
    %v4874 = vadd.f32 %v4873, %v4630
    %v4875 = vadd.f32 %v4874, %v4650
    %v4876 = vadd.f32 %v4875, %v4670
    %v4877 = vadd.f32 %v4876, %v4690
    %v4878 = vadd.f32 %v4877, %v4710
    %v4879 = vadd.f32 %v4878, %v4730
    %v4880 = vadd.f32 %v4879, %v4750
    %v4881 = vadd.f32 %v4880, %v4770
    %v4882 = vadd.f32 %v4881, %v4790
    %v4883 = vadd.f32 %v4882, %v4810
    %v4884 = vadd.f32 %v4883, %v4830
    %v4885 = vadd.f32 %v4884, %v4850
    %v4886 = vadd.f32 %v4885, %v4870
    %4887 = vadd.xlane.f32.xlu0 %v4886
    %v4888 = vpop.xlane.xlu0 %4887
    %v4889 = vrcp.pop 2048.0
    %v4890 = vmul.f32 2048.0, %v4889
    %v4891 = vsub.f32 1.0, %v4890
    %v4892 = vmul.f32 %v4889, %v4891
    %v4893 = vadd.f32 %v4889, %v4892
    %vm4894 = vweird.f32 %v4889
    %v4895 = vsel %vm4894, %v4889, %v4893
    %v4896 = vmul.f32 %v4888, %v4895
    %v4897 = vmul.f32 %v4570, %v4570
    %v4898 = vmul.f32 %v4590, %v4590
    %v4899 = vmul.f32 %v4610, %v4610
    %v4900 = vmul.f32 %v4630, %v4630
    %v4901 = vmul.f32 %v4650, %v4650
    %v4902 = vmul.f32 %v4670, %v4670
    %v4903 = vmul.f32 %v4690, %v4690
    %v4904 = vmul.f32 %v4710, %v4710
    %v4905 = vmul.f32 %v4730, %v4730
    %v4906 = vmul.f32 %v4750, %v4750
    %v4907 = vmul.f32 %v4770, %v4770
    %v4908 = vmul.f32 %v4790, %v4790
    %v4909 = vmul.f32 %v4810, %v4810
    %v4910 = vmul.f32 %v4830, %v4830
    %v4911 = vmul.f32 %v4850, %v4850
    %v4912 = vmul.f32 %v4870, %v4870
    %v4913 = vadd.f32 %v4897, %v4898
    %v4914 = vadd.f32 %v4913, %v4899
    %v4915 = vadd.f32 %v4914, %v4900
    %v4916 = vadd.f32 %v4915, %v4901
    %v4917 = vadd.f32 %v4916, %v4902
    %v4918 = vadd.f32 %v4917, %v4903
    %v4919 = vadd.f32 %v4918, %v4904
    %v4920 = vadd.f32 %v4919, %v4905
    %v4921 = vadd.f32 %v4920, %v4906
    %v4922 = vadd.f32 %v4921, %v4907
    %v4923 = vadd.f32 %v4922, %v4908
    %v4924 = vadd.f32 %v4923, %v4909
    %v4925 = vadd.f32 %v4924, %v4910
    %v4926 = vadd.f32 %v4925, %v4911
    %v4927 = vadd.f32 %v4926, %v4912
    %4928 = vadd.xlane.f32.xlu0 %v4927
    %v4929 = vpop.xlane.xlu0 %4928
    %v4930 = vmul.f32 %v4929, %v4895
    %v4931 = vmul.f32 %v4896, %v4896
    %v4932 = vsub.f32 %v4930, %v4931
    %v4933 = vsub.f32 %v4570, %v4896
    %v4934 = vsub.f32 %v4590, %v4896
    %v4935 = vsub.f32 %v4610, %v4896
    %v4936 = vsub.f32 %v4630, %v4896
    %v4937 = vsub.f32 %v4650, %v4896
    %v4938 = vsub.f32 %v4670, %v4896
    %v4939 = vsub.f32 %v4690, %v4896
    %v4940 = vsub.f32 %v4710, %v4896
    %v4941 = vsub.f32 %v4730, %v4896
    %v4942 = vsub.f32 %v4750, %v4896
    %v4943 = vsub.f32 %v4770, %v4896
    %v4944 = vsub.f32 %v4790, %v4896
    %v4945 = vsub.f32 %v4810, %v4896
    %v4946 = vsub.f32 %v4830, %v4896
    %v4947 = vsub.f32 %v4850, %v4896
    %v4948 = vsub.f32 %v4870, %v4896
    %v4949 = vadd.f32 %v4932, 1e-05
    %v4950 = vrsqrt.pop %v4949
    %v4951 = vmul.f32 %v4950, %v4949
    %v4952 = vmul.f32 %v4951, %v4950
    %v4953 = vmul.f32 0.5, %v4952
    %v4954 = vsub.f32 1.5, %v4953
    %v4955 = vmul.f32 %v4950, %v4954
    %vm4956 = vweird.f32 %v4949
    %vm4957 = vweird.f32 %v4950
    %vm4958 = vmor %vm4956, %vm4957
    %v4959 = vsel %vm4958, %v4950, %v4955
    %v4960 = vmul.f32 %v4933, %v4959
    %v4961 = vmul.f32 %v4934, %v4959
    %v4962 = vmul.f32 %v4935, %v4959
    %v4963 = vmul.f32 %v4936, %v4959
    %v4964 = vmul.f32 %v4937, %v4959
    %v4965 = vmul.f32 %v4938, %v4959
    %v4966 = vmul.f32 %v4939, %v4959
    %v4967 = vmul.f32 %v4940, %v4959
    %v4968 = vmul.f32 %v4941, %v4959
    %v4969 = vmul.f32 %v4942, %v4959
    %v4970 = vmul.f32 %v4943, %v4959
    %v4971 = vmul.f32 %v4944, %v4959
    %v4972 = vmul.f32 %v4945, %v4959
    %v4973 = vmul.f32 %v4946, %v4959
    %v4974 = vmul.f32 %v4947, %v4959
    %v4975 = vmul.f32 %v4948, %v4959
    %v4976 = vld [vmem:[#allocation8] sm:$0xff]
    %v4977 = vld [vmem:[#allocation8 + $0x8] sm:$0xff]
    %v4978 = vld [vmem:[#allocation8 + $0x10] sm:$0xff]
    %v4979 = vld [vmem:[#allocation8 + $0x18] sm:$0xff]
    %v4980 = vld [vmem:[#allocation8 + $0x20] sm:$0xff]
    %v4981 = vld [vmem:[#allocation8 + $0x28] sm:$0xff]
    %v4982 = vld [vmem:[#allocation8 + $0x30] sm:$0xff]
    %v4983 = vld [vmem:[#allocation8 + $0x38] sm:$0xff]
    %v4984 = vld [vmem:[#allocation8 + $0x40] sm:$0xff]
    %v4985 = vld [vmem:[#allocation8 + $0x48] sm:$0xff]
    %v4986 = vld [vmem:[#allocation8 + $0x50] sm:$0xff]
    %v4987 = vld [vmem:[#allocation8 + $0x58] sm:$0xff]
    %v4988 = vld [vmem:[#allocation8 + $0x60] sm:$0xff]
    %v4989 = vld [vmem:[#allocation8 + $0x68] sm:$0xff]
    %v4990 = vld [vmem:[#allocation8 + $0x70] sm:$0xff]
    %v4991 = vld [vmem:[#allocation8 + $0x78] sm:$0xff]
    %v4992 = vmul.f32 %v4960, %v4976
    %v4993 = vmul.f32 %v4961, %v4977
    %v4994 = vmul.f32 %v4962, %v4978
    %v4995 = vmul.f32 %v4963, %v4979
    %v4996 = vmul.f32 %v4964, %v4980
    %v4997 = vmul.f32 %v4965, %v4981
    %v4998 = vmul.f32 %v4966, %v4982
    %v4999 = vmul.f32 %v4967, %v4983
    %v5000 = vmul.f32 %v4968, %v4984
    %v5001 = vmul.f32 %v4969, %v4985
    %v5002 = vmul.f32 %v4970, %v4986
    %v5003 = vmul.f32 %v4971, %v4987
    %v5004 = vmul.f32 %v4972, %v4988
    %v5005 = vmul.f32 %v4973, %v4989
    %v5006 = vmul.f32 %v4974, %v4990
    %v5007 = vmul.f32 %v4975, %v4991
    %v5008 = vld [vmem:[#allocation10] sm:$0xff]
    %v5009 = vld [vmem:[#allocation10 + $0x8] sm:$0xff]
    %v5010 = vld [vmem:[#allocation10 + $0x10] sm:$0xff]
    %v5011 = vld [vmem:[#allocation10 + $0x18] sm:$0xff]
    %v5012 = vld [vmem:[#allocation10 + $0x20] sm:$0xff]
    %v5013 = vld [vmem:[#allocation10 + $0x28] sm:$0xff]
    %v5014 = vld [vmem:[#allocation10 + $0x30] sm:$0xff]
    %v5015 = vld [vmem:[#allocation10 + $0x38] sm:$0xff]
    %v5016 = vld [vmem:[#allocation10 + $0x40] sm:$0xff]
    %v5017 = vld [vmem:[#allocation10 + $0x48] sm:$0xff]
    %v5018 = vld [vmem:[#allocation10 + $0x50] sm:$0xff]
    %v5019 = vld [vmem:[#allocation10 + $0x58] sm:$0xff]
    %v5020 = vld [vmem:[#allocation10 + $0x60] sm:$0xff]
    %v5021 = vld [vmem:[#allocation10 + $0x68] sm:$0xff]
    %v5022 = vld [vmem:[#allocation10 + $0x70] sm:$0xff]
    %v5023 = vld [vmem:[#allocation10 + $0x78] sm:$0xff]
    %v5024 = vadd.f32 %v4992, %v5008
    %v5025 = vadd.f32 %v4993, %v5009
    %v5026 = vadd.f32 %v4994, %v5010
    %v5027 = vadd.f32 %v4995, %v5011
    %v5028 = vadd.f32 %v4996, %v5012
    %v5029 = vadd.f32 %v4997, %v5013
    %v5030 = vadd.f32 %v4998, %v5014
    %v5031 = vadd.f32 %v4999, %v5015
    %v5032 = vadd.f32 %v5000, %v5016
    %v5033 = vadd.f32 %v5001, %v5017
    %v5034 = vadd.f32 %v5002, %v5018
    %v5035 = vadd.f32 %v5003, %v5019
    %v5036 = vadd.f32 %v5004, %v5020
    %v5037 = vadd.f32 %v5005, %v5021
    %v5038 = vadd.f32 %v5006, %v5022
    %v5039 = vadd.f32 %v5007, %v5023
    %v5040 = vmax.f32 %v5024, 0.0
    %v5041 = vmax.f32 %v5025, 0.0
    %v5042 = vmax.f32 %v5026, 0.0
    %v5043 = vmax.f32 %v5027, 0.0
    %v5044 = vmax.f32 %v5028, 0.0
    %v5045 = vmax.f32 %v5029, 0.0
    %v5046 = vmax.f32 %v5030, 0.0
    %v5047 = vmax.f32 %v5031, 0.0
    %v5048 = vmax.f32 %v5032, 0.0
    %v5049 = vmax.f32 %v5033, 0.0
    %v5050 = vmax.f32 %v5034, 0.0
    %v5051 = vmax.f32 %v5035, 0.0
    %v5052 = vmax.f32 %v5036, 0.0
    %v5053 = vmax.f32 %v5037, 0.0
    %v5054 = vmax.f32 %v5038, 0.0
    %v5055 = vmax.f32 %v5039, 0.0
    %5056 = vrot.lane.b32.xlu0 %v5040, 1
    %v5057 = vpop.permute.xlu0 %5056
    %5058 = vrot.lane.b32.xlu0 %v5041, 1
    %v5059 = vpop.permute.xlu0 %5058
    %5060 = vrot.lane.b32.xlu0 %v5042, 1
    %v5061 = vpop.permute.xlu0 %5060
    %5062 = vrot.lane.b32.xlu0 %v5043, 1
    %v5063 = vpop.permute.xlu0 %5062
    %5064 = vrot.lane.b32.xlu0 %v5044, 1
    %v5065 = vpop.permute.xlu0 %5064
    %5066 = vrot.lane.b32.xlu0 %v5045, 1
    %v5067 = vpop.permute.xlu0 %5066
    %5068 = vrot.lane.b32.xlu0 %v5046, 1
    %v5069 = vpop.permute.xlu0 %5068
    %5070 = vrot.lane.b32.xlu0 %v5047, 1
    %v5071 = vpop.permute.xlu0 %5070
    %5072 = vrot.lane.b32.xlu0 %v5048, 1
    %v5073 = vpop.permute.xlu0 %5072
    %5074 = vrot.lane.b32.xlu0 %v5049, 1
    %v5075 = vpop.permute.xlu0 %5074
    %5076 = vrot.lane.b32.xlu0 %v5050, 1
    %v5077 = vpop.permute.xlu0 %5076
    %5078 = vrot.lane.b32.xlu0 %v5051, 1
    %v5079 = vpop.permute.xlu0 %5078
    %5080 = vrot.lane.b32.xlu0 %v5052, 1
    %v5081 = vpop.permute.xlu0 %5080
    %5082 = vrot.lane.b32.xlu0 %v5053, 1
    %v5083 = vpop.permute.xlu0 %5082
    %5084 = vrot.lane.b32.xlu0 %v5054, 1
    %v5085 = vpop.permute.xlu0 %5084
    %5086 = vrot.lane.b32.xlu0 %v5055, 1
    %v5087 = vpop.permute.xlu0 %5086
    %v5088 = vsel %vm3857, %v5085, %v5087
    %v5089 = vsel %vm3857, %v5083, %v5085
    %v5090 = vsel %vm3857, %v5081, %v5083
    %v5091 = vsel %vm3857, %v5079, %v5081
    %v5092 = vsel %vm3857, %v5077, %v5079
    %v5093 = vsel %vm3857, %v5075, %v5077
    %v5094 = vsel %vm3857, %v5073, %v5075
    %v5095 = vsel %vm3857, %v5071, %v5073
    %v5096 = vsel %vm3857, %v5069, %v5071
    %v5097 = vsel %vm3857, %v5067, %v5069
    %v5098 = vsel %vm3857, %v5065, %v5067
    %v5099 = vsel %vm3857, %v5063, %v5065
    %v5100 = vsel %vm3857, %v5061, %v5063
    %v5101 = vsel %vm3857, %v5059, %v5061
    %v5102 = vsel %vm3857, %v5057, %v5059
    %v5103 = vsel %vm3857, %v5087, %v5057
    %v5104 = vmul.f32 %v5103, %v3914
    %v5105 = vmul.f32 %v5102, %v3915
    %v5106 = vmul.f32 %v5101, %v3916
    %v5107 = vmul.f32 %v5100, %v3917
    %v5108 = vmul.f32 %v5099, %v3918
    %v5109 = vmul.f32 %v5098, %v3919
    %v5110 = vmul.f32 %v5097, %v3920
    %v5111 = vmul.f32 %v5096, %v3921
    %v5112 = vmul.f32 %v5095, %v3922
    %v5113 = vmul.f32 %v5094, %v3923
    %v5114 = vmul.f32 %v5093, %v3924
    %v5115 = vmul.f32 %v5092, %v3925
    %v5116 = vmul.f32 %v5091, %v3926
    %v5117 = vmul.f32 %v5090, %v3927
    %v5118 = vmul.f32 %v5089, %v3928
    %v5119 = vmul.f32 %v5088, %v3929
    %5120 = vrot.lane.b32.xlu0 %v5040, 127
    %v5121 = vpop.permute.xlu0 %5120
    %5122 = vrot.lane.b32.xlu0 %v5041, 127
    %v5123 = vpop.permute.xlu0 %5122
    %5124 = vrot.lane.b32.xlu0 %v5042, 127
    %v5125 = vpop.permute.xlu0 %5124
    %5126 = vrot.lane.b32.xlu0 %v5043, 127
    %v5127 = vpop.permute.xlu0 %5126
    %5128 = vrot.lane.b32.xlu0 %v5044, 127
    %v5129 = vpop.permute.xlu0 %5128
    %5130 = vrot.lane.b32.xlu0 %v5045, 127
    %v5131 = vpop.permute.xlu0 %5130
    %5132 = vrot.lane.b32.xlu0 %v5046, 127
    %v5133 = vpop.permute.xlu0 %5132
    %5134 = vrot.lane.b32.xlu0 %v5047, 127
    %v5135 = vpop.permute.xlu0 %5134
    %5136 = vrot.lane.b32.xlu0 %v5048, 127
    %v5137 = vpop.permute.xlu0 %5136
    %5138 = vrot.lane.b32.xlu0 %v5049, 127
    %v5139 = vpop.permute.xlu0 %5138
    %5140 = vrot.lane.b32.xlu0 %v5050, 127
    %v5141 = vpop.permute.xlu0 %5140
    %5142 = vrot.lane.b32.xlu0 %v5051, 127
    %v5143 = vpop.permute.xlu0 %5142
    %5144 = vrot.lane.b32.xlu0 %v5052, 127
    %v5145 = vpop.permute.xlu0 %5144
    %5146 = vrot.lane.b32.xlu0 %v5053, 127
    %v5147 = vpop.permute.xlu0 %5146
    %5148 = vrot.lane.b32.xlu0 %v5054, 127
    %v5149 = vpop.permute.xlu0 %5148
    %5150 = vrot.lane.b32.xlu0 %v5055, 127
    %v5151 = vpop.permute.xlu0 %5150
    %v5152 = vsel %vm3978, %v5149, %v5151
    %v5153 = vsel %vm3978, %v5147, %v5149
    %v5154 = vsel %vm3978, %v5145, %v5147
    %v5155 = vsel %vm3978, %v5143, %v5145
    %v5156 = vsel %vm3978, %v5141, %v5143
    %v5157 = vsel %vm3978, %v5139, %v5141
    %v5158 = vsel %vm3978, %v5137, %v5139
    %v5159 = vsel %vm3978, %v5135, %v5137
    %v5160 = vsel %vm3978, %v5133, %v5135
    %v5161 = vsel %vm3978, %v5131, %v5133
    %v5162 = vsel %vm3978, %v5129, %v5131
    %v5163 = vsel %vm3978, %v5127, %v5129
    %v5164 = vsel %vm3978, %v5125, %v5127
    %v5165 = vsel %vm3978, %v5123, %v5125
    %v5166 = vsel %vm3978, %v5121, %v5123
    %v5167 = vsel %vm3978, %v5151, %v5121
    %v5168 = vmul.f32 %v5166, %v4027
    %v5169 = vmul.f32 %v5165, %v4028
    %v5170 = vmul.f32 %v5164, %v4029
    %v5171 = vmul.f32 %v5163, %v4030
    %v5172 = vmul.f32 %v5162, %v4031
    %v5173 = vmul.f32 %v5161, %v4032
    %v5174 = vmul.f32 %v5160, %v4033
    %v5175 = vmul.f32 %v5159, %v4034
    %v5176 = vmul.f32 %v5158, %v4035
    %v5177 = vmul.f32 %v5157, %v4036
    %v5178 = vmul.f32 %v5156, %v4037
    %v5179 = vmul.f32 %v5155, %v4038
    %v5180 = vmul.f32 %v5154, %v4039
    %v5181 = vmul.f32 %v5153, %v4040
    %v5182 = vmul.f32 %v5152, %v4041
    %v5183 = vmul.f32 %v5167, %v4042
    %5184 = vrot.lane.b32.xlu0 %v5104, 32
    %v5185 = vpop.permute.xlu0 %5184
    %5186 = vrot.lane.b32.xlu0 %v5105, 32
    %v5187 = vpop.permute.xlu0 %5186
    %5188 = vrot.lane.b32.xlu0 %v5106, 32
    %v5189 = vpop.permute.xlu0 %5188
    %5190 = vrot.lane.b32.xlu0 %v5107, 32
    %v5191 = vpop.permute.xlu0 %5190
    %5192 = vrot.lane.b32.xlu0 %v5108, 32
    %v5193 = vpop.permute.xlu0 %5192
    %5194 = vrot.lane.b32.xlu0 %v5109, 32
    %v5195 = vpop.permute.xlu0 %5194
    %5196 = vrot.lane.b32.xlu0 %v5110, 32
    %v5197 = vpop.permute.xlu0 %5196
    %5198 = vrot.lane.b32.xlu0 %v5111, 32
    %v5199 = vpop.permute.xlu0 %5198
    %5200 = vrot.lane.b32.xlu0 %v5112, 32
    %v5201 = vpop.permute.xlu0 %5200
    %5202 = vrot.lane.b32.xlu0 %v5113, 32
    %v5203 = vpop.permute.xlu0 %5202
    %5204 = vrot.lane.b32.xlu0 %v5114, 32
    %v5205 = vpop.permute.xlu0 %5204
    %5206 = vrot.lane.b32.xlu0 %v5115, 32
    %v5207 = vpop.permute.xlu0 %5206
    %5208 = vrot.lane.b32.xlu0 %v5116, 32
    %v5209 = vpop.permute.xlu0 %5208
    %5210 = vrot.lane.b32.xlu0 %v5117, 32
    %v5211 = vpop.permute.xlu0 %5210
    %5212 = vrot.lane.b32.xlu0 %v5118, 32
    %v5213 = vpop.permute.xlu0 %5212
    %5214 = vrot.lane.b32.xlu0 %v5119, 32
    %v5215 = vpop.permute.xlu0 %5214
    %v5216 = vsel %vm4091, %v5213, %v5215
    %v5217 = vsel %vm4091, %v5211, %v5213
    %v5218 = vsel %vm4091, %v5209, %v5211
    %v5219 = vsel %vm4091, %v5207, %v5209
    %v5220 = vsel %vm4091, %v5205, %v5207
    %v5221 = vsel %vm4091, %v5203, %v5205
    %v5222 = vsel %vm4091, %v5201, %v5203
    %v5223 = vsel %vm4091, %v5199, %v5201
    %v5224 = vsel %vm4091, %v5197, %v5199
    %v5225 = vsel %vm4091, %v5195, %v5197
    %v5226 = vsel %vm4091, %v5193, %v5195
    %v5227 = vsel %vm4091, %v5191, %v5193
    %v5228 = vsel %vm4091, %v5189, %v5191
    %v5229 = vsel %vm4091, %v5187, %v5189
    %v5230 = vsel %vm4091, %v5185, %v5187
    %v5231 = vsel %vm4091, %v5215, %v5185
    %v5232 = vmul.f32 %v5231, %v4140
    %v5233 = vmul.f32 %v5230, %v4141
    %v5234 = vmul.f32 %v5229, %v4142
    %v5235 = vmul.f32 %v5228, %v4143
    %v5236 = vmul.f32 %v5227, %v4144
    %v5237 = vmul.f32 %v5226, %v4145
    %v5238 = vmul.f32 %v5225, %v4146
    %v5239 = vmul.f32 %v5224, %v4147
    %v5240 = vmul.f32 %v5223, %v4148
    %v5241 = vmul.f32 %v5222, %v4149
    %v5242 = vmul.f32 %v5221, %v4150
    %v5243 = vmul.f32 %v5220, %v4151
    %v5244 = vmul.f32 %v5219, %v4152
    %v5245 = vmul.f32 %v5218, %v4153
    %v5246 = vmul.f32 %v5217, %v4154
    %v5247 = vmul.f32 %v5216, %v4155
    %5248 = vrot.lane.b32.xlu0 %v5040, 32
    %v5249 = vpop.permute.xlu0 %5248
    %5250 = vrot.lane.b32.xlu0 %v5041, 32
    %v5251 = vpop.permute.xlu0 %5250
    %5252 = vrot.lane.b32.xlu0 %v5042, 32
    %v5253 = vpop.permute.xlu0 %5252
    %5254 = vrot.lane.b32.xlu0 %v5043, 32
    %v5255 = vpop.permute.xlu0 %5254
    %5256 = vrot.lane.b32.xlu0 %v5044, 32
    %v5257 = vpop.permute.xlu0 %5256
    %5258 = vrot.lane.b32.xlu0 %v5045, 32
    %v5259 = vpop.permute.xlu0 %5258
    %5260 = vrot.lane.b32.xlu0 %v5046, 32
    %v5261 = vpop.permute.xlu0 %5260
    %5262 = vrot.lane.b32.xlu0 %v5047, 32
    %v5263 = vpop.permute.xlu0 %5262
    %5264 = vrot.lane.b32.xlu0 %v5048, 32
    %v5265 = vpop.permute.xlu0 %5264
    %5266 = vrot.lane.b32.xlu0 %v5049, 32
    %v5267 = vpop.permute.xlu0 %5266
    %5268 = vrot.lane.b32.xlu0 %v5050, 32
    %v5269 = vpop.permute.xlu0 %5268
    %5270 = vrot.lane.b32.xlu0 %v5051, 32
    %v5271 = vpop.permute.xlu0 %5270
    %5272 = vrot.lane.b32.xlu0 %v5052, 32
    %v5273 = vpop.permute.xlu0 %5272
    %5274 = vrot.lane.b32.xlu0 %v5053, 32
    %v5275 = vpop.permute.xlu0 %5274
    %5276 = vrot.lane.b32.xlu0 %v5054, 32
    %v5277 = vpop.permute.xlu0 %5276
    %5278 = vrot.lane.b32.xlu0 %v5055, 32
    %v5279 = vpop.permute.xlu0 %5278
    %v5280 = vsel %vm4091, %v5277, %v5279
    %v5281 = vsel %vm4091, %v5275, %v5277
    %v5282 = vsel %vm4091, %v5273, %v5275
    %v5283 = vsel %vm4091, %v5271, %v5273
    %v5284 = vsel %vm4091, %v5269, %v5271
    %v5285 = vsel %vm4091, %v5267, %v5269
    %v5286 = vsel %vm4091, %v5265, %v5267
    %v5287 = vsel %vm4091, %v5263, %v5265
    %v5288 = vsel %vm4091, %v5261, %v5263
    %v5289 = vsel %vm4091, %v5259, %v5261
    %v5290 = vsel %vm4091, %v5257, %v5259
    %v5291 = vsel %vm4091, %v5255, %v5257
    %v5292 = vsel %vm4091, %v5253, %v5255
    %v5293 = vsel %vm4091, %v5251, %v5253
    %v5294 = vsel %vm4091, %v5249, %v5251
    %v5295 = vsel %vm4091, %v5279, %v5249
    %v5296 = vmul.f32 %v5295, %v4140
    %v5297 = vmul.f32 %v5294, %v4141
    %v5298 = vmul.f32 %v5293, %v4142
    %v5299 = vmul.f32 %v5292, %v4143
    %v5300 = vmul.f32 %v5291, %v4144
    %v5301 = vmul.f32 %v5290, %v4145
    %v5302 = vmul.f32 %v5289, %v4146
    %v5303 = vmul.f32 %v5288, %v4147
    %v5304 = vmul.f32 %v5287, %v4148
    %v5305 = vmul.f32 %v5286, %v4149
    %v5306 = vmul.f32 %v5285, %v4150
    %v5307 = vmul.f32 %v5284, %v4151
    %v5308 = vmul.f32 %v5283, %v4152
    %v5309 = vmul.f32 %v5282, %v4153
    %v5310 = vmul.f32 %v5281, %v4154
    %v5311 = vmul.f32 %v5280, %v4155
    %5312 = vrot.lane.b32.xlu0 %v5168, 32
    %v5313 = vpop.permute.xlu0 %5312
    %5314 = vrot.lane.b32.xlu0 %v5169, 32
    %v5315 = vpop.permute.xlu0 %5314
    %5316 = vrot.lane.b32.xlu0 %v5170, 32
    %v5317 = vpop.permute.xlu0 %5316
    %5318 = vrot.lane.b32.xlu0 %v5171, 32
    %v5319 = vpop.permute.xlu0 %5318
    %5320 = vrot.lane.b32.xlu0 %v5172, 32
    %v5321 = vpop.permute.xlu0 %5320
    %5322 = vrot.lane.b32.xlu0 %v5173, 32
    %v5323 = vpop.permute.xlu0 %5322
    %5324 = vrot.lane.b32.xlu0 %v5174, 32
    %v5325 = vpop.permute.xlu0 %5324
    %5326 = vrot.lane.b32.xlu0 %v5175, 32
    %v5327 = vpop.permute.xlu0 %5326
    %5328 = vrot.lane.b32.xlu0 %v5176, 32
    %v5329 = vpop.permute.xlu0 %5328
    %5330 = vrot.lane.b32.xlu0 %v5177, 32
    %v5331 = vpop.permute.xlu0 %5330
    %5332 = vrot.lane.b32.xlu0 %v5178, 32
    %v5333 = vpop.permute.xlu0 %5332
    %5334 = vrot.lane.b32.xlu0 %v5179, 32
    %v5335 = vpop.permute.xlu0 %5334
    %5336 = vrot.lane.b32.xlu0 %v5180, 32
    %v5337 = vpop.permute.xlu0 %5336
    %5338 = vrot.lane.b32.xlu0 %v5181, 32
    %v5339 = vpop.permute.xlu0 %5338
    %5340 = vrot.lane.b32.xlu0 %v5182, 32
    %v5341 = vpop.permute.xlu0 %5340
    %5342 = vrot.lane.b32.xlu0 %v5183, 32
    %v5343 = vpop.permute.xlu0 %5342
    %v5344 = vsel %vm4091, %v5341, %v5343
    %v5345 = vsel %vm4091, %v5339, %v5341
    %v5346 = vsel %vm4091, %v5337, %v5339
    %v5347 = vsel %vm4091, %v5335, %v5337
    %v5348 = vsel %vm4091, %v5333, %v5335
    %v5349 = vsel %vm4091, %v5331, %v5333
    %v5350 = vsel %vm4091, %v5329, %v5331
    %v5351 = vsel %vm4091, %v5327, %v5329
    %v5352 = vsel %vm4091, %v5325, %v5327
    %v5353 = vsel %vm4091, %v5323, %v5325
    %v5354 = vsel %vm4091, %v5321, %v5323
    %v5355 = vsel %vm4091, %v5319, %v5321
    %v5356 = vsel %vm4091, %v5317, %v5319
    %v5357 = vsel %vm4091, %v5315, %v5317
    %v5358 = vsel %vm4091, %v5313, %v5315
    %v5359 = vsel %vm4091, %v5343, %v5313
    %v5360 = vmul.f32 %v5359, %v4140
    %v5361 = vmul.f32 %v5358, %v4141
    %v5362 = vmul.f32 %v5357, %v4142
    %v5363 = vmul.f32 %v5356, %v4143
    %v5364 = vmul.f32 %v5355, %v4144
    %v5365 = vmul.f32 %v5354, %v4145
    %v5366 = vmul.f32 %v5353, %v4146
    %v5367 = vmul.f32 %v5352, %v4147
    %v5368 = vmul.f32 %v5351, %v4148
    %v5369 = vmul.f32 %v5350, %v4149
    %v5370 = vmul.f32 %v5349, %v4150
    %v5371 = vmul.f32 %v5348, %v4151
    %v5372 = vmul.f32 %v5347, %v4152
    %v5373 = vmul.f32 %v5346, %v4153
    %v5374 = vmul.f32 %v5345, %v4154
    %v5375 = vmul.f32 %v5344, %v4155
    %5376 = vrot.lane.b32.xlu0 %v5104, 96
    %v5377 = vpop.permute.xlu0 %5376
    %5378 = vrot.lane.b32.xlu0 %v5105, 96
    %v5379 = vpop.permute.xlu0 %5378
    %5380 = vrot.lane.b32.xlu0 %v5106, 96
    %v5381 = vpop.permute.xlu0 %5380
    %5382 = vrot.lane.b32.xlu0 %v5107, 96
    %v5383 = vpop.permute.xlu0 %5382
    %5384 = vrot.lane.b32.xlu0 %v5108, 96
    %v5385 = vpop.permute.xlu0 %5384
    %5386 = vrot.lane.b32.xlu0 %v5109, 96
    %v5387 = vpop.permute.xlu0 %5386
    %5388 = vrot.lane.b32.xlu0 %v5110, 96
    %v5389 = vpop.permute.xlu0 %5388
    %5390 = vrot.lane.b32.xlu0 %v5111, 96
    %v5391 = vpop.permute.xlu0 %5390
    %5392 = vrot.lane.b32.xlu0 %v5112, 96
    %v5393 = vpop.permute.xlu0 %5392
    %5394 = vrot.lane.b32.xlu0 %v5113, 96
    %v5395 = vpop.permute.xlu0 %5394
    %5396 = vrot.lane.b32.xlu0 %v5114, 96
    %v5397 = vpop.permute.xlu0 %5396
    %5398 = vrot.lane.b32.xlu0 %v5115, 96
    %v5399 = vpop.permute.xlu0 %5398
    %5400 = vrot.lane.b32.xlu0 %v5116, 96
    %v5401 = vpop.permute.xlu0 %5400
    %5402 = vrot.lane.b32.xlu0 %v5117, 96
    %v5403 = vpop.permute.xlu0 %5402
    %5404 = vrot.lane.b32.xlu0 %v5118, 96
    %v5405 = vpop.permute.xlu0 %5404
    %5406 = vrot.lane.b32.xlu0 %v5119, 96
    %v5407 = vpop.permute.xlu0 %5406
    %v5408 = vsel %vm4332, %v5405, %v5407
    %v5409 = vsel %vm4332, %v5403, %v5405
    %v5410 = vsel %vm4332, %v5401, %v5403
    %v5411 = vsel %vm4332, %v5399, %v5401
    %v5412 = vsel %vm4332, %v5397, %v5399
    %v5413 = vsel %vm4332, %v5395, %v5397
    %v5414 = vsel %vm4332, %v5393, %v5395
    %v5415 = vsel %vm4332, %v5391, %v5393
    %v5416 = vsel %vm4332, %v5389, %v5391
    %v5417 = vsel %vm4332, %v5387, %v5389
    %v5418 = vsel %vm4332, %v5385, %v5387
    %v5419 = vsel %vm4332, %v5383, %v5385
    %v5420 = vsel %vm4332, %v5381, %v5383
    %v5421 = vsel %vm4332, %v5379, %v5381
    %v5422 = vsel %vm4332, %v5377, %v5379
    %v5423 = vsel %vm4332, %v5407, %v5377
    %v5424 = vmul.f32 %v5422, %v4381
    %v5425 = vmul.f32 %v5421, %v4382
    %v5426 = vmul.f32 %v5420, %v4383
    %v5427 = vmul.f32 %v5419, %v4384
    %v5428 = vmul.f32 %v5418, %v4385
    %v5429 = vmul.f32 %v5417, %v4386
    %v5430 = vmul.f32 %v5416, %v4387
    %v5431 = vmul.f32 %v5415, %v4388
    %v5432 = vmul.f32 %v5414, %v4389
    %v5433 = vmul.f32 %v5413, %v4390
    %v5434 = vmul.f32 %v5412, %v4391
    %v5435 = vmul.f32 %v5411, %v4392
    %v5436 = vmul.f32 %v5410, %v4393
    %v5437 = vmul.f32 %v5409, %v4394
    %v5438 = vmul.f32 %v5408, %v4395
    %v5439 = vmul.f32 %v5423, %v4396
    %5440 = vrot.lane.b32.xlu0 %v5040, 96
    %v5441 = vpop.permute.xlu0 %5440
    %5442 = vrot.lane.b32.xlu0 %v5041, 96
    %v5443 = vpop.permute.xlu0 %5442
    %5444 = vrot.lane.b32.xlu0 %v5042, 96
    %v5445 = vpop.permute.xlu0 %5444
    %5446 = vrot.lane.b32.xlu0 %v5043, 96
    %v5447 = vpop.permute.xlu0 %5446
    %5448 = vrot.lane.b32.xlu0 %v5044, 96
    %v5449 = vpop.permute.xlu0 %5448
    %5450 = vrot.lane.b32.xlu0 %v5045, 96
    %v5451 = vpop.permute.xlu0 %5450
    %5452 = vrot.lane.b32.xlu0 %v5046, 96
    %v5453 = vpop.permute.xlu0 %5452
    %5454 = vrot.lane.b32.xlu0 %v5047, 96
    %v5455 = vpop.permute.xlu0 %5454
    %5456 = vrot.lane.b32.xlu0 %v5048, 96
    %v5457 = vpop.permute.xlu0 %5456
    %5458 = vrot.lane.b32.xlu0 %v5049, 96
    %v5459 = vpop.permute.xlu0 %5458
    %5460 = vrot.lane.b32.xlu0 %v5050, 96
    %v5461 = vpop.permute.xlu0 %5460
    %5462 = vrot.lane.b32.xlu0 %v5051, 96
    %v5463 = vpop.permute.xlu0 %5462
    %5464 = vrot.lane.b32.xlu0 %v5052, 96
    %v5465 = vpop.permute.xlu0 %5464
    %5466 = vrot.lane.b32.xlu0 %v5053, 96
    %v5467 = vpop.permute.xlu0 %5466
    %5468 = vrot.lane.b32.xlu0 %v5054, 96
    %v5469 = vpop.permute.xlu0 %5468
    %5470 = vrot.lane.b32.xlu0 %v5055, 96
    %v5471 = vpop.permute.xlu0 %5470
    %v5472 = vsel %vm4332, %v5469, %v5471
    %v5473 = vsel %vm4332, %v5467, %v5469
    %v5474 = vsel %vm4332, %v5465, %v5467
    %v5475 = vsel %vm4332, %v5463, %v5465
    %v5476 = vsel %vm4332, %v5461, %v5463
    %v5477 = vsel %vm4332, %v5459, %v5461
    %v5478 = vsel %vm4332, %v5457, %v5459
    %v5479 = vsel %vm4332, %v5455, %v5457
    %v5480 = vsel %vm4332, %v5453, %v5455
    %v5481 = vsel %vm4332, %v5451, %v5453
    %v5482 = vsel %vm4332, %v5449, %v5451
    %v5483 = vsel %vm4332, %v5447, %v5449
    %v5484 = vsel %vm4332, %v5445, %v5447
    %v5485 = vsel %vm4332, %v5443, %v5445
    %v5486 = vsel %vm4332, %v5441, %v5443
    %v5487 = vsel %vm4332, %v5471, %v5441
    %v5488 = vmul.f32 %v5486, %v4381
    %v5489 = vmul.f32 %v5485, %v4382
    %v5490 = vmul.f32 %v5484, %v4383
    %v5491 = vmul.f32 %v5483, %v4384
    %v5492 = vmul.f32 %v5482, %v4385
    %v5493 = vmul.f32 %v5481, %v4386
    %v5494 = vmul.f32 %v5480, %v4387
    %v5495 = vmul.f32 %v5479, %v4388
    %v5496 = vmul.f32 %v5478, %v4389
    %v5497 = vmul.f32 %v5477, %v4390
    %v5498 = vmul.f32 %v5476, %v4391
    %v5499 = vmul.f32 %v5475, %v4392
    %v5500 = vmul.f32 %v5474, %v4393
    %v5501 = vmul.f32 %v5473, %v4394
    %v5502 = vmul.f32 %v5472, %v4395
    %v5503 = vmul.f32 %v5487, %v4396
    %5504 = vrot.lane.b32.xlu0 %v5168, 96
    %v5505 = vpop.permute.xlu0 %5504
    %5506 = vrot.lane.b32.xlu0 %v5169, 96
    %v5507 = vpop.permute.xlu0 %5506
    %5508 = vrot.lane.b32.xlu0 %v5170, 96
    %v5509 = vpop.permute.xlu0 %5508
    %5510 = vrot.lane.b32.xlu0 %v5171, 96
    %v5511 = vpop.permute.xlu0 %5510
    %5512 = vrot.lane.b32.xlu0 %v5172, 96
    %v5513 = vpop.permute.xlu0 %5512
    %5514 = vrot.lane.b32.xlu0 %v5173, 96
    %v5515 = vpop.permute.xlu0 %5514
    %5516 = vrot.lane.b32.xlu0 %v5174, 96
    %v5517 = vpop.permute.xlu0 %5516
    %5518 = vrot.lane.b32.xlu0 %v5175, 96
    %v5519 = vpop.permute.xlu0 %5518
    %5520 = vrot.lane.b32.xlu0 %v5176, 96
    %v5521 = vpop.permute.xlu0 %5520
    %5522 = vrot.lane.b32.xlu0 %v5177, 96
    %v5523 = vpop.permute.xlu0 %5522
    %5524 = vrot.lane.b32.xlu0 %v5178, 96
    %v5525 = vpop.permute.xlu0 %5524
    %5526 = vrot.lane.b32.xlu0 %v5179, 96
    %v5527 = vpop.permute.xlu0 %5526
    %5528 = vrot.lane.b32.xlu0 %v5180, 96
    %v5529 = vpop.permute.xlu0 %5528
    %5530 = vrot.lane.b32.xlu0 %v5181, 96
    %v5531 = vpop.permute.xlu0 %5530
    %5532 = vrot.lane.b32.xlu0 %v5182, 96
    %v5533 = vpop.permute.xlu0 %5532
    %5534 = vrot.lane.b32.xlu0 %v5183, 96
    %v5535 = vpop.permute.xlu0 %5534
    %v5536 = vsel %vm4332, %v5533, %v5535
    %v5537 = vsel %vm4332, %v5531, %v5533
    %v5538 = vsel %vm4332, %v5529, %v5531
    %v5539 = vsel %vm4332, %v5527, %v5529
    %v5540 = vsel %vm4332, %v5525, %v5527
    %v5541 = vsel %vm4332, %v5523, %v5525
    %v5542 = vsel %vm4332, %v5521, %v5523
    %v5543 = vsel %vm4332, %v5519, %v5521
    %v5544 = vsel %vm4332, %v5517, %v5519
    %v5545 = vsel %vm4332, %v5515, %v5517
    %v5546 = vsel %vm4332, %v5513, %v5515
    %v5547 = vsel %vm4332, %v5511, %v5513
    %v5548 = vsel %vm4332, %v5509, %v5511
    %v5549 = vsel %vm4332, %v5507, %v5509
    %v5550 = vsel %vm4332, %v5505, %v5507
    %v5551 = vsel %vm4332, %v5535, %v5505
    %v5552 = vmul.f32 %v5550, %v4381
    %v5553 = vmul.f32 %v5549, %v4382
    %v5554 = vmul.f32 %v5548, %v4383
    %v5555 = vmul.f32 %v5547, %v4384
    %v5556 = vmul.f32 %v5546, %v4385
    %v5557 = vmul.f32 %v5545, %v4386
    %v5558 = vmul.f32 %v5544, %v4387
    %v5559 = vmul.f32 %v5543, %v4388
    %v5560 = vmul.f32 %v5542, %v4389
    %v5561 = vmul.f32 %v5541, %v4390
    %v5562 = vmul.f32 %v5540, %v4391
    %v5563 = vmul.f32 %v5539, %v4392
    %v5564 = vmul.f32 %v5538, %v4393
    %v5565 = vmul.f32 %v5537, %v4394
    %v5566 = vmul.f32 %v5536, %v4395
    %v5567 = vmul.f32 %v5551, %v4396
    %v5568 = vld [vmem:[#allocation14] sm:$0xff]
    %v5569 = vld [vmem:[%s9] sm:$0xff]
    %5571 = vset.pattern.permute.xlu0 0
    %5572 = vperm.xlu0 %5571, %v5569
    %v5573 = vpop.permute.xlu0 %5572
    %vm5575 = vcmask 654336
    %v5577 = vsel %vm5575, %v5568, 0
    %5579 = vmatpush.msra.mxu0 0.0
    %5580 = vmatpush.msra.mxu0 0.0
    %5581 = vmatpush.msra.mxu0 0.0
    %5582 = vmatpush.msra.mxu0 0.0
    %5583 = vmatpush.msra.mxu0 0.0
    %5584 = vmatpush.msra.mxu0 0.0
    %5585 = vmatpush.msra.mxu0 %v2613
    %5586 = vmatpush.msra.mxu0 %v5552
    %5587 = vmatpush.msra.mxu0 %v5488
    %5588 = vmatpush.msra.mxu0 %v5424
    %5589 = vmatpush.msra.mxu0 %v5168
    %5590 = vmatpush.msra.mxu0 %v5040
    %5591 = vmatpush.msra.mxu0 %v5104
    %5592 = vmatpush.msra.mxu0 %v5360
    %5593 = vmatpush.msra.mxu0 %v5296
    %5594 = vmatpush.msra.mxu0 %v5232
    %5595 = vmatmul.f32.gmra.mxu0 %v5577
    %v5596 = vpop.f32.mrf.mxu0
    %v5597 = vadd.f32 %v5573, %v5596
    %5598 = vdwg.mxu0
    %5599 = vmatpush.msra.mxu0 0.0
    %5600 = vmatpush.msra.mxu0 0.0
    %5601 = vmatpush.msra.mxu0 0.0
    %5602 = vmatpush.msra.mxu0 0.0
    %5603 = vmatpush.msra.mxu0 0.0
    %5604 = vmatpush.msra.mxu0 0.0
    %5605 = vmatpush.msra.mxu0 %v2693
    %5606 = vmatpush.msra.mxu0 %v5553
    %5607 = vmatpush.msra.mxu0 %v5489
    %5608 = vmatpush.msra.mxu0 %v5425
    %5609 = vmatpush.msra.mxu0 %v5169
    %5610 = vmatpush.msra.mxu0 %v5041
    %5611 = vmatpush.msra.mxu0 %v5105
    %5612 = vmatpush.msra.mxu0 %v5361
    %5613 = vmatpush.msra.mxu0 %v5297
    %5614 = vmatpush.msra.mxu0 %v5233
    %5615 = vmatmul.f32.gmra.mxu0 %v5577
    %v5616 = vpop.f32.mrf.mxu0
    %v5617 = vadd.f32 %v5573, %v5616
    %5618 = vdwg.mxu0
    %5619 = vmatpush.msra.mxu0 0.0
    %5620 = vmatpush.msra.mxu0 0.0
    %5621 = vmatpush.msra.mxu0 0.0
    %5622 = vmatpush.msra.mxu0 0.0
    %5623 = vmatpush.msra.mxu0 0.0
    %5624 = vmatpush.msra.mxu0 0.0
    %5625 = vmatpush.msra.mxu0 %v2773
    %5626 = vmatpush.msra.mxu0 %v5554
    %5627 = vmatpush.msra.mxu0 %v5490
    %5628 = vmatpush.msra.mxu0 %v5426
    %5629 = vmatpush.msra.mxu0 %v5170
    %5630 = vmatpush.msra.mxu0 %v5042
    %5631 = vmatpush.msra.mxu0 %v5106
    %5632 = vmatpush.msra.mxu0 %v5362
    %5633 = vmatpush.msra.mxu0 %v5298
    %5634 = vmatpush.msra.mxu0 %v5234
    %5635 = vmatmul.f32.gmra.mxu0 %v5577
    %v5636 = vpop.f32.mrf.mxu0
    %v5637 = vadd.f32 %v5573, %v5636
    %5638 = vdwg.mxu0
    %5639 = vmatpush.msra.mxu0 0.0
    %5640 = vmatpush.msra.mxu0 0.0
    %5641 = vmatpush.msra.mxu0 0.0
    %5642 = vmatpush.msra.mxu0 0.0
    %5643 = vmatpush.msra.mxu0 0.0
    %5644 = vmatpush.msra.mxu0 0.0
    %5645 = vmatpush.msra.mxu0 %v2853
    %5646 = vmatpush.msra.mxu0 %v5555
    %5647 = vmatpush.msra.mxu0 %v5491
    %5648 = vmatpush.msra.mxu0 %v5427
    %5649 = vmatpush.msra.mxu0 %v5171
    %5650 = vmatpush.msra.mxu0 %v5043
    %5651 = vmatpush.msra.mxu0 %v5107
    %5652 = vmatpush.msra.mxu0 %v5363
    %5653 = vmatpush.msra.mxu0 %v5299
    %5654 = vmatpush.msra.mxu0 %v5235
    %5655 = vmatmul.f32.gmra.mxu0 %v5577
    %v5656 = vpop.f32.mrf.mxu0
    %v5657 = vadd.f32 %v5573, %v5656
    %5658 = vdwg.mxu0
    %5659 = vmatpush.msra.mxu0 0.0
    %5660 = vmatpush.msra.mxu0 0.0
    %5661 = vmatpush.msra.mxu0 0.0
    %5662 = vmatpush.msra.mxu0 0.0
    %5663 = vmatpush.msra.mxu0 0.0
    %5664 = vmatpush.msra.mxu0 0.0
    %5665 = vmatpush.msra.mxu0 %v2933
    %5666 = vmatpush.msra.mxu0 %v5556
    %5667 = vmatpush.msra.mxu0 %v5492
    %5668 = vmatpush.msra.mxu0 %v5428
    %5669 = vmatpush.msra.mxu0 %v5172
    %5670 = vmatpush.msra.mxu0 %v5044
    %5671 = vmatpush.msra.mxu0 %v5108
    %5672 = vmatpush.msra.mxu0 %v5364
    %5673 = vmatpush.msra.mxu0 %v5300
    %5674 = vmatpush.msra.mxu0 %v5236
    %5675 = vmatmul.f32.gmra.mxu0 %v5577
    %v5676 = vpop.f32.mrf.mxu0
    %v5677 = vadd.f32 %v5573, %v5676
    %5678 = vdwg.mxu0
    %5679 = vmatpush.msra.mxu0 0.0
    %5680 = vmatpush.msra.mxu0 0.0
    %5681 = vmatpush.msra.mxu0 0.0
    %5682 = vmatpush.msra.mxu0 0.0
    %5683 = vmatpush.msra.mxu0 0.0
    %5684 = vmatpush.msra.mxu0 0.0
    %5685 = vmatpush.msra.mxu0 %v3013
    %5686 = vmatpush.msra.mxu0 %v5557
    %5687 = vmatpush.msra.mxu0 %v5493
    %5688 = vmatpush.msra.mxu0 %v5429
    %5689 = vmatpush.msra.mxu0 %v5173
    %5690 = vmatpush.msra.mxu0 %v5045
    %5691 = vmatpush.msra.mxu0 %v5109
    %5692 = vmatpush.msra.mxu0 %v5365
    %5693 = vmatpush.msra.mxu0 %v5301
    %5694 = vmatpush.msra.mxu0 %v5237
    %5695 = vmatmul.f32.gmra.mxu0 %v5577
    %v5696 = vpop.f32.mrf.mxu0
    %v5697 = vadd.f32 %v5573, %v5696
    %5698 = vdwg.mxu0
    %5699 = vmatpush.msra.mxu0 0.0
    %5700 = vmatpush.msra.mxu0 0.0
    %5701 = vmatpush.msra.mxu0 0.0
    %5702 = vmatpush.msra.mxu0 0.0
    %5703 = vmatpush.msra.mxu0 0.0
    %5704 = vmatpush.msra.mxu0 0.0
    %5705 = vmatpush.msra.mxu0 %v3093
    %5706 = vmatpush.msra.mxu0 %v5558
    %5707 = vmatpush.msra.mxu0 %v5494
    %5708 = vmatpush.msra.mxu0 %v5430
    %5709 = vmatpush.msra.mxu0 %v5174
    %5710 = vmatpush.msra.mxu0 %v5046
    %5711 = vmatpush.msra.mxu0 %v5110
    %5712 = vmatpush.msra.mxu0 %v5366
    %5713 = vmatpush.msra.mxu0 %v5302
    %5714 = vmatpush.msra.mxu0 %v5238
    %5715 = vmatmul.f32.gmra.mxu0 %v5577
    %v5716 = vpop.f32.mrf.mxu0
    %v5717 = vadd.f32 %v5573, %v5716
    %5718 = vdwg.mxu0
    %5719 = vmatpush.msra.mxu0 0.0
    %5720 = vmatpush.msra.mxu0 0.0
    %5721 = vmatpush.msra.mxu0 0.0
    %5722 = vmatpush.msra.mxu0 0.0
    %5723 = vmatpush.msra.mxu0 0.0
    %5724 = vmatpush.msra.mxu0 0.0
    %5725 = vmatpush.msra.mxu0 %v3173
    %5726 = vmatpush.msra.mxu0 %v5559
    %5727 = vmatpush.msra.mxu0 %v5495
    %5728 = vmatpush.msra.mxu0 %v5431
    %5729 = vmatpush.msra.mxu0 %v5175
    %5730 = vmatpush.msra.mxu0 %v5047
    %5731 = vmatpush.msra.mxu0 %v5111
    %5732 = vmatpush.msra.mxu0 %v5367
    %5733 = vmatpush.msra.mxu0 %v5303
    %5734 = vmatpush.msra.mxu0 %v5239
    %5735 = vmatmul.f32.gmra.mxu0 %v5577
    %v5736 = vpop.f32.mrf.mxu0
    %v5737 = vadd.f32 %v5573, %v5736
    %5738 = vdwg.mxu0
    %5739 = vmatpush.msra.mxu0 0.0
    %5740 = vmatpush.msra.mxu0 0.0
    %5741 = vmatpush.msra.mxu0 0.0
    %5742 = vmatpush.msra.mxu0 0.0
    %5743 = vmatpush.msra.mxu0 0.0
    %5744 = vmatpush.msra.mxu0 0.0
    %5745 = vmatpush.msra.mxu0 %v3253
    %5746 = vmatpush.msra.mxu0 %v5560
    %5747 = vmatpush.msra.mxu0 %v5496
    %5748 = vmatpush.msra.mxu0 %v5432
    %5749 = vmatpush.msra.mxu0 %v5176
    %5750 = vmatpush.msra.mxu0 %v5048
    %5751 = vmatpush.msra.mxu0 %v5112
    %5752 = vmatpush.msra.mxu0 %v5368
    %5753 = vmatpush.msra.mxu0 %v5304
    %5754 = vmatpush.msra.mxu0 %v5240
    %5755 = vmatmul.f32.gmra.mxu0 %v5577
    %v5756 = vpop.f32.mrf.mxu0
    %v5757 = vadd.f32 %v5573, %v5756
    %5758 = vdwg.mxu0
    %5759 = vmatpush.msra.mxu0 0.0
    %5760 = vmatpush.msra.mxu0 0.0
    %5761 = vmatpush.msra.mxu0 0.0
    %5762 = vmatpush.msra.mxu0 0.0
    %5763 = vmatpush.msra.mxu0 0.0
    %5764 = vmatpush.msra.mxu0 0.0
    %5765 = vmatpush.msra.mxu0 %v3333
    %5766 = vmatpush.msra.mxu0 %v5561
    %5767 = vmatpush.msra.mxu0 %v5497
    %5768 = vmatpush.msra.mxu0 %v5433
    %5769 = vmatpush.msra.mxu0 %v5177
    %5770 = vmatpush.msra.mxu0 %v5049
    %5771 = vmatpush.msra.mxu0 %v5113
    %5772 = vmatpush.msra.mxu0 %v5369
    %5773 = vmatpush.msra.mxu0 %v5305
    %5774 = vmatpush.msra.mxu0 %v5241
    %5775 = vmatmul.f32.gmra.mxu0 %v5577
    %v5776 = vpop.f32.mrf.mxu0
    %v5777 = vadd.f32 %v5573, %v5776
    %5778 = vdwg.mxu0
    %5779 = vmatpush.msra.mxu0 0.0
    %5780 = vmatpush.msra.mxu0 0.0
    %5781 = vmatpush.msra.mxu0 0.0
    %5782 = vmatpush.msra.mxu0 0.0
    %5783 = vmatpush.msra.mxu0 0.0
    %5784 = vmatpush.msra.mxu0 0.0
    %5785 = vmatpush.msra.mxu0 %v3413
    %5786 = vmatpush.msra.mxu0 %v5562
    %5787 = vmatpush.msra.mxu0 %v5498
    %5788 = vmatpush.msra.mxu0 %v5434
    %5789 = vmatpush.msra.mxu0 %v5178
    %5790 = vmatpush.msra.mxu0 %v5050
    %5791 = vmatpush.msra.mxu0 %v5114
    %5792 = vmatpush.msra.mxu0 %v5370
    %5793 = vmatpush.msra.mxu0 %v5306
    %5794 = vmatpush.msra.mxu0 %v5242
    %5795 = vmatmul.f32.gmra.mxu0 %v5577
    %v5796 = vpop.f32.mrf.mxu0
    %v5797 = vadd.f32 %v5573, %v5796
    %5798 = vdwg.mxu0
    %5799 = vmatpush.msra.mxu0 0.0
    %5800 = vmatpush.msra.mxu0 0.0
    %5801 = vmatpush.msra.mxu0 0.0
    %5802 = vmatpush.msra.mxu0 0.0
    %5803 = vmatpush.msra.mxu0 0.0
    %5804 = vmatpush.msra.mxu0 0.0
    %5805 = vmatpush.msra.mxu0 %v3493
    %5806 = vmatpush.msra.mxu0 %v5563
    %5807 = vmatpush.msra.mxu0 %v5499
    %5808 = vmatpush.msra.mxu0 %v5435
    %5809 = vmatpush.msra.mxu0 %v5179
    %5810 = vmatpush.msra.mxu0 %v5051
    %5811 = vmatpush.msra.mxu0 %v5115
    %5812 = vmatpush.msra.mxu0 %v5371
    %5813 = vmatpush.msra.mxu0 %v5307
    %5814 = vmatpush.msra.mxu0 %v5243
    %5815 = vmatmul.f32.gmra.mxu0 %v5577
    %v5816 = vpop.f32.mrf.mxu0
    %v5817 = vadd.f32 %v5573, %v5816
    %5818 = vdwg.mxu0
    %5819 = vmatpush.msra.mxu0 0.0
    %5820 = vmatpush.msra.mxu0 0.0
    %5821 = vmatpush.msra.mxu0 0.0
    %5822 = vmatpush.msra.mxu0 0.0
    %5823 = vmatpush.msra.mxu0 0.0
    %5824 = vmatpush.msra.mxu0 0.0
    %5825 = vmatpush.msra.mxu0 %v3573
    %5826 = vmatpush.msra.mxu0 %v5564
    %5827 = vmatpush.msra.mxu0 %v5500
    %5828 = vmatpush.msra.mxu0 %v5436
    %5829 = vmatpush.msra.mxu0 %v5180
    %5830 = vmatpush.msra.mxu0 %v5052
    %5831 = vmatpush.msra.mxu0 %v5116
    %5832 = vmatpush.msra.mxu0 %v5372
    %5833 = vmatpush.msra.mxu0 %v5308
    %5834 = vmatpush.msra.mxu0 %v5244
    %5835 = vmatmul.f32.gmra.mxu0 %v5577
    %v5836 = vpop.f32.mrf.mxu0
    %v5837 = vadd.f32 %v5573, %v5836
    %5838 = vdwg.mxu0
    %5839 = vmatpush.msra.mxu0 0.0
    %5840 = vmatpush.msra.mxu0 0.0
    %5841 = vmatpush.msra.mxu0 0.0
    %5842 = vmatpush.msra.mxu0 0.0
    %5843 = vmatpush.msra.mxu0 0.0
    %5844 = vmatpush.msra.mxu0 0.0
    %5845 = vmatpush.msra.mxu0 %v3653
    %5846 = vmatpush.msra.mxu0 %v5565
    %5847 = vmatpush.msra.mxu0 %v5501
    %5848 = vmatpush.msra.mxu0 %v5437
    %5849 = vmatpush.msra.mxu0 %v5181
    %5850 = vmatpush.msra.mxu0 %v5053
    %5851 = vmatpush.msra.mxu0 %v5117
    %5852 = vmatpush.msra.mxu0 %v5373
    %5853 = vmatpush.msra.mxu0 %v5309
    %5854 = vmatpush.msra.mxu0 %v5245
    %5855 = vmatmul.f32.gmra.mxu0 %v5577
    %v5856 = vpop.f32.mrf.mxu0
    %v5857 = vadd.f32 %v5573, %v5856
    %5858 = vdwg.mxu0
    %5859 = vmatpush.msra.mxu0 0.0
    %5860 = vmatpush.msra.mxu0 0.0
    %5861 = vmatpush.msra.mxu0 0.0
    %5862 = vmatpush.msra.mxu0 0.0
    %5863 = vmatpush.msra.mxu0 0.0
    %5864 = vmatpush.msra.mxu0 0.0
    %5865 = vmatpush.msra.mxu0 %v3733
    %5866 = vmatpush.msra.mxu0 %v5566
    %5867 = vmatpush.msra.mxu0 %v5502
    %5868 = vmatpush.msra.mxu0 %v5438
    %5869 = vmatpush.msra.mxu0 %v5182
    %5870 = vmatpush.msra.mxu0 %v5054
    %5871 = vmatpush.msra.mxu0 %v5118
    %5872 = vmatpush.msra.mxu0 %v5374
    %5873 = vmatpush.msra.mxu0 %v5310
    %5874 = vmatpush.msra.mxu0 %v5246
    %5875 = vmatmul.f32.gmra.mxu0 %v5577
    %v5876 = vpop.f32.mrf.mxu0
    %v5877 = vadd.f32 %v5573, %v5876
    %5878 = vdwg.mxu0
    %5879 = vmatpush.msra.mxu0 0.0
    %5880 = vmatpush.msra.mxu0 0.0
    %5881 = vmatpush.msra.mxu0 0.0
    %5882 = vmatpush.msra.mxu0 0.0
    %5883 = vmatpush.msra.mxu0 0.0
    %5884 = vmatpush.msra.mxu0 0.0
    %5885 = vmatpush.msra.mxu0 %v3813
    %5886 = vmatpush.msra.mxu0 %v5567
    %5887 = vmatpush.msra.mxu0 %v5503
    %5888 = vmatpush.msra.mxu0 %v5439
    %5889 = vmatpush.msra.mxu0 %v5183
    %5890 = vmatpush.msra.mxu0 %v5055
    %5891 = vmatpush.msra.mxu0 %v5119
    %5892 = vmatpush.msra.mxu0 %v5375
    %5893 = vmatpush.msra.mxu0 %v5311
    %5894 = vmatpush.msra.mxu0 %v5247
    %5895 = vmatmul.f32.gmra.mxu0 %v5577
    %v5896 = vpop.f32.mrf.mxu0
    %v5897 = vadd.f32 %v5573, %v5896
    %5898 = vdwg.mxu0
    %5899 = vst [vmem:[#allocation17] sm:$0xff] %v5597
    %5900 = vst [vmem:[#allocation17 + $0x8] sm:$0xff] %v5617
    %5901 = vst [vmem:[#allocation17 + $0x10] sm:$0xff] %v5637
    %5902 = vst [vmem:[#allocation17 + $0x18] sm:$0xff] %v5657
    %5903 = vst [vmem:[#allocation17 + $0x20] sm:$0xff] %v5677
    %5904 = vst [vmem:[#allocation17 + $0x28] sm:$0xff] %v5697
    %5905 = vst [vmem:[#allocation17 + $0x30] sm:$0xff] %v5717
    %5906 = vst [vmem:[#allocation17 + $0x38] sm:$0xff] %v5737
    %5907 = vst [vmem:[#allocation17 + $0x40] sm:$0xff] %v5757
    %5908 = vst [vmem:[#allocation17 + $0x48] sm:$0xff] %v5777
    %5909 = vst [vmem:[#allocation17 + $0x50] sm:$0xff] %v5797
    %5910 = vst [vmem:[#allocation17 + $0x58] sm:$0xff] %v5817
    %5911 = vst [vmem:[#allocation17 + $0x60] sm:$0xff] %v5837
    %5912 = vst [vmem:[#allocation17 + $0x68] sm:$0xff] %v5857
    %5913 = vst [vmem:[#allocation17 + $0x70] sm:$0xff] %v5877
    %5914 = vst [vmem:[#allocation17 + $0x78] sm:$0xff] %v5897
    // Predicated region
    $region82: #{tpu_custom_call.1} parent=1 // pred_check
      _
    $region83: #{tpu_custom_call.1} parent=1 // pred_check_branch
      %5916 = sbr.rel (0) target = $region85
    $region84: #{tpu_custom_call.1} parent=1 // pred_region
      %5918 = vsyncadd [#allocation4], 0
      %s5920 = sshll.u32 [#allocation17], 4
      %s5921 = int_to_ptr.vmem [resolvable:$true] %s5920
      %s5922 = sshll.u32 %s11, 4
      %s5923 = int_to_ptr.hbm [resolvable:$true] %s5922
      %5925 = dma.vmem_to_hbm [thread:$0]  %s5921, 2048, %s5923, [#allocation4]
    $region85: #{tpu_custom_call.1} parent=1 // pred_fallthru
      _
    // Predicated region
    $region86: #{tpu_custom_call.1} parent=1 // pred_check
      _
    $region87: #{tpu_custom_call.1} parent=1 // pred_check_branch
      %5927 = sbr.rel (0) target = $region89
    $region88: #{tpu_custom_call.1} parent=1 // pred_region
      %5929 = dma.done [#allocation4], 2048
    $region89: #{tpu_custom_call.1} parent=1 // pred_fallthru
      _
    %5930 = vsyncpa [#allocation3], 1
    %5931 = vsyncpa [#allocation6], 1
    %5932 = vsyncpa [#allocation9], 1
    %5933 = vsyncpa [#allocation12], 1
    %5934 = vsyncpa [#allocation15], 1
    %5935 = vsyncpa [#allocation4], 1

</llo_original>
